<compile_context>
chip_gen: v7x
topology: tpu7x:2x2x1
jax: 0.10.0
libtpu: 0.0.40
codegen_flags: <defaults>
</compile_context>

<pallas_src>
import numpy as np
import jax
import jax.numpy as jnp
from jax.experimental import pallas as pl
from jax.experimental.pallas import tpu as pltpu


# ----------------------------------------------------------------------------
# Bicubic upsample (F.interpolate mode='bicubic', align_corners=True), applied
# as two fixed separable interpolation matrices in plain JAX glue (setup path).
# ----------------------------------------------------------------------------
def _cubic1(t, a=-0.75):          # |x| <= 1
    return ((a + 2.0) * t - (a + 3.0)) * t * t + 1.0


def _cubic2(t, a=-0.75):          # 1 < |x| < 2
    return a * (((t - 5.0) * t + 8.0) * t - 4.0)


def bicubic_matrix(in_size, out_size):
    A = np.zeros((out_size, in_size), dtype=np.float32)
    for i in range(out_size):
        src = i * (in_size - 1) / (out_size - 1) if out_size > 1 else 0.0
        i0 = int(np.floor(src))
        t = src - i0
        ws = [_cubic2(t + 1.0), _cubic1(t), _cubic1(1.0 - t), _cubic2(2.0 - t)]
        for dk, w in zip(range(-1, 3), ws):
            idx = min(max(i0 + dk, 0), in_size - 1)   # clamped (matches PyTorch bounded access)
            A[i, idx] += w
    return jnp.asarray(A)


def bicubic_upsample(x, H, W):
    # x: (N, C, h, w) -> (N, C, H, W)
    _, _, h, w = x.shape
    Ah = bicubic_matrix(h, H)
    Aw = bicubic_matrix(w, W)
    return jnp.einsum("ip,ncpq,jq->ncij", Ah, x, Aw)


# ----------------------------------------------------------------------------
# Layer-1 im2col in NHWC (glue, runs once on the kernel input).
# Columns are tap-major: col index = (ki*k + kj) * Cin + ci.
# ----------------------------------------------------------------------------
def im2col_nhwc(x_nhwc, k, stride, pad):
    N, H, W, C = x_nhwc.shape
    xp = jnp.pad(x_nhwc, ((0, 0), (pad, pad), (pad, pad), (0, 0)))
    Ho = (H + 2 * pad - k) // stride + 1
    Wo = (W + 2 * pad - k) // stride + 1
    taps = []
    for i in range(k):
        for j in range(k):
            taps.append(xp[:, i:i + stride * Ho:stride, j:j + stride * Wo:stride, :])
    patches = jnp.stack(taps, axis=3)                 # (N, Ho, Wo, k*k, C)
    return patches.reshape(N * Ho * Wo, k * k * C), Ho, Wo


# ----------------------------------------------------------------------------
# Constant 0/1 row-selection matrices: S[t] @ A_prev gathers (with zero rows
# for padding) the rows of the previous layer's (M_prev, Cin) activation that
# feed tap t of every output position -> im2col entirely via matmul in-kernel.
# ----------------------------------------------------------------------------
def build_selection(N, H, W, k, stride, pad):
    Ho = (H + 2 * pad - k) // stride + 1
    Wo = (W + 2 * pad - k) // stride + 1
    Min, Mout = N * H * W, N * Ho * Wo
    S = np.zeros((k * k, Mout, Min), np.float32)
    for n in range(N):
        for ho in range(Ho):
            for wo in range(Wo):
                m = (n * Ho + ho) * Wo + wo
                for ki in range(k):
                    for kj in range(k):
                        h = stride * ho + ki - pad
                        w = stride * wo + kj - pad
                        if 0 <= h < H and 0 <= w < W:
                            S[ki * k + kj, m, (n * H + h) * W + w] = 1.0
    return jnp.asarray(S), Ho, Wo


# ----------------------------------------------------------------------------
# Fused Pallas kernel: 5 x (conv -> training-mode BatchNorm -> activation).
# ----------------------------------------------------------------------------
def _bn_act(y, gb_ref, act):
    # One-pass batch stats over all M rows (biased variance, eps=1e-5),
    # folded into a single scale/shift. Conv bias omitted (cancelled by mean).
    m = y.shape[0]
    inv_m = 1.0 / m
    mean = jnp.sum(y, axis=0, keepdims=True) * inv_m
    var = jnp.maximum(jnp.sum(y * y, axis=0, keepdims=True) * inv_m - mean * mean, 0.0)
    scale = gb_ref[0:1, :] * jax.lax.rsqrt(var + 1e-5)
    shift = gb_ref[1:2, :] - mean * scale
    y = y * scale + shift
    if act == "leaky":
        return jnp.where(y >= 0.0, y, 0.01 * y)       # nn.LeakyReLU default slope
    return jax.nn.sigmoid(y)


def _conv3x3(a, w_ref, s_ref):
    # y = sum_t (S_t @ a) @ W_t  (exactly im2col @ W, tap-major weight rows)
    cin = w_ref.shape[0] // 9
    cout = w_ref.shape[1]
    mo = s_ref.shape[1]
    acc = jnp.zeros((mo, cout), jnp.float32)
    for t in range(9):
        g = jnp.dot(s_ref[t], a, preferred_element_type=jnp.float32)
        acc = acc + jnp.dot(g, w_ref[t * cin:(t + 1) * cin, :],
                            preferred_element_type=jnp.float32)
    return acc


def fused_disc_kernel(xc_ref, w1_ref, w2_ref, w3_ref, w4_ref, w5_ref,
                      gb1_ref, gb2_ref, gb3_ref, gb4_ref, gb5_ref,
                      s2_ref, s3_ref, s4_ref, o_ref):
    a = _bn_act(jnp.dot(xc_ref[...], w1_ref[...],
                        preferred_element_type=jnp.float32), gb1_ref, "leaky")
    a = _bn_act(_conv3x3(a, w2_ref, s2_ref), gb2_ref, "leaky")
    a = _bn_act(_conv3x3(a, w3_ref, s3_ref), gb3_ref, "leaky")
    a = _bn_act(_conv3x3(a, w4_ref, s4_ref), gb4_ref, "leaky")
    a = _bn_act(jnp.dot(a, w5_ref[...],                       # 1x1 conv = plain matmul
                        preferred_element_type=jnp.float32), gb5_ref, "sigmoid")
    o_ref[...] = a


def _zero_index_map(ndim):
    zeros = (0,) * ndim
    return lambda i: zeros


def run_fused(xcols1, params, sels, m_out):
    inputs = ([xcols1]
              + [p["w"] for p in params]
              + [p["gb"] for p in params]
              + list(sels))
    in_specs = [pl.BlockSpec(tuple(a.shape), _zero_index_map(a.ndim)) for a in inputs]
    return pl.pallas_call(
        fused_disc_kernel,
        out_shape=jax.ShapeDtypeStruct((m_out, 1), jnp.float32),
        grid=(1,),
        in_specs=in_specs,
        out_specs=pl.BlockSpec((m_out, 1), lambda i: (0, 0)),
        compiler_params=pltpu.CompilerParams(dimension_semantics=("arbitrary",)),
    )(*inputs)


# ----------------------------------------------------------------------------
# Parameter init (mirrors weights_init_normal; conv bias dropped — it is
# exactly cancelled by training-mode BatchNorm mean subtraction).
# ----------------------------------------------------------------------------
def init_params(key, in_channel, base_channel=32):
    cfgs = [
        (base_channel, in_channel, 3),
        (2 * base_channel, base_channel, 3),
        (4 * base_channel, 2 * base_channel, 3),
        (8 * base_channel, 4 * base_channel, 3),
        (1, 8 * base_channel, 1),
    ]
    params = []
    for cout, cin, k in cfgs:
        key, kw, kg = jax.random.split(key, 3)
        w = 0.02 * jax.random.normal(kw, (cout, cin, k, k), jnp.float32)   # N(0, 0.02)
        gamma = 1.0 + 0.02 * jax.random.normal(kg, (cout,), jnp.float32)   # N(1, 0.02)
        beta = jnp.zeros((cout,), jnp.float32)
        # tap-major weight rows: (ki, kj, ci) -> row index (ki*k+kj)*cin + ci
        w_km = jnp.transpose(w, (2, 3, 1, 0)).reshape(k * k * cin, cout)
        gb = jnp.stack([gamma, beta], axis=0)                              # (2, Cout)
        params.append(dict(w=w_km, gb=gb, k=k))
    return params


LAYER_CFG = [  # (stride, pad, activation)
    (2, 1, "leaky"),
    (2, 1, "leaky"),
    (2, 1, "leaky"),
    (1, 1, "leaky"),
    (1, 0, "sigmoid"),
]


def discriminator_forward(params, output_img, input_img, input_pan):
    N, _, H, W = input_pan.shape
    input_img_up = bicubic_upsample(input_img, H, W)
    x = jnp.concatenate([output_img, input_img_up, input_pan], axis=1)     # NCHW (PyTorch order)
    x = jnp.transpose(x, (0, 2, 3, 1))                                     # -> NHWC, once

    # Layer-1 im2col on the input (only layer touching the raw image).
    xcols1, h, w = im2col_nhwc(x, k=3, stride=2, pad=1)

    # Constant selection matrices encoding im2col for layers 2-4 (3x3 convs).
    sels = []
    for stride, pad, _ in LAYER_CFG[1:4]:
        S, h, w = build_selection(N, h, w, 3, stride, pad)
        sels.append(S)
    # Layers 4 (stride 1, pad 1) and 5 (1x1) keep spatial size -> final (h, w).

    m_out = N * h * w
    y = run_fused(xcols1, params, sels, m_out)                             # (m_out, 1)
    return jnp.transpose(y.reshape(N, h, w, 1), (0, 3, 1, 2))              # NCHW validity map


if __name__ == "__main__":
    key = jax.random.PRNGKey(0)
    k0, k1, k2, kp = jax.random.split(key, 4)

    # Pan-sharpening style inputs: 4-band MS + 1-band PAN -> in_channel = 4+4+1 = 9
    output_img = jax.random.normal(k0, (2, 4, 16, 16), jnp.float32)   # fused MS (high res)
    input_img = jax.random.normal(k1, (2, 4, 8, 8), jnp.float32)      # low-res MS
    input_pan = jax.random.normal(k2, (2, 1, 16, 16), jnp.float32)    # PAN

    params = init_params(kp, in_channel=9, base_channel=32)

    validity = discriminator_forward(params, output_img, input_img, input_pan)
    validity = jax.block_until_ready(validity)

    assert validity.shape == (2, 1, 2, 2), validity.shape
    assert bool(jnp.all(jnp.isfinite(validity)))
    assert bool(jnp.all((validity >= 0.0) & (validity <= 1.0)))       # sigmoid output
    print("KERNEL_OK")
</pallas_src>

<mosaic_0001>
module attributes {stable_mosaic.version = 11 : i64} {
  func.func @fused_disc_kernel(%arg0: i32, %arg1: memref<128x81xf32, #tpu.memory_space<vmem>>, %arg2: memref<81x32xf32, #tpu.memory_space<vmem>>, %arg3: memref<288x64xf32, #tpu.memory_space<vmem>>, %arg4: memref<576x128xf32, #tpu.memory_space<vmem>>, %arg5: memref<1152x256xf32, #tpu.memory_space<vmem>>, %arg6: memref<256x1xf32, #tpu.memory_space<vmem>>, %arg7: memref<2x32xf32, #tpu.memory_space<vmem>>, %arg8: memref<2x64xf32, #tpu.memory_space<vmem>>, %arg9: memref<2x128xf32, #tpu.memory_space<vmem>>, %arg10: memref<2x256xf32, #tpu.memory_space<vmem>>, %arg11: memref<2x1xf32, #tpu.memory_space<vmem>>, %arg12: memref<9x32x128xf32, #tpu.memory_space<vmem>>, %arg13: memref<9x8x32xf32, #tpu.memory_space<vmem>>, %arg14: memref<9x8x8xf32, #tpu.memory_space<vmem>>, %arg15: memref<8x1xf32, #tpu.memory_space<vmem>>) attributes {dimension_semantics = [#tpu.dimension_semantics<arbitrary>], iteration_bounds = array<i64: 1>, scalar_prefetch = 0 : i64, scratch_operands = 0 : i64, tpu.core_type = #tpu.core_type<tc>, window_params = [{pipeline_mode = #tpu.pipeline_mode<synchronous>, transform_indices = @transform_0, window_bounds = array<i64: 128, 81>}, {pipeline_mode = #tpu.pipeline_mode<synchronous>, transform_indices = @transform_1, window_bounds = array<i64: 81, 32>}, {pipeline_mode = #tpu.pipeline_mode<synchronous>, transform_indices = @transform_2, window_bounds = array<i64: 288, 64>}, {pipeline_mode = #tpu.pipeline_mode<synchronous>, transform_indices = @transform_3, window_bounds = array<i64: 576, 128>}, {pipeline_mode = #tpu.pipeline_mode<synchronous>, transform_indices = @transform_4, window_bounds = array<i64: 1152, 256>}, {pipeline_mode = #tpu.pipeline_mode<synchronous>, transform_indices = @transform_5, window_bounds = array<i64: 256, 1>}, {pipeline_mode = #tpu.pipeline_mode<synchronous>, transform_indices = @transform_6, window_bounds = array<i64: 2, 32>}, {pipeline_mode = #tpu.pipeline_mode<synchronous>, transform_indices = @transform_7, window_bounds = array<i64: 2, 64>}, {pipeline_mode = #tpu.pipeline_mode<synchronous>, transform_indices = @transform_8, window_bounds = array<i64: 2, 128>}, {pipeline_mode = #tpu.pipeline_mode<synchronous>, transform_indices = @transform_9, window_bounds = array<i64: 2, 256>}, {pipeline_mode = #tpu.pipeline_mode<synchronous>, transform_indices = @transform_10, window_bounds = array<i64: 2, 1>}, {pipeline_mode = #tpu.pipeline_mode<synchronous>, transform_indices = @transform_11, window_bounds = array<i64: 9, 32, 128>}, {pipeline_mode = #tpu.pipeline_mode<synchronous>, transform_indices = @transform_12, window_bounds = array<i64: 9, 8, 32>}, {pipeline_mode = #tpu.pipeline_mode<synchronous>, transform_indices = @transform_13, window_bounds = array<i64: 9, 8, 8>}, {pipeline_mode = #tpu.pipeline_mode<synchronous>, transform_indices = @transform_14, window_bounds = array<i64: 8, 1>}]} {
    %c0 = arith.constant 0 : index
    %c0_0 = arith.constant 0 : index
    %0 = vector.load %arg1[%c0, %c0_0] : memref<128x81xf32, #tpu.memory_space<vmem>>, vector<128x81xf32>
    %c0_1 = arith.constant 0 : index
    %c0_2 = arith.constant 0 : index
    %1 = vector.load %arg2[%c0_1, %c0_2] : memref<81x32xf32, #tpu.memory_space<vmem>>, vector<81x32xf32>
    %cst = arith.constant dense<0.000000e+00> : vector<128x32xf32>
    %2 = tpu.matmul %0, %1, %cst {dimension_numbers = #tpu.dot_dimension_numbers<[1], [0], [0], [1], [0, 0, 1, 1], [], []>} : vector<128x81xf32>, vector<81x32xf32>, vector<128x32xf32> -> vector<128x32xf32>
    %cst_3 = arith.constant dense<0.000000e+00> : vector<32xf32>
    %3 = vector.multi_reduction <add>, %2, %cst_3 [0] : vector<128x32xf32> to vector<32xf32>
    %4 = vector.shape_cast %3 : vector<32xf32> to vector<1x32xf32>
    %cst_4 = arith.constant 7.812500e-03 : f32
    %5 = vector.broadcast %cst_4 : f32 to vector<1x32xf32>
    %6 = arith.mulf %4, %5 : vector<1x32xf32>
    %7 = arith.mulf %2, %2 : vector<128x32xf32>
    %cst_5 = arith.constant dense<0.000000e+00> : vector<32xf32>
    %8 = vector.multi_reduction <add>, %7, %cst_5 [0] : vector<128x32xf32> to vector<32xf32>
    %9 = vector.shape_cast %8 : vector<32xf32> to vector<1x32xf32>
    %cst_6 = arith.constant 7.812500e-03 : f32
    %10 = vector.broadcast %cst_6 : f32 to vector<1x32xf32>
    %11 = arith.mulf %9, %10 : vector<1x32xf32>
    %12 = arith.mulf %6, %6 : vector<1x32xf32>
    %13 = arith.subf %11, %12 : vector<1x32xf32>
    %cst_7 = arith.constant 0.000000e+00 : f32
    %14 = vector.broadcast %cst_7 : f32 to vector<1x32xf32>
    %15 = arith.maximumf %13, %14 : vector<1x32xf32>
    %c0_8 = arith.constant 0 : index
    %c0_9 = arith.constant 0 : index
    %16 = vector.load %arg7[%c0_8, %c0_9] : memref<2x32xf32, #tpu.memory_space<vmem>>, vector<1x32xf32>
    %cst_10 = arith.constant 9.99999974E-6 : f32
    %17 = vector.broadcast %cst_10 : f32 to vector<1x32xf32>
    %18 = arith.addf %15, %17 : vector<1x32xf32>
    %19 = math.rsqrt %18 : vector<1x32xf32>
    %20 = arith.mulf %16, %19 : vector<1x32xf32>
    %c1 = arith.constant 1 : index
    %c0_11 = arith.constant 0 : index
    %21 = vector.load %arg7[%c1, %c0_11] : memref<2x32xf32, #tpu.memory_space<vmem>>, vector<1x32xf32>
    %22 = arith.mulf %6, %20 : vector<1x32xf32>
    %23 = arith.subf %21, %22 : vector<1x32xf32>
    %24 = vector.broadcast %20 : vector<1x32xf32> to vector<128x32xf32>
    %25 = arith.mulf %2, %24 : vector<128x32xf32>
    %26 = vector.broadcast %23 : vector<1x32xf32> to vector<128x32xf32>
    %27 = arith.addf %25, %26 : vector<128x32xf32>
    %cst_12 = arith.constant 0.000000e+00 : f32
    %28 = vector.broadcast %cst_12 : f32 to vector<128x32xf32>
    %29 = arith.cmpf oge, %27, %28 : vector<128x32xf32>
    %cst_13 = arith.constant 0.00999999977 : f32
    %30 = vector.broadcast %cst_13 : f32 to vector<128x32xf32>
    %31 = arith.mulf %30, %27 : vector<128x32xf32>
    %32 = arith.select %29, %27, %31 : vector<128x32xi1>, vector<128x32xf32>
    %cst_14 = arith.constant 0.000000e+00 : f32
    %33 = vector.broadcast %cst_14 : f32 to vector<32x64xf32>
    %c0_15 = arith.constant 0 : index
    %c0_16 = arith.constant 0 : index
    %c0_17 = arith.constant 0 : index
    %34 = vector.load %arg12[%c0_15, %c0_16, %c0_17] : memref<9x32x128xf32, #tpu.memory_space<vmem>>, vector<1x32x128xf32>
    %35 = vector.shape_cast %34 : vector<1x32x128xf32> to vector<32x128xf32>
    %cst_18 = arith.constant dense<0.000000e+00> : vector<32x32xf32>
    %36 = tpu.matmul %35, %32, %cst_18 {dimension_numbers = #tpu.dot_dimension_numbers<[1], [0], [0], [1], [0, 0, 1, 1], [], []>} : vector<32x128xf32>, vector<128x32xf32>, vector<32x32xf32> -> vector<32x32xf32>
    %c0_19 = arith.constant 0 : index
    %c0_20 = arith.constant 0 : index
    %37 = vector.load %arg3[%c0_19, %c0_20] : memref<288x64xf32, #tpu.memory_space<vmem>>, vector<32x64xf32>
    %cst_21 = arith.constant dense<0.000000e+00> : vector<32x64xf32>
    %38 = tpu.matmul %36, %37, %cst_21 {dimension_numbers = #tpu.dot_dimension_numbers<[1], [0], [0], [1], [0, 0, 1, 1], [], []>} : vector<32x32xf32>, vector<32x64xf32>, vector<32x64xf32> -> vector<32x64xf32>
    %39 = arith.addf %33, %38 : vector<32x64xf32>
    %c1_22 = arith.constant 1 : index
    %c0_23 = arith.constant 0 : index
    %c0_24 = arith.constant 0 : index
    %40 = vector.load %arg12[%c1_22, %c0_23, %c0_24] : memref<9x32x128xf32, #tpu.memory_space<vmem>>, vector<1x32x128xf32>
    %41 = vector.shape_cast %40 : vector<1x32x128xf32> to vector<32x128xf32>
    %cst_25 = arith.constant dense<0.000000e+00> : vector<32x32xf32>
    %42 = tpu.matmul %41, %32, %cst_25 {dimension_numbers = #tpu.dot_dimension_numbers<[1], [0], [0], [1], [0, 0, 1, 1], [], []>} : vector<32x128xf32>, vector<128x32xf32>, vector<32x32xf32> -> vector<32x32xf32>
    %c32 = arith.constant 32 : index
    %c0_26 = arith.constant 0 : index
    %43 = vector.load %arg3[%c32, %c0_26] : memref<288x64xf32, #tpu.memory_space<vmem>>, vector<32x64xf32>
    %cst_27 = arith.constant dense<0.000000e+00> : vector<32x64xf32>
    %44 = tpu.matmul %42, %43, %cst_27 {dimension_numbers = #tpu.dot_dimension_numbers<[1], [0], [0], [1], [0, 0, 1, 1], [], []>} : vector<32x32xf32>, vector<32x64xf32>, vector<32x64xf32> -> vector<32x64xf32>
    %45 = arith.addf %39, %44 : vector<32x64xf32>
    %c2 = arith.constant 2 : index
    %c0_28 = arith.constant 0 : index
    %c0_29 = arith.constant 0 : index
    %46 = vector.load %arg12[%c2, %c0_28, %c0_29] : memref<9x32x128xf32, #tpu.memory_space<vmem>>, vector<1x32x128xf32>
    %47 = vector.shape_cast %46 : vector<1x32x128xf32> to vector<32x128xf32>
    %cst_30 = arith.constant dense<0.000000e+00> : vector<32x32xf32>
    %48 = tpu.matmul %47, %32, %cst_30 {dimension_numbers = #tpu.dot_dimension_numbers<[1], [0], [0], [1], [0, 0, 1, 1], [], []>} : vector<32x128xf32>, vector<128x32xf32>, vector<32x32xf32> -> vector<32x32xf32>
    %c64 = arith.constant 64 : index
    %c0_31 = arith.constant 0 : index
    %49 = vector.load %arg3[%c64, %c0_31] : memref<288x64xf32, #tpu.memory_space<vmem>>, vector<32x64xf32>
    %cst_32 = arith.constant dense<0.000000e+00> : vector<32x64xf32>
    %50 = tpu.matmul %48, %49, %cst_32 {dimension_numbers = #tpu.dot_dimension_numbers<[1], [0], [0], [1], [0, 0, 1, 1], [], []>} : vector<32x32xf32>, vector<32x64xf32>, vector<32x64xf32> -> vector<32x64xf32>
    %51 = arith.addf %45, %50 : vector<32x64xf32>
    %c3 = arith.constant 3 : index
    %c0_33 = arith.constant 0 : index
    %c0_34 = arith.constant 0 : index
    %52 = vector.load %arg12[%c3, %c0_33, %c0_34] : memref<9x32x128xf32, #tpu.memory_space<vmem>>, vector<1x32x128xf32>
    %53 = vector.shape_cast %52 : vector<1x32x128xf32> to vector<32x128xf32>
    %cst_35 = arith.constant dense<0.000000e+00> : vector<32x32xf32>
    %54 = tpu.matmul %53, %32, %cst_35 {dimension_numbers = #tpu.dot_dimension_numbers<[1], [0], [0], [1], [0, 0, 1, 1], [], []>} : vector<32x128xf32>, vector<128x32xf32>, vector<32x32xf32> -> vector<32x32xf32>
    %c96 = arith.constant 96 : index
    %c0_36 = arith.constant 0 : index
    %55 = vector.load %arg3[%c96, %c0_36] : memref<288x64xf32, #tpu.memory_space<vmem>>, vector<32x64xf32>
    %cst_37 = arith.constant dense<0.000000e+00> : vector<32x64xf32>
    %56 = tpu.matmul %54, %55, %cst_37 {dimension_numbers = #tpu.dot_dimension_numbers<[1], [0], [0], [1], [0, 0, 1, 1], [], []>} : vector<32x32xf32>, vector<32x64xf32>, vector<32x64xf32> -> vector<32x64xf32>
    %57 = arith.addf %51, %56 : vector<32x64xf32>
    %c4 = arith.constant 4 : index
    %c0_38 = arith.constant 0 : index
    %c0_39 = arith.constant 0 : index
    %58 = vector.load %arg12[%c4, %c0_38, %c0_39] : memref<9x32x128xf32, #tpu.memory_space<vmem>>, vector<1x32x128xf32>
    %59 = vector.shape_cast %58 : vector<1x32x128xf32> to vector<32x128xf32>
    %cst_40 = arith.constant dense<0.000000e+00> : vector<32x32xf32>
    %60 = tpu.matmul %59, %32, %cst_40 {dimension_numbers = #tpu.dot_dimension_numbers<[1], [0], [0], [1], [0, 0, 1, 1], [], []>} : vector<32x128xf32>, vector<128x32xf32>, vector<32x32xf32> -> vector<32x32xf32>
    %c128 = arith.constant 128 : index
    %c0_41 = arith.constant 0 : index
    %61 = vector.load %arg3[%c128, %c0_41] : memref<288x64xf32, #tpu.memory_space<vmem>>, vector<32x64xf32>
    %cst_42 = arith.constant dense<0.000000e+00> : vector<32x64xf32>
    %62 = tpu.matmul %60, %61, %cst_42 {dimension_numbers = #tpu.dot_dimension_numbers<[1], [0], [0], [1], [0, 0, 1, 1], [], []>} : vector<32x32xf32>, vector<32x64xf32>, vector<32x64xf32> -> vector<32x64xf32>
    %63 = arith.addf %57, %62 : vector<32x64xf32>
    %c5 = arith.constant 5 : index
    %c0_43 = arith.constant 0 : index
    %c0_44 = arith.constant 0 : index
    %64 = vector.load %arg12[%c5, %c0_43, %c0_44] : memref<9x32x128xf32, #tpu.memory_space<vmem>>, vector<1x32x128xf32>
    %65 = vector.shape_cast %64 : vector<1x32x128xf32> to vector<32x128xf32>
    %cst_45 = arith.constant dense<0.000000e+00> : vector<32x32xf32>
    %66 = tpu.matmul %65, %32, %cst_45 {dimension_numbers = #tpu.dot_dimension_numbers<[1], [0], [0], [1], [0, 0, 1, 1], [], []>} : vector<32x128xf32>, vector<128x32xf32>, vector<32x32xf32> -> vector<32x32xf32>
    %c160 = arith.constant 160 : index
    %c0_46 = arith.constant 0 : index
    %67 = vector.load %arg3[%c160, %c0_46] : memref<288x64xf32, #tpu.memory_space<vmem>>, vector<32x64xf32>
    %cst_47 = arith.constant dense<0.000000e+00> : vector<32x64xf32>
    %68 = tpu.matmul %66, %67, %cst_47 {dimension_numbers = #tpu.dot_dimension_numbers<[1], [0], [0], [1], [0, 0, 1, 1], [], []>} : vector<32x32xf32>, vector<32x64xf32>, vector<32x64xf32> -> vector<32x64xf32>
    %69 = arith.addf %63, %68 : vector<32x64xf32>
    %c6 = arith.constant 6 : index
    %c0_48 = arith.constant 0 : index
    %c0_49 = arith.constant 0 : index
    %70 = vector.load %arg12[%c6, %c0_48, %c0_49] : memref<9x32x128xf32, #tpu.memory_space<vmem>>, vector<1x32x128xf32>
    %71 = vector.shape_cast %70 : vector<1x32x128xf32> to vector<32x128xf32>
    %cst_50 = arith.constant dense<0.000000e+00> : vector<32x32xf32>
    %72 = tpu.matmul %71, %32, %cst_50 {dimension_numbers = #tpu.dot_dimension_numbers<[1], [0], [0], [1], [0, 0, 1, 1], [], []>} : vector<32x128xf32>, vector<128x32xf32>, vector<32x32xf32> -> vector<32x32xf32>
    %c192 = arith.constant 192 : index
    %c0_51 = arith.constant 0 : index
    %73 = vector.load %arg3[%c192, %c0_51] : memref<288x64xf32, #tpu.memory_space<vmem>>, vector<32x64xf32>
    %cst_52 = arith.constant dense<0.000000e+00> : vector<32x64xf32>
    %74 = tpu.matmul %72, %73, %cst_52 {dimension_numbers = #tpu.dot_dimension_numbers<[1], [0], [0], [1], [0, 0, 1, 1], [], []>} : vector<32x32xf32>, vector<32x64xf32>, vector<32x64xf32> -> vector<32x64xf32>
    %75 = arith.addf %69, %74 : vector<32x64xf32>
    %c7 = arith.constant 7 : index
    %c0_53 = arith.constant 0 : index
    %c0_54 = arith.constant 0 : index
    %76 = vector.load %arg12[%c7, %c0_53, %c0_54] : memref<9x32x128xf32, #tpu.memory_space<vmem>>, vector<1x32x128xf32>
    %77 = vector.shape_cast %76 : vector<1x32x128xf32> to vector<32x128xf32>
    %cst_55 = arith.constant dense<0.000000e+00> : vector<32x32xf32>
    %78 = tpu.matmul %77, %32, %cst_55 {dimension_numbers = #tpu.dot_dimension_numbers<[1], [0], [0], [1], [0, 0, 1, 1], [], []>} : vector<32x128xf32>, vector<128x32xf32>, vector<32x32xf32> -> vector<32x32xf32>
    %c224 = arith.constant 224 : index
    %c0_56 = arith.constant 0 : index
    %79 = vector.load %arg3[%c224, %c0_56] : memref<288x64xf32, #tpu.memory_space<vmem>>, vector<32x64xf32>
    %cst_57 = arith.constant dense<0.000000e+00> : vector<32x64xf32>
    %80 = tpu.matmul %78, %79, %cst_57 {dimension_numbers = #tpu.dot_dimension_numbers<[1], [0], [0], [1], [0, 0, 1, 1], [], []>} : vector<32x32xf32>, vector<32x64xf32>, vector<32x64xf32> -> vector<32x64xf32>
    %81 = arith.addf %75, %80 : vector<32x64xf32>
    %c8 = arith.constant 8 : index
    %c0_58 = arith.constant 0 : index
    %c0_59 = arith.constant 0 : index
    %82 = vector.load %arg12[%c8, %c0_58, %c0_59] : memref<9x32x128xf32, #tpu.memory_space<vmem>>, vector<1x32x128xf32>
    %83 = vector.shape_cast %82 : vector<1x32x128xf32> to vector<32x128xf32>
    %cst_60 = arith.constant dense<0.000000e+00> : vector<32x32xf32>
    %84 = tpu.matmul %83, %32, %cst_60 {dimension_numbers = #tpu.dot_dimension_numbers<[1], [0], [0], [1], [0, 0, 1, 1], [], []>} : vector<32x128xf32>, vector<128x32xf32>, vector<32x32xf32> -> vector<32x32xf32>
    %c256 = arith.constant 256 : index
    %c0_61 = arith.constant 0 : index
    %85 = vector.load %arg3[%c256, %c0_61] : memref<288x64xf32, #tpu.memory_space<vmem>>, vector<32x64xf32>
    %cst_62 = arith.constant dense<0.000000e+00> : vector<32x64xf32>
    %86 = tpu.matmul %84, %85, %cst_62 {dimension_numbers = #tpu.dot_dimension_numbers<[1], [0], [0], [1], [0, 0, 1, 1], [], []>} : vector<32x32xf32>, vector<32x64xf32>, vector<32x64xf32> -> vector<32x64xf32>
    %87 = arith.addf %81, %86 : vector<32x64xf32>
    %cst_63 = arith.constant dense<0.000000e+00> : vector<64xf32>
    %88 = vector.multi_reduction <add>, %87, %cst_63 [0] : vector<32x64xf32> to vector<64xf32>
    %89 = vector.shape_cast %88 : vector<64xf32> to vector<1x64xf32>
    %cst_64 = arith.constant 3.125000e-02 : f32
    %90 = vector.broadcast %cst_64 : f32 to vector<1x64xf32>
    %91 = arith.mulf %89, %90 : vector<1x64xf32>
    %92 = arith.mulf %87, %87 : vector<32x64xf32>
    %cst_65 = arith.constant dense<0.000000e+00> : vector<64xf32>
    %93 = vector.multi_reduction <add>, %92, %cst_65 [0] : vector<32x64xf32> to vector<64xf32>
    %94 = vector.shape_cast %93 : vector<64xf32> to vector<1x64xf32>
    %cst_66 = arith.constant 3.125000e-02 : f32
    %95 = vector.broadcast %cst_66 : f32 to vector<1x64xf32>
    %96 = arith.mulf %94, %95 : vector<1x64xf32>
    %97 = arith.mulf %91, %91 : vector<1x64xf32>
    %98 = arith.subf %96, %97 : vector<1x64xf32>
    %cst_67 = arith.constant 0.000000e+00 : f32
    %99 = vector.broadcast %cst_67 : f32 to vector<1x64xf32>
    %100 = arith.maximumf %98, %99 : vector<1x64xf32>
    %c0_68 = arith.constant 0 : index
    %c0_69 = arith.constant 0 : index
    %101 = vector.load %arg8[%c0_68, %c0_69] : memref<2x64xf32, #tpu.memory_space<vmem>>, vector<1x64xf32>
    %cst_70 = arith.constant 9.99999974E-6 : f32
    %102 = vector.broadcast %cst_70 : f32 to vector<1x64xf32>
    %103 = arith.addf %100, %102 : vector<1x64xf32>
    %104 = math.rsqrt %103 : vector<1x64xf32>
    %105 = arith.mulf %101, %104 : vector<1x64xf32>
    %c1_71 = arith.constant 1 : index
    %c0_72 = arith.constant 0 : index
    %106 = vector.load %arg8[%c1_71, %c0_72] : memref<2x64xf32, #tpu.memory_space<vmem>>, vector<1x64xf32>
    %107 = arith.mulf %91, %105 : vector<1x64xf32>
    %108 = arith.subf %106, %107 : vector<1x64xf32>
    %109 = vector.broadcast %105 : vector<1x64xf32> to vector<32x64xf32>
    %110 = arith.mulf %87, %109 : vector<32x64xf32>
    %111 = vector.broadcast %108 : vector<1x64xf32> to vector<32x64xf32>
    %112 = arith.addf %110, %111 : vector<32x64xf32>
    %cst_73 = arith.constant 0.000000e+00 : f32
    %113 = vector.broadcast %cst_73 : f32 to vector<32x64xf32>
    %114 = arith.cmpf oge, %112, %113 : vector<32x64xf32>
    %cst_74 = arith.constant 0.00999999977 : f32
    %115 = vector.broadcast %cst_74 : f32 to vector<32x64xf32>
    %116 = arith.mulf %115, %112 : vector<32x64xf32>
    %117 = arith.select %114, %112, %116 : vector<32x64xi1>, vector<32x64xf32>
    %cst_75 = arith.constant 0.000000e+00 : f32
    %118 = vector.broadcast %cst_75 : f32 to vector<8x128xf32>
    %c0_76 = arith.constant 0 : index
    %c0_77 = arith.constant 0 : index
    %c0_78 = arith.constant 0 : index
    %119 = vector.load %arg13[%c0_76, %c0_77, %c0_78] : memref<9x8x32xf32, #tpu.memory_space<vmem>>, vector<1x8x32xf32>
    %120 = vector.shape_cast %119 : vector<1x8x32xf32> to vector<8x32xf32>
    %cst_79 = arith.constant dense<0.000000e+00> : vector<8x64xf32>
    %121 = tpu.matmul %120, %117, %cst_79 {dimension_numbers = #tpu.dot_dimension_numbers<[1], [0], [0], [1], [0, 0, 1, 1], [], []>} : vector<8x32xf32>, vector<32x64xf32>, vector<8x64xf32> -> vector<8x64xf32>
    %c0_80 = arith.constant 0 : index
    %c0_81 = arith.constant 0 : index
    %122 = vector.load %arg4[%c0_80, %c0_81] : memref<576x128xf32, #tpu.memory_space<vmem>>, vector<64x128xf32>
    %cst_82 = arith.constant dense<0.000000e+00> : vector<8x128xf32>
    %123 = tpu.matmul %121, %122, %cst_82 {dimension_numbers = #tpu.dot_dimension_numbers<[1], [0], [0], [1], [0, 0, 1, 1], [], []>} : vector<8x64xf32>, vector<64x128xf32>, vector<8x128xf32> -> vector<8x128xf32>
    %124 = arith.addf %118, %123 : vector<8x128xf32>
    %c1_83 = arith.constant 1 : index
    %c0_84 = arith.constant 0 : index
    %c0_85 = arith.constant 0 : index
    %125 = vector.load %arg13[%c1_83, %c0_84, %c0_85] : memref<9x8x32xf32, #tpu.memory_space<vmem>>, vector<1x8x32xf32>
    %126 = vector.shape_cast %125 : vector<1x8x32xf32> to vector<8x32xf32>
    %cst_86 = arith.constant dense<0.000000e+00> : vector<8x64xf32>
    %127 = tpu.matmul %126, %117, %cst_86 {dimension_numbers = #tpu.dot_dimension_numbers<[1], [0], [0], [1], [0, 0, 1, 1], [], []>} : vector<8x32xf32>, vector<32x64xf32>, vector<8x64xf32> -> vector<8x64xf32>
    %c64_87 = arith.constant 64 : index
    %c0_88 = arith.constant 0 : index
    %128 = vector.load %arg4[%c64_87, %c0_88] : memref<576x128xf32, #tpu.memory_space<vmem>>, vector<64x128xf32>
    %cst_89 = arith.constant dense<0.000000e+00> : vector<8x128xf32>
    %129 = tpu.matmul %127, %128, %cst_89 {dimension_numbers = #tpu.dot_dimension_numbers<[1], [0], [0], [1], [0, 0, 1, 1], [], []>} : vector<8x64xf32>, vector<64x128xf32>, vector<8x128xf32> -> vector<8x128xf32>
    %130 = arith.addf %124, %129 : vector<8x128xf32>
    %c2_90 = arith.constant 2 : index
    %c0_91 = arith.constant 0 : index
    %c0_92 = arith.constant 0 : index
    %131 = vector.load %arg13[%c2_90, %c0_91, %c0_92] : memref<9x8x32xf32, #tpu.memory_space<vmem>>, vector<1x8x32xf32>
    %132 = vector.shape_cast %131 : vector<1x8x32xf32> to vector<8x32xf32>
    %cst_93 = arith.constant dense<0.000000e+00> : vector<8x64xf32>
    %133 = tpu.matmul %132, %117, %cst_93 {dimension_numbers = #tpu.dot_dimension_numbers<[1], [0], [0], [1], [0, 0, 1, 1], [], []>} : vector<8x32xf32>, vector<32x64xf32>, vector<8x64xf32> -> vector<8x64xf32>
    %c128_94 = arith.constant 128 : index
    %c0_95 = arith.constant 0 : index
    %134 = vector.load %arg4[%c128_94, %c0_95] : memref<576x128xf32, #tpu.memory_space<vmem>>, vector<64x128xf32>
    %cst_96 = arith.constant dense<0.000000e+00> : vector<8x128xf32>
    %135 = tpu.matmul %133, %134, %cst_96 {dimension_numbers = #tpu.dot_dimension_numbers<[1], [0], [0], [1], [0, 0, 1, 1], [], []>} : vector<8x64xf32>, vector<64x128xf32>, vector<8x128xf32> -> vector<8x128xf32>
    %136 = arith.addf %130, %135 : vector<8x128xf32>
    %c3_97 = arith.constant 3 : index
    %c0_98 = arith.constant 0 : index
    %c0_99 = arith.constant 0 : index
    %137 = vector.load %arg13[%c3_97, %c0_98, %c0_99] : memref<9x8x32xf32, #tpu.memory_space<vmem>>, vector<1x8x32xf32>
    %138 = vector.shape_cast %137 : vector<1x8x32xf32> to vector<8x32xf32>
    %cst_100 = arith.constant dense<0.000000e+00> : vector<8x64xf32>
    %139 = tpu.matmul %138, %117, %cst_100 {dimension_numbers = #tpu.dot_dimension_numbers<[1], [0], [0], [1], [0, 0, 1, 1], [], []>} : vector<8x32xf32>, vector<32x64xf32>, vector<8x64xf32> -> vector<8x64xf32>
    %c192_101 = arith.constant 192 : index
    %c0_102 = arith.constant 0 : index
    %140 = vector.load %arg4[%c192_101, %c0_102] : memref<576x128xf32, #tpu.memory_space<vmem>>, vector<64x128xf32>
    %cst_103 = arith.constant dense<0.000000e+00> : vector<8x128xf32>
    %141 = tpu.matmul %139, %140, %cst_103 {dimension_numbers = #tpu.dot_dimension_numbers<[1], [0], [0], [1], [0, 0, 1, 1], [], []>} : vector<8x64xf32>, vector<64x128xf32>, vector<8x128xf32> -> vector<8x128xf32>
    %142 = arith.addf %136, %141 : vector<8x128xf32>
    %c4_104 = arith.constant 4 : index
    %c0_105 = arith.constant 0 : index
    %c0_106 = arith.constant 0 : index
    %143 = vector.load %arg13[%c4_104, %c0_105, %c0_106] : memref<9x8x32xf32, #tpu.memory_space<vmem>>, vector<1x8x32xf32>
    %144 = vector.shape_cast %143 : vector<1x8x32xf32> to vector<8x32xf32>
    %cst_107 = arith.constant dense<0.000000e+00> : vector<8x64xf32>
    %145 = tpu.matmul %144, %117, %cst_107 {dimension_numbers = #tpu.dot_dimension_numbers<[1], [0], [0], [1], [0, 0, 1, 1], [], []>} : vector<8x32xf32>, vector<32x64xf32>, vector<8x64xf32> -> vector<8x64xf32>
    %c256_108 = arith.constant 256 : index
    %c0_109 = arith.constant 0 : index
    %146 = vector.load %arg4[%c256_108, %c0_109] : memref<576x128xf32, #tpu.memory_space<vmem>>, vector<64x128xf32>
    %cst_110 = arith.constant dense<0.000000e+00> : vector<8x128xf32>
    %147 = tpu.matmul %145, %146, %cst_110 {dimension_numbers = #tpu.dot_dimension_numbers<[1], [0], [0], [1], [0, 0, 1, 1], [], []>} : vector<8x64xf32>, vector<64x128xf32>, vector<8x128xf32> -> vector<8x128xf32>
    %148 = arith.addf %142, %147 : vector<8x128xf32>
    %c5_111 = arith.constant 5 : index
    %c0_112 = arith.constant 0 : index
    %c0_113 = arith.constant 0 : index
    %149 = vector.load %arg13[%c5_111, %c0_112, %c0_113] : memref<9x8x32xf32, #tpu.memory_space<vmem>>, vector<1x8x32xf32>
    %150 = vector.shape_cast %149 : vector<1x8x32xf32> to vector<8x32xf32>
    %cst_114 = arith.constant dense<0.000000e+00> : vector<8x64xf32>
    %151 = tpu.matmul %150, %117, %cst_114 {dimension_numbers = #tpu.dot_dimension_numbers<[1], [0], [0], [1], [0, 0, 1, 1], [], []>} : vector<8x32xf32>, vector<32x64xf32>, vector<8x64xf32> -> vector<8x64xf32>
    %c320 = arith.constant 320 : index
    %c0_115 = arith.constant 0 : index
    %152 = vector.load %arg4[%c320, %c0_115] : memref<576x128xf32, #tpu.memory_space<vmem>>, vector<64x128xf32>
    %cst_116 = arith.constant dense<0.000000e+00> : vector<8x128xf32>
    %153 = tpu.matmul %151, %152, %cst_116 {dimension_numbers = #tpu.dot_dimension_numbers<[1], [0], [0], [1], [0, 0, 1, 1], [], []>} : vector<8x64xf32>, vector<64x128xf32>, vector<8x128xf32> -> vector<8x128xf32>
    %154 = arith.addf %148, %153 : vector<8x128xf32>
    %c6_117 = arith.constant 6 : index
    %c0_118 = arith.constant 0 : index
    %c0_119 = arith.constant 0 : index
    %155 = vector.load %arg13[%c6_117, %c0_118, %c0_119] : memref<9x8x32xf32, #tpu.memory_space<vmem>>, vector<1x8x32xf32>
    %156 = vector.shape_cast %155 : vector<1x8x32xf32> to vector<8x32xf32>
    %cst_120 = arith.constant dense<0.000000e+00> : vector<8x64xf32>
    %157 = tpu.matmul %156, %117, %cst_120 {dimension_numbers = #tpu.dot_dimension_numbers<[1], [0], [0], [1], [0, 0, 1, 1], [], []>} : vector<8x32xf32>, vector<32x64xf32>, vector<8x64xf32> -> vector<8x64xf32>
    %c384 = arith.constant 384 : index
    %c0_121 = arith.constant 0 : index
    %158 = vector.load %arg4[%c384, %c0_121] : memref<576x128xf32, #tpu.memory_space<vmem>>, vector<64x128xf32>
    %cst_122 = arith.constant dense<0.000000e+00> : vector<8x128xf32>
    %159 = tpu.matmul %157, %158, %cst_122 {dimension_numbers = #tpu.dot_dimension_numbers<[1], [0], [0], [1], [0, 0, 1, 1], [], []>} : vector<8x64xf32>, vector<64x128xf32>, vector<8x128xf32> -> vector<8x128xf32>
    %160 = arith.addf %154, %159 : vector<8x128xf32>
    %c7_123 = arith.constant 7 : index
    %c0_124 = arith.constant 0 : index
    %c0_125 = arith.constant 0 : index
    %161 = vector.load %arg13[%c7_123, %c0_124, %c0_125] : memref<9x8x32xf32, #tpu.memory_space<vmem>>, vector<1x8x32xf32>
    %162 = vector.shape_cast %161 : vector<1x8x32xf32> to vector<8x32xf32>
    %cst_126 = arith.constant dense<0.000000e+00> : vector<8x64xf32>
    %163 = tpu.matmul %162, %117, %cst_126 {dimension_numbers = #tpu.dot_dimension_numbers<[1], [0], [0], [1], [0, 0, 1, 1], [], []>} : vector<8x32xf32>, vector<32x64xf32>, vector<8x64xf32> -> vector<8x64xf32>
    %c448 = arith.constant 448 : index
    %c0_127 = arith.constant 0 : index
    %164 = vector.load %arg4[%c448, %c0_127] : memref<576x128xf32, #tpu.memory_space<vmem>>, vector<64x128xf32>
    %cst_128 = arith.constant dense<0.000000e+00> : vector<8x128xf32>
    %165 = tpu.matmul %163, %164, %cst_128 {dimension_numbers = #tpu.dot_dimension_numbers<[1], [0], [0], [1], [0, 0, 1, 1], [], []>} : vector<8x64xf32>, vector<64x128xf32>, vector<8x128xf32> -> vector<8x128xf32>
    %166 = arith.addf %160, %165 : vector<8x128xf32>
    %c8_129 = arith.constant 8 : index
    %c0_130 = arith.constant 0 : index
    %c0_131 = arith.constant 0 : index
    %167 = vector.load %arg13[%c8_129, %c0_130, %c0_131] : memref<9x8x32xf32, #tpu.memory_space<vmem>>, vector<1x8x32xf32>
    %168 = vector.shape_cast %167 : vector<1x8x32xf32> to vector<8x32xf32>
    %cst_132 = arith.constant dense<0.000000e+00> : vector<8x64xf32>
    %169 = tpu.matmul %168, %117, %cst_132 {dimension_numbers = #tpu.dot_dimension_numbers<[1], [0], [0], [1], [0, 0, 1, 1], [], []>} : vector<8x32xf32>, vector<32x64xf32>, vector<8x64xf32> -> vector<8x64xf32>
    %c512 = arith.constant 512 : index
    %c0_133 = arith.constant 0 : index
    %170 = vector.load %arg4[%c512, %c0_133] : memref<576x128xf32, #tpu.memory_space<vmem>>, vector<64x128xf32>
    %cst_134 = arith.constant dense<0.000000e+00> : vector<8x128xf32>
    %171 = tpu.matmul %169, %170, %cst_134 {dimension_numbers = #tpu.dot_dimension_numbers<[1], [0], [0], [1], [0, 0, 1, 1], [], []>} : vector<8x64xf32>, vector<64x128xf32>, vector<8x128xf32> -> vector<8x128xf32>
    %172 = arith.addf %166, %171 : vector<8x128xf32>
    %cst_135 = arith.constant dense<0.000000e+00> : vector<128xf32>
    %173 = vector.multi_reduction <add>, %172, %cst_135 [0] : vector<8x128xf32> to vector<128xf32>
    %174 = vector.shape_cast %173 : vector<128xf32> to vector<1x128xf32>
    %cst_136 = arith.constant 1.250000e-01 : f32
    %175 = vector.broadcast %cst_136 : f32 to vector<1x128xf32>
    %176 = arith.mulf %174, %175 : vector<1x128xf32>
    %177 = arith.mulf %172, %172 : vector<8x128xf32>
    %cst_137 = arith.constant dense<0.000000e+00> : vector<128xf32>
    %178 = vector.multi_reduction <add>, %177, %cst_137 [0] : vector<8x128xf32> to vector<128xf32>
    %179 = vector.shape_cast %178 : vector<128xf32> to vector<1x128xf32>
    %cst_138 = arith.constant 1.250000e-01 : f32
    %180 = vector.broadcast %cst_138 : f32 to vector<1x128xf32>
    %181 = arith.mulf %179, %180 : vector<1x128xf32>
    %182 = arith.mulf %176, %176 : vector<1x128xf32>
    %183 = arith.subf %181, %182 : vector<1x128xf32>
    %cst_139 = arith.constant 0.000000e+00 : f32
    %184 = vector.broadcast %cst_139 : f32 to vector<1x128xf32>
    %185 = arith.maximumf %183, %184 : vector<1x128xf32>
    %c0_140 = arith.constant 0 : index
    %c0_141 = arith.constant 0 : index
    %186 = vector.load %arg9[%c0_140, %c0_141] : memref<2x128xf32, #tpu.memory_space<vmem>>, vector<1x128xf32>
    %cst_142 = arith.constant 9.99999974E-6 : f32
    %187 = vector.broadcast %cst_142 : f32 to vector<1x128xf32>
    %188 = arith.addf %185, %187 : vector<1x128xf32>
    %189 = math.rsqrt %188 : vector<1x128xf32>
    %190 = arith.mulf %186, %189 : vector<1x128xf32>
    %c1_143 = arith.constant 1 : index
    %c0_144 = arith.constant 0 : index
    %191 = vector.load %arg9[%c1_143, %c0_144] : memref<2x128xf32, #tpu.memory_space<vmem>>, vector<1x128xf32>
    %192 = arith.mulf %176, %190 : vector<1x128xf32>
    %193 = arith.subf %191, %192 : vector<1x128xf32>
    %194 = vector.broadcast %190 : vector<1x128xf32> to vector<8x128xf32>
    %195 = arith.mulf %172, %194 : vector<8x128xf32>
    %196 = vector.broadcast %193 : vector<1x128xf32> to vector<8x128xf32>
    %197 = arith.addf %195, %196 : vector<8x128xf32>
    %cst_145 = arith.constant 0.000000e+00 : f32
    %198 = vector.broadcast %cst_145 : f32 to vector<8x128xf32>
    %199 = arith.cmpf oge, %197, %198 : vector<8x128xf32>
    %cst_146 = arith.constant 0.00999999977 : f32
    %200 = vector.broadcast %cst_146 : f32 to vector<8x128xf32>
    %201 = arith.mulf %200, %197 : vector<8x128xf32>
    %202 = arith.select %199, %197, %201 : vector<8x128xi1>, vector<8x128xf32>
    %cst_147 = arith.constant 0.000000e+00 : f32
    %203 = vector.broadcast %cst_147 : f32 to vector<8x256xf32>
    %c0_148 = arith.constant 0 : index
    %c0_149 = arith.constant 0 : index
    %c0_150 = arith.constant 0 : index
    %204 = vector.load %arg14[%c0_148, %c0_149, %c0_150] : memref<9x8x8xf32, #tpu.memory_space<vmem>>, vector<1x8x8xf32>
    %205 = vector.shape_cast %204 : vector<1x8x8xf32> to vector<8x8xf32>
    %cst_151 = arith.constant dense<0.000000e+00> : vector<8x128xf32>
    %206 = tpu.matmul %205, %202, %cst_151 {dimension_numbers = #tpu.dot_dimension_numbers<[1], [0], [0], [1], [0, 0, 1, 1], [], []>} : vector<8x8xf32>, vector<8x128xf32>, vector<8x128xf32> -> vector<8x128xf32>
    %c0_152 = arith.constant 0 : index
    %c0_153 = arith.constant 0 : index
    %207 = vector.load %arg5[%c0_152, %c0_153] : memref<1152x256xf32, #tpu.memory_space<vmem>>, vector<128x256xf32>
    %cst_154 = arith.constant dense<0.000000e+00> : vector<8x256xf32>
    %208 = tpu.matmul %206, %207, %cst_154 {dimension_numbers = #tpu.dot_dimension_numbers<[1], [0], [0], [1], [0, 0, 1, 1], [], []>} : vector<8x128xf32>, vector<128x256xf32>, vector<8x256xf32> -> vector<8x256xf32>
    %209 = arith.addf %203, %208 : vector<8x256xf32>
    %c1_155 = arith.constant 1 : index
    %c0_156 = arith.constant 0 : index
    %c0_157 = arith.constant 0 : index
    %210 = vector.load %arg14[%c1_155, %c0_156, %c0_157] : memref<9x8x8xf32, #tpu.memory_space<vmem>>, vector<1x8x8xf32>
    %211 = vector.shape_cast %210 : vector<1x8x8xf32> to vector<8x8xf32>
    %cst_158 = arith.constant dense<0.000000e+00> : vector<8x128xf32>
    %212 = tpu.matmul %211, %202, %cst_158 {dimension_numbers = #tpu.dot_dimension_numbers<[1], [0], [0], [1], [0, 0, 1, 1], [], []>} : vector<8x8xf32>, vector<8x128xf32>, vector<8x128xf32> -> vector<8x128xf32>
    %c128_159 = arith.constant 128 : index
    %c0_160 = arith.constant 0 : index
    %213 = vector.load %arg5[%c128_159, %c0_160] : memref<1152x256xf32, #tpu.memory_space<vmem>>, vector<128x256xf32>
    %cst_161 = arith.constant dense<0.000000e+00> : vector<8x256xf32>
    %214 = tpu.matmul %212, %213, %cst_161 {dimension_numbers = #tpu.dot_dimension_numbers<[1], [0], [0], [1], [0, 0, 1, 1], [], []>} : vector<8x128xf32>, vector<128x256xf32>, vector<8x256xf32> -> vector<8x256xf32>
    %215 = arith.addf %209, %214 : vector<8x256xf32>
    %c2_162 = arith.constant 2 : index
    %c0_163 = arith.constant 0 : index
    %c0_164 = arith.constant 0 : index
    %216 = vector.load %arg14[%c2_162, %c0_163, %c0_164] : memref<9x8x8xf32, #tpu.memory_space<vmem>>, vector<1x8x8xf32>
    %217 = vector.shape_cast %216 : vector<1x8x8xf32> to vector<8x8xf32>
    %cst_165 = arith.constant dense<0.000000e+00> : vector<8x128xf32>
    %218 = tpu.matmul %217, %202, %cst_165 {dimension_numbers = #tpu.dot_dimension_numbers<[1], [0], [0], [1], [0, 0, 1, 1], [], []>} : vector<8x8xf32>, vector<8x128xf32>, vector<8x128xf32> -> vector<8x128xf32>
    %c256_166 = arith.constant 256 : index
    %c0_167 = arith.constant 0 : index
    %219 = vector.load %arg5[%c256_166, %c0_167] : memref<1152x256xf32, #tpu.memory_space<vmem>>, vector<128x256xf32>
    %cst_168 = arith.constant dense<0.000000e+00> : vector<8x256xf32>
    %220 = tpu.matmul %218, %219, %cst_168 {dimension_numbers = #tpu.dot_dimension_numbers<[1], [0], [0], [1], [0, 0, 1, 1], [], []>} : vector<8x128xf32>, vector<128x256xf32>, vector<8x256xf32> -> vector<8x256xf32>
    %221 = arith.addf %215, %220 : vector<8x256xf32>
    %c3_169 = arith.constant 3 : index
    %c0_170 = arith.constant 0 : index
    %c0_171 = arith.constant 0 : index
    %222 = vector.load %arg14[%c3_169, %c0_170, %c0_171] : memref<9x8x8xf32, #tpu.memory_space<vmem>>, vector<1x8x8xf32>
    %223 = vector.shape_cast %222 : vector<1x8x8xf32> to vector<8x8xf32>
    %cst_172 = arith.constant dense<0.000000e+00> : vector<8x128xf32>
    %224 = tpu.matmul %223, %202, %cst_172 {dimension_numbers = #tpu.dot_dimension_numbers<[1], [0], [0], [1], [0, 0, 1, 1], [], []>} : vector<8x8xf32>, vector<8x128xf32>, vector<8x128xf32> -> vector<8x128xf32>
    %c384_173 = arith.constant 384 : index
    %c0_174 = arith.constant 0 : index
    %225 = vector.load %arg5[%c384_173, %c0_174] : memref<1152x256xf32, #tpu.memory_space<vmem>>, vector<128x256xf32>
    %cst_175 = arith.constant dense<0.000000e+00> : vector<8x256xf32>
    %226 = tpu.matmul %224, %225, %cst_175 {dimension_numbers = #tpu.dot_dimension_numbers<[1], [0], [0], [1], [0, 0, 1, 1], [], []>} : vector<8x128xf32>, vector<128x256xf32>, vector<8x256xf32> -> vector<8x256xf32>
    %227 = arith.addf %221, %226 : vector<8x256xf32>
    %c4_176 = arith.constant 4 : index
    %c0_177 = arith.constant 0 : index
    %c0_178 = arith.constant 0 : index
    %228 = vector.load %arg14[%c4_176, %c0_177, %c0_178] : memref<9x8x8xf32, #tpu.memory_space<vmem>>, vector<1x8x8xf32>
    %229 = vector.shape_cast %228 : vector<1x8x8xf32> to vector<8x8xf32>
    %cst_179 = arith.constant dense<0.000000e+00> : vector<8x128xf32>
    %230 = tpu.matmul %229, %202, %cst_179 {dimension_numbers = #tpu.dot_dimension_numbers<[1], [0], [0], [1], [0, 0, 1, 1], [], []>} : vector<8x8xf32>, vector<8x128xf32>, vector<8x128xf32> -> vector<8x128xf32>
    %c512_180 = arith.constant 512 : index
    %c0_181 = arith.constant 0 : index
    %231 = vector.load %arg5[%c512_180, %c0_181] : memref<1152x256xf32, #tpu.memory_space<vmem>>, vector<128x256xf32>
    %cst_182 = arith.constant dense<0.000000e+00> : vector<8x256xf32>
    %232 = tpu.matmul %230, %231, %cst_182 {dimension_numbers = #tpu.dot_dimension_numbers<[1], [0], [0], [1], [0, 0, 1, 1], [], []>} : vector<8x128xf32>, vector<128x256xf32>, vector<8x256xf32> -> vector<8x256xf32>
    %233 = arith.addf %227, %232 : vector<8x256xf32>
    %c5_183 = arith.constant 5 : index
    %c0_184 = arith.constant 0 : index
    %c0_185 = arith.constant 0 : index
    %234 = vector.load %arg14[%c5_183, %c0_184, %c0_185] : memref<9x8x8xf32, #tpu.memory_space<vmem>>, vector<1x8x8xf32>
    %235 = vector.shape_cast %234 : vector<1x8x8xf32> to vector<8x8xf32>
    %cst_186 = arith.constant dense<0.000000e+00> : vector<8x128xf32>
    %236 = tpu.matmul %235, %202, %cst_186 {dimension_numbers = #tpu.dot_dimension_numbers<[1], [0], [0], [1], [0, 0, 1, 1], [], []>} : vector<8x8xf32>, vector<8x128xf32>, vector<8x128xf32> -> vector<8x128xf32>
    %c640 = arith.constant 640 : index
    %c0_187 = arith.constant 0 : index
    %237 = vector.load %arg5[%c640, %c0_187] : memref<1152x256xf32, #tpu.memory_space<vmem>>, vector<128x256xf32>
    %cst_188 = arith.constant dense<0.000000e+00> : vector<8x256xf32>
    %238 = tpu.matmul %236, %237, %cst_188 {dimension_numbers = #tpu.dot_dimension_numbers<[1], [0], [0], [1], [0, 0, 1, 1], [], []>} : vector<8x128xf32>, vector<128x256xf32>, vector<8x256xf32> -> vector<8x256xf32>
    %239 = arith.addf %233, %238 : vector<8x256xf32>
    %c6_189 = arith.constant 6 : index
    %c0_190 = arith.constant 0 : index
    %c0_191 = arith.constant 0 : index
    %240 = vector.load %arg14[%c6_189, %c0_190, %c0_191] : memref<9x8x8xf32, #tpu.memory_space<vmem>>, vector<1x8x8xf32>
    %241 = vector.shape_cast %240 : vector<1x8x8xf32> to vector<8x8xf32>
    %cst_192 = arith.constant dense<0.000000e+00> : vector<8x128xf32>
    %242 = tpu.matmul %241, %202, %cst_192 {dimension_numbers = #tpu.dot_dimension_numbers<[1], [0], [0], [1], [0, 0, 1, 1], [], []>} : vector<8x8xf32>, vector<8x128xf32>, vector<8x128xf32> -> vector<8x128xf32>
    %c768 = arith.constant 768 : index
    %c0_193 = arith.constant 0 : index
    %243 = vector.load %arg5[%c768, %c0_193] : memref<1152x256xf32, #tpu.memory_space<vmem>>, vector<128x256xf32>
    %cst_194 = arith.constant dense<0.000000e+00> : vector<8x256xf32>
    %244 = tpu.matmul %242, %243, %cst_194 {dimension_numbers = #tpu.dot_dimension_numbers<[1], [0], [0], [1], [0, 0, 1, 1], [], []>} : vector<8x128xf32>, vector<128x256xf32>, vector<8x256xf32> -> vector<8x256xf32>
    %245 = arith.addf %239, %244 : vector<8x256xf32>
    %c7_195 = arith.constant 7 : index
    %c0_196 = arith.constant 0 : index
    %c0_197 = arith.constant 0 : index
    %246 = vector.load %arg14[%c7_195, %c0_196, %c0_197] : memref<9x8x8xf32, #tpu.memory_space<vmem>>, vector<1x8x8xf32>
    %247 = vector.shape_cast %246 : vector<1x8x8xf32> to vector<8x8xf32>
    %cst_198 = arith.constant dense<0.000000e+00> : vector<8x128xf32>
    %248 = tpu.matmul %247, %202, %cst_198 {dimension_numbers = #tpu.dot_dimension_numbers<[1], [0], [0], [1], [0, 0, 1, 1], [], []>} : vector<8x8xf32>, vector<8x128xf32>, vector<8x128xf32> -> vector<8x128xf32>
    %c896 = arith.constant 896 : index
    %c0_199 = arith.constant 0 : index
    %249 = vector.load %arg5[%c896, %c0_199] : memref<1152x256xf32, #tpu.memory_space<vmem>>, vector<128x256xf32>
    %cst_200 = arith.constant dense<0.000000e+00> : vector<8x256xf32>
    %250 = tpu.matmul %248, %249, %cst_200 {dimension_numbers = #tpu.dot_dimension_numbers<[1], [0], [0], [1], [0, 0, 1, 1], [], []>} : vector<8x128xf32>, vector<128x256xf32>, vector<8x256xf32> -> vector<8x256xf32>
    %251 = arith.addf %245, %250 : vector<8x256xf32>
    %c8_201 = arith.constant 8 : index
    %c0_202 = arith.constant 0 : index
    %c0_203 = arith.constant 0 : index
    %252 = vector.load %arg14[%c8_201, %c0_202, %c0_203] : memref<9x8x8xf32, #tpu.memory_space<vmem>>, vector<1x8x8xf32>
    %253 = vector.shape_cast %252 : vector<1x8x8xf32> to vector<8x8xf32>
    %cst_204 = arith.constant dense<0.000000e+00> : vector<8x128xf32>
    %254 = tpu.matmul %253, %202, %cst_204 {dimension_numbers = #tpu.dot_dimension_numbers<[1], [0], [0], [1], [0, 0, 1, 1], [], []>} : vector<8x8xf32>, vector<8x128xf32>, vector<8x128xf32> -> vector<8x128xf32>
    %c1024 = arith.constant 1024 : index
    %c0_205 = arith.constant 0 : index
    %255 = vector.load %arg5[%c1024, %c0_205] : memref<1152x256xf32, #tpu.memory_space<vmem>>, vector<128x256xf32>
    %cst_206 = arith.constant dense<0.000000e+00> : vector<8x256xf32>
    %256 = tpu.matmul %254, %255, %cst_206 {dimension_numbers = #tpu.dot_dimension_numbers<[1], [0], [0], [1], [0, 0, 1, 1], [], []>} : vector<8x128xf32>, vector<128x256xf32>, vector<8x256xf32> -> vector<8x256xf32>
    %257 = arith.addf %251, %256 : vector<8x256xf32>
    %cst_207 = arith.constant dense<0.000000e+00> : vector<256xf32>
    %258 = vector.multi_reduction <add>, %257, %cst_207 [0] : vector<8x256xf32> to vector<256xf32>
    %259 = vector.shape_cast %258 : vector<256xf32> to vector<1x256xf32>
    %cst_208 = arith.constant 1.250000e-01 : f32
    %260 = vector.broadcast %cst_208 : f32 to vector<1x256xf32>
    %261 = arith.mulf %259, %260 : vector<1x256xf32>
    %262 = arith.mulf %257, %257 : vector<8x256xf32>
    %cst_209 = arith.constant dense<0.000000e+00> : vector<256xf32>
    %263 = vector.multi_reduction <add>, %262, %cst_209 [0] : vector<8x256xf32> to vector<256xf32>
    %264 = vector.shape_cast %263 : vector<256xf32> to vector<1x256xf32>
    %cst_210 = arith.constant 1.250000e-01 : f32
    %265 = vector.broadcast %cst_210 : f32 to vector<1x256xf32>
    %266 = arith.mulf %264, %265 : vector<1x256xf32>
    %267 = arith.mulf %261, %261 : vector<1x256xf32>
    %268 = arith.subf %266, %267 : vector<1x256xf32>
    %cst_211 = arith.constant 0.000000e+00 : f32
    %269 = vector.broadcast %cst_211 : f32 to vector<1x256xf32>
    %270 = arith.maximumf %268, %269 : vector<1x256xf32>
    %c0_212 = arith.constant 0 : index
    %c0_213 = arith.constant 0 : index
    %271 = vector.load %arg10[%c0_212, %c0_213] : memref<2x256xf32, #tpu.memory_space<vmem>>, vector<1x256xf32>
    %cst_214 = arith.constant 9.99999974E-6 : f32
    %272 = vector.broadcast %cst_214 : f32 to vector<1x256xf32>
    %273 = arith.addf %270, %272 : vector<1x256xf32>
    %274 = math.rsqrt %273 : vector<1x256xf32>
    %275 = arith.mulf %271, %274 : vector<1x256xf32>
    %c1_215 = arith.constant 1 : index
    %c0_216 = arith.constant 0 : index
    %276 = vector.load %arg10[%c1_215, %c0_216] : memref<2x256xf32, #tpu.memory_space<vmem>>, vector<1x256xf32>
    %277 = arith.mulf %261, %275 : vector<1x256xf32>
    %278 = arith.subf %276, %277 : vector<1x256xf32>
    %279 = vector.broadcast %275 : vector<1x256xf32> to vector<8x256xf32>
    %280 = arith.mulf %257, %279 : vector<8x256xf32>
    %281 = vector.broadcast %278 : vector<1x256xf32> to vector<8x256xf32>
    %282 = arith.addf %280, %281 : vector<8x256xf32>
    %cst_217 = arith.constant 0.000000e+00 : f32
    %283 = vector.broadcast %cst_217 : f32 to vector<8x256xf32>
    %284 = arith.cmpf oge, %282, %283 : vector<8x256xf32>
    %cst_218 = arith.constant 0.00999999977 : f32
    %285 = vector.broadcast %cst_218 : f32 to vector<8x256xf32>
    %286 = arith.mulf %285, %282 : vector<8x256xf32>
    %287 = arith.select %284, %282, %286 : vector<8x256xi1>, vector<8x256xf32>
    %c0_219 = arith.constant 0 : index
    %c0_220 = arith.constant 0 : index
    %288 = vector.load %arg6[%c0_219, %c0_220] : memref<256x1xf32, #tpu.memory_space<vmem>>, vector<256x1xf32>
    %cst_221 = arith.constant dense<0.000000e+00> : vector<8x1xf32>
    %289 = tpu.matmul %287, %288, %cst_221 {dimension_numbers = #tpu.dot_dimension_numbers<[1], [0], [0], [1], [0, 0, 1, 1], [], []>} : vector<8x256xf32>, vector<256x1xf32>, vector<8x1xf32> -> vector<8x1xf32>
    %cst_222 = arith.constant dense<0.000000e+00> : vector<1xf32>
    %290 = vector.multi_reduction <add>, %289, %cst_222 [0] : vector<8x1xf32> to vector<1xf32>
    %291 = vector.shape_cast %290 : vector<1xf32> to vector<1x1xf32>
    %cst_223 = arith.constant 1.250000e-01 : f32
    %292 = vector.broadcast %cst_223 : f32 to vector<1x1xf32>
    %293 = arith.mulf %291, %292 : vector<1x1xf32>
    %294 = arith.mulf %289, %289 : vector<8x1xf32>
    %cst_224 = arith.constant dense<0.000000e+00> : vector<1xf32>
    %295 = vector.multi_reduction <add>, %294, %cst_224 [0] : vector<8x1xf32> to vector<1xf32>
    %296 = vector.shape_cast %295 : vector<1xf32> to vector<1x1xf32>
    %cst_225 = arith.constant 1.250000e-01 : f32
    %297 = vector.broadcast %cst_225 : f32 to vector<1x1xf32>
    %298 = arith.mulf %296, %297 : vector<1x1xf32>
    %299 = arith.mulf %293, %293 : vector<1x1xf32>
    %300 = arith.subf %298, %299 : vector<1x1xf32>
    %cst_226 = arith.constant 0.000000e+00 : f32
    %301 = vector.broadcast %cst_226 : f32 to vector<1x1xf32>
    %302 = arith.maximumf %300, %301 : vector<1x1xf32>
    %c0_227 = arith.constant 0 : index
    %c0_228 = arith.constant 0 : index
    %303 = vector.load %arg11[%c0_227, %c0_228] : memref<2x1xf32, #tpu.memory_space<vmem>>, vector<1x1xf32>
    %cst_229 = arith.constant 9.99999974E-6 : f32
    %304 = vector.broadcast %cst_229 : f32 to vector<1x1xf32>
    %305 = arith.addf %302, %304 : vector<1x1xf32>
    %306 = math.rsqrt %305 : vector<1x1xf32>
    %307 = arith.mulf %303, %306 : vector<1x1xf32>
    %c1_230 = arith.constant 1 : index
    %c0_231 = arith.constant 0 : index
    %308 = vector.load %arg11[%c1_230, %c0_231] : memref<2x1xf32, #tpu.memory_space<vmem>>, vector<1x1xf32>
    %309 = arith.mulf %293, %307 : vector<1x1xf32>
    %310 = arith.subf %308, %309 : vector<1x1xf32>
    %311 = vector.broadcast %307 : vector<1x1xf32> to vector<8x1xf32>
    %312 = arith.mulf %289, %311 : vector<8x1xf32>
    %313 = vector.broadcast %310 : vector<1x1xf32> to vector<8x1xf32>
    %314 = arith.addf %312, %313 : vector<8x1xf32>
    %315 = arith.negf %314 : vector<8x1xf32>
    %316 = math.exp %315 : vector<8x1xf32>
    %cst_232 = arith.constant 1.000000e+00 : f32
    %317 = vector.broadcast %cst_232 : f32 to vector<8x1xf32>
    %318 = arith.addf %317, %316 : vector<8x1xf32>
    %319 = arith.divf %317, %318 : vector<8x1xf32>
    %c0_233 = arith.constant 0 : index
    %c0_234 = arith.constant 0 : index
    %320 = vector.load %arg15[%c0_233, %c0_234] : memref<8x1xf32, #tpu.memory_space<vmem>>, vector<8x1xf32>
    tpu.vector_store %arg15[%c0_233, %c0_234], %319 {strides = array<i32>} : memref<8x1xf32, #tpu.memory_space<vmem>>, vector<8x1xf32>,
    return
  }
  func.func @transform_0(%arg0: i32) -> (i32, i32) {
    %c0_i32 = arith.constant 0 : i32
    %c0_i32_0 = arith.constant 0 : i32
    %c0_i32_1 = arith.constant 0 : i32
    return %c0_i32, %c0_i32_0 : i32, i32
  }
  func.func @transform_1(%arg0: i32) -> (i32, i32) {
    %c0_i32 = arith.constant 0 : i32
    %c0_i32_0 = arith.constant 0 : i32
    %c0_i32_1 = arith.constant 0 : i32
    return %c0_i32, %c0_i32_0 : i32, i32
  }
  func.func @transform_2(%arg0: i32) -> (i32, i32) {
    %c0_i32 = arith.constant 0 : i32
    %c0_i32_0 = arith.constant 0 : i32
    %c0_i32_1 = arith.constant 0 : i32
    return %c0_i32, %c0_i32_0 : i32, i32
  }
  func.func @transform_3(%arg0: i32) -> (i32, i32) {
    %c0_i32 = arith.constant 0 : i32
    %c0_i32_0 = arith.constant 0 : i32
    %c0_i32_1 = arith.constant 0 : i32
    return %c0_i32, %c0_i32_0 : i32, i32
  }
  func.func @transform_4(%arg0: i32) -> (i32, i32) {
    %c0_i32 = arith.constant 0 : i32
    %c0_i32_0 = arith.constant 0 : i32
    %c0_i32_1 = arith.constant 0 : i32
    return %c0_i32, %c0_i32_0 : i32, i32
  }
  func.func @transform_5(%arg0: i32) -> (i32, i32) {
    %c0_i32 = arith.constant 0 : i32
    %c0_i32_0 = arith.constant 0 : i32
    %c0_i32_1 = arith.constant 0 : i32
    return %c0_i32, %c0_i32_0 : i32, i32
  }
  func.func @transform_6(%arg0: i32) -> (i32, i32) {
    %c0_i32 = arith.constant 0 : i32
    %c0_i32_0 = arith.constant 0 : i32
    %c0_i32_1 = arith.constant 0 : i32
    return %c0_i32, %c0_i32_0 : i32, i32
  }
  func.func @transform_7(%arg0: i32) -> (i32, i32) {
    %c0_i32 = arith.constant 0 : i32
    %c0_i32_0 = arith.constant 0 : i32
    %c0_i32_1 = arith.constant 0 : i32
    return %c0_i32, %c0_i32_0 : i32, i32
  }
  func.func @transform_8(%arg0: i32) -> (i32, i32) {
    %c0_i32 = arith.constant 0 : i32
    %c0_i32_0 = arith.constant 0 : i32
    %c0_i32_1 = arith.constant 0 : i32
    return %c0_i32, %c0_i32_0 : i32, i32
  }
  func.func @transform_9(%arg0: i32) -> (i32, i32) {
    %c0_i32 = arith.constant 0 : i32
    %c0_i32_0 = arith.constant 0 : i32
    %c0_i32_1 = arith.constant 0 : i32
    return %c0_i32, %c0_i32_0 : i32, i32
  }
  func.func @transform_10(%arg0: i32) -> (i32, i32) {
    %c0_i32 = arith.constant 0 : i32
    %c0_i32_0 = arith.constant 0 : i32
    %c0_i32_1 = arith.constant 0 : i32
    return %c0_i32, %c0_i32_0 : i32, i32
  }
  func.func @transform_11(%arg0: i32) -> (i32, i32, i32) {
    %c0_i32 = arith.constant 0 : i32
    %c0_i32_0 = arith.constant 0 : i32
    %c0_i32_1 = arith.constant 0 : i32
    %c0_i32_2 = arith.constant 0 : i32
    return %c0_i32, %c0_i32_0, %c0_i32_1 : i32, i32, i32
  }
  func.func @transform_12(%arg0: i32) -> (i32, i32, i32) {
    %c0_i32 = arith.constant 0 : i32
    %c0_i32_0 = arith.constant 0 : i32
    %c0_i32_1 = arith.constant 0 : i32
    %c0_i32_2 = arith.constant 0 : i32
    return %c0_i32, %c0_i32_0, %c0_i32_1 : i32, i32, i32
  }
  func.func @transform_13(%arg0: i32) -> (i32, i32, i32) {
    %c0_i32 = arith.constant 0 : i32
    %c0_i32_0 = arith.constant 0 : i32
    %c0_i32_1 = arith.constant 0 : i32
    %c0_i32_2 = arith.constant 0 : i32
    return %c0_i32, %c0_i32_0, %c0_i32_1 : i32, i32, i32
  }
  func.func @transform_14(%arg0: i32) -> (i32, i32) {
    %c0_i32 = arith.constant 0 : i32
    %c0_i32_0 = arith.constant 0 : i32
    %c0_i32_1 = arith.constant 0 : i32
    return %c0_i32, %c0_i32_0 : i32, i32
  }
}

</mosaic_0001>

<llo_original>
// kernel: tpu_custom_call.1
$region0: #{tpu_custom_call.1}
  #allocation0 [shape = 'u32[]', space=smem, size = 0x4, offset = 0x4, fixed_abs, tag = 'smem constant byte address 0x4 - core index']
  #allocation1 [shape = 'u32[144,128]{1,0:T(1,128)}', space=vmem, size = 0x12000, scoped, tag = 'internal scratch']
  %s0 = inlined_call_operand.vmem [shape: f32[128,81], index: 0, kind: input, shape index: {}]
  %s1 = inlined_call_operand.vmem [shape: f32[81,32], index: 1, kind: input, shape index: {}]
  %s2 = inlined_call_operand.vmem [shape: f32[288,64], index: 2, kind: input, shape index: {}]
  %s3 = inlined_call_operand.hbm [shape: f32[576,128], index: 3, kind: input, shape index: {}]
  %s4 = inlined_call_operand.hbm [shape: f32[1152,256], index: 4, kind: input, shape index: {}]
  %s5 = inlined_call_operand.vmem [shape: f32[256,1], index: 5, kind: input, shape index: {}]
  %s6 = inlined_call_operand.hbm [shape: f32[2,32], index: 6, kind: input, shape index: {}]
  %s7 = inlined_call_operand.hbm [shape: f32[2,64], index: 7, kind: input, shape index: {}]
  %s8 = inlined_call_operand.hbm [shape: f32[2,128], index: 8, kind: input, shape index: {}]
  %s9 = inlined_call_operand.hbm [shape: f32[2,256], index: 9, kind: input, shape index: {}]
  %s10 = inlined_call_operand.vmem [shape: f32[2,1], index: 10, kind: input, shape index: {}]
  %s11 = inlined_call_operand.hbm [shape: f32[9,32,128], index: 11, kind: input, shape index: {}]
  %s12 = inlined_call_operand.hbm [shape: f32[9,8,32], index: 12, kind: input, shape index: {}]
  %s13 = inlined_call_operand.vmem [shape: f32[9,8,8], index: 13, kind: input, shape index: {}]
  %s14 = inlined_call_operand.vmem [shape: f32[8,1], index: 14, kind: output, shape index: {}]
  %s15 = sld [smem:[#allocation0]]
  $region98: #{tpu_custom_call.1} parent=0
    _
  %s17 = ssub.s32 1, %s15
  %s18 = scalar_select 0, %s17, %s15
  $region1: #{tpu_custom_call.1} parent=0
    #allocation2 [shape = 'u8[294912]{0}', space=vmem, size = 0x48000, scoped, tag = 'input window, operand 3, single buffered']
    #allocation3 [shape = 's32[1]{0}', space=sflag, size = 0x4, scoped, tag = 'scoped memory for tpu_custom_call.1']
    #allocation4 [shape = 'u8[1179648]{0}', space=vmem, size = 0x120000, scoped, tag = 'input window, operand 4, single buffered']
    #allocation5 [shape = 's32[1]{0}', space=sflag, size = 0x4, scoped, tag = 'scoped memory for tpu_custom_call.1']
    #allocation6 [shape = 'u8[1024]{0}', space=vmem, size = 0x400, scoped, tag = 'input window, operand 6, single buffered']
    #allocation7 [shape = 'u8[1024]{0}', space=vmem, size = 0x400, scoped, tag = 'input window, operand 7, single buffered']
    #allocation8 [shape = 's32[1]{0}', space=sflag, size = 0x4, scoped, tag = 'scoped memory for tpu_custom_call.1']
    #allocation9 [shape = 'u8[1024]{0}', space=vmem, size = 0x400, scoped, tag = 'input window, operand 8, single buffered']
    #allocation10 [shape = 'u8[2048]{0}', space=vmem, size = 0x800, scoped, tag = 'input window, operand 9, single buffered']
    #allocation11 [shape = 's32[1]{0}', space=sflag, size = 0x4, scoped, tag = 'scoped memory for tpu_custom_call.1']
    #allocation12 [shape = 'u8[147456]{0}', space=vmem, size = 0x24000, scoped, tag = 'input window, operand 11, single buffered']
    #allocation13 [shape = 'u8[36864]{0}', space=vmem, size = 0x9000, scoped, tag = 'input window, operand 12, single buffered']
    #allocation14 [shape = 's32[1]{0}', space=sflag, size = 0x4, scoped, tag = 'scoped memory for tpu_custom_call.1']
    %19 = vsyncpa [#allocation3], 0
    %20 = vsyncpa [#allocation5], 0
    %21 = vsyncpa [#allocation8], 0
    %22 = vsyncpa [#allocation11], 0
    %23 = vsyncpa [#allocation14], 0
    // Predicated region
    $region2: #{tpu_custom_call.1} parent=1 // pred_check
      _
    $region3: #{tpu_custom_call.1} parent=1 // pred_check_branch
      %25 = sbr.rel (0) target = $region5
    $region4: #{tpu_custom_call.1} parent=1 // pred_region
      _
    $region5: #{tpu_custom_call.1} parent=1 // pred_fallthru
      _
    // Predicated region
    $region6: #{tpu_custom_call.1} parent=1 // pred_check
      _
    $region7: #{tpu_custom_call.1} parent=1 // pred_check_branch
      %27 = sbr.rel (0) target = $region9
    $region8: #{tpu_custom_call.1} parent=1 // pred_region
      _
    $region9: #{tpu_custom_call.1} parent=1 // pred_fallthru
      _
    // Predicated region
    $region10: #{tpu_custom_call.1} parent=1 // pred_check
      _
    $region11: #{tpu_custom_call.1} parent=1 // pred_check_branch
      %29 = sbr.rel (0) target = $region13
    $region12: #{tpu_custom_call.1} parent=1 // pred_region
      _
    $region13: #{tpu_custom_call.1} parent=1 // pred_fallthru
      _
    // Predicated region
    $region14: #{tpu_custom_call.1} parent=1 // pred_check
      _
    $region15: #{tpu_custom_call.1} parent=1 // pred_check_branch
      %31 = sbr.rel (0) target = $region17
    $region16: #{tpu_custom_call.1} parent=1 // pred_region
      %s33 = ssub.s32 9216, 9216
      %34 = vsyncadd [#allocation3], %s33
      %s35 = sshll.u32 [#allocation2], 4
      %s36 = int_to_ptr.vmem [resolvable:$true] %s35
      %41 = dma.hbm_to_vmem [thread:$0]  %s3, 9216, %s36, [#allocation3], 128, 128, 8
    $region17: #{tpu_custom_call.1} parent=1 // pred_fallthru
      _
    // Predicated region
    $region18: #{tpu_custom_call.1} parent=1 // pred_check
      _
    $region19: #{tpu_custom_call.1} parent=1 // pred_check_branch
      %43 = sbr.rel (0) target = $region21
    $region20: #{tpu_custom_call.1} parent=1 // pred_region
      %s45 = ssub.s32 36864, 36864
      %46 = vsyncadd [#allocation5], %s45
      %s47 = sshll.u32 [#allocation4], 4
      %s48 = int_to_ptr.vmem [resolvable:$true] %s47
      %53 = dma.hbm_to_vmem [thread:$0]  %s4, 36864, %s48, [#allocation5], 256, 256, 16
    $region21: #{tpu_custom_call.1} parent=1 // pred_fallthru
      _
    // Predicated region
    $region22: #{tpu_custom_call.1} parent=1 // pred_check
      _
    $region23: #{tpu_custom_call.1} parent=1 // pred_check_branch
      %55 = sbr.rel (0) target = $region25
    $region24: #{tpu_custom_call.1} parent=1 // pred_region
      _
    $region25: #{tpu_custom_call.1} parent=1 // pred_fallthru
      _
    // Predicated region
    $region26: #{tpu_custom_call.1} parent=1 // pred_check
      _
    $region27: #{tpu_custom_call.1} parent=1 // pred_check_branch
      %57 = sbr.rel (0) target = $region29
    $region28: #{tpu_custom_call.1} parent=1 // pred_region
      %s59 = ssub.s32 32, 32
      %60 = vsyncadd [#allocation5], %s59
      %s62 = sshll.u32 [#allocation6], 4
      %s63 = int_to_ptr.vmem [resolvable:$true] %s62
      %65 = dma.hbm_to_vmem [thread:$0]  %s6, 32, %s63, [#allocation5]
    $region29: #{tpu_custom_call.1} parent=1 // pred_fallthru
      _
    // Predicated region
    $region30: #{tpu_custom_call.1} parent=1 // pred_check
      _
    $region31: #{tpu_custom_call.1} parent=1 // pred_check_branch
      %67 = sbr.rel (0) target = $region33
    $region32: #{tpu_custom_call.1} parent=1 // pred_region
      %s69 = ssub.s32 32, 32
      %70 = vsyncadd [#allocation8], %s69
      %s72 = sshll.u32 [#allocation7], 4
      %s73 = int_to_ptr.vmem [resolvable:$true] %s72
      %75 = dma.hbm_to_vmem [thread:$0]  %s7, 32, %s73, [#allocation8]
    $region33: #{tpu_custom_call.1} parent=1 // pred_fallthru
      _
    // Predicated region
    $region34: #{tpu_custom_call.1} parent=1 // pred_check
      _
    $region35: #{tpu_custom_call.1} parent=1 // pred_check_branch
      %77 = sbr.rel (0) target = $region37
    $region36: #{tpu_custom_call.1} parent=1 // pred_region
      %s79 = ssub.s32 32, 32
      %80 = vsyncadd [#allocation8], %s79
      %s82 = sshll.u32 [#allocation9], 4
      %s83 = int_to_ptr.vmem [resolvable:$true] %s82
      %85 = dma.hbm_to_vmem [thread:$0]  %s8, 32, %s83, [#allocation8]
    $region37: #{tpu_custom_call.1} parent=1 // pred_fallthru
      _
    // Predicated region
    $region38: #{tpu_custom_call.1} parent=1 // pred_check
      _
    $region39: #{tpu_custom_call.1} parent=1 // pred_check_branch
      %87 = sbr.rel (0) target = $region41
    $region40: #{tpu_custom_call.1} parent=1 // pred_region
      %s89 = ssub.s32 64, 64
      %90 = vsyncadd [#allocation11], %s89
      %s92 = sshll.u32 [#allocation10], 4
      %s93 = int_to_ptr.vmem [resolvable:$true] %s92
      %95 = dma.hbm_to_vmem [thread:$0]  %s9, 64, %s93, [#allocation11]
    $region41: #{tpu_custom_call.1} parent=1 // pred_fallthru
      _
    // Predicated region
    $region42: #{tpu_custom_call.1} parent=1 // pred_check
      _
    $region43: #{tpu_custom_call.1} parent=1 // pred_check_branch
      %97 = sbr.rel (0) target = $region45
    $region44: #{tpu_custom_call.1} parent=1 // pred_region
      _
    $region45: #{tpu_custom_call.1} parent=1 // pred_fallthru
      _
    // Predicated region
    $region46: #{tpu_custom_call.1} parent=1 // pred_check
      _
    $region47: #{tpu_custom_call.1} parent=1 // pred_check_branch
      %99 = sbr.rel (0) target = $region49
    $region48: #{tpu_custom_call.1} parent=1 // pred_region
      %s101 = ssub.s32 4608, 4608
      %102 = vsyncadd [#allocation11], %s101
      %s103 = sshll.u32 [#allocation12], 4
      %s104 = int_to_ptr.vmem [resolvable:$true] %s103
      %109 = dma.hbm_to_vmem [thread:$0]  %s11, 4608, %s104, [#allocation11], 128, 128, 8
    $region49: #{tpu_custom_call.1} parent=1 // pred_fallthru
      _
    // Predicated region
    $region50: #{tpu_custom_call.1} parent=1 // pred_check
      _
    $region51: #{tpu_custom_call.1} parent=1 // pred_check_branch
      %111 = sbr.rel (0) target = $region53
    $region52: #{tpu_custom_call.1} parent=1 // pred_region
      %s113 = ssub.s32 1152, 1152
      %114 = vsyncadd [#allocation14], %s113
      %s115 = sshll.u32 [#allocation13], 4
      %s116 = int_to_ptr.vmem [resolvable:$true] %s115
      %121 = dma.hbm_to_vmem [thread:$0]  %s12, 1152, %s116, [#allocation14], 128, 128, 8
    $region53: #{tpu_custom_call.1} parent=1 // pred_fallthru
      _
    // Predicated region
    $region54: #{tpu_custom_call.1} parent=1 // pred_check
      _
    $region55: #{tpu_custom_call.1} parent=1 // pred_check_branch
      %123 = sbr.rel (0) target = $region57
    $region56: #{tpu_custom_call.1} parent=1 // pred_region
      _
    $region57: #{tpu_custom_call.1} parent=1 // pred_fallthru
      _
    // Predicated region
    $region58: #{tpu_custom_call.1} parent=1 // pred_check
      _
    $region59: #{tpu_custom_call.1} parent=1 // pred_check_branch
      %125 = sbr.rel (0) target = $region61
    $region60: #{tpu_custom_call.1} parent=1 // pred_region
      %126 = dma.done [#allocation3], 9216
    $region61: #{tpu_custom_call.1} parent=1 // pred_fallthru
      _
    // Predicated region
    $region62: #{tpu_custom_call.1} parent=1 // pred_check
      _
    $region63: #{tpu_custom_call.1} parent=1 // pred_check_branch
      %128 = sbr.rel (0) target = $region65
    $region64: #{tpu_custom_call.1} parent=1 // pred_region
      %129 = dma.done [#allocation5], 36864
    $region65: #{tpu_custom_call.1} parent=1 // pred_fallthru
      _
    // Predicated region
    $region66: #{tpu_custom_call.1} parent=1 // pred_check
      _
    $region67: #{tpu_custom_call.1} parent=1 // pred_check_branch
      %131 = sbr.rel (0) target = $region69
    $region68: #{tpu_custom_call.1} parent=1 // pred_region
      %132 = dma.done [#allocation5], 32
    $region69: #{tpu_custom_call.1} parent=1 // pred_fallthru
      _
    // Predicated region
    $region70: #{tpu_custom_call.1} parent=1 // pred_check
      _
    $region71: #{tpu_custom_call.1} parent=1 // pred_check_branch
      %134 = sbr.rel (0) target = $region73
    $region72: #{tpu_custom_call.1} parent=1 // pred_region
      %135 = dma.done [#allocation8], 32
    $region73: #{tpu_custom_call.1} parent=1 // pred_fallthru
      _
    // Predicated region
    $region74: #{tpu_custom_call.1} parent=1 // pred_check
      _
    $region75: #{tpu_custom_call.1} parent=1 // pred_check_branch
      %137 = sbr.rel (0) target = $region77
    $region76: #{tpu_custom_call.1} parent=1 // pred_region
      %138 = dma.done [#allocation8], 32
    $region77: #{tpu_custom_call.1} parent=1 // pred_fallthru
      _
    // Predicated region
    $region78: #{tpu_custom_call.1} parent=1 // pred_check
      _
    $region79: #{tpu_custom_call.1} parent=1 // pred_check_branch
      %140 = sbr.rel (0) target = $region81
    $region80: #{tpu_custom_call.1} parent=1 // pred_region
      %141 = dma.done [#allocation11], 64
    $region81: #{tpu_custom_call.1} parent=1 // pred_fallthru
      _
    // Predicated region
    $region82: #{tpu_custom_call.1} parent=1 // pred_check
      _
    $region83: #{tpu_custom_call.1} parent=1 // pred_check_branch
      %143 = sbr.rel (0) target = $region85
    $region84: #{tpu_custom_call.1} parent=1 // pred_region
      %144 = dma.done [#allocation11], 4608
    $region85: #{tpu_custom_call.1} parent=1 // pred_fallthru
      _
    // Predicated region
    $region86: #{tpu_custom_call.1} parent=1 // pred_check
      _
    $region87: #{tpu_custom_call.1} parent=1 // pred_check_branch
      %146 = sbr.rel (0) target = $region89
    $region88: #{tpu_custom_call.1} parent=1 // pred_region
      %147 = dma.done [#allocation14], 1152
    $region89: #{tpu_custom_call.1} parent=1 // pred_fallthru
      _
    %v148 = vld [vmem:[%s0] sm:$0xff]
    %v149 = vld [vmem:[%s0 + $0x8] sm:$0xff]
    %v150 = vld [vmem:[%s0 + $0x10] sm:$0xff]
    %v151 = vld [vmem:[%s0 + $0x18] sm:$0xff]
    %v152 = vld [vmem:[%s0 + $0x20] sm:$0xff]
    %v153 = vld [vmem:[%s0 + $0x28] sm:$0xff]
    %v154 = vld [vmem:[%s0 + $0x30] sm:$0xff]
    %v155 = vld [vmem:[%s0 + $0x38] sm:$0xff]
    %v156 = vld [vmem:[%s0 + $0x40] sm:$0xff]
    %v157 = vld [vmem:[%s0 + $0x48] sm:$0xff]
    %v158 = vld [vmem:[%s0 + $0x50] sm:$0xff]
    %v159 = vld [vmem:[%s0 + $0x58] sm:$0xff]
    %v160 = vld [vmem:[%s0 + $0x60] sm:$0xff]
    %v161 = vld [vmem:[%s0 + $0x68] sm:$0xff]
    %v162 = vld [vmem:[%s0 + $0x70] sm:$0xff]
    %v163 = vld [vmem:[%s0 + $0x78] sm:$0xff]
    %v164 = vld [vmem:[%s1] sm:$0xff]
    %v165 = vld [vmem:[%s1 + $0x8] sm:$0xff]
    %v166 = vld [vmem:[%s1 + $0x10] sm:$0xff]
    %v167 = vld [vmem:[%s1 + $0x18] sm:$0xff]
    %v168 = vld [vmem:[%s1 + $0x20] sm:$0xff]
    %v169 = vld [vmem:[%s1 + $0x28] sm:$0xff]
    %v170 = vld [vmem:[%s1 + $0x30] sm:$0xff]
    %v171 = vld [vmem:[%s1 + $0x38] sm:$0xff]
    %v172 = vld [vmem:[%s1 + $0x40] sm:$0xff]
    %v173 = vld [vmem:[%s1 + $0x48] sm:$0xff]
    %v174 = vld [vmem:[%s1 + $0x50] sm:$0x1]
    %vm175 = vcmask 662528
    %v177 = vsel %vm175, %v148, 0
    %v180 = vsel %vm175, %v149, 0
    %v183 = vsel %vm175, %v150, 0
    %v186 = vsel %vm175, %v151, 0
    %v189 = vsel %vm175, %v152, 0
    %v192 = vsel %vm175, %v153, 0
    %v195 = vsel %vm175, %v154, 0
    %v198 = vsel %vm175, %v155, 0
    %v201 = vsel %vm175, %v156, 0
    %v204 = vsel %vm175, %v157, 0
    %v207 = vsel %vm175, %v158, 0
    %v210 = vsel %vm175, %v159, 0
    %v213 = vsel %vm175, %v160, 0
    %v216 = vsel %vm175, %v161, 0
    %v219 = vsel %vm175, %v162, 0
    %v222 = vsel %vm175, %v163, 0
    %vm224 = vcmask 1040384
    %v226 = vsel %vm224, %v174, 0
    %228 = vmatprep.subr.mxu0 0.0
    %229 = vmatpush1.msra.mxu0 %v164
    %230 = vmatprep.subr.mxu0 0.0
    %231 = vmatpush1.msra.mxu0 %v165
    %232 = vmatprep.subr.mxu0 0.0
    %233 = vmatpush1.msra.mxu0 %v166
    %234 = vmatprep.subr.mxu0 0.0
    %235 = vmatpush1.msra.mxu0 %v167
    %236 = vmatprep.subr.mxu0 0.0
    %237 = vmatpush1.msra.mxu0 %v168
    %238 = vmatprep.subr.mxu0 0.0
    %239 = vmatpush1.msra.mxu0 %v169
    %240 = vmatprep.subr.mxu0 0.0
    %241 = vmatpush1.msra.mxu0 %v170
    %242 = vmatprep.subr.mxu0 0.0
    %243 = vmatpush1.msra.mxu0 %v171
    %244 = vmatprep.subr.mxu0 0.0
    %245 = vmatpush1.msra.mxu0 %v172
    %246 = vmatprep.subr.mxu0 0.0
    %247 = vmatpush1.msra.mxu0 %v173
    %248 = vmatprep.subr.mxu0 0.0
    %249 = vmatpush1.msra.mxu0 %v226
    %250 = vmatprep.subr.mxu0 0.0
    %251 = vmatpush1.msra.mxu0 0.0
    %252 = vmatprep.subr.mxu0 0.0
    %253 = vmatpush1.msra.mxu0 0.0
    %254 = vmatprep.subr.mxu0 0.0
    %255 = vmatpush1.msra.mxu0 0.0
    %256 = vmatprep.subr.mxu0 0.0
    %257 = vmatpush1.msra.mxu0 0.0
    %258 = vmatprep.subr.mxu0 0.0
    %259 = vmatpush1.msra.mxu0 0.0
    %260 = vmatprep.subr.mxu0 0.0
    %261 = vmatpush1.msra.mxu0 0.0
    %262 = vmatprep.subr.mxu0 0.0
    %263 = vmatpush1.msra.mxu0 0.0
    %264 = vmatprep.subr.mxu0 0.0
    %265 = vmatpush1.msra.mxu0 0.0
    %266 = vmatprep.subr.mxu0 0.0
    %267 = vmatpush1.msra.mxu0 0.0
    %268 = vmatprep.subr.mxu0 0.0
    %269 = vmatpush1.msra.mxu0 0.0
    %270 = vmatprep.subr.mxu0 0.0
    %271 = vmatpush1.msra.mxu0 0.0
    %272 = vmatprep.subr.mxu0 0.0
    %273 = vmatpush1.msra.mxu0 0.0
    %274 = vmatprep.subr.mxu0 0.0
    %275 = vmatpush1.msra.mxu0 0.0
    %276 = vmatprep.subr.mxu0 0.0
    %277 = vmatpush1.msra.mxu0 0.0
    %278 = vmatprep.subr.mxu0 0.0
    %279 = vmatpush1.msra.mxu0 0.0
    %280 = vmatprep.subr.mxu0 0.0
    %281 = vmatpush1.msra.mxu0 0.0
    %282 = vmatprep.subr.mxu0 0.0
    %283 = vmatpush1.msra.mxu0 0.0
    %284 = vmatprep.subr.mxu0 0.0
    %285 = vmatpush1.msra.mxu0 0.0
    %286 = vmatprep.subr.mxu0 0.0
    %287 = vmatpush1.msra.mxu0 0.0
    %288 = vmatprep.subr.mxu0 0.0
    %289 = vmatpush1.msra.mxu0 0.0
    %290 = vmatprep.subr.mxu0 0.0
    %291 = vmatpush1.msra.mxu0 0.0
    %292 = vmatprep.mubr.f32.mxu0 0.0
    %293 = vmatmul.mubr.f32.gmra.mrb[0].mxu0 %v177
    %v294 = vpop.f32.mrb[0].mxu0
    %v295 = vadd.f32 0.0, %v294
    %v296 = vpop.f32.mrb[0].mxu0
    %297 = vmatprep.mubr.f32.mxu0 0.0
    %298 = vmatmul.mubr.f32.gmra.mrb[0].mxu0 %v180
    %v299 = vpop.f32.mrb[0].mxu0
    %v300 = vadd.f32 0.0, %v299
    %v301 = vpop.f32.mrb[0].mxu0
    %302 = vmatprep.mubr.f32.mxu0 0.0
    %303 = vmatmul.mubr.f32.gmra.mrb[0].mxu0 %v183
    %v304 = vpop.f32.mrb[0].mxu0
    %v305 = vadd.f32 0.0, %v304
    %v306 = vpop.f32.mrb[0].mxu0
    %307 = vmatprep.mubr.f32.mxu0 0.0
    %308 = vmatmul.mubr.f32.gmra.mrb[0].mxu0 %v186
    %v309 = vpop.f32.mrb[0].mxu0
    %v310 = vadd.f32 0.0, %v309
    %v311 = vpop.f32.mrb[0].mxu0
    %312 = vmatprep.mubr.f32.mxu0 0.0
    %313 = vmatmul.mubr.f32.gmra.mrb[0].mxu0 %v189
    %v314 = vpop.f32.mrb[0].mxu0
    %v315 = vadd.f32 0.0, %v314
    %v316 = vpop.f32.mrb[0].mxu0
    %317 = vmatprep.mubr.f32.mxu0 0.0
    %318 = vmatmul.mubr.f32.gmra.mrb[0].mxu0 %v192
    %v319 = vpop.f32.mrb[0].mxu0
    %v320 = vadd.f32 0.0, %v319
    %v321 = vpop.f32.mrb[0].mxu0
    %322 = vmatprep.mubr.f32.mxu0 0.0
    %323 = vmatmul.mubr.f32.gmra.mrb[0].mxu0 %v195
    %v324 = vpop.f32.mrb[0].mxu0
    %v325 = vadd.f32 0.0, %v324
    %v326 = vpop.f32.mrb[0].mxu0
    %327 = vmatprep.mubr.f32.mxu0 0.0
    %328 = vmatmul.mubr.f32.gmra.mrb[0].mxu0 %v198
    %v329 = vpop.f32.mrb[0].mxu0
    %v330 = vadd.f32 0.0, %v329
    %v331 = vpop.f32.mrb[0].mxu0
    %332 = vmatprep.mubr.f32.mxu0 0.0
    %333 = vmatmul.mubr.f32.gmra.mrb[0].mxu0 %v201
    %v334 = vpop.f32.mrb[0].mxu0
    %v335 = vadd.f32 0.0, %v334
    %v336 = vpop.f32.mrb[0].mxu0
    %337 = vmatprep.mubr.f32.mxu0 0.0
    %338 = vmatmul.mubr.f32.gmra.mrb[0].mxu0 %v204
    %v339 = vpop.f32.mrb[0].mxu0
    %v340 = vadd.f32 0.0, %v339
    %v341 = vpop.f32.mrb[0].mxu0
    %342 = vmatprep.mubr.f32.mxu0 0.0
    %343 = vmatmul.mubr.f32.gmra.mrb[0].mxu0 %v207
    %v344 = vpop.f32.mrb[0].mxu0
    %v345 = vadd.f32 0.0, %v344
    %v346 = vpop.f32.mrb[0].mxu0
    %347 = vmatprep.mubr.f32.mxu0 0.0
    %348 = vmatmul.mubr.f32.gmra.mrb[0].mxu0 %v210
    %v349 = vpop.f32.mrb[0].mxu0
    %v350 = vadd.f32 0.0, %v349
    %v351 = vpop.f32.mrb[0].mxu0
    %352 = vmatprep.mubr.f32.mxu0 0.0
    %353 = vmatmul.mubr.f32.gmra.mrb[0].mxu0 %v213
    %v354 = vpop.f32.mrb[0].mxu0
    %v355 = vadd.f32 0.0, %v354
    %v356 = vpop.f32.mrb[0].mxu0
    %357 = vmatprep.mubr.f32.mxu0 0.0
    %358 = vmatmul.mubr.f32.gmra.mrb[0].mxu0 %v216
    %v359 = vpop.f32.mrb[0].mxu0
    %v360 = vadd.f32 0.0, %v359
    %v361 = vpop.f32.mrb[0].mxu0
    %362 = vmatprep.mubr.f32.mxu0 0.0
    %363 = vmatmul.mubr.f32.gmra.mrb[0].mxu0 %v219
    %v364 = vpop.f32.mrb[0].mxu0
    %v365 = vadd.f32 0.0, %v364
    %v366 = vpop.f32.mrb[0].mxu0
    %367 = vmatprep.mubr.f32.mxu0 0.0
    %368 = vmatmul.mubr.f32.gmra.mrb[0].mxu0 %v222
    %v369 = vpop.f32.mrb[0].mxu0
    %v370 = vadd.f32 0.0, %v369
    %v371 = vpop.f32.mrb[0].mxu0
    %372 = vdwg.mxu0
    %vm373 = vcmask 261120
    %v374 = vsel %vm373, %v295, 0.0
    %v375 = vsel %vm373, %v300, 0.0
    %v376 = vadd.f32 %v374, %v375
    %v377 = vsel %vm373, %v305, 0.0
    %v378 = vadd.f32 %v376, %v377
    %v379 = vsel %vm373, %v310, 0.0
    %v380 = vadd.f32 %v378, %v379
    %v381 = vsel %vm373, %v315, 0.0
    %v382 = vadd.f32 %v380, %v381
    %v383 = vsel %vm373, %v320, 0.0
    %v384 = vadd.f32 %v382, %v383
    %v385 = vsel %vm373, %v325, 0.0
    %v386 = vadd.f32 %v384, %v385
    %v387 = vsel %vm373, %v330, 0.0
    %v388 = vadd.f32 %v386, %v387
    %v389 = vsel %vm373, %v335, 0.0
    %v390 = vadd.f32 %v388, %v389
    %v391 = vsel %vm373, %v340, 0.0
    %v392 = vadd.f32 %v390, %v391
    %v393 = vsel %vm373, %v345, 0.0
    %v394 = vadd.f32 %v392, %v393
    %v395 = vsel %vm373, %v350, 0.0
    %v396 = vadd.f32 %v394, %v395
    %v397 = vsel %vm373, %v355, 0.0
    %v398 = vadd.f32 %v396, %v397
    %v399 = vsel %vm373, %v360, 0.0
    %v400 = vadd.f32 %v398, %v399
    %v401 = vsel %vm373, %v365, 0.0
    %v402 = vadd.f32 %v400, %v401
    %v403 = vsel %vm373, %v370, 0.0
    %v404 = vadd.f32 %v402, %v403
    %v405 = vrot.slane %v404, 4
    %v406 = vadd.f32 %v404, %v405
    %v407 = vrot.slane %v406, 2
    %v408 = vadd.f32 %v406, %v407
    %v409 = vrot.slane %v408, 1
    %v410 = vadd.f32 %v408, %v409
    %v411 = vmul.f32 %v410, 0.0078125
    %v412 = vmul.f32 %v295, %v295
    %v413 = vmul.f32 %v300, %v300
    %v414 = vmul.f32 %v305, %v305
    %v415 = vmul.f32 %v310, %v310
    %v416 = vmul.f32 %v315, %v315
    %v417 = vmul.f32 %v320, %v320
    %v418 = vmul.f32 %v325, %v325
    %v419 = vmul.f32 %v330, %v330
    %v420 = vmul.f32 %v335, %v335
    %v421 = vmul.f32 %v340, %v340
    %v422 = vmul.f32 %v345, %v345
    %v423 = vmul.f32 %v350, %v350
    %v424 = vmul.f32 %v355, %v355
    %v425 = vmul.f32 %v360, %v360
    %v426 = vmul.f32 %v365, %v365
    %v427 = vmul.f32 %v370, %v370
    %v428 = vsel %vm373, %v412, 0.0
    %v429 = vsel %vm373, %v413, 0.0
    %v430 = vadd.f32 %v428, %v429
    %v431 = vsel %vm373, %v414, 0.0
    %v432 = vadd.f32 %v430, %v431
    %v433 = vsel %vm373, %v415, 0.0
    %v434 = vadd.f32 %v432, %v433
    %v435 = vsel %vm373, %v416, 0.0
    %v436 = vadd.f32 %v434, %v435
    %v437 = vsel %vm373, %v417, 0.0
    %v438 = vadd.f32 %v436, %v437
    %v439 = vsel %vm373, %v418, 0.0
    %v440 = vadd.f32 %v438, %v439
    %v441 = vsel %vm373, %v419, 0.0
    %v442 = vadd.f32 %v440, %v441
    %v443 = vsel %vm373, %v420, 0.0
    %v444 = vadd.f32 %v442, %v443
    %v445 = vsel %vm373, %v421, 0.0
    %v446 = vadd.f32 %v444, %v445
    %v447 = vsel %vm373, %v422, 0.0
    %v448 = vadd.f32 %v446, %v447
    %v449 = vsel %vm373, %v423, 0.0
    %v450 = vadd.f32 %v448, %v449
    %v451 = vsel %vm373, %v424, 0.0
    %v452 = vadd.f32 %v450, %v451
    %v453 = vsel %vm373, %v425, 0.0
    %v454 = vadd.f32 %v452, %v453
    %v455 = vsel %vm373, %v426, 0.0
    %v456 = vadd.f32 %v454, %v455
    %v457 = vsel %vm373, %v427, 0.0
    %v458 = vadd.f32 %v456, %v457
    %v459 = vrot.slane %v458, 4
    %v460 = vadd.f32 %v458, %v459
    %v461 = vrot.slane %v460, 2
    %v462 = vadd.f32 %v460, %v461
    %v463 = vrot.slane %v462, 1
    %v464 = vadd.f32 %v462, %v463
    %v465 = vmul.f32 %v464, 0.0078125
    %v466 = vmul.f32 %v411, %v411
    %v467 = vsub.f32 %v465, %v466
    %v468 = vmax.f32 %v467, 0.0
    %v469 = vld [vmem:[#allocation6] sm:$0x1]
    %v470 = vadd.f32 %v468, 1e-05
    %v471 = vrsqrt.pop %v470
    %v472 = vmul.f32 %v469, %v471
    %v473 = vld [vmem:[#allocation6 + $0x1] sm:$0x1]
    %v474 = vmul.f32 %v411, %v472
    %v475 = vsub.f32 %v473, %v474
    %v476 = vlaneseq
    %v477 = vshrl.u32 %v476, 7
    %v478 = vsub.s32 0, %v477
    %v479 = vrot.slane %v472, %v478
    %v480 = vmul.f32 %v295, %v479
    %v481 = vmul.f32 %v300, %v479
    %v482 = vmul.f32 %v305, %v479
    %v483 = vmul.f32 %v310, %v479
    %v484 = vmul.f32 %v315, %v479
    %v485 = vmul.f32 %v320, %v479
    %v486 = vmul.f32 %v325, %v479
    %v487 = vmul.f32 %v330, %v479
    %v488 = vmul.f32 %v335, %v479
    %v489 = vmul.f32 %v340, %v479
    %v490 = vmul.f32 %v345, %v479
    %v491 = vmul.f32 %v350, %v479
    %v492 = vmul.f32 %v355, %v479
    %v493 = vmul.f32 %v360, %v479
    %v494 = vmul.f32 %v365, %v479
    %v495 = vmul.f32 %v370, %v479
    %v496 = vlaneseq
    %v497 = vshrl.u32 %v496, 7
    %v498 = vsub.s32 0, %v497
    %v499 = vrot.slane %v475, %v498
    %v500 = vadd.f32 %v480, %v499
    %v501 = vadd.f32 %v481, %v499
    %v502 = vadd.f32 %v482, %v499
    %v503 = vadd.f32 %v483, %v499
    %v504 = vadd.f32 %v484, %v499
    %v505 = vadd.f32 %v485, %v499
    %v506 = vadd.f32 %v486, %v499
    %v507 = vadd.f32 %v487, %v499
    %v508 = vadd.f32 %v488, %v499
    %v509 = vadd.f32 %v489, %v499
    %v510 = vadd.f32 %v490, %v499
    %v511 = vadd.f32 %v491, %v499
    %v512 = vadd.f32 %v492, %v499
    %v513 = vadd.f32 %v493, %v499
    %v514 = vadd.f32 %v494, %v499
    %v515 = vadd.f32 %v495, %v499
    %vm516 = vcmp.ge.f32.partialorder %v500, 0.0
    %vm517 = vcmp.ge.f32.partialorder %v501, 0.0
    %vm518 = vcmp.ge.f32.partialorder %v502, 0.0
    %vm519 = vcmp.ge.f32.partialorder %v503, 0.0
    %vm520 = vcmp.ge.f32.partialorder %v504, 0.0
    %vm521 = vcmp.ge.f32.partialorder %v505, 0.0
    %vm522 = vcmp.ge.f32.partialorder %v506, 0.0
    %vm523 = vcmp.ge.f32.partialorder %v507, 0.0
    %vm524 = vcmp.ge.f32.partialorder %v508, 0.0
    %vm525 = vcmp.ge.f32.partialorder %v509, 0.0
    %vm526 = vcmp.ge.f32.partialorder %v510, 0.0
    %vm527 = vcmp.ge.f32.partialorder %v511, 0.0
    %vm528 = vcmp.ge.f32.partialorder %v512, 0.0
    %vm529 = vcmp.ge.f32.partialorder %v513, 0.0
    %vm530 = vcmp.ge.f32.partialorder %v514, 0.0
    %vm531 = vcmp.ge.f32.partialorder %v515, 0.0
    %v532 = vmul.f32 %v500, 0.01
    %v533 = vmul.f32 %v501, 0.01
    %v534 = vmul.f32 %v502, 0.01
    %v535 = vmul.f32 %v503, 0.01
    %v536 = vmul.f32 %v504, 0.01
    %v537 = vmul.f32 %v505, 0.01
    %v538 = vmul.f32 %v506, 0.01
    %v539 = vmul.f32 %v507, 0.01
    %v540 = vmul.f32 %v508, 0.01
    %v541 = vmul.f32 %v509, 0.01
    %v542 = vmul.f32 %v510, 0.01
    %v543 = vmul.f32 %v511, 0.01
    %v544 = vmul.f32 %v512, 0.01
    %v545 = vmul.f32 %v513, 0.01
    %v546 = vmul.f32 %v514, 0.01
    %v547 = vmul.f32 %v515, 0.01
    %v548 = vsel %vm516, %v500, %v532
    %v549 = vsel %vm517, %v501, %v533
    %v550 = vsel %vm518, %v502, %v534
    %v551 = vsel %vm519, %v503, %v535
    %v552 = vsel %vm520, %v504, %v536
    %v553 = vsel %vm521, %v505, %v537
    %v554 = vsel %vm522, %v506, %v538
    %v555 = vsel %vm523, %v507, %v539
    %v556 = vsel %vm524, %v508, %v540
    %v557 = vsel %vm525, %v509, %v541
    %v558 = vsel %vm526, %v510, %v542
    %v559 = vsel %vm527, %v511, %v543
    %v560 = vsel %vm528, %v512, %v544
    %v561 = vsel %vm529, %v513, %v545
    %v562 = vsel %vm530, %v514, %v546
    %v563 = vsel %vm531, %v515, %v547
    %v564 = vld [vmem:[#allocation12] sm:$0xff]
    %v565 = vld [vmem:[#allocation12 + $0x8] sm:$0xff]
    %v566 = vld [vmem:[#allocation12 + $0x10] sm:$0xff]
    %v567 = vld [vmem:[#allocation12 + $0x18] sm:$0xff]
    %568 = vmatprep.subr.mxu0 0.0
    %569 = vmatpush1.msra.mxu0 %v548
    %570 = vmatprep.subr.mxu0 0.0
    %571 = vmatpush1.msra.mxu0 %v549
    %572 = vmatprep.subr.mxu0 0.0
    %573 = vmatpush1.msra.mxu0 %v550
    %574 = vmatprep.subr.mxu0 0.0
    %575 = vmatpush1.msra.mxu0 %v551
    %576 = vmatprep.subr.mxu0 0.0
    %577 = vmatpush1.msra.mxu0 %v552
    %578 = vmatprep.subr.mxu0 0.0
    %579 = vmatpush1.msra.mxu0 %v553
    %580 = vmatprep.subr.mxu0 0.0
    %581 = vmatpush1.msra.mxu0 %v554
    %582 = vmatprep.subr.mxu0 0.0
    %583 = vmatpush1.msra.mxu0 %v555
    %584 = vmatprep.subr.mxu0 0.0
    %585 = vmatpush1.msra.mxu0 %v556
    %586 = vmatprep.subr.mxu0 0.0
    %587 = vmatpush1.msra.mxu0 %v557
    %588 = vmatprep.subr.mxu0 0.0
    %589 = vmatpush1.msra.mxu0 %v558
    %590 = vmatprep.subr.mxu0 0.0
    %591 = vmatpush1.msra.mxu0 %v559
    %592 = vmatprep.subr.mxu0 0.0
    %593 = vmatpush1.msra.mxu0 %v560
    %594 = vmatprep.subr.mxu0 0.0
    %595 = vmatpush1.msra.mxu0 %v561
    %596 = vmatprep.subr.mxu0 0.0
    %597 = vmatpush1.msra.mxu0 %v562
    %598 = vmatprep.subr.mxu0 0.0
    %599 = vmatpush1.msra.mxu0 %v563
    %600 = vmatprep.subr.mxu0 0.0
    %601 = vmatpush1.msra.mxu0 0.0
    %602 = vmatprep.subr.mxu0 0.0
    %603 = vmatpush1.msra.mxu0 0.0
    %604 = vmatprep.subr.mxu0 0.0
    %605 = vmatpush1.msra.mxu0 0.0
    %606 = vmatprep.subr.mxu0 0.0
    %607 = vmatpush1.msra.mxu0 0.0
    %608 = vmatprep.subr.mxu0 0.0
    %609 = vmatpush1.msra.mxu0 0.0
    %610 = vmatprep.subr.mxu0 0.0
    %611 = vmatpush1.msra.mxu0 0.0
    %612 = vmatprep.subr.mxu0 0.0
    %613 = vmatpush1.msra.mxu0 0.0
    %614 = vmatprep.subr.mxu0 0.0
    %615 = vmatpush1.msra.mxu0 0.0
    %616 = vmatprep.subr.mxu0 0.0
    %617 = vmatpush1.msra.mxu0 0.0
    %618 = vmatprep.subr.mxu0 0.0
    %619 = vmatpush1.msra.mxu0 0.0
    %620 = vmatprep.subr.mxu0 0.0
    %621 = vmatpush1.msra.mxu0 0.0
    %622 = vmatprep.subr.mxu0 0.0
    %623 = vmatpush1.msra.mxu0 0.0
    %624 = vmatprep.subr.mxu0 0.0
    %625 = vmatpush1.msra.mxu0 0.0
    %626 = vmatprep.subr.mxu0 0.0
    %627 = vmatpush1.msra.mxu0 0.0
    %628 = vmatprep.subr.mxu0 0.0
    %629 = vmatpush1.msra.mxu0 0.0
    %630 = vmatprep.subr.mxu0 0.0
    %631 = vmatpush1.msra.mxu0 0.0
    %632 = vmatprep.mubr.f32.mxu0 0.0
    %633 = vmatmul.mubr.f32.gmra.mrb[0].mxu0 %v564
    %v634 = vpop.f32.mrb[0].mxu0
    %v635 = vadd.f32 0.0, %v634
    %v636 = vpop.f32.mrb[0].mxu0
    %637 = vmatprep.mubr.f32.mxu0 0.0
    %638 = vmatmul.mubr.f32.gmra.mrb[0].mxu0 %v565
    %v639 = vpop.f32.mrb[0].mxu0
    %v640 = vadd.f32 0.0, %v639
    %v641 = vpop.f32.mrb[0].mxu0
    %642 = vmatprep.mubr.f32.mxu0 0.0
    %643 = vmatmul.mubr.f32.gmra.mrb[0].mxu0 %v566
    %v644 = vpop.f32.mrb[0].mxu0
    %v645 = vadd.f32 0.0, %v644
    %v646 = vpop.f32.mrb[0].mxu0
    %647 = vmatprep.mubr.f32.mxu0 0.0
    %648 = vmatmul.mubr.f32.gmra.mrb[0].mxu0 %v567
    %v649 = vpop.f32.mrb[0].mxu0
    %v650 = vadd.f32 0.0, %v649
    %v651 = vpop.f32.mrb[0].mxu0
    %652 = vdwg.mxu0
    %v653 = vld [vmem:[%s2] sm:$0xff]
    %v654 = vld [vmem:[%s2 + $0x8] sm:$0xff]
    %v655 = vld [vmem:[%s2 + $0x10] sm:$0xff]
    %v656 = vld [vmem:[%s2 + $0x18] sm:$0xff]
    %s657 = scalar_lea.vmem [#allocation12], 32
    %v658 = vld [vmem:[%s657] sm:$0xff]
    %v659 = vld [vmem:[%s657 + $0x8] sm:$0xff]
    %v660 = vld [vmem:[%s657 + $0x10] sm:$0xff]
    %v661 = vld [vmem:[%s657 + $0x18] sm:$0xff]
    %662 = vmatprep.subr.mxu0 0.0
    %663 = vmatpush1.msra.mxu0 %v548
    %664 = vmatprep.subr.mxu0 0.0
    %665 = vmatpush1.msra.mxu0 %v549
    %666 = vmatprep.subr.mxu0 0.0
    %667 = vmatpush1.msra.mxu0 %v550
    %668 = vmatprep.subr.mxu0 0.0
    %669 = vmatpush1.msra.mxu0 %v551
    %670 = vmatprep.subr.mxu0 0.0
    %671 = vmatpush1.msra.mxu0 %v552
    %672 = vmatprep.subr.mxu0 0.0
    %673 = vmatpush1.msra.mxu0 %v553
    %674 = vmatprep.subr.mxu0 0.0
    %675 = vmatpush1.msra.mxu0 %v554
    %676 = vmatprep.subr.mxu0 0.0
    %677 = vmatpush1.msra.mxu0 %v555
    %678 = vmatprep.subr.mxu0 0.0
    %679 = vmatpush1.msra.mxu0 %v556
    %680 = vmatprep.subr.mxu0 0.0
    %681 = vmatpush1.msra.mxu0 %v557
    %682 = vmatprep.subr.mxu0 0.0
    %683 = vmatpush1.msra.mxu0 %v558
    %684 = vmatprep.subr.mxu0 0.0
    %685 = vmatpush1.msra.mxu0 %v559
    %686 = vmatprep.subr.mxu0 0.0
    %687 = vmatpush1.msra.mxu0 %v560
    %688 = vmatprep.subr.mxu0 0.0
    %689 = vmatpush1.msra.mxu0 %v561
    %690 = vmatprep.subr.mxu0 0.0
    %691 = vmatpush1.msra.mxu0 %v562
    %692 = vmatprep.subr.mxu0 0.0
    %693 = vmatpush1.msra.mxu0 %v563
    %694 = vmatprep.subr.mxu0 0.0
    %695 = vmatpush1.msra.mxu0 0.0
    %696 = vmatprep.subr.mxu0 0.0
    %697 = vmatpush1.msra.mxu0 0.0
    %698 = vmatprep.subr.mxu0 0.0
    %699 = vmatpush1.msra.mxu0 0.0
    %700 = vmatprep.subr.mxu0 0.0
    %701 = vmatpush1.msra.mxu0 0.0
    %702 = vmatprep.subr.mxu0 0.0
    %703 = vmatpush1.msra.mxu0 0.0
    %704 = vmatprep.subr.mxu0 0.0
    %705 = vmatpush1.msra.mxu0 0.0
    %706 = vmatprep.subr.mxu0 0.0
    %707 = vmatpush1.msra.mxu0 0.0
    %708 = vmatprep.subr.mxu0 0.0
    %709 = vmatpush1.msra.mxu0 0.0
    %710 = vmatprep.subr.mxu0 0.0
    %711 = vmatpush1.msra.mxu0 0.0
    %712 = vmatprep.subr.mxu0 0.0
    %713 = vmatpush1.msra.mxu0 0.0
    %714 = vmatprep.subr.mxu0 0.0
    %715 = vmatpush1.msra.mxu0 0.0
    %716 = vmatprep.subr.mxu0 0.0
    %717 = vmatpush1.msra.mxu0 0.0
    %718 = vmatprep.subr.mxu0 0.0
    %719 = vmatpush1.msra.mxu0 0.0
    %720 = vmatprep.subr.mxu0 0.0
    %721 = vmatpush1.msra.mxu0 0.0
    %722 = vmatprep.subr.mxu0 0.0
    %723 = vmatpush1.msra.mxu0 0.0
    %724 = vmatprep.subr.mxu0 0.0
    %725 = vmatpush1.msra.mxu0 0.0
    %726 = vmatprep.mubr.f32.mxu0 0.0
    %727 = vmatmul.mubr.f32.gmra.mrb[0].mxu0 %v658
    %v728 = vpop.f32.mrb[0].mxu0
    %v729 = vadd.f32 0.0, %v728
    %v730 = vpop.f32.mrb[0].mxu0
    %731 = vmatprep.mubr.f32.mxu0 0.0
    %732 = vmatmul.mubr.f32.gmra.mrb[0].mxu0 %v659
    %v733 = vpop.f32.mrb[0].mxu0
    %v734 = vadd.f32 0.0, %v733
    %v735 = vpop.f32.mrb[0].mxu0
    %736 = vmatprep.mubr.f32.mxu0 0.0
    %737 = vmatmul.mubr.f32.gmra.mrb[0].mxu0 %v660
    %v738 = vpop.f32.mrb[0].mxu0
    %v739 = vadd.f32 0.0, %v738
    %v740 = vpop.f32.mrb[0].mxu0
    %741 = vmatprep.mubr.f32.mxu0 0.0
    %742 = vmatmul.mubr.f32.gmra.mrb[0].mxu0 %v661
    %v743 = vpop.f32.mrb[0].mxu0
    %v744 = vadd.f32 0.0, %v743
    %v745 = vpop.f32.mrb[0].mxu0
    %746 = vdwg.mxu0
    %v747 = vld [vmem:[%s2 + $0x20] sm:$0xff]
    %v748 = vld [vmem:[%s2 + $0x28] sm:$0xff]
    %v749 = vld [vmem:[%s2 + $0x30] sm:$0xff]
    %v750 = vld [vmem:[%s2 + $0x38] sm:$0xff]
    %v752 = vsel %vm373, %v729, 0
    %v755 = vsel %vm373, %v734, 0
    %v758 = vsel %vm373, %v739, 0
    %v761 = vsel %vm373, %v744, 0
    %763 = vmatprep.subr.mxu0 0.0
    %764 = vmatpush1.msra.mxu0 %v747
    %765 = vmatprep.subr.mxu0 0.0
    %766 = vmatpush1.msra.mxu0 %v748
    %767 = vmatprep.subr.mxu0 0.0
    %768 = vmatpush1.msra.mxu0 %v749
    %769 = vmatprep.subr.mxu0 0.0
    %770 = vmatpush1.msra.mxu0 %v750
    %771 = vmatprep.subr.mxu0 0.0
    %772 = vmatpush1.msra.mxu0 0.0
    %773 = vmatprep.subr.mxu0 0.0
    %774 = vmatpush1.msra.mxu0 0.0
    %775 = vmatprep.subr.mxu0 0.0
    %776 = vmatpush1.msra.mxu0 0.0
    %777 = vmatprep.subr.mxu0 0.0
    %778 = vmatpush1.msra.mxu0 0.0
    %779 = vmatprep.subr.mxu0 0.0
    %780 = vmatpush1.msra.mxu0 0.0
    %781 = vmatprep.subr.mxu0 0.0
    %782 = vmatpush1.msra.mxu0 0.0
    %783 = vmatprep.subr.mxu0 0.0
    %784 = vmatpush1.msra.mxu0 0.0
    %785 = vmatprep.subr.mxu0 0.0
    %786 = vmatpush1.msra.mxu0 0.0
    %787 = vmatprep.subr.mxu0 0.0
    %788 = vmatpush1.msra.mxu0 0.0
    %789 = vmatprep.subr.mxu0 0.0
    %790 = vmatpush1.msra.mxu0 0.0
    %791 = vmatprep.subr.mxu0 0.0
    %792 = vmatpush1.msra.mxu0 0.0
    %793 = vmatprep.subr.mxu0 0.0
    %794 = vmatpush1.msra.mxu0 0.0
    %795 = vmatprep.subr.mxu0 0.0
    %796 = vmatpush1.msra.mxu0 0.0
    %797 = vmatprep.subr.mxu0 0.0
    %798 = vmatpush1.msra.mxu0 0.0
    %799 = vmatprep.subr.mxu0 0.0
    %800 = vmatpush1.msra.mxu0 0.0
    %801 = vmatprep.subr.mxu0 0.0
    %802 = vmatpush1.msra.mxu0 0.0
    %803 = vmatprep.subr.mxu0 0.0
    %804 = vmatpush1.msra.mxu0 0.0
    %805 = vmatprep.subr.mxu0 0.0
    %806 = vmatpush1.msra.mxu0 0.0
    %807 = vmatprep.subr.mxu0 0.0
    %808 = vmatpush1.msra.mxu0 0.0
    %809 = vmatprep.subr.mxu0 0.0
    %810 = vmatpush1.msra.mxu0 0.0
    %811 = vmatprep.subr.mxu0 0.0
    %812 = vmatpush1.msra.mxu0 0.0
    %813 = vmatprep.subr.mxu0 0.0
    %814 = vmatpush1.msra.mxu0 0.0
    %815 = vmatprep.subr.mxu0 0.0
    %816 = vmatpush1.msra.mxu0 0.0
    %817 = vmatprep.subr.mxu0 0.0
    %818 = vmatpush1.msra.mxu0 0.0
    %819 = vmatprep.subr.mxu0 0.0
    %820 = vmatpush1.msra.mxu0 0.0
    %821 = vmatprep.subr.mxu0 0.0
    %822 = vmatpush1.msra.mxu0 0.0
    %823 = vmatprep.subr.mxu0 0.0
    %824 = vmatpush1.msra.mxu0 0.0
    %825 = vmatprep.subr.mxu0 0.0
    %826 = vmatpush1.msra.mxu0 0.0
    %827 = vmatprep.mubr.f32.mxu0 0.0
    %828 = vmatmul.mubr.f32.gmra.mrb[0].mxu0 %v752
    %v829 = vpop.f32.mrb[0].mxu0
    %v830 = vadd.f32 0.0, %v829
    %v831 = vpop.f32.mrb[0].mxu0
    %832 = vmatprep.mubr.f32.mxu0 0.0
    %833 = vmatmul.mubr.f32.gmra.mrb[0].mxu0 %v755
    %v834 = vpop.f32.mrb[0].mxu0
    %v835 = vadd.f32 0.0, %v834
    %v836 = vpop.f32.mrb[0].mxu0
    %837 = vmatprep.mubr.f32.mxu0 0.0
    %838 = vmatmul.mubr.f32.gmra.mrb[0].mxu0 %v758
    %v839 = vpop.f32.mrb[0].mxu0
    %v840 = vadd.f32 0.0, %v839
    %v841 = vpop.f32.mrb[0].mxu0
    %842 = vmatprep.mubr.f32.mxu0 0.0
    %843 = vmatmul.mubr.f32.gmra.mrb[0].mxu0 %v761
    %v844 = vpop.f32.mrb[0].mxu0
    %v845 = vadd.f32 0.0, %v844
    %v846 = vpop.f32.mrb[0].mxu0
    %847 = vdwg.mxu0
    %v849 = vsel %vm373, %v635, 0
    %v852 = vsel %vm373, %v640, 0
    %v855 = vsel %vm373, %v645, 0
    %v858 = vsel %vm373, %v650, 0
    %860 = vmatprep.subr.mxu0 0.0
    %861 = vmatpush1.msra.mxu0 %v653
    %862 = vmatprep.subr.mxu0 0.0
    %863 = vmatpush1.msra.mxu0 %v654
    %864 = vmatprep.subr.mxu0 0.0
    %865 = vmatpush1.msra.mxu0 %v655
    %866 = vmatprep.subr.mxu0 0.0
    %867 = vmatpush1.msra.mxu0 %v656
    %868 = vmatprep.subr.mxu0 0.0
    %869 = vmatpush1.msra.mxu0 0.0
    %870 = vmatprep.subr.mxu0 0.0
    %871 = vmatpush1.msra.mxu0 0.0
    %872 = vmatprep.subr.mxu0 0.0
    %873 = vmatpush1.msra.mxu0 0.0
    %874 = vmatprep.subr.mxu0 0.0
    %875 = vmatpush1.msra.mxu0 0.0
    %876 = vmatprep.subr.mxu0 0.0
    %877 = vmatpush1.msra.mxu0 0.0
    %878 = vmatprep.subr.mxu0 0.0
    %879 = vmatpush1.msra.mxu0 0.0
    %880 = vmatprep.subr.mxu0 0.0
    %881 = vmatpush1.msra.mxu0 0.0
    %882 = vmatprep.subr.mxu0 0.0
    %883 = vmatpush1.msra.mxu0 0.0
    %884 = vmatprep.subr.mxu0 0.0
    %885 = vmatpush1.msra.mxu0 0.0
    %886 = vmatprep.subr.mxu0 0.0
    %887 = vmatpush1.msra.mxu0 0.0
    %888 = vmatprep.subr.mxu0 0.0
    %889 = vmatpush1.msra.mxu0 0.0
    %890 = vmatprep.subr.mxu0 0.0
    %891 = vmatpush1.msra.mxu0 0.0
    %892 = vmatprep.subr.mxu0 0.0
    %893 = vmatpush1.msra.mxu0 0.0
    %894 = vmatprep.subr.mxu0 0.0
    %895 = vmatpush1.msra.mxu0 0.0
    %896 = vmatprep.subr.mxu0 0.0
    %897 = vmatpush1.msra.mxu0 0.0
    %898 = vmatprep.subr.mxu0 0.0
    %899 = vmatpush1.msra.mxu0 0.0
    %900 = vmatprep.subr.mxu0 0.0
    %901 = vmatpush1.msra.mxu0 0.0
    %902 = vmatprep.subr.mxu0 0.0
    %903 = vmatpush1.msra.mxu0 0.0
    %904 = vmatprep.subr.mxu0 0.0
    %905 = vmatpush1.msra.mxu0 0.0
    %906 = vmatprep.subr.mxu0 0.0
    %907 = vmatpush1.msra.mxu0 0.0
    %908 = vmatprep.subr.mxu0 0.0
    %909 = vmatpush1.msra.mxu0 0.0
    %910 = vmatprep.subr.mxu0 0.0
    %911 = vmatpush1.msra.mxu0 0.0
    %912 = vmatprep.subr.mxu0 0.0
    %913 = vmatpush1.msra.mxu0 0.0
    %914 = vmatprep.subr.mxu0 0.0
    %915 = vmatpush1.msra.mxu0 0.0
    %916 = vmatprep.subr.mxu0 0.0
    %917 = vmatpush1.msra.mxu0 0.0
    %918 = vmatprep.subr.mxu0 0.0
    %919 = vmatpush1.msra.mxu0 0.0
    %920 = vmatprep.subr.mxu0 0.0
    %921 = vmatpush1.msra.mxu0 0.0
    %922 = vmatprep.subr.mxu0 0.0
    %923 = vmatpush1.msra.mxu0 0.0
    %924 = vmatprep.mubr.f32.mxu0 0.0
    %925 = vmatmul.mubr.f32.gmra.mrb[0].mxu0 %v849
    %v926 = vpop.f32.mrb[0].mxu0
    %v927 = vadd.f32 %v830, %v926
    %v928 = vpop.f32.mrb[0].mxu0
    %929 = vmatprep.mubr.f32.mxu0 0.0
    %930 = vmatmul.mubr.f32.gmra.mrb[0].mxu0 %v852
    %v931 = vpop.f32.mrb[0].mxu0
    %v932 = vadd.f32 %v835, %v931
    %v933 = vpop.f32.mrb[0].mxu0
    %934 = vmatprep.mubr.f32.mxu0 0.0
    %935 = vmatmul.mubr.f32.gmra.mrb[0].mxu0 %v855
    %v936 = vpop.f32.mrb[0].mxu0
    %v937 = vadd.f32 %v840, %v936
    %v938 = vpop.f32.mrb[0].mxu0
    %939 = vmatprep.mubr.f32.mxu0 0.0
    %940 = vmatmul.mubr.f32.gmra.mrb[0].mxu0 %v858
    %v941 = vpop.f32.mrb[0].mxu0
    %v942 = vadd.f32 %v845, %v941
    %v943 = vpop.f32.mrb[0].mxu0
    %944 = vdwg.mxu0
    %s945 = scalar_lea.vmem [#allocation12], 64
    %v946 = vld [vmem:[%s945] sm:$0xff]
    %v947 = vld [vmem:[%s945 + $0x8] sm:$0xff]
    %v948 = vld [vmem:[%s945 + $0x10] sm:$0xff]
    %v949 = vld [vmem:[%s945 + $0x18] sm:$0xff]
    %950 = vmatprep.subr.mxu0 0.0
    %951 = vmatpush1.msra.mxu0 %v548
    %952 = vmatprep.subr.mxu0 0.0
    %953 = vmatpush1.msra.mxu0 %v549
    %954 = vmatprep.subr.mxu0 0.0
    %955 = vmatpush1.msra.mxu0 %v550
    %956 = vmatprep.subr.mxu0 0.0
    %957 = vmatpush1.msra.mxu0 %v551
    %958 = vmatprep.subr.mxu0 0.0
    %959 = vmatpush1.msra.mxu0 %v552
    %960 = vmatprep.subr.mxu0 0.0
    %961 = vmatpush1.msra.mxu0 %v553
    %962 = vmatprep.subr.mxu0 0.0
    %963 = vmatpush1.msra.mxu0 %v554
    %964 = vmatprep.subr.mxu0 0.0
    %965 = vmatpush1.msra.mxu0 %v555
    %966 = vmatprep.subr.mxu0 0.0
    %967 = vmatpush1.msra.mxu0 %v556
    %968 = vmatprep.subr.mxu0 0.0
    %969 = vmatpush1.msra.mxu0 %v557
    %970 = vmatprep.subr.mxu0 0.0
    %971 = vmatpush1.msra.mxu0 %v558
    %972 = vmatprep.subr.mxu0 0.0
    %973 = vmatpush1.msra.mxu0 %v559
    %974 = vmatprep.subr.mxu0 0.0
    %975 = vmatpush1.msra.mxu0 %v560
    %976 = vmatprep.subr.mxu0 0.0
    %977 = vmatpush1.msra.mxu0 %v561
    %978 = vmatprep.subr.mxu0 0.0
    %979 = vmatpush1.msra.mxu0 %v562
    %980 = vmatprep.subr.mxu0 0.0
    %981 = vmatpush1.msra.mxu0 %v563
    %982 = vmatprep.subr.mxu0 0.0
    %983 = vmatpush1.msra.mxu0 0.0
    %984 = vmatprep.subr.mxu0 0.0
    %985 = vmatpush1.msra.mxu0 0.0
    %986 = vmatprep.subr.mxu0 0.0
    %987 = vmatpush1.msra.mxu0 0.0
    %988 = vmatprep.subr.mxu0 0.0
    %989 = vmatpush1.msra.mxu0 0.0
    %990 = vmatprep.subr.mxu0 0.0
    %991 = vmatpush1.msra.mxu0 0.0
    %992 = vmatprep.subr.mxu0 0.0
    %993 = vmatpush1.msra.mxu0 0.0
    %994 = vmatprep.subr.mxu0 0.0
    %995 = vmatpush1.msra.mxu0 0.0
    %996 = vmatprep.subr.mxu0 0.0
    %997 = vmatpush1.msra.mxu0 0.0
    %998 = vmatprep.subr.mxu0 0.0
    %999 = vmatpush1.msra.mxu0 0.0
    %1000 = vmatprep.subr.mxu0 0.0
    %1001 = vmatpush1.msra.mxu0 0.0
    %1002 = vmatprep.subr.mxu0 0.0
    %1003 = vmatpush1.msra.mxu0 0.0
    %1004 = vmatprep.subr.mxu0 0.0
    %1005 = vmatpush1.msra.mxu0 0.0
    %1006 = vmatprep.subr.mxu0 0.0
    %1007 = vmatpush1.msra.mxu0 0.0
    %1008 = vmatprep.subr.mxu0 0.0
    %1009 = vmatpush1.msra.mxu0 0.0
    %1010 = vmatprep.subr.mxu0 0.0
    %1011 = vmatpush1.msra.mxu0 0.0
    %1012 = vmatprep.subr.mxu0 0.0
    %1013 = vmatpush1.msra.mxu0 0.0
    %1014 = vmatprep.mubr.f32.mxu0 0.0
    %1015 = vmatmul.mubr.f32.gmra.mrb[0].mxu0 %v946
    %v1016 = vpop.f32.mrb[0].mxu0
    %v1017 = vadd.f32 0.0, %v1016
    %v1018 = vpop.f32.mrb[0].mxu0
    %1019 = vmatprep.mubr.f32.mxu0 0.0
    %1020 = vmatmul.mubr.f32.gmra.mrb[0].mxu0 %v947
    %v1021 = vpop.f32.mrb[0].mxu0
    %v1022 = vadd.f32 0.0, %v1021
    %v1023 = vpop.f32.mrb[0].mxu0
    %1024 = vmatprep.mubr.f32.mxu0 0.0
    %1025 = vmatmul.mubr.f32.gmra.mrb[0].mxu0 %v948
    %v1026 = vpop.f32.mrb[0].mxu0
    %v1027 = vadd.f32 0.0, %v1026
    %v1028 = vpop.f32.mrb[0].mxu0
    %1029 = vmatprep.mubr.f32.mxu0 0.0
    %1030 = vmatmul.mubr.f32.gmra.mrb[0].mxu0 %v949
    %v1031 = vpop.f32.mrb[0].mxu0
    %v1032 = vadd.f32 0.0, %v1031
    %v1033 = vpop.f32.mrb[0].mxu0
    %1034 = vdwg.mxu0
    %v1035 = vld [vmem:[%s2 + $0x40] sm:$0xff]
    %v1036 = vld [vmem:[%s2 + $0x48] sm:$0xff]
    %v1037 = vld [vmem:[%s2 + $0x50] sm:$0xff]
    %v1038 = vld [vmem:[%s2 + $0x58] sm:$0xff]
    %v1040 = vsel %vm373, %v1017, 0
    %v1043 = vsel %vm373, %v1022, 0
    %v1046 = vsel %vm373, %v1027, 0
    %v1049 = vsel %vm373, %v1032, 0
    %1051 = vmatprep.subr.mxu0 0.0
    %1052 = vmatpush1.msra.mxu0 %v1035
    %1053 = vmatprep.subr.mxu0 0.0
    %1054 = vmatpush1.msra.mxu0 %v1036
    %1055 = vmatprep.subr.mxu0 0.0
    %1056 = vmatpush1.msra.mxu0 %v1037
    %1057 = vmatprep.subr.mxu0 0.0
    %1058 = vmatpush1.msra.mxu0 %v1038
    %1059 = vmatprep.subr.mxu0 0.0
    %1060 = vmatpush1.msra.mxu0 0.0
    %1061 = vmatprep.subr.mxu0 0.0
    %1062 = vmatpush1.msra.mxu0 0.0
    %1063 = vmatprep.subr.mxu0 0.0
    %1064 = vmatpush1.msra.mxu0 0.0
    %1065 = vmatprep.subr.mxu0 0.0
    %1066 = vmatpush1.msra.mxu0 0.0
    %1067 = vmatprep.subr.mxu0 0.0
    %1068 = vmatpush1.msra.mxu0 0.0
    %1069 = vmatprep.subr.mxu0 0.0
    %1070 = vmatpush1.msra.mxu0 0.0
    %1071 = vmatprep.subr.mxu0 0.0
    %1072 = vmatpush1.msra.mxu0 0.0
    %1073 = vmatprep.subr.mxu0 0.0
    %1074 = vmatpush1.msra.mxu0 0.0
    %1075 = vmatprep.subr.mxu0 0.0
    %1076 = vmatpush1.msra.mxu0 0.0
    %1077 = vmatprep.subr.mxu0 0.0
    %1078 = vmatpush1.msra.mxu0 0.0
    %1079 = vmatprep.subr.mxu0 0.0
    %1080 = vmatpush1.msra.mxu0 0.0
    %1081 = vmatprep.subr.mxu0 0.0
    %1082 = vmatpush1.msra.mxu0 0.0
    %1083 = vmatprep.subr.mxu0 0.0
    %1084 = vmatpush1.msra.mxu0 0.0
    %1085 = vmatprep.subr.mxu0 0.0
    %1086 = vmatpush1.msra.mxu0 0.0
    %1087 = vmatprep.subr.mxu0 0.0
    %1088 = vmatpush1.msra.mxu0 0.0
    %1089 = vmatprep.subr.mxu0 0.0
    %1090 = vmatpush1.msra.mxu0 0.0
    %1091 = vmatprep.subr.mxu0 0.0
    %1092 = vmatpush1.msra.mxu0 0.0
    %1093 = vmatprep.subr.mxu0 0.0
    %1094 = vmatpush1.msra.mxu0 0.0
    %1095 = vmatprep.subr.mxu0 0.0
    %1096 = vmatpush1.msra.mxu0 0.0
    %1097 = vmatprep.subr.mxu0 0.0
    %1098 = vmatpush1.msra.mxu0 0.0
    %1099 = vmatprep.subr.mxu0 0.0
    %1100 = vmatpush1.msra.mxu0 0.0
    %1101 = vmatprep.subr.mxu0 0.0
    %1102 = vmatpush1.msra.mxu0 0.0
    %1103 = vmatprep.subr.mxu0 0.0
    %1104 = vmatpush1.msra.mxu0 0.0
    %1105 = vmatprep.subr.mxu0 0.0
    %1106 = vmatpush1.msra.mxu0 0.0
    %1107 = vmatprep.subr.mxu0 0.0
    %1108 = vmatpush1.msra.mxu0 0.0
    %1109 = vmatprep.subr.mxu0 0.0
    %1110 = vmatpush1.msra.mxu0 0.0
    %1111 = vmatprep.subr.mxu0 0.0
    %1112 = vmatpush1.msra.mxu0 0.0
    %1113 = vmatprep.subr.mxu0 0.0
    %1114 = vmatpush1.msra.mxu0 0.0
    %1115 = vmatprep.mubr.f32.mxu0 0.0
    %1116 = vmatmul.mubr.f32.gmra.mrb[0].mxu0 %v1040
    %v1117 = vpop.f32.mrb[0].mxu0
    %v1118 = vadd.f32 0.0, %v1117
    %v1119 = vpop.f32.mrb[0].mxu0
    %1120 = vmatprep.mubr.f32.mxu0 0.0
    %1121 = vmatmul.mubr.f32.gmra.mrb[0].mxu0 %v1043
    %v1122 = vpop.f32.mrb[0].mxu0
    %v1123 = vadd.f32 0.0, %v1122
    %v1124 = vpop.f32.mrb[0].mxu0
    %1125 = vmatprep.mubr.f32.mxu0 0.0
    %1126 = vmatmul.mubr.f32.gmra.mrb[0].mxu0 %v1046
    %v1127 = vpop.f32.mrb[0].mxu0
    %v1128 = vadd.f32 0.0, %v1127
    %v1129 = vpop.f32.mrb[0].mxu0
    %1130 = vmatprep.mubr.f32.mxu0 0.0
    %1131 = vmatmul.mubr.f32.gmra.mrb[0].mxu0 %v1049
    %v1132 = vpop.f32.mrb[0].mxu0
    %v1133 = vadd.f32 0.0, %v1132
    %v1134 = vpop.f32.mrb[0].mxu0
    %1135 = vdwg.mxu0
    %v1136 = vadd.f32 %v927, %v1118
    %v1137 = vadd.f32 %v932, %v1123
    %v1138 = vadd.f32 %v937, %v1128
    %v1139 = vadd.f32 %v942, %v1133
    %s1140 = scalar_lea.vmem [#allocation12], 96
    %v1141 = vld [vmem:[%s1140] sm:$0xff]
    %v1142 = vld [vmem:[%s1140 + $0x8] sm:$0xff]
    %v1143 = vld [vmem:[%s1140 + $0x10] sm:$0xff]
    %v1144 = vld [vmem:[%s1140 + $0x18] sm:$0xff]
    %1145 = vmatprep.subr.mxu0 0.0
    %1146 = vmatpush1.msra.mxu0 %v548
    %1147 = vmatprep.subr.mxu0 0.0
    %1148 = vmatpush1.msra.mxu0 %v549
    %1149 = vmatprep.subr.mxu0 0.0
    %1150 = vmatpush1.msra.mxu0 %v550
    %1151 = vmatprep.subr.mxu0 0.0
    %1152 = vmatpush1.msra.mxu0 %v551
    %1153 = vmatprep.subr.mxu0 0.0
    %1154 = vmatpush1.msra.mxu0 %v552
    %1155 = vmatprep.subr.mxu0 0.0
    %1156 = vmatpush1.msra.mxu0 %v553
    %1157 = vmatprep.subr.mxu0 0.0
    %1158 = vmatpush1.msra.mxu0 %v554
    %1159 = vmatprep.subr.mxu0 0.0
    %1160 = vmatpush1.msra.mxu0 %v555
    %1161 = vmatprep.subr.mxu0 0.0
    %1162 = vmatpush1.msra.mxu0 %v556
    %1163 = vmatprep.subr.mxu0 0.0
    %1164 = vmatpush1.msra.mxu0 %v557
    %1165 = vmatprep.subr.mxu0 0.0
    %1166 = vmatpush1.msra.mxu0 %v558
    %1167 = vmatprep.subr.mxu0 0.0
    %1168 = vmatpush1.msra.mxu0 %v559
    %1169 = vmatprep.subr.mxu0 0.0
    %1170 = vmatpush1.msra.mxu0 %v560
    %1171 = vmatprep.subr.mxu0 0.0
    %1172 = vmatpush1.msra.mxu0 %v561
    %1173 = vmatprep.subr.mxu0 0.0
    %1174 = vmatpush1.msra.mxu0 %v562
    %1175 = vmatprep.subr.mxu0 0.0
    %1176 = vmatpush1.msra.mxu0 %v563
    %1177 = vmatprep.subr.mxu0 0.0
    %1178 = vmatpush1.msra.mxu0 0.0
    %1179 = vmatprep.subr.mxu0 0.0
    %1180 = vmatpush1.msra.mxu0 0.0
    %1181 = vmatprep.subr.mxu0 0.0
    %1182 = vmatpush1.msra.mxu0 0.0
    %1183 = vmatprep.subr.mxu0 0.0
    %1184 = vmatpush1.msra.mxu0 0.0
    %1185 = vmatprep.subr.mxu0 0.0
    %1186 = vmatpush1.msra.mxu0 0.0
    %1187 = vmatprep.subr.mxu0 0.0
    %1188 = vmatpush1.msra.mxu0 0.0
    %1189 = vmatprep.subr.mxu0 0.0
    %1190 = vmatpush1.msra.mxu0 0.0
    %1191 = vmatprep.subr.mxu0 0.0
    %1192 = vmatpush1.msra.mxu0 0.0
    %1193 = vmatprep.subr.mxu0 0.0
    %1194 = vmatpush1.msra.mxu0 0.0
    %1195 = vmatprep.subr.mxu0 0.0
    %1196 = vmatpush1.msra.mxu0 0.0
    %1197 = vmatprep.subr.mxu0 0.0
    %1198 = vmatpush1.msra.mxu0 0.0
    %1199 = vmatprep.subr.mxu0 0.0
    %1200 = vmatpush1.msra.mxu0 0.0
    %1201 = vmatprep.subr.mxu0 0.0
    %1202 = vmatpush1.msra.mxu0 0.0
    %1203 = vmatprep.subr.mxu0 0.0
    %1204 = vmatpush1.msra.mxu0 0.0
    %1205 = vmatprep.subr.mxu0 0.0
    %1206 = vmatpush1.msra.mxu0 0.0
    %1207 = vmatprep.subr.mxu0 0.0
    %1208 = vmatpush1.msra.mxu0 0.0
    %1209 = vmatprep.mubr.f32.mxu0 0.0
    %1210 = vmatmul.mubr.f32.gmra.mrb[0].mxu0 %v1141
    %v1211 = vpop.f32.mrb[0].mxu0
    %v1212 = vadd.f32 0.0, %v1211
    %v1213 = vpop.f32.mrb[0].mxu0
    %1214 = vmatprep.mubr.f32.mxu0 0.0
    %1215 = vmatmul.mubr.f32.gmra.mrb[0].mxu0 %v1142
    %v1216 = vpop.f32.mrb[0].mxu0
    %v1217 = vadd.f32 0.0, %v1216
    %v1218 = vpop.f32.mrb[0].mxu0
    %1219 = vmatprep.mubr.f32.mxu0 0.0
    %1220 = vmatmul.mubr.f32.gmra.mrb[0].mxu0 %v1143
    %v1221 = vpop.f32.mrb[0].mxu0
    %v1222 = vadd.f32 0.0, %v1221
    %v1223 = vpop.f32.mrb[0].mxu0
    %1224 = vmatprep.mubr.f32.mxu0 0.0
    %1225 = vmatmul.mubr.f32.gmra.mrb[0].mxu0 %v1144
    %v1226 = vpop.f32.mrb[0].mxu0
    %v1227 = vadd.f32 0.0, %v1226
    %v1228 = vpop.f32.mrb[0].mxu0
    %1229 = vdwg.mxu0
    %v1230 = vld [vmem:[%s2 + $0x60] sm:$0xff]
    %v1231 = vld [vmem:[%s2 + $0x68] sm:$0xff]
    %v1232 = vld [vmem:[%s2 + $0x70] sm:$0xff]
    %v1233 = vld [vmem:[%s2 + $0x78] sm:$0xff]
    %v1235 = vsel %vm373, %v1212, 0
    %v1238 = vsel %vm373, %v1217, 0
    %v1241 = vsel %vm373, %v1222, 0
    %v1244 = vsel %vm373, %v1227, 0
    %1246 = vmatprep.subr.mxu0 0.0
    %1247 = vmatpush1.msra.mxu0 %v1230
    %1248 = vmatprep.subr.mxu0 0.0
    %1249 = vmatpush1.msra.mxu0 %v1231
    %1250 = vmatprep.subr.mxu0 0.0
    %1251 = vmatpush1.msra.mxu0 %v1232
    %1252 = vmatprep.subr.mxu0 0.0
    %1253 = vmatpush1.msra.mxu0 %v1233
    %1254 = vmatprep.subr.mxu0 0.0
    %1255 = vmatpush1.msra.mxu0 0.0
    %1256 = vmatprep.subr.mxu0 0.0
    %1257 = vmatpush1.msra.mxu0 0.0
    %1258 = vmatprep.subr.mxu0 0.0
    %1259 = vmatpush1.msra.mxu0 0.0
    %1260 = vmatprep.subr.mxu0 0.0
    %1261 = vmatpush1.msra.mxu0 0.0
    %1262 = vmatprep.subr.mxu0 0.0
    %1263 = vmatpush1.msra.mxu0 0.0
    %1264 = vmatprep.subr.mxu0 0.0
    %1265 = vmatpush1.msra.mxu0 0.0
    %1266 = vmatprep.subr.mxu0 0.0
    %1267 = vmatpush1.msra.mxu0 0.0
    %1268 = vmatprep.subr.mxu0 0.0
    %1269 = vmatpush1.msra.mxu0 0.0
    %1270 = vmatprep.subr.mxu0 0.0
    %1271 = vmatpush1.msra.mxu0 0.0
    %1272 = vmatprep.subr.mxu0 0.0
    %1273 = vmatpush1.msra.mxu0 0.0
    %1274 = vmatprep.subr.mxu0 0.0
    %1275 = vmatpush1.msra.mxu0 0.0
    %1276 = vmatprep.subr.mxu0 0.0
    %1277 = vmatpush1.msra.mxu0 0.0
    %1278 = vmatprep.subr.mxu0 0.0
    %1279 = vmatpush1.msra.mxu0 0.0
    %1280 = vmatprep.subr.mxu0 0.0
    %1281 = vmatpush1.msra.mxu0 0.0
    %1282 = vmatprep.subr.mxu0 0.0
    %1283 = vmatpush1.msra.mxu0 0.0
    %1284 = vmatprep.subr.mxu0 0.0
    %1285 = vmatpush1.msra.mxu0 0.0
    %1286 = vmatprep.subr.mxu0 0.0
    %1287 = vmatpush1.msra.mxu0 0.0
    %1288 = vmatprep.subr.mxu0 0.0
    %1289 = vmatpush1.msra.mxu0 0.0
    %1290 = vmatprep.subr.mxu0 0.0
    %1291 = vmatpush1.msra.mxu0 0.0
    %1292 = vmatprep.subr.mxu0 0.0
    %1293 = vmatpush1.msra.mxu0 0.0
    %1294 = vmatprep.subr.mxu0 0.0
    %1295 = vmatpush1.msra.mxu0 0.0
    %1296 = vmatprep.subr.mxu0 0.0
    %1297 = vmatpush1.msra.mxu0 0.0
    %1298 = vmatprep.subr.mxu0 0.0
    %1299 = vmatpush1.msra.mxu0 0.0
    %1300 = vmatprep.subr.mxu0 0.0
    %1301 = vmatpush1.msra.mxu0 0.0
    %1302 = vmatprep.subr.mxu0 0.0
    %1303 = vmatpush1.msra.mxu0 0.0
    %1304 = vmatprep.subr.mxu0 0.0
    %1305 = vmatpush1.msra.mxu0 0.0
    %1306 = vmatprep.subr.mxu0 0.0
    %1307 = vmatpush1.msra.mxu0 0.0
    %1308 = vmatprep.subr.mxu0 0.0
    %1309 = vmatpush1.msra.mxu0 0.0
    %1310 = vmatprep.mubr.f32.mxu0 0.0
    %1311 = vmatmul.mubr.f32.gmra.mrb[0].mxu0 %v1235
    %v1312 = vpop.f32.mrb[0].mxu0
    %v1313 = vadd.f32 0.0, %v1312
    %v1314 = vpop.f32.mrb[0].mxu0
    %1315 = vmatprep.mubr.f32.mxu0 0.0
    %1316 = vmatmul.mubr.f32.gmra.mrb[0].mxu0 %v1238
    %v1317 = vpop.f32.mrb[0].mxu0
    %v1318 = vadd.f32 0.0, %v1317
    %v1319 = vpop.f32.mrb[0].mxu0
    %1320 = vmatprep.mubr.f32.mxu0 0.0
    %1321 = vmatmul.mubr.f32.gmra.mrb[0].mxu0 %v1241
    %v1322 = vpop.f32.mrb[0].mxu0
    %v1323 = vadd.f32 0.0, %v1322
    %v1324 = vpop.f32.mrb[0].mxu0
    %1325 = vmatprep.mubr.f32.mxu0 0.0
    %1326 = vmatmul.mubr.f32.gmra.mrb[0].mxu0 %v1244
    %v1327 = vpop.f32.mrb[0].mxu0
    %v1328 = vadd.f32 0.0, %v1327
    %v1329 = vpop.f32.mrb[0].mxu0
    %1330 = vdwg.mxu0
    %v1331 = vadd.f32 %v1136, %v1313
    %v1332 = vadd.f32 %v1137, %v1318
    %v1333 = vadd.f32 %v1138, %v1323
    %v1334 = vadd.f32 %v1139, %v1328
    %s1335 = scalar_lea.vmem [#allocation12], 128
    %v1336 = vld [vmem:[%s1335] sm:$0xff]
    %v1337 = vld [vmem:[%s1335 + $0x8] sm:$0xff]
    %v1338 = vld [vmem:[%s1335 + $0x10] sm:$0xff]
    %v1339 = vld [vmem:[%s1335 + $0x18] sm:$0xff]
    %1340 = vmatprep.subr.mxu0 0.0
    %1341 = vmatpush1.msra.mxu0 %v548
    %1342 = vmatprep.subr.mxu0 0.0
    %1343 = vmatpush1.msra.mxu0 %v549
    %1344 = vmatprep.subr.mxu0 0.0
    %1345 = vmatpush1.msra.mxu0 %v550
    %1346 = vmatprep.subr.mxu0 0.0
    %1347 = vmatpush1.msra.mxu0 %v551
    %1348 = vmatprep.subr.mxu0 0.0
    %1349 = vmatpush1.msra.mxu0 %v552
    %1350 = vmatprep.subr.mxu0 0.0
    %1351 = vmatpush1.msra.mxu0 %v553
    %1352 = vmatprep.subr.mxu0 0.0
    %1353 = vmatpush1.msra.mxu0 %v554
    %1354 = vmatprep.subr.mxu0 0.0
    %1355 = vmatpush1.msra.mxu0 %v555
    %1356 = vmatprep.subr.mxu0 0.0
    %1357 = vmatpush1.msra.mxu0 %v556
    %1358 = vmatprep.subr.mxu0 0.0
    %1359 = vmatpush1.msra.mxu0 %v557
    %1360 = vmatprep.subr.mxu0 0.0
    %1361 = vmatpush1.msra.mxu0 %v558
    %1362 = vmatprep.subr.mxu0 0.0
    %1363 = vmatpush1.msra.mxu0 %v559
    %1364 = vmatprep.subr.mxu0 0.0
    %1365 = vmatpush1.msra.mxu0 %v560
    %1366 = vmatprep.subr.mxu0 0.0
    %1367 = vmatpush1.msra.mxu0 %v561
    %1368 = vmatprep.subr.mxu0 0.0
    %1369 = vmatpush1.msra.mxu0 %v562
    %1370 = vmatprep.subr.mxu0 0.0
    %1371 = vmatpush1.msra.mxu0 %v563
    %1372 = vmatprep.subr.mxu0 0.0
    %1373 = vmatpush1.msra.mxu0 0.0
    %1374 = vmatprep.subr.mxu0 0.0
    %1375 = vmatpush1.msra.mxu0 0.0
    %1376 = vmatprep.subr.mxu0 0.0
    %1377 = vmatpush1.msra.mxu0 0.0
    %1378 = vmatprep.subr.mxu0 0.0
    %1379 = vmatpush1.msra.mxu0 0.0
    %1380 = vmatprep.subr.mxu0 0.0
    %1381 = vmatpush1.msra.mxu0 0.0
    %1382 = vmatprep.subr.mxu0 0.0
    %1383 = vmatpush1.msra.mxu0 0.0
    %1384 = vmatprep.subr.mxu0 0.0
    %1385 = vmatpush1.msra.mxu0 0.0
    %1386 = vmatprep.subr.mxu0 0.0
    %1387 = vmatpush1.msra.mxu0 0.0
    %1388 = vmatprep.subr.mxu0 0.0
    %1389 = vmatpush1.msra.mxu0 0.0
    %1390 = vmatprep.subr.mxu0 0.0
    %1391 = vmatpush1.msra.mxu0 0.0
    %1392 = vmatprep.subr.mxu0 0.0
    %1393 = vmatpush1.msra.mxu0 0.0
    %1394 = vmatprep.subr.mxu0 0.0
    %1395 = vmatpush1.msra.mxu0 0.0
    %1396 = vmatprep.subr.mxu0 0.0
    %1397 = vmatpush1.msra.mxu0 0.0
    %1398 = vmatprep.subr.mxu0 0.0
    %1399 = vmatpush1.msra.mxu0 0.0
    %1400 = vmatprep.subr.mxu0 0.0
    %1401 = vmatpush1.msra.mxu0 0.0
    %1402 = vmatprep.subr.mxu0 0.0
    %1403 = vmatpush1.msra.mxu0 0.0
    %1404 = vmatprep.mubr.f32.mxu0 0.0
    %1405 = vmatmul.mubr.f32.gmra.mrb[0].mxu0 %v1336
    %v1406 = vpop.f32.mrb[0].mxu0
    %v1407 = vadd.f32 0.0, %v1406
    %v1408 = vpop.f32.mrb[0].mxu0
    %1409 = vmatprep.mubr.f32.mxu0 0.0
    %1410 = vmatmul.mubr.f32.gmra.mrb[0].mxu0 %v1337
    %v1411 = vpop.f32.mrb[0].mxu0
    %v1412 = vadd.f32 0.0, %v1411
    %v1413 = vpop.f32.mrb[0].mxu0
    %1414 = vmatprep.mubr.f32.mxu0 0.0
    %1415 = vmatmul.mubr.f32.gmra.mrb[0].mxu0 %v1338
    %v1416 = vpop.f32.mrb[0].mxu0
    %v1417 = vadd.f32 0.0, %v1416
    %v1418 = vpop.f32.mrb[0].mxu0
    %1419 = vmatprep.mubr.f32.mxu0 0.0
    %1420 = vmatmul.mubr.f32.gmra.mrb[0].mxu0 %v1339
    %v1421 = vpop.f32.mrb[0].mxu0
    %v1422 = vadd.f32 0.0, %v1421
    %v1423 = vpop.f32.mrb[0].mxu0
    %1424 = vdwg.mxu0
    %v1425 = vld [vmem:[%s2 + $0x80] sm:$0xff]
    %v1426 = vld [vmem:[%s2 + $0x88] sm:$0xff]
    %v1427 = vld [vmem:[%s2 + $0x90] sm:$0xff]
    %v1428 = vld [vmem:[%s2 + $0x98] sm:$0xff]
    %v1430 = vsel %vm373, %v1407, 0
    %v1433 = vsel %vm373, %v1412, 0
    %v1436 = vsel %vm373, %v1417, 0
    %v1439 = vsel %vm373, %v1422, 0
    %1441 = vmatprep.subr.mxu0 0.0
    %1442 = vmatpush1.msra.mxu0 %v1425
    %1443 = vmatprep.subr.mxu0 0.0
    %1444 = vmatpush1.msra.mxu0 %v1426
    %1445 = vmatprep.subr.mxu0 0.0
    %1446 = vmatpush1.msra.mxu0 %v1427
    %1447 = vmatprep.subr.mxu0 0.0
    %1448 = vmatpush1.msra.mxu0 %v1428
    %1449 = vmatprep.subr.mxu0 0.0
    %1450 = vmatpush1.msra.mxu0 0.0
    %1451 = vmatprep.subr.mxu0 0.0
    %1452 = vmatpush1.msra.mxu0 0.0
    %1453 = vmatprep.subr.mxu0 0.0
    %1454 = vmatpush1.msra.mxu0 0.0
    %1455 = vmatprep.subr.mxu0 0.0
    %1456 = vmatpush1.msra.mxu0 0.0
    %1457 = vmatprep.subr.mxu0 0.0
    %1458 = vmatpush1.msra.mxu0 0.0
    %1459 = vmatprep.subr.mxu0 0.0
    %1460 = vmatpush1.msra.mxu0 0.0
    %1461 = vmatprep.subr.mxu0 0.0
    %1462 = vmatpush1.msra.mxu0 0.0
    %1463 = vmatprep.subr.mxu0 0.0
    %1464 = vmatpush1.msra.mxu0 0.0
    %1465 = vmatprep.subr.mxu0 0.0
    %1466 = vmatpush1.msra.mxu0 0.0
    %1467 = vmatprep.subr.mxu0 0.0
    %1468 = vmatpush1.msra.mxu0 0.0
    %1469 = vmatprep.subr.mxu0 0.0
    %1470 = vmatpush1.msra.mxu0 0.0
    %1471 = vmatprep.subr.mxu0 0.0
    %1472 = vmatpush1.msra.mxu0 0.0
    %1473 = vmatprep.subr.mxu0 0.0
    %1474 = vmatpush1.msra.mxu0 0.0
    %1475 = vmatprep.subr.mxu0 0.0
    %1476 = vmatpush1.msra.mxu0 0.0
    %1477 = vmatprep.subr.mxu0 0.0
    %1478 = vmatpush1.msra.mxu0 0.0
    %1479 = vmatprep.subr.mxu0 0.0
    %1480 = vmatpush1.msra.mxu0 0.0
    %1481 = vmatprep.subr.mxu0 0.0
    %1482 = vmatpush1.msra.mxu0 0.0
    %1483 = vmatprep.subr.mxu0 0.0
    %1484 = vmatpush1.msra.mxu0 0.0
    %1485 = vmatprep.subr.mxu0 0.0
    %1486 = vmatpush1.msra.mxu0 0.0
    %1487 = vmatprep.subr.mxu0 0.0
    %1488 = vmatpush1.msra.mxu0 0.0
    %1489 = vmatprep.subr.mxu0 0.0
    %1490 = vmatpush1.msra.mxu0 0.0
    %1491 = vmatprep.subr.mxu0 0.0
    %1492 = vmatpush1.msra.mxu0 0.0
    %1493 = vmatprep.subr.mxu0 0.0
    %1494 = vmatpush1.msra.mxu0 0.0
    %1495 = vmatprep.subr.mxu0 0.0
    %1496 = vmatpush1.msra.mxu0 0.0
    %1497 = vmatprep.subr.mxu0 0.0
    %1498 = vmatpush1.msra.mxu0 0.0
    %1499 = vmatprep.subr.mxu0 0.0
    %1500 = vmatpush1.msra.mxu0 0.0
    %1501 = vmatprep.subr.mxu0 0.0
    %1502 = vmatpush1.msra.mxu0 0.0
    %1503 = vmatprep.subr.mxu0 0.0
    %1504 = vmatpush1.msra.mxu0 0.0
    %1505 = vmatprep.mubr.f32.mxu0 0.0
    %1506 = vmatmul.mubr.f32.gmra.mrb[0].mxu0 %v1430
    %v1507 = vpop.f32.mrb[0].mxu0
    %v1508 = vadd.f32 0.0, %v1507
    %v1509 = vpop.f32.mrb[0].mxu0
    %1510 = vmatprep.mubr.f32.mxu0 0.0
    %1511 = vmatmul.mubr.f32.gmra.mrb[0].mxu0 %v1433
    %v1512 = vpop.f32.mrb[0].mxu0
    %v1513 = vadd.f32 0.0, %v1512
    %v1514 = vpop.f32.mrb[0].mxu0
    %1515 = vmatprep.mubr.f32.mxu0 0.0
    %1516 = vmatmul.mubr.f32.gmra.mrb[0].mxu0 %v1436
    %v1517 = vpop.f32.mrb[0].mxu0
    %v1518 = vadd.f32 0.0, %v1517
    %v1519 = vpop.f32.mrb[0].mxu0
    %1520 = vmatprep.mubr.f32.mxu0 0.0
    %1521 = vmatmul.mubr.f32.gmra.mrb[0].mxu0 %v1439
    %v1522 = vpop.f32.mrb[0].mxu0
    %v1523 = vadd.f32 0.0, %v1522
    %v1524 = vpop.f32.mrb[0].mxu0
    %1525 = vdwg.mxu0
    %v1526 = vadd.f32 %v1331, %v1508
    %v1527 = vadd.f32 %v1332, %v1513
    %v1528 = vadd.f32 %v1333, %v1518
    %v1529 = vadd.f32 %v1334, %v1523
    %s1530 = scalar_lea.vmem [#allocation12], 160
    %v1531 = vld [vmem:[%s1530] sm:$0xff]
    %v1532 = vld [vmem:[%s1530 + $0x8] sm:$0xff]
    %v1533 = vld [vmem:[%s1530 + $0x10] sm:$0xff]
    %v1534 = vld [vmem:[%s1530 + $0x18] sm:$0xff]
    %1535 = vmatprep.subr.mxu0 0.0
    %1536 = vmatpush1.msra.mxu0 %v548
    %1537 = vmatprep.subr.mxu0 0.0
    %1538 = vmatpush1.msra.mxu0 %v549
    %1539 = vmatprep.subr.mxu0 0.0
    %1540 = vmatpush1.msra.mxu0 %v550
    %1541 = vmatprep.subr.mxu0 0.0
    %1542 = vmatpush1.msra.mxu0 %v551
    %1543 = vmatprep.subr.mxu0 0.0
    %1544 = vmatpush1.msra.mxu0 %v552
    %1545 = vmatprep.subr.mxu0 0.0
    %1546 = vmatpush1.msra.mxu0 %v553
    %1547 = vmatprep.subr.mxu0 0.0
    %1548 = vmatpush1.msra.mxu0 %v554
    %1549 = vmatprep.subr.mxu0 0.0
    %1550 = vmatpush1.msra.mxu0 %v555
    %1551 = vmatprep.subr.mxu0 0.0
    %1552 = vmatpush1.msra.mxu0 %v556
    %1553 = vmatprep.subr.mxu0 0.0
    %1554 = vmatpush1.msra.mxu0 %v557
    %1555 = vmatprep.subr.mxu0 0.0
    %1556 = vmatpush1.msra.mxu0 %v558
    %1557 = vmatprep.subr.mxu0 0.0
    %1558 = vmatpush1.msra.mxu0 %v559
    %1559 = vmatprep.subr.mxu0 0.0
    %1560 = vmatpush1.msra.mxu0 %v560
    %1561 = vmatprep.subr.mxu0 0.0
    %1562 = vmatpush1.msra.mxu0 %v561
    %1563 = vmatprep.subr.mxu0 0.0
    %1564 = vmatpush1.msra.mxu0 %v562
    %1565 = vmatprep.subr.mxu0 0.0
    %1566 = vmatpush1.msra.mxu0 %v563
    %1567 = vmatprep.subr.mxu0 0.0
    %1568 = vmatpush1.msra.mxu0 0.0
    %1569 = vmatprep.subr.mxu0 0.0
    %1570 = vmatpush1.msra.mxu0 0.0
    %1571 = vmatprep.subr.mxu0 0.0
    %1572 = vmatpush1.msra.mxu0 0.0
    %1573 = vmatprep.subr.mxu0 0.0
    %1574 = vmatpush1.msra.mxu0 0.0
    %1575 = vmatprep.subr.mxu0 0.0
    %1576 = vmatpush1.msra.mxu0 0.0
    %1577 = vmatprep.subr.mxu0 0.0
    %1578 = vmatpush1.msra.mxu0 0.0
    %1579 = vmatprep.subr.mxu0 0.0
    %1580 = vmatpush1.msra.mxu0 0.0
    %1581 = vmatprep.subr.mxu0 0.0
    %1582 = vmatpush1.msra.mxu0 0.0
    %1583 = vmatprep.subr.mxu0 0.0
    %1584 = vmatpush1.msra.mxu0 0.0
    %1585 = vmatprep.subr.mxu0 0.0
    %1586 = vmatpush1.msra.mxu0 0.0
    %1587 = vmatprep.subr.mxu0 0.0
    %1588 = vmatpush1.msra.mxu0 0.0
    %1589 = vmatprep.subr.mxu0 0.0
    %1590 = vmatpush1.msra.mxu0 0.0
    %1591 = vmatprep.subr.mxu0 0.0
    %1592 = vmatpush1.msra.mxu0 0.0
    %1593 = vmatprep.subr.mxu0 0.0
    %1594 = vmatpush1.msra.mxu0 0.0
    %1595 = vmatprep.subr.mxu0 0.0
    %1596 = vmatpush1.msra.mxu0 0.0
    %1597 = vmatprep.subr.mxu0 0.0
    %1598 = vmatpush1.msra.mxu0 0.0
    %1599 = vmatprep.mubr.f32.mxu0 0.0
    %1600 = vmatmul.mubr.f32.gmra.mrb[0].mxu0 %v1531
    %v1601 = vpop.f32.mrb[0].mxu0
    %v1602 = vadd.f32 0.0, %v1601
    %v1603 = vpop.f32.mrb[0].mxu0
    %1604 = vmatprep.mubr.f32.mxu0 0.0
    %1605 = vmatmul.mubr.f32.gmra.mrb[0].mxu0 %v1532
    %v1606 = vpop.f32.mrb[0].mxu0
    %v1607 = vadd.f32 0.0, %v1606
    %v1608 = vpop.f32.mrb[0].mxu0
    %1609 = vmatprep.mubr.f32.mxu0 0.0
    %1610 = vmatmul.mubr.f32.gmra.mrb[0].mxu0 %v1533
    %v1611 = vpop.f32.mrb[0].mxu0
    %v1612 = vadd.f32 0.0, %v1611
    %v1613 = vpop.f32.mrb[0].mxu0
    %1614 = vmatprep.mubr.f32.mxu0 0.0
    %1615 = vmatmul.mubr.f32.gmra.mrb[0].mxu0 %v1534
    %v1616 = vpop.f32.mrb[0].mxu0
    %v1617 = vadd.f32 0.0, %v1616
    %v1618 = vpop.f32.mrb[0].mxu0
    %1619 = vdwg.mxu0
    %v1620 = vld [vmem:[%s2 + $0xa0] sm:$0xff]
    %v1621 = vld [vmem:[%s2 + $0xa8] sm:$0xff]
    %v1622 = vld [vmem:[%s2 + $0xb0] sm:$0xff]
    %v1623 = vld [vmem:[%s2 + $0xb8] sm:$0xff]
    %v1625 = vsel %vm373, %v1602, 0
    %v1628 = vsel %vm373, %v1607, 0
    %v1631 = vsel %vm373, %v1612, 0
    %v1634 = vsel %vm373, %v1617, 0
    %1636 = vmatprep.subr.mxu0 0.0
    %1637 = vmatpush1.msra.mxu0 %v1620
    %1638 = vmatprep.subr.mxu0 0.0
    %1639 = vmatpush1.msra.mxu0 %v1621
    %1640 = vmatprep.subr.mxu0 0.0
    %1641 = vmatpush1.msra.mxu0 %v1622
    %1642 = vmatprep.subr.mxu0 0.0
    %1643 = vmatpush1.msra.mxu0 %v1623
    %1644 = vmatprep.subr.mxu0 0.0
    %1645 = vmatpush1.msra.mxu0 0.0
    %1646 = vmatprep.subr.mxu0 0.0
    %1647 = vmatpush1.msra.mxu0 0.0
    %1648 = vmatprep.subr.mxu0 0.0
    %1649 = vmatpush1.msra.mxu0 0.0
    %1650 = vmatprep.subr.mxu0 0.0
    %1651 = vmatpush1.msra.mxu0 0.0
    %1652 = vmatprep.subr.mxu0 0.0
    %1653 = vmatpush1.msra.mxu0 0.0
    %1654 = vmatprep.subr.mxu0 0.0
    %1655 = vmatpush1.msra.mxu0 0.0
    %1656 = vmatprep.subr.mxu0 0.0
    %1657 = vmatpush1.msra.mxu0 0.0
    %1658 = vmatprep.subr.mxu0 0.0
    %1659 = vmatpush1.msra.mxu0 0.0
    %1660 = vmatprep.subr.mxu0 0.0
    %1661 = vmatpush1.msra.mxu0 0.0
    %1662 = vmatprep.subr.mxu0 0.0
    %1663 = vmatpush1.msra.mxu0 0.0
    %1664 = vmatprep.subr.mxu0 0.0
    %1665 = vmatpush1.msra.mxu0 0.0
    %1666 = vmatprep.subr.mxu0 0.0
    %1667 = vmatpush1.msra.mxu0 0.0
    %1668 = vmatprep.subr.mxu0 0.0
    %1669 = vmatpush1.msra.mxu0 0.0
    %1670 = vmatprep.subr.mxu0 0.0
    %1671 = vmatpush1.msra.mxu0 0.0
    %1672 = vmatprep.subr.mxu0 0.0
    %1673 = vmatpush1.msra.mxu0 0.0
    %1674 = vmatprep.subr.mxu0 0.0
    %1675 = vmatpush1.msra.mxu0 0.0
    %1676 = vmatprep.subr.mxu0 0.0
    %1677 = vmatpush1.msra.mxu0 0.0
    %1678 = vmatprep.subr.mxu0 0.0
    %1679 = vmatpush1.msra.mxu0 0.0
    %1680 = vmatprep.subr.mxu0 0.0
    %1681 = vmatpush1.msra.mxu0 0.0
    %1682 = vmatprep.subr.mxu0 0.0
    %1683 = vmatpush1.msra.mxu0 0.0
    %1684 = vmatprep.subr.mxu0 0.0
    %1685 = vmatpush1.msra.mxu0 0.0
    %1686 = vmatprep.subr.mxu0 0.0
    %1687 = vmatpush1.msra.mxu0 0.0
    %1688 = vmatprep.subr.mxu0 0.0
    %1689 = vmatpush1.msra.mxu0 0.0
    %1690 = vmatprep.subr.mxu0 0.0
    %1691 = vmatpush1.msra.mxu0 0.0
    %1692 = vmatprep.subr.mxu0 0.0
    %1693 = vmatpush1.msra.mxu0 0.0
    %1694 = vmatprep.subr.mxu0 0.0
    %1695 = vmatpush1.msra.mxu0 0.0
    %1696 = vmatprep.subr.mxu0 0.0
    %1697 = vmatpush1.msra.mxu0 0.0
    %1698 = vmatprep.subr.mxu0 0.0
    %1699 = vmatpush1.msra.mxu0 0.0
    %1700 = vmatprep.mubr.f32.mxu0 0.0
    %1701 = vmatmul.mubr.f32.gmra.mrb[0].mxu0 %v1625
    %v1702 = vpop.f32.mrb[0].mxu0
    %v1703 = vadd.f32 0.0, %v1702
    %v1704 = vpop.f32.mrb[0].mxu0
    %1705 = vmatprep.mubr.f32.mxu0 0.0
    %1706 = vmatmul.mubr.f32.gmra.mrb[0].mxu0 %v1628
    %v1707 = vpop.f32.mrb[0].mxu0
    %v1708 = vadd.f32 0.0, %v1707
    %v1709 = vpop.f32.mrb[0].mxu0
    %1710 = vmatprep.mubr.f32.mxu0 0.0
    %1711 = vmatmul.mubr.f32.gmra.mrb[0].mxu0 %v1631
    %v1712 = vpop.f32.mrb[0].mxu0
    %v1713 = vadd.f32 0.0, %v1712
    %v1714 = vpop.f32.mrb[0].mxu0
    %1715 = vmatprep.mubr.f32.mxu0 0.0
    %1716 = vmatmul.mubr.f32.gmra.mrb[0].mxu0 %v1634
    %v1717 = vpop.f32.mrb[0].mxu0
    %v1718 = vadd.f32 0.0, %v1717
    %v1719 = vpop.f32.mrb[0].mxu0
    %1720 = vdwg.mxu0
    %v1721 = vadd.f32 %v1526, %v1703
    %v1722 = vadd.f32 %v1527, %v1708
    %v1723 = vadd.f32 %v1528, %v1713
    %v1724 = vadd.f32 %v1529, %v1718
    %s1725 = scalar_lea.vmem [#allocation12], 192
    %v1726 = vld [vmem:[%s1725] sm:$0xff]
    %v1727 = vld [vmem:[%s1725 + $0x8] sm:$0xff]
    %v1728 = vld [vmem:[%s1725 + $0x10] sm:$0xff]
    %v1729 = vld [vmem:[%s1725 + $0x18] sm:$0xff]
    %1730 = vmatprep.subr.mxu0 0.0
    %1731 = vmatpush1.msra.mxu0 %v548
    %1732 = vmatprep.subr.mxu0 0.0
    %1733 = vmatpush1.msra.mxu0 %v549
    %1734 = vmatprep.subr.mxu0 0.0
    %1735 = vmatpush1.msra.mxu0 %v550
    %1736 = vmatprep.subr.mxu0 0.0
    %1737 = vmatpush1.msra.mxu0 %v551
    %1738 = vmatprep.subr.mxu0 0.0
    %1739 = vmatpush1.msra.mxu0 %v552
    %1740 = vmatprep.subr.mxu0 0.0
    %1741 = vmatpush1.msra.mxu0 %v553
    %1742 = vmatprep.subr.mxu0 0.0
    %1743 = vmatpush1.msra.mxu0 %v554
    %1744 = vmatprep.subr.mxu0 0.0
    %1745 = vmatpush1.msra.mxu0 %v555
    %1746 = vmatprep.subr.mxu0 0.0
    %1747 = vmatpush1.msra.mxu0 %v556
    %1748 = vmatprep.subr.mxu0 0.0
    %1749 = vmatpush1.msra.mxu0 %v557
    %1750 = vmatprep.subr.mxu0 0.0
    %1751 = vmatpush1.msra.mxu0 %v558
    %1752 = vmatprep.subr.mxu0 0.0
    %1753 = vmatpush1.msra.mxu0 %v559
    %1754 = vmatprep.subr.mxu0 0.0
    %1755 = vmatpush1.msra.mxu0 %v560
    %1756 = vmatprep.subr.mxu0 0.0
    %1757 = vmatpush1.msra.mxu0 %v561
    %1758 = vmatprep.subr.mxu0 0.0
    %1759 = vmatpush1.msra.mxu0 %v562
    %1760 = vmatprep.subr.mxu0 0.0
    %1761 = vmatpush1.msra.mxu0 %v563
    %1762 = vmatprep.subr.mxu0 0.0
    %1763 = vmatpush1.msra.mxu0 0.0
    %1764 = vmatprep.subr.mxu0 0.0
    %1765 = vmatpush1.msra.mxu0 0.0
    %1766 = vmatprep.subr.mxu0 0.0
    %1767 = vmatpush1.msra.mxu0 0.0
    %1768 = vmatprep.subr.mxu0 0.0
    %1769 = vmatpush1.msra.mxu0 0.0
    %1770 = vmatprep.subr.mxu0 0.0
    %1771 = vmatpush1.msra.mxu0 0.0
    %1772 = vmatprep.subr.mxu0 0.0
    %1773 = vmatpush1.msra.mxu0 0.0
    %1774 = vmatprep.subr.mxu0 0.0
    %1775 = vmatpush1.msra.mxu0 0.0
    %1776 = vmatprep.subr.mxu0 0.0
    %1777 = vmatpush1.msra.mxu0 0.0
    %1778 = vmatprep.subr.mxu0 0.0
    %1779 = vmatpush1.msra.mxu0 0.0
    %1780 = vmatprep.subr.mxu0 0.0
    %1781 = vmatpush1.msra.mxu0 0.0
    %1782 = vmatprep.subr.mxu0 0.0
    %1783 = vmatpush1.msra.mxu0 0.0
    %1784 = vmatprep.subr.mxu0 0.0
    %1785 = vmatpush1.msra.mxu0 0.0
    %1786 = vmatprep.subr.mxu0 0.0
    %1787 = vmatpush1.msra.mxu0 0.0
    %1788 = vmatprep.subr.mxu0 0.0
    %1789 = vmatpush1.msra.mxu0 0.0
    %1790 = vmatprep.subr.mxu0 0.0
    %1791 = vmatpush1.msra.mxu0 0.0
    %1792 = vmatprep.subr.mxu0 0.0
    %1793 = vmatpush1.msra.mxu0 0.0
    %1794 = vmatprep.mubr.f32.mxu0 0.0
    %1795 = vmatmul.mubr.f32.gmra.mrb[0].mxu0 %v1726
    %v1796 = vpop.f32.mrb[0].mxu0
    %v1797 = vadd.f32 0.0, %v1796
    %v1798 = vpop.f32.mrb[0].mxu0
    %1799 = vmatprep.mubr.f32.mxu0 0.0
    %1800 = vmatmul.mubr.f32.gmra.mrb[0].mxu0 %v1727
    %v1801 = vpop.f32.mrb[0].mxu0
    %v1802 = vadd.f32 0.0, %v1801
    %v1803 = vpop.f32.mrb[0].mxu0
    %1804 = vmatprep.mubr.f32.mxu0 0.0
    %1805 = vmatmul.mubr.f32.gmra.mrb[0].mxu0 %v1728
    %v1806 = vpop.f32.mrb[0].mxu0
    %v1807 = vadd.f32 0.0, %v1806
    %v1808 = vpop.f32.mrb[0].mxu0
    %1809 = vmatprep.mubr.f32.mxu0 0.0
    %1810 = vmatmul.mubr.f32.gmra.mrb[0].mxu0 %v1729
    %v1811 = vpop.f32.mrb[0].mxu0
    %v1812 = vadd.f32 0.0, %v1811
    %v1813 = vpop.f32.mrb[0].mxu0
    %1814 = vdwg.mxu0
    %v1815 = vld [vmem:[%s2 + $0xc0] sm:$0xff]
    %v1816 = vld [vmem:[%s2 + $0xc8] sm:$0xff]
    %v1817 = vld [vmem:[%s2 + $0xd0] sm:$0xff]
    %v1818 = vld [vmem:[%s2 + $0xd8] sm:$0xff]
    %v1820 = vsel %vm373, %v1797, 0
    %v1823 = vsel %vm373, %v1802, 0
    %v1826 = vsel %vm373, %v1807, 0
    %v1829 = vsel %vm373, %v1812, 0
    %1831 = vmatprep.subr.mxu0 0.0
    %1832 = vmatpush1.msra.mxu0 %v1815
    %1833 = vmatprep.subr.mxu0 0.0
    %1834 = vmatpush1.msra.mxu0 %v1816
    %1835 = vmatprep.subr.mxu0 0.0
    %1836 = vmatpush1.msra.mxu0 %v1817
    %1837 = vmatprep.subr.mxu0 0.0
    %1838 = vmatpush1.msra.mxu0 %v1818
    %1839 = vmatprep.subr.mxu0 0.0
    %1840 = vmatpush1.msra.mxu0 0.0
    %1841 = vmatprep.subr.mxu0 0.0
    %1842 = vmatpush1.msra.mxu0 0.0
    %1843 = vmatprep.subr.mxu0 0.0
    %1844 = vmatpush1.msra.mxu0 0.0
    %1845 = vmatprep.subr.mxu0 0.0
    %1846 = vmatpush1.msra.mxu0 0.0
    %1847 = vmatprep.subr.mxu0 0.0
    %1848 = vmatpush1.msra.mxu0 0.0
    %1849 = vmatprep.subr.mxu0 0.0
    %1850 = vmatpush1.msra.mxu0 0.0
    %1851 = vmatprep.subr.mxu0 0.0
    %1852 = vmatpush1.msra.mxu0 0.0
    %1853 = vmatprep.subr.mxu0 0.0
    %1854 = vmatpush1.msra.mxu0 0.0
    %1855 = vmatprep.subr.mxu0 0.0
    %1856 = vmatpush1.msra.mxu0 0.0
    %1857 = vmatprep.subr.mxu0 0.0
    %1858 = vmatpush1.msra.mxu0 0.0
    %1859 = vmatprep.subr.mxu0 0.0
    %1860 = vmatpush1.msra.mxu0 0.0
    %1861 = vmatprep.subr.mxu0 0.0
    %1862 = vmatpush1.msra.mxu0 0.0
    %1863 = vmatprep.subr.mxu0 0.0
    %1864 = vmatpush1.msra.mxu0 0.0
    %1865 = vmatprep.subr.mxu0 0.0
    %1866 = vmatpush1.msra.mxu0 0.0
    %1867 = vmatprep.subr.mxu0 0.0
    %1868 = vmatpush1.msra.mxu0 0.0
    %1869 = vmatprep.subr.mxu0 0.0
    %1870 = vmatpush1.msra.mxu0 0.0
    %1871 = vmatprep.subr.mxu0 0.0
    %1872 = vmatpush1.msra.mxu0 0.0
    %1873 = vmatprep.subr.mxu0 0.0
    %1874 = vmatpush1.msra.mxu0 0.0
    %1875 = vmatprep.subr.mxu0 0.0
    %1876 = vmatpush1.msra.mxu0 0.0
    %1877 = vmatprep.subr.mxu0 0.0
    %1878 = vmatpush1.msra.mxu0 0.0
    %1879 = vmatprep.subr.mxu0 0.0
    %1880 = vmatpush1.msra.mxu0 0.0
    %1881 = vmatprep.subr.mxu0 0.0
    %1882 = vmatpush1.msra.mxu0 0.0
    %1883 = vmatprep.subr.mxu0 0.0
    %1884 = vmatpush1.msra.mxu0 0.0
    %1885 = vmatprep.subr.mxu0 0.0
    %1886 = vmatpush1.msra.mxu0 0.0
    %1887 = vmatprep.subr.mxu0 0.0
    %1888 = vmatpush1.msra.mxu0 0.0
    %1889 = vmatprep.subr.mxu0 0.0
    %1890 = vmatpush1.msra.mxu0 0.0
    %1891 = vmatprep.subr.mxu0 0.0
    %1892 = vmatpush1.msra.mxu0 0.0
    %1893 = vmatprep.subr.mxu0 0.0
    %1894 = vmatpush1.msra.mxu0 0.0
    %1895 = vmatprep.mubr.f32.mxu0 0.0
    %1896 = vmatmul.mubr.f32.gmra.mrb[0].mxu0 %v1820
    %v1897 = vpop.f32.mrb[0].mxu0
    %v1898 = vadd.f32 0.0, %v1897
    %v1899 = vpop.f32.mrb[0].mxu0
    %1900 = vmatprep.mubr.f32.mxu0 0.0
    %1901 = vmatmul.mubr.f32.gmra.mrb[0].mxu0 %v1823
    %v1902 = vpop.f32.mrb[0].mxu0
    %v1903 = vadd.f32 0.0, %v1902
    %v1904 = vpop.f32.mrb[0].mxu0
    %1905 = vmatprep.mubr.f32.mxu0 0.0
    %1906 = vmatmul.mubr.f32.gmra.mrb[0].mxu0 %v1826
    %v1907 = vpop.f32.mrb[0].mxu0
    %v1908 = vadd.f32 0.0, %v1907
    %v1909 = vpop.f32.mrb[0].mxu0
    %1910 = vmatprep.mubr.f32.mxu0 0.0
    %1911 = vmatmul.mubr.f32.gmra.mrb[0].mxu0 %v1829
    %v1912 = vpop.f32.mrb[0].mxu0
    %v1913 = vadd.f32 0.0, %v1912
    %v1914 = vpop.f32.mrb[0].mxu0
    %1915 = vdwg.mxu0
    %v1916 = vadd.f32 %v1721, %v1898
    %v1917 = vadd.f32 %v1722, %v1903
    %v1918 = vadd.f32 %v1723, %v1908
    %v1919 = vadd.f32 %v1724, %v1913
    %s1920 = scalar_lea.vmem [#allocation12], 224
    %v1921 = vld [vmem:[%s1920] sm:$0xff]
    %v1922 = vld [vmem:[%s1920 + $0x8] sm:$0xff]
    %v1923 = vld [vmem:[%s1920 + $0x10] sm:$0xff]
    %v1924 = vld [vmem:[%s1920 + $0x18] sm:$0xff]
    %1925 = vmatprep.subr.mxu0 0.0
    %1926 = vmatpush1.msra.mxu0 %v548
    %1927 = vmatprep.subr.mxu0 0.0
    %1928 = vmatpush1.msra.mxu0 %v549
    %1929 = vmatprep.subr.mxu0 0.0
    %1930 = vmatpush1.msra.mxu0 %v550
    %1931 = vmatprep.subr.mxu0 0.0
    %1932 = vmatpush1.msra.mxu0 %v551
    %1933 = vmatprep.subr.mxu0 0.0
    %1934 = vmatpush1.msra.mxu0 %v552
    %1935 = vmatprep.subr.mxu0 0.0
    %1936 = vmatpush1.msra.mxu0 %v553
    %1937 = vmatprep.subr.mxu0 0.0
    %1938 = vmatpush1.msra.mxu0 %v554
    %1939 = vmatprep.subr.mxu0 0.0
    %1940 = vmatpush1.msra.mxu0 %v555
    %1941 = vmatprep.subr.mxu0 0.0
    %1942 = vmatpush1.msra.mxu0 %v556
    %1943 = vmatprep.subr.mxu0 0.0
    %1944 = vmatpush1.msra.mxu0 %v557
    %1945 = vmatprep.subr.mxu0 0.0
    %1946 = vmatpush1.msra.mxu0 %v558
    %1947 = vmatprep.subr.mxu0 0.0
    %1948 = vmatpush1.msra.mxu0 %v559
    %1949 = vmatprep.subr.mxu0 0.0
    %1950 = vmatpush1.msra.mxu0 %v560
    %1951 = vmatprep.subr.mxu0 0.0
    %1952 = vmatpush1.msra.mxu0 %v561
    %1953 = vmatprep.subr.mxu0 0.0
    %1954 = vmatpush1.msra.mxu0 %v562
    %1955 = vmatprep.subr.mxu0 0.0
    %1956 = vmatpush1.msra.mxu0 %v563
    %1957 = vmatprep.subr.mxu0 0.0
    %1958 = vmatpush1.msra.mxu0 0.0
    %1959 = vmatprep.subr.mxu0 0.0
    %1960 = vmatpush1.msra.mxu0 0.0
    %1961 = vmatprep.subr.mxu0 0.0
    %1962 = vmatpush1.msra.mxu0 0.0
    %1963 = vmatprep.subr.mxu0 0.0
    %1964 = vmatpush1.msra.mxu0 0.0
    %1965 = vmatprep.subr.mxu0 0.0
    %1966 = vmatpush1.msra.mxu0 0.0
    %1967 = vmatprep.subr.mxu0 0.0
    %1968 = vmatpush1.msra.mxu0 0.0
    %1969 = vmatprep.subr.mxu0 0.0
    %1970 = vmatpush1.msra.mxu0 0.0
    %1971 = vmatprep.subr.mxu0 0.0
    %1972 = vmatpush1.msra.mxu0 0.0
    %1973 = vmatprep.subr.mxu0 0.0
    %1974 = vmatpush1.msra.mxu0 0.0
    %1975 = vmatprep.subr.mxu0 0.0
    %1976 = vmatpush1.msra.mxu0 0.0
    %1977 = vmatprep.subr.mxu0 0.0
    %1978 = vmatpush1.msra.mxu0 0.0
    %1979 = vmatprep.subr.mxu0 0.0
    %1980 = vmatpush1.msra.mxu0 0.0
    %1981 = vmatprep.subr.mxu0 0.0
    %1982 = vmatpush1.msra.mxu0 0.0
    %1983 = vmatprep.subr.mxu0 0.0
    %1984 = vmatpush1.msra.mxu0 0.0
    %1985 = vmatprep.subr.mxu0 0.0
    %1986 = vmatpush1.msra.mxu0 0.0
    %1987 = vmatprep.subr.mxu0 0.0
    %1988 = vmatpush1.msra.mxu0 0.0
    %1989 = vmatprep.mubr.f32.mxu0 0.0
    %1990 = vmatmul.mubr.f32.gmra.mrb[0].mxu0 %v1921
    %v1991 = vpop.f32.mrb[0].mxu0
    %v1992 = vadd.f32 0.0, %v1991
    %v1993 = vpop.f32.mrb[0].mxu0
    %1994 = vmatprep.mubr.f32.mxu0 0.0
    %1995 = vmatmul.mubr.f32.gmra.mrb[0].mxu0 %v1922
    %v1996 = vpop.f32.mrb[0].mxu0
    %v1997 = vadd.f32 0.0, %v1996
    %v1998 = vpop.f32.mrb[0].mxu0
    %1999 = vmatprep.mubr.f32.mxu0 0.0
    %2000 = vmatmul.mubr.f32.gmra.mrb[0].mxu0 %v1923
    %v2001 = vpop.f32.mrb[0].mxu0
    %v2002 = vadd.f32 0.0, %v2001
    %v2003 = vpop.f32.mrb[0].mxu0
    %2004 = vmatprep.mubr.f32.mxu0 0.0
    %2005 = vmatmul.mubr.f32.gmra.mrb[0].mxu0 %v1924
    %v2006 = vpop.f32.mrb[0].mxu0
    %v2007 = vadd.f32 0.0, %v2006
    %v2008 = vpop.f32.mrb[0].mxu0
    %2009 = vdwg.mxu0
    %v2010 = vld [vmem:[%s2 + $0xe0] sm:$0xff]
    %v2011 = vld [vmem:[%s2 + $0xe8] sm:$0xff]
    %v2012 = vld [vmem:[%s2 + $0xf0] sm:$0xff]
    %v2013 = vld [vmem:[%s2 + $0xf8] sm:$0xff]
    %v2015 = vsel %vm373, %v1992, 0
    %v2018 = vsel %vm373, %v1997, 0
    %v2021 = vsel %vm373, %v2002, 0
    %v2024 = vsel %vm373, %v2007, 0
    %2026 = vmatprep.subr.mxu0 0.0
    %2027 = vmatpush1.msra.mxu0 %v2010
    %2028 = vmatprep.subr.mxu0 0.0
    %2029 = vmatpush1.msra.mxu0 %v2011
    %2030 = vmatprep.subr.mxu0 0.0
    %2031 = vmatpush1.msra.mxu0 %v2012
    %2032 = vmatprep.subr.mxu0 0.0
    %2033 = vmatpush1.msra.mxu0 %v2013
    %2034 = vmatprep.subr.mxu0 0.0
    %2035 = vmatpush1.msra.mxu0 0.0
    %2036 = vmatprep.subr.mxu0 0.0
    %2037 = vmatpush1.msra.mxu0 0.0
    %2038 = vmatprep.subr.mxu0 0.0
    %2039 = vmatpush1.msra.mxu0 0.0
    %2040 = vmatprep.subr.mxu0 0.0
    %2041 = vmatpush1.msra.mxu0 0.0
    %2042 = vmatprep.subr.mxu0 0.0
    %2043 = vmatpush1.msra.mxu0 0.0
    %2044 = vmatprep.subr.mxu0 0.0
    %2045 = vmatpush1.msra.mxu0 0.0
    %2046 = vmatprep.subr.mxu0 0.0
    %2047 = vmatpush1.msra.mxu0 0.0
    %2048 = vmatprep.subr.mxu0 0.0
    %2049 = vmatpush1.msra.mxu0 0.0
    %2050 = vmatprep.subr.mxu0 0.0
    %2051 = vmatpush1.msra.mxu0 0.0
    %2052 = vmatprep.subr.mxu0 0.0
    %2053 = vmatpush1.msra.mxu0 0.0
    %2054 = vmatprep.subr.mxu0 0.0
    %2055 = vmatpush1.msra.mxu0 0.0
    %2056 = vmatprep.subr.mxu0 0.0
    %2057 = vmatpush1.msra.mxu0 0.0
    %2058 = vmatprep.subr.mxu0 0.0
    %2059 = vmatpush1.msra.mxu0 0.0
    %2060 = vmatprep.subr.mxu0 0.0
    %2061 = vmatpush1.msra.mxu0 0.0
    %2062 = vmatprep.subr.mxu0 0.0
    %2063 = vmatpush1.msra.mxu0 0.0
    %2064 = vmatprep.subr.mxu0 0.0
    %2065 = vmatpush1.msra.mxu0 0.0
    %2066 = vmatprep.subr.mxu0 0.0
    %2067 = vmatpush1.msra.mxu0 0.0
    %2068 = vmatprep.subr.mxu0 0.0
    %2069 = vmatpush1.msra.mxu0 0.0
    %2070 = vmatprep.subr.mxu0 0.0
    %2071 = vmatpush1.msra.mxu0 0.0
    %2072 = vmatprep.subr.mxu0 0.0
    %2073 = vmatpush1.msra.mxu0 0.0
    %2074 = vmatprep.subr.mxu0 0.0
    %2075 = vmatpush1.msra.mxu0 0.0
    %2076 = vmatprep.subr.mxu0 0.0
    %2077 = vmatpush1.msra.mxu0 0.0
    %2078 = vmatprep.subr.mxu0 0.0
    %2079 = vmatpush1.msra.mxu0 0.0
    %2080 = vmatprep.subr.mxu0 0.0
    %2081 = vmatpush1.msra.mxu0 0.0
    %2082 = vmatprep.subr.mxu0 0.0
    %2083 = vmatpush1.msra.mxu0 0.0
    %2084 = vmatprep.subr.mxu0 0.0
    %2085 = vmatpush1.msra.mxu0 0.0
    %2086 = vmatprep.subr.mxu0 0.0
    %2087 = vmatpush1.msra.mxu0 0.0
    %2088 = vmatprep.subr.mxu0 0.0
    %2089 = vmatpush1.msra.mxu0 0.0
    %2090 = vmatprep.mubr.f32.mxu0 0.0
    %2091 = vmatmul.mubr.f32.gmra.mrb[0].mxu0 %v2015
    %v2092 = vpop.f32.mrb[0].mxu0
    %v2093 = vadd.f32 0.0, %v2092
    %v2094 = vpop.f32.mrb[0].mxu0
    %2095 = vmatprep.mubr.f32.mxu0 0.0
    %2096 = vmatmul.mubr.f32.gmra.mrb[0].mxu0 %v2018
    %v2097 = vpop.f32.mrb[0].mxu0
    %v2098 = vadd.f32 0.0, %v2097
    %v2099 = vpop.f32.mrb[0].mxu0
    %2100 = vmatprep.mubr.f32.mxu0 0.0
    %2101 = vmatmul.mubr.f32.gmra.mrb[0].mxu0 %v2021
    %v2102 = vpop.f32.mrb[0].mxu0
    %v2103 = vadd.f32 0.0, %v2102
    %v2104 = vpop.f32.mrb[0].mxu0
    %2105 = vmatprep.mubr.f32.mxu0 0.0
    %2106 = vmatmul.mubr.f32.gmra.mrb[0].mxu0 %v2024
    %v2107 = vpop.f32.mrb[0].mxu0
    %v2108 = vadd.f32 0.0, %v2107
    %v2109 = vpop.f32.mrb[0].mxu0
    %2110 = vdwg.mxu0
    %v2111 = vadd.f32 %v1916, %v2093
    %v2112 = vadd.f32 %v1917, %v2098
    %v2113 = vadd.f32 %v1918, %v2103
    %v2114 = vadd.f32 %v1919, %v2108
    %s2115 = scalar_lea.vmem [#allocation12], 256
    %v2116 = vld [vmem:[%s2115] sm:$0xff]
    %v2117 = vld [vmem:[%s2115 + $0x8] sm:$0xff]
    %v2118 = vld [vmem:[%s2115 + $0x10] sm:$0xff]
    %v2119 = vld [vmem:[%s2115 + $0x18] sm:$0xff]
    %2120 = vmatprep.subr.mxu0 0.0
    %2121 = vmatpush1.msra.mxu0 %v548
    %2122 = vmatprep.subr.mxu0 0.0
    %2123 = vmatpush1.msra.mxu0 %v549
    %2124 = vmatprep.subr.mxu0 0.0
    %2125 = vmatpush1.msra.mxu0 %v550
    %2126 = vmatprep.subr.mxu0 0.0
    %2127 = vmatpush1.msra.mxu0 %v551
    %2128 = vmatprep.subr.mxu0 0.0
    %2129 = vmatpush1.msra.mxu0 %v552
    %2130 = vmatprep.subr.mxu0 0.0
    %2131 = vmatpush1.msra.mxu0 %v553
    %2132 = vmatprep.subr.mxu0 0.0
    %2133 = vmatpush1.msra.mxu0 %v554
    %2134 = vmatprep.subr.mxu0 0.0
    %2135 = vmatpush1.msra.mxu0 %v555
    %2136 = vmatprep.subr.mxu0 0.0
    %2137 = vmatpush1.msra.mxu0 %v556
    %2138 = vmatprep.subr.mxu0 0.0
    %2139 = vmatpush1.msra.mxu0 %v557
    %2140 = vmatprep.subr.mxu0 0.0
    %2141 = vmatpush1.msra.mxu0 %v558
    %2142 = vmatprep.subr.mxu0 0.0
    %2143 = vmatpush1.msra.mxu0 %v559
    %2144 = vmatprep.subr.mxu0 0.0
    %2145 = vmatpush1.msra.mxu0 %v560
    %2146 = vmatprep.subr.mxu0 0.0
    %2147 = vmatpush1.msra.mxu0 %v561
    %2148 = vmatprep.subr.mxu0 0.0
    %2149 = vmatpush1.msra.mxu0 %v562
    %2150 = vmatprep.subr.mxu0 0.0
    %2151 = vmatpush1.msra.mxu0 %v563
    %2152 = vmatprep.subr.mxu0 0.0
    %2153 = vmatpush1.msra.mxu0 0.0
    %2154 = vmatprep.subr.mxu0 0.0
    %2155 = vmatpush1.msra.mxu0 0.0
    %2156 = vmatprep.subr.mxu0 0.0
    %2157 = vmatpush1.msra.mxu0 0.0
    %2158 = vmatprep.subr.mxu0 0.0
    %2159 = vmatpush1.msra.mxu0 0.0
    %2160 = vmatprep.subr.mxu0 0.0
    %2161 = vmatpush1.msra.mxu0 0.0
    %2162 = vmatprep.subr.mxu0 0.0
    %2163 = vmatpush1.msra.mxu0 0.0
    %2164 = vmatprep.subr.mxu0 0.0
    %2165 = vmatpush1.msra.mxu0 0.0
    %2166 = vmatprep.subr.mxu0 0.0
    %2167 = vmatpush1.msra.mxu0 0.0
    %2168 = vmatprep.subr.mxu0 0.0
    %2169 = vmatpush1.msra.mxu0 0.0
    %2170 = vmatprep.subr.mxu0 0.0
    %2171 = vmatpush1.msra.mxu0 0.0
    %2172 = vmatprep.subr.mxu0 0.0
    %2173 = vmatpush1.msra.mxu0 0.0
    %2174 = vmatprep.subr.mxu0 0.0
    %2175 = vmatpush1.msra.mxu0 0.0
    %2176 = vmatprep.subr.mxu0 0.0
    %2177 = vmatpush1.msra.mxu0 0.0
    %2178 = vmatprep.subr.mxu0 0.0
    %2179 = vmatpush1.msra.mxu0 0.0
    %2180 = vmatprep.subr.mxu0 0.0
    %2181 = vmatpush1.msra.mxu0 0.0
    %2182 = vmatprep.subr.mxu0 0.0
    %2183 = vmatpush1.msra.mxu0 0.0
    %2184 = vmatprep.mubr.f32.mxu0 0.0
    %2185 = vmatmul.mubr.f32.gmra.mrb[0].mxu0 %v2116
    %v2186 = vpop.f32.mrb[0].mxu0
    %v2187 = vadd.f32 0.0, %v2186
    %v2188 = vpop.f32.mrb[0].mxu0
    %2189 = vmatprep.mubr.f32.mxu0 0.0
    %2190 = vmatmul.mubr.f32.gmra.mrb[0].mxu0 %v2117
    %v2191 = vpop.f32.mrb[0].mxu0
    %v2192 = vadd.f32 0.0, %v2191
    %v2193 = vpop.f32.mrb[0].mxu0
    %2194 = vmatprep.mubr.f32.mxu0 0.0
    %2195 = vmatmul.mubr.f32.gmra.mrb[0].mxu0 %v2118
    %v2196 = vpop.f32.mrb[0].mxu0
    %v2197 = vadd.f32 0.0, %v2196
    %v2198 = vpop.f32.mrb[0].mxu0
    %2199 = vmatprep.mubr.f32.mxu0 0.0
    %2200 = vmatmul.mubr.f32.gmra.mrb[0].mxu0 %v2119
    %v2201 = vpop.f32.mrb[0].mxu0
    %v2202 = vadd.f32 0.0, %v2201
    %v2203 = vpop.f32.mrb[0].mxu0
    %2204 = vdwg.mxu0
    %v2205 = vld [vmem:[%s2 + $0x100] sm:$0xff]
    %v2206 = vld [vmem:[%s2 + $0x108] sm:$0xff]
    %v2207 = vld [vmem:[%s2 + $0x110] sm:$0xff]
    %v2208 = vld [vmem:[%s2 + $0x118] sm:$0xff]
    %v2210 = vsel %vm373, %v2187, 0
    %v2213 = vsel %vm373, %v2192, 0
    %v2216 = vsel %vm373, %v2197, 0
    %v2219 = vsel %vm373, %v2202, 0
    %2221 = vmatprep.subr.mxu0 0.0
    %2222 = vmatpush1.msra.mxu0 %v2205
    %2223 = vmatprep.subr.mxu0 0.0
    %2224 = vmatpush1.msra.mxu0 %v2206
    %2225 = vmatprep.subr.mxu0 0.0
    %2226 = vmatpush1.msra.mxu0 %v2207
    %2227 = vmatprep.subr.mxu0 0.0
    %2228 = vmatpush1.msra.mxu0 %v2208
    %2229 = vmatprep.subr.mxu0 0.0
    %2230 = vmatpush1.msra.mxu0 0.0
    %2231 = vmatprep.subr.mxu0 0.0
    %2232 = vmatpush1.msra.mxu0 0.0
    %2233 = vmatprep.subr.mxu0 0.0
    %2234 = vmatpush1.msra.mxu0 0.0
    %2235 = vmatprep.subr.mxu0 0.0
    %2236 = vmatpush1.msra.mxu0 0.0
    %2237 = vmatprep.subr.mxu0 0.0
    %2238 = vmatpush1.msra.mxu0 0.0
    %2239 = vmatprep.subr.mxu0 0.0
    %2240 = vmatpush1.msra.mxu0 0.0
    %2241 = vmatprep.subr.mxu0 0.0
    %2242 = vmatpush1.msra.mxu0 0.0
    %2243 = vmatprep.subr.mxu0 0.0
    %2244 = vmatpush1.msra.mxu0 0.0
    %2245 = vmatprep.subr.mxu0 0.0
    %2246 = vmatpush1.msra.mxu0 0.0
    %2247 = vmatprep.subr.mxu0 0.0
    %2248 = vmatpush1.msra.mxu0 0.0
    %2249 = vmatprep.subr.mxu0 0.0
    %2250 = vmatpush1.msra.mxu0 0.0
    %2251 = vmatprep.subr.mxu0 0.0
    %2252 = vmatpush1.msra.mxu0 0.0
    %2253 = vmatprep.subr.mxu0 0.0
    %2254 = vmatpush1.msra.mxu0 0.0
    %2255 = vmatprep.subr.mxu0 0.0
    %2256 = vmatpush1.msra.mxu0 0.0
    %2257 = vmatprep.subr.mxu0 0.0
    %2258 = vmatpush1.msra.mxu0 0.0
    %2259 = vmatprep.subr.mxu0 0.0
    %2260 = vmatpush1.msra.mxu0 0.0
    %2261 = vmatprep.subr.mxu0 0.0
    %2262 = vmatpush1.msra.mxu0 0.0
    %2263 = vmatprep.subr.mxu0 0.0
    %2264 = vmatpush1.msra.mxu0 0.0
    %2265 = vmatprep.subr.mxu0 0.0
    %2266 = vmatpush1.msra.mxu0 0.0
    %2267 = vmatprep.subr.mxu0 0.0
    %2268 = vmatpush1.msra.mxu0 0.0
    %2269 = vmatprep.subr.mxu0 0.0
    %2270 = vmatpush1.msra.mxu0 0.0
    %2271 = vmatprep.subr.mxu0 0.0
    %2272 = vmatpush1.msra.mxu0 0.0
    %2273 = vmatprep.subr.mxu0 0.0
    %2274 = vmatpush1.msra.mxu0 0.0
    %2275 = vmatprep.subr.mxu0 0.0
    %2276 = vmatpush1.msra.mxu0 0.0
    %2277 = vmatprep.subr.mxu0 0.0
    %2278 = vmatpush1.msra.mxu0 0.0
    %2279 = vmatprep.subr.mxu0 0.0
    %2280 = vmatpush1.msra.mxu0 0.0
    %2281 = vmatprep.subr.mxu0 0.0
    %2282 = vmatpush1.msra.mxu0 0.0
    %2283 = vmatprep.subr.mxu0 0.0
    %2284 = vmatpush1.msra.mxu0 0.0
    %2285 = vmatprep.mubr.f32.mxu0 0.0
    %2286 = vmatmul.mubr.f32.gmra.mrb[0].mxu0 %v2210
    %v2287 = vpop.f32.mrb[0].mxu0
    %v2288 = vadd.f32 0.0, %v2287
    %v2289 = vpop.f32.mrb[0].mxu0
    %2290 = vmatprep.mubr.f32.mxu0 0.0
    %2291 = vmatmul.mubr.f32.gmra.mrb[0].mxu0 %v2213
    %v2292 = vpop.f32.mrb[0].mxu0
    %v2293 = vadd.f32 0.0, %v2292
    %v2294 = vpop.f32.mrb[0].mxu0
    %2295 = vmatprep.mubr.f32.mxu0 0.0
    %2296 = vmatmul.mubr.f32.gmra.mrb[0].mxu0 %v2216
    %v2297 = vpop.f32.mrb[0].mxu0
    %v2298 = vadd.f32 0.0, %v2297
    %v2299 = vpop.f32.mrb[0].mxu0
    %2300 = vmatprep.mubr.f32.mxu0 0.0
    %2301 = vmatmul.mubr.f32.gmra.mrb[0].mxu0 %v2219
    %v2302 = vpop.f32.mrb[0].mxu0
    %v2303 = vadd.f32 0.0, %v2302
    %v2304 = vpop.f32.mrb[0].mxu0
    %2305 = vdwg.mxu0
    %v2306 = vadd.f32 %v2111, %v2288
    %v2307 = vadd.f32 %v2112, %v2293
    %v2308 = vadd.f32 %v2113, %v2298
    %v2309 = vadd.f32 %v2114, %v2303
    %vm2310 = vcmask 523264
    %v2311 = vsel %vm2310, %v2306, 0.0
    %v2312 = vsel %vm2310, %v2307, 0.0
    %v2313 = vadd.f32 %v2311, %v2312
    %v2314 = vsel %vm2310, %v2308, 0.0
    %v2315 = vadd.f32 %v2313, %v2314
    %v2316 = vsel %vm2310, %v2309, 0.0
    %v2317 = vadd.f32 %v2315, %v2316
    %v2318 = vrot.slane %v2317, 4
    %v2319 = vadd.f32 %v2317, %v2318
    %v2320 = vrot.slane %v2319, 2
    %v2321 = vadd.f32 %v2319, %v2320
    %v2322 = vrot.slane %v2321, 1
    %v2323 = vadd.f32 %v2321, %v2322
    %v2324 = vmul.f32 %v2323, 0.03125
    %v2325 = vmul.f32 %v2306, %v2306
    %v2326 = vmul.f32 %v2307, %v2307
    %v2327 = vmul.f32 %v2308, %v2308
    %v2328 = vmul.f32 %v2309, %v2309
    %v2329 = vsel %vm2310, %v2325, 0.0
    %v2330 = vsel %vm2310, %v2326, 0.0
    %v2331 = vadd.f32 %v2329, %v2330
    %v2332 = vsel %vm2310, %v2327, 0.0
    %v2333 = vadd.f32 %v2331, %v2332
    %v2334 = vsel %vm2310, %v2328, 0.0
    %v2335 = vadd.f32 %v2333, %v2334
    %v2336 = vrot.slane %v2335, 4
    %v2337 = vadd.f32 %v2335, %v2336
    %v2338 = vrot.slane %v2337, 2
    %v2339 = vadd.f32 %v2337, %v2338
    %v2340 = vrot.slane %v2339, 1
    %v2341 = vadd.f32 %v2339, %v2340
    %v2342 = vmul.f32 %v2341, 0.03125
    %v2343 = vmul.f32 %v2324, %v2324
    %v2344 = vsub.f32 %v2342, %v2343
    %v2345 = vmax.f32 %v2344, 0.0
    %v2346 = vld [vmem:[#allocation7] sm:$0x1]
    %v2347 = vadd.f32 %v2345, 1e-05
    %v2348 = vrsqrt.pop %v2347
    %v2349 = vmul.f32 %v2346, %v2348
    %v2350 = vld [vmem:[#allocation7 + $0x1] sm:$0x1]
    %v2351 = vmul.f32 %v2324, %v2349
    %v2352 = vsub.f32 %v2350, %v2351
    %v2353 = vlaneseq
    %v2354 = vshrl.u32 %v2353, 7
    %v2355 = vsub.s32 0, %v2354
    %v2356 = vrot.slane %v2349, %v2355
    %v2357 = vmul.f32 %v2306, %v2356
    %v2358 = vmul.f32 %v2307, %v2356
    %v2359 = vmul.f32 %v2308, %v2356
    %v2360 = vmul.f32 %v2309, %v2356
    %v2361 = vlaneseq
    %v2362 = vshrl.u32 %v2361, 7
    %v2363 = vsub.s32 0, %v2362
    %v2364 = vrot.slane %v2352, %v2363
    %v2365 = vadd.f32 %v2357, %v2364
    %v2366 = vadd.f32 %v2358, %v2364
    %v2367 = vadd.f32 %v2359, %v2364
    %v2368 = vadd.f32 %v2360, %v2364
    %vm2369 = vcmp.ge.f32.partialorder %v2365, 0.0
    %vm2370 = vcmp.ge.f32.partialorder %v2366, 0.0
    %vm2371 = vcmp.ge.f32.partialorder %v2367, 0.0
    %vm2372 = vcmp.ge.f32.partialorder %v2368, 0.0
    %v2373 = vmul.f32 %v2365, 0.01
    %v2374 = vmul.f32 %v2366, 0.01
    %v2375 = vmul.f32 %v2367, 0.01
    %v2376 = vmul.f32 %v2368, 0.01
    %v2377 = vsel %vm2369, %v2365, %v2373
    %v2378 = vsel %vm2370, %v2366, %v2374
    %v2379 = vsel %vm2371, %v2367, %v2375
    %v2380 = vsel %vm2372, %v2368, %v2376
    %v2381 = vld [vmem:[#allocation13] sm:$0xff]
    %v2383 = vsel %vm373, %v2381, 0
    %2385 = vmatprep.subr.mxu0 0.0
    %2386 = vmatpush1.msra.mxu0 %v2377
    %2387 = vmatprep.subr.mxu0 0.0
    %2388 = vmatpush1.msra.mxu0 %v2378
    %2389 = vmatprep.subr.mxu0 0.0
    %2390 = vmatpush1.msra.mxu0 %v2379
    %2391 = vmatprep.subr.mxu0 0.0
    %2392 = vmatpush1.msra.mxu0 %v2380
    %2393 = vmatprep.subr.mxu0 0.0
    %2394 = vmatpush1.msra.mxu0 0.0
    %2395 = vmatprep.subr.mxu0 0.0
    %2396 = vmatpush1.msra.mxu0 0.0
    %2397 = vmatprep.subr.mxu0 0.0
    %2398 = vmatpush1.msra.mxu0 0.0
    %2399 = vmatprep.subr.mxu0 0.0
    %2400 = vmatpush1.msra.mxu0 0.0
    %2401 = vmatprep.subr.mxu0 0.0
    %2402 = vmatpush1.msra.mxu0 0.0
    %2403 = vmatprep.subr.mxu0 0.0
    %2404 = vmatpush1.msra.mxu0 0.0
    %2405 = vmatprep.subr.mxu0 0.0
    %2406 = vmatpush1.msra.mxu0 0.0
    %2407 = vmatprep.subr.mxu0 0.0
    %2408 = vmatpush1.msra.mxu0 0.0
    %2409 = vmatprep.subr.mxu0 0.0
    %2410 = vmatpush1.msra.mxu0 0.0
    %2411 = vmatprep.subr.mxu0 0.0
    %2412 = vmatpush1.msra.mxu0 0.0
    %2413 = vmatprep.subr.mxu0 0.0
    %2414 = vmatpush1.msra.mxu0 0.0
    %2415 = vmatprep.subr.mxu0 0.0
    %2416 = vmatpush1.msra.mxu0 0.0
    %2417 = vmatprep.subr.mxu0 0.0
    %2418 = vmatpush1.msra.mxu0 0.0
    %2419 = vmatprep.subr.mxu0 0.0
    %2420 = vmatpush1.msra.mxu0 0.0
    %2421 = vmatprep.subr.mxu0 0.0
    %2422 = vmatpush1.msra.mxu0 0.0
    %2423 = vmatprep.subr.mxu0 0.0
    %2424 = vmatpush1.msra.mxu0 0.0
    %2425 = vmatprep.subr.mxu0 0.0
    %2426 = vmatpush1.msra.mxu0 0.0
    %2427 = vmatprep.subr.mxu0 0.0
    %2428 = vmatpush1.msra.mxu0 0.0
    %2429 = vmatprep.subr.mxu0 0.0
    %2430 = vmatpush1.msra.mxu0 0.0
    %2431 = vmatprep.subr.mxu0 0.0
    %2432 = vmatpush1.msra.mxu0 0.0
    %2433 = vmatprep.subr.mxu0 0.0
    %2434 = vmatpush1.msra.mxu0 0.0
    %2435 = vmatprep.subr.mxu0 0.0
    %2436 = vmatpush1.msra.mxu0 0.0
    %2437 = vmatprep.subr.mxu0 0.0
    %2438 = vmatpush1.msra.mxu0 0.0
    %2439 = vmatprep.subr.mxu0 0.0
    %2440 = vmatpush1.msra.mxu0 0.0
    %2441 = vmatprep.subr.mxu0 0.0
    %2442 = vmatpush1.msra.mxu0 0.0
    %2443 = vmatprep.subr.mxu0 0.0
    %2444 = vmatpush1.msra.mxu0 0.0
    %2445 = vmatprep.subr.mxu0 0.0
    %2446 = vmatpush1.msra.mxu0 0.0
    %2447 = vmatprep.subr.mxu0 0.0
    %2448 = vmatpush1.msra.mxu0 0.0
    %2449 = vmatprep.mubr.f32.mxu0 0.0
    %2450 = vmatmul.mubr.f32.gmra.mrb[0].mxu0 %v2383
    %v2451 = vpop.f32.mrb[0].mxu0
    %v2452 = vadd.f32 0.0, %v2451
    %v2453 = vpop.f32.mrb[0].mxu0
    %2454 = vdwg.mxu0
    %v2455 = vld [vmem:[#allocation2] sm:$0xff]
    %v2456 = vld [vmem:[#allocation2 + $0x8] sm:$0xff]
    %v2457 = vld [vmem:[#allocation2 + $0x10] sm:$0xff]
    %v2458 = vld [vmem:[#allocation2 + $0x18] sm:$0xff]
    %v2459 = vld [vmem:[#allocation2 + $0x20] sm:$0xff]
    %v2460 = vld [vmem:[#allocation2 + $0x28] sm:$0xff]
    %v2461 = vld [vmem:[#allocation2 + $0x30] sm:$0xff]
    %v2462 = vld [vmem:[#allocation2 + $0x38] sm:$0xff]
    %s2463 = scalar_lea.vmem [#allocation13], 8
    %v2464 = vld [vmem:[%s2463] sm:$0xff]
    %v2466 = vsel %vm373, %v2464, 0
    %2468 = vmatprep.subr.mxu0 0.0
    %2469 = vmatpush1.msra.mxu0 %v2377
    %2470 = vmatprep.subr.mxu0 0.0
    %2471 = vmatpush1.msra.mxu0 %v2378
    %2472 = vmatprep.subr.mxu0 0.0
    %2473 = vmatpush1.msra.mxu0 %v2379
    %2474 = vmatprep.subr.mxu0 0.0
    %2475 = vmatpush1.msra.mxu0 %v2380
    %2476 = vmatprep.subr.mxu0 0.0
    %2477 = vmatpush1.msra.mxu0 0.0
    %2478 = vmatprep.subr.mxu0 0.0
    %2479 = vmatpush1.msra.mxu0 0.0
    %2480 = vmatprep.subr.mxu0 0.0
    %2481 = vmatpush1.msra.mxu0 0.0
    %2482 = vmatprep.subr.mxu0 0.0
    %2483 = vmatpush1.msra.mxu0 0.0
    %2484 = vmatprep.subr.mxu0 0.0
    %2485 = vmatpush1.msra.mxu0 0.0
    %2486 = vmatprep.subr.mxu0 0.0
    %2487 = vmatpush1.msra.mxu0 0.0
    %2488 = vmatprep.subr.mxu0 0.0
    %2489 = vmatpush1.msra.mxu0 0.0
    %2490 = vmatprep.subr.mxu0 0.0
    %2491 = vmatpush1.msra.mxu0 0.0
    %2492 = vmatprep.subr.mxu0 0.0
    %2493 = vmatpush1.msra.mxu0 0.0
    %2494 = vmatprep.subr.mxu0 0.0
    %2495 = vmatpush1.msra.mxu0 0.0
    %2496 = vmatprep.subr.mxu0 0.0
    %2497 = vmatpush1.msra.mxu0 0.0
    %2498 = vmatprep.subr.mxu0 0.0
    %2499 = vmatpush1.msra.mxu0 0.0
    %2500 = vmatprep.subr.mxu0 0.0
    %2501 = vmatpush1.msra.mxu0 0.0
    %2502 = vmatprep.subr.mxu0 0.0
    %2503 = vmatpush1.msra.mxu0 0.0
    %2504 = vmatprep.subr.mxu0 0.0
    %2505 = vmatpush1.msra.mxu0 0.0
    %2506 = vmatprep.subr.mxu0 0.0
    %2507 = vmatpush1.msra.mxu0 0.0
    %2508 = vmatprep.subr.mxu0 0.0
    %2509 = vmatpush1.msra.mxu0 0.0
    %2510 = vmatprep.subr.mxu0 0.0
    %2511 = vmatpush1.msra.mxu0 0.0
    %2512 = vmatprep.subr.mxu0 0.0
    %2513 = vmatpush1.msra.mxu0 0.0
    %2514 = vmatprep.subr.mxu0 0.0
    %2515 = vmatpush1.msra.mxu0 0.0
    %2516 = vmatprep.subr.mxu0 0.0
    %2517 = vmatpush1.msra.mxu0 0.0
    %2518 = vmatprep.subr.mxu0 0.0
    %2519 = vmatpush1.msra.mxu0 0.0
    %2520 = vmatprep.subr.mxu0 0.0
    %2521 = vmatpush1.msra.mxu0 0.0
    %2522 = vmatprep.subr.mxu0 0.0
    %2523 = vmatpush1.msra.mxu0 0.0
    %2524 = vmatprep.subr.mxu0 0.0
    %2525 = vmatpush1.msra.mxu0 0.0
    %2526 = vmatprep.subr.mxu0 0.0
    %2527 = vmatpush1.msra.mxu0 0.0
    %2528 = vmatprep.subr.mxu0 0.0
    %2529 = vmatpush1.msra.mxu0 0.0
    %2530 = vmatprep.subr.mxu0 0.0
    %2531 = vmatpush1.msra.mxu0 0.0
    %2532 = vmatprep.mubr.f32.mxu0 0.0
    %2533 = vmatmul.mubr.f32.gmra.mrb[0].mxu0 %v2466
    %v2534 = vpop.f32.mrb[0].mxu0
    %v2535 = vadd.f32 0.0, %v2534
    %v2536 = vpop.f32.mrb[0].mxu0
    %2537 = vdwg.mxu0
    %v2538 = vld [vmem:[#allocation2 + $0x40] sm:$0xff]
    %v2539 = vld [vmem:[#allocation2 + $0x48] sm:$0xff]
    %v2540 = vld [vmem:[#allocation2 + $0x50] sm:$0xff]
    %v2541 = vld [vmem:[#allocation2 + $0x58] sm:$0xff]
    %v2542 = vld [vmem:[#allocation2 + $0x60] sm:$0xff]
    %v2543 = vld [vmem:[#allocation2 + $0x68] sm:$0xff]
    %v2544 = vld [vmem:[#allocation2 + $0x70] sm:$0xff]
    %v2545 = vld [vmem:[#allocation2 + $0x78] sm:$0xff]
    %v2547 = vsel %vm2310, %v2535, 0
    %2549 = vmatprep.subr.mxu0 0.0
    %2550 = vmatpush1.msra.mxu0 %v2538
    %2551 = vmatprep.subr.mxu0 0.0
    %2552 = vmatpush1.msra.mxu0 %v2539
    %2553 = vmatprep.subr.mxu0 0.0
    %2554 = vmatpush1.msra.mxu0 %v2540
    %2555 = vmatprep.subr.mxu0 0.0
    %2556 = vmatpush1.msra.mxu0 %v2541
    %2557 = vmatprep.subr.mxu0 0.0
    %2558 = vmatpush1.msra.mxu0 %v2542
    %2559 = vmatprep.subr.mxu0 0.0
    %2560 = vmatpush1.msra.mxu0 %v2543
    %2561 = vmatprep.subr.mxu0 0.0
    %2562 = vmatpush1.msra.mxu0 %v2544
    %2563 = vmatprep.subr.mxu0 0.0
    %2564 = vmatpush1.msra.mxu0 %v2545
    %2565 = vmatprep.subr.mxu0 0.0
    %2566 = vmatpush1.msra.mxu0 0.0
    %2567 = vmatprep.subr.mxu0 0.0
    %2568 = vmatpush1.msra.mxu0 0.0
    %2569 = vmatprep.subr.mxu0 0.0
    %2570 = vmatpush1.msra.mxu0 0.0
    %2571 = vmatprep.subr.mxu0 0.0
    %2572 = vmatpush1.msra.mxu0 0.0
    %2573 = vmatprep.subr.mxu0 0.0
    %2574 = vmatpush1.msra.mxu0 0.0
    %2575 = vmatprep.subr.mxu0 0.0
    %2576 = vmatpush1.msra.mxu0 0.0
    %2577 = vmatprep.subr.mxu0 0.0
    %2578 = vmatpush1.msra.mxu0 0.0
    %2579 = vmatprep.subr.mxu0 0.0
    %2580 = vmatpush1.msra.mxu0 0.0
    %2581 = vmatprep.subr.mxu0 0.0
    %2582 = vmatpush1.msra.mxu0 0.0
    %2583 = vmatprep.subr.mxu0 0.0
    %2584 = vmatpush1.msra.mxu0 0.0
    %2585 = vmatprep.subr.mxu0 0.0
    %2586 = vmatpush1.msra.mxu0 0.0
    %2587 = vmatprep.subr.mxu0 0.0
    %2588 = vmatpush1.msra.mxu0 0.0
    %2589 = vmatprep.subr.mxu0 0.0
    %2590 = vmatpush1.msra.mxu0 0.0
    %2591 = vmatprep.subr.mxu0 0.0
    %2592 = vmatpush1.msra.mxu0 0.0
    %2593 = vmatprep.subr.mxu0 0.0
    %2594 = vmatpush1.msra.mxu0 0.0
    %2595 = vmatprep.subr.mxu0 0.0
    %2596 = vmatpush1.msra.mxu0 0.0
    %2597 = vmatprep.subr.mxu0 0.0
    %2598 = vmatpush1.msra.mxu0 0.0
    %2599 = vmatprep.subr.mxu0 0.0
    %2600 = vmatpush1.msra.mxu0 0.0
    %2601 = vmatprep.subr.mxu0 0.0
    %2602 = vmatpush1.msra.mxu0 0.0
    %2603 = vmatprep.subr.mxu0 0.0
    %2604 = vmatpush1.msra.mxu0 0.0
    %2605 = vmatprep.subr.mxu0 0.0
    %2606 = vmatpush1.msra.mxu0 0.0
    %2607 = vmatprep.subr.mxu0 0.0
    %2608 = vmatpush1.msra.mxu0 0.0
    %2609 = vmatprep.subr.mxu0 0.0
    %2610 = vmatpush1.msra.mxu0 0.0
    %2611 = vmatprep.subr.mxu0 0.0
    %2612 = vmatpush1.msra.mxu0 0.0
    %2613 = vmatprep.mubr.f32.mxu0 0.0
    %2614 = vmatmul.mubr.f32.gmra.mrb[0].mxu0 %v2547
    %v2615 = vpop.f32.mrb[0].mxu0
    %v2616 = vadd.f32 0.0, %v2615
    %v2617 = vpop.f32.mrb[0].mxu0
    %2618 = vdwg.mxu0
    %v2620 = vsel %vm2310, %v2452, 0
    %2622 = vmatprep.subr.mxu0 0.0
    %2623 = vmatpush1.msra.mxu0 %v2455
    %2624 = vmatprep.subr.mxu0 0.0
    %2625 = vmatpush1.msra.mxu0 %v2456
    %2626 = vmatprep.subr.mxu0 0.0
    %2627 = vmatpush1.msra.mxu0 %v2457
    %2628 = vmatprep.subr.mxu0 0.0
    %2629 = vmatpush1.msra.mxu0 %v2458
    %2630 = vmatprep.subr.mxu0 0.0
    %2631 = vmatpush1.msra.mxu0 %v2459
    %2632 = vmatprep.subr.mxu0 0.0
    %2633 = vmatpush1.msra.mxu0 %v2460
    %2634 = vmatprep.subr.mxu0 0.0
    %2635 = vmatpush1.msra.mxu0 %v2461
    %2636 = vmatprep.subr.mxu0 0.0
    %2637 = vmatpush1.msra.mxu0 %v2462
    %2638 = vmatprep.subr.mxu0 0.0
    %2639 = vmatpush1.msra.mxu0 0.0
    %2640 = vmatprep.subr.mxu0 0.0
    %2641 = vmatpush1.msra.mxu0 0.0
    %2642 = vmatprep.subr.mxu0 0.0
    %2643 = vmatpush1.msra.mxu0 0.0
    %2644 = vmatprep.subr.mxu0 0.0
    %2645 = vmatpush1.msra.mxu0 0.0
    %2646 = vmatprep.subr.mxu0 0.0
    %2647 = vmatpush1.msra.mxu0 0.0
    %2648 = vmatprep.subr.mxu0 0.0
    %2649 = vmatpush1.msra.mxu0 0.0
    %2650 = vmatprep.subr.mxu0 0.0
    %2651 = vmatpush1.msra.mxu0 0.0
    %2652 = vmatprep.subr.mxu0 0.0
    %2653 = vmatpush1.msra.mxu0 0.0
    %2654 = vmatprep.subr.mxu0 0.0
    %2655 = vmatpush1.msra.mxu0 0.0
    %2656 = vmatprep.subr.mxu0 0.0
    %2657 = vmatpush1.msra.mxu0 0.0
    %2658 = vmatprep.subr.mxu0 0.0
    %2659 = vmatpush1.msra.mxu0 0.0
    %2660 = vmatprep.subr.mxu0 0.0
    %2661 = vmatpush1.msra.mxu0 0.0
    %2662 = vmatprep.subr.mxu0 0.0
    %2663 = vmatpush1.msra.mxu0 0.0
    %2664 = vmatprep.subr.mxu0 0.0
    %2665 = vmatpush1.msra.mxu0 0.0
    %2666 = vmatprep.subr.mxu0 0.0
    %2667 = vmatpush1.msra.mxu0 0.0
    %2668 = vmatprep.subr.mxu0 0.0
    %2669 = vmatpush1.msra.mxu0 0.0
    %2670 = vmatprep.subr.mxu0 0.0
    %2671 = vmatpush1.msra.mxu0 0.0
    %2672 = vmatprep.subr.mxu0 0.0
    %2673 = vmatpush1.msra.mxu0 0.0
    %2674 = vmatprep.subr.mxu0 0.0
    %2675 = vmatpush1.msra.mxu0 0.0
    %2676 = vmatprep.subr.mxu0 0.0
    %2677 = vmatpush1.msra.mxu0 0.0
    %2678 = vmatprep.subr.mxu0 0.0
    %2679 = vmatpush1.msra.mxu0 0.0
    %2680 = vmatprep.subr.mxu0 0.0
    %2681 = vmatpush1.msra.mxu0 0.0
    %2682 = vmatprep.subr.mxu0 0.0
    %2683 = vmatpush1.msra.mxu0 0.0
    %2684 = vmatprep.subr.mxu0 0.0
    %2685 = vmatpush1.msra.mxu0 0.0
    %2686 = vmatprep.mubr.f32.mxu0 0.0
    %2687 = vmatmul.mubr.f32.gmra.mrb[0].mxu0 %v2620
    %v2688 = vpop.f32.mrb[0].mxu0
    %v2689 = vadd.f32 %v2616, %v2688
    %v2690 = vpop.f32.mrb[0].mxu0
    %2691 = vdwg.mxu0
    %s2692 = scalar_lea.vmem [#allocation13], 16
    %v2693 = vld [vmem:[%s2692] sm:$0xff]
    %v2695 = vsel %vm373, %v2693, 0
    %2697 = vmatprep.subr.mxu0 0.0
    %2698 = vmatpush1.msra.mxu0 %v2377
    %2699 = vmatprep.subr.mxu0 0.0
    %2700 = vmatpush1.msra.mxu0 %v2378
    %2701 = vmatprep.subr.mxu0 0.0
    %2702 = vmatpush1.msra.mxu0 %v2379
    %2703 = vmatprep.subr.mxu0 0.0
    %2704 = vmatpush1.msra.mxu0 %v2380
    %2705 = vmatprep.subr.mxu0 0.0
    %2706 = vmatpush1.msra.mxu0 0.0
    %2707 = vmatprep.subr.mxu0 0.0
    %2708 = vmatpush1.msra.mxu0 0.0
    %2709 = vmatprep.subr.mxu0 0.0
    %2710 = vmatpush1.msra.mxu0 0.0
    %2711 = vmatprep.subr.mxu0 0.0
    %2712 = vmatpush1.msra.mxu0 0.0
    %2713 = vmatprep.subr.mxu0 0.0
    %2714 = vmatpush1.msra.mxu0 0.0
    %2715 = vmatprep.subr.mxu0 0.0
    %2716 = vmatpush1.msra.mxu0 0.0
    %2717 = vmatprep.subr.mxu0 0.0
    %2718 = vmatpush1.msra.mxu0 0.0
    %2719 = vmatprep.subr.mxu0 0.0
    %2720 = vmatpush1.msra.mxu0 0.0
    %2721 = vmatprep.subr.mxu0 0.0
    %2722 = vmatpush1.msra.mxu0 0.0
    %2723 = vmatprep.subr.mxu0 0.0
    %2724 = vmatpush1.msra.mxu0 0.0
    %2725 = vmatprep.subr.mxu0 0.0
    %2726 = vmatpush1.msra.mxu0 0.0
    %2727 = vmatprep.subr.mxu0 0.0
    %2728 = vmatpush1.msra.mxu0 0.0
    %2729 = vmatprep.subr.mxu0 0.0
    %2730 = vmatpush1.msra.mxu0 0.0
    %2731 = vmatprep.subr.mxu0 0.0
    %2732 = vmatpush1.msra.mxu0 0.0
    %2733 = vmatprep.subr.mxu0 0.0
    %2734 = vmatpush1.msra.mxu0 0.0
    %2735 = vmatprep.subr.mxu0 0.0
    %2736 = vmatpush1.msra.mxu0 0.0
    %2737 = vmatprep.subr.mxu0 0.0
    %2738 = vmatpush1.msra.mxu0 0.0
    %2739 = vmatprep.subr.mxu0 0.0
    %2740 = vmatpush1.msra.mxu0 0.0
    %2741 = vmatprep.subr.mxu0 0.0
    %2742 = vmatpush1.msra.mxu0 0.0
    %2743 = vmatprep.subr.mxu0 0.0
    %2744 = vmatpush1.msra.mxu0 0.0
    %2745 = vmatprep.subr.mxu0 0.0
    %2746 = vmatpush1.msra.mxu0 0.0
    %2747 = vmatprep.subr.mxu0 0.0
    %2748 = vmatpush1.msra.mxu0 0.0
    %2749 = vmatprep.subr.mxu0 0.0
    %2750 = vmatpush1.msra.mxu0 0.0
    %2751 = vmatprep.subr.mxu0 0.0
    %2752 = vmatpush1.msra.mxu0 0.0
    %2753 = vmatprep.subr.mxu0 0.0
    %2754 = vmatpush1.msra.mxu0 0.0
    %2755 = vmatprep.subr.mxu0 0.0
    %2756 = vmatpush1.msra.mxu0 0.0
    %2757 = vmatprep.subr.mxu0 0.0
    %2758 = vmatpush1.msra.mxu0 0.0
    %2759 = vmatprep.subr.mxu0 0.0
    %2760 = vmatpush1.msra.mxu0 0.0
    %2761 = vmatprep.mubr.f32.mxu0 0.0
    %2762 = vmatmul.mubr.f32.gmra.mrb[0].mxu0 %v2695
    %v2763 = vpop.f32.mrb[0].mxu0
    %v2764 = vadd.f32 0.0, %v2763
    %v2765 = vpop.f32.mrb[0].mxu0
    %2766 = vdwg.mxu0
    %v2767 = vld [vmem:[#allocation2 + $0x80] sm:$0xff]
    %v2768 = vld [vmem:[#allocation2 + $0x88] sm:$0xff]
    %v2769 = vld [vmem:[#allocation2 + $0x90] sm:$0xff]
    %v2770 = vld [vmem:[#allocation2 + $0x98] sm:$0xff]
    %v2771 = vld [vmem:[#allocation2 + $0xa0] sm:$0xff]
    %v2772 = vld [vmem:[#allocation2 + $0xa8] sm:$0xff]
    %v2773 = vld [vmem:[#allocation2 + $0xb0] sm:$0xff]
    %v2774 = vld [vmem:[#allocation2 + $0xb8] sm:$0xff]
    %v2776 = vsel %vm2310, %v2764, 0
    %2778 = vmatprep.subr.mxu0 0.0
    %2779 = vmatpush1.msra.mxu0 %v2767
    %2780 = vmatprep.subr.mxu0 0.0
    %2781 = vmatpush1.msra.mxu0 %v2768
    %2782 = vmatprep.subr.mxu0 0.0
    %2783 = vmatpush1.msra.mxu0 %v2769
    %2784 = vmatprep.subr.mxu0 0.0
    %2785 = vmatpush1.msra.mxu0 %v2770
    %2786 = vmatprep.subr.mxu0 0.0
    %2787 = vmatpush1.msra.mxu0 %v2771
    %2788 = vmatprep.subr.mxu0 0.0
    %2789 = vmatpush1.msra.mxu0 %v2772
    %2790 = vmatprep.subr.mxu0 0.0
    %2791 = vmatpush1.msra.mxu0 %v2773
    %2792 = vmatprep.subr.mxu0 0.0
    %2793 = vmatpush1.msra.mxu0 %v2774
    %2794 = vmatprep.subr.mxu0 0.0
    %2795 = vmatpush1.msra.mxu0 0.0
    %2796 = vmatprep.subr.mxu0 0.0
    %2797 = vmatpush1.msra.mxu0 0.0
    %2798 = vmatprep.subr.mxu0 0.0
    %2799 = vmatpush1.msra.mxu0 0.0
    %2800 = vmatprep.subr.mxu0 0.0
    %2801 = vmatpush1.msra.mxu0 0.0
    %2802 = vmatprep.subr.mxu0 0.0
    %2803 = vmatpush1.msra.mxu0 0.0
    %2804 = vmatprep.subr.mxu0 0.0
    %2805 = vmatpush1.msra.mxu0 0.0
    %2806 = vmatprep.subr.mxu0 0.0
    %2807 = vmatpush1.msra.mxu0 0.0
    %2808 = vmatprep.subr.mxu0 0.0
    %2809 = vmatpush1.msra.mxu0 0.0
    %2810 = vmatprep.subr.mxu0 0.0
    %2811 = vmatpush1.msra.mxu0 0.0
    %2812 = vmatprep.subr.mxu0 0.0
    %2813 = vmatpush1.msra.mxu0 0.0
    %2814 = vmatprep.subr.mxu0 0.0
    %2815 = vmatpush1.msra.mxu0 0.0
    %2816 = vmatprep.subr.mxu0 0.0
    %2817 = vmatpush1.msra.mxu0 0.0
    %2818 = vmatprep.subr.mxu0 0.0
    %2819 = vmatpush1.msra.mxu0 0.0
    %2820 = vmatprep.subr.mxu0 0.0
    %2821 = vmatpush1.msra.mxu0 0.0
    %2822 = vmatprep.subr.mxu0 0.0
    %2823 = vmatpush1.msra.mxu0 0.0
    %2824 = vmatprep.subr.mxu0 0.0
    %2825 = vmatpush1.msra.mxu0 0.0
    %2826 = vmatprep.subr.mxu0 0.0
    %2827 = vmatpush1.msra.mxu0 0.0
    %2828 = vmatprep.subr.mxu0 0.0
    %2829 = vmatpush1.msra.mxu0 0.0
    %2830 = vmatprep.subr.mxu0 0.0
    %2831 = vmatpush1.msra.mxu0 0.0
    %2832 = vmatprep.subr.mxu0 0.0
    %2833 = vmatpush1.msra.mxu0 0.0
    %2834 = vmatprep.subr.mxu0 0.0
    %2835 = vmatpush1.msra.mxu0 0.0
    %2836 = vmatprep.subr.mxu0 0.0
    %2837 = vmatpush1.msra.mxu0 0.0
    %2838 = vmatprep.subr.mxu0 0.0
    %2839 = vmatpush1.msra.mxu0 0.0
    %2840 = vmatprep.subr.mxu0 0.0
    %2841 = vmatpush1.msra.mxu0 0.0
    %2842 = vmatprep.mubr.f32.mxu0 0.0
    %2843 = vmatmul.mubr.f32.gmra.mrb[0].mxu0 %v2776
    %v2844 = vpop.f32.mrb[0].mxu0
    %v2845 = vadd.f32 0.0, %v2844
    %v2846 = vpop.f32.mrb[0].mxu0
    %2847 = vdwg.mxu0
    %v2848 = vadd.f32 %v2689, %v2845
    %s2849 = scalar_lea.vmem [#allocation13], 24
    %v2850 = vld [vmem:[%s2849] sm:$0xff]
    %v2852 = vsel %vm373, %v2850, 0
    %2854 = vmatprep.subr.mxu0 0.0
    %2855 = vmatpush1.msra.mxu0 %v2377
    %2856 = vmatprep.subr.mxu0 0.0
    %2857 = vmatpush1.msra.mxu0 %v2378
    %2858 = vmatprep.subr.mxu0 0.0
    %2859 = vmatpush1.msra.mxu0 %v2379
    %2860 = vmatprep.subr.mxu0 0.0
    %2861 = vmatpush1.msra.mxu0 %v2380
    %2862 = vmatprep.subr.mxu0 0.0
    %2863 = vmatpush1.msra.mxu0 0.0
    %2864 = vmatprep.subr.mxu0 0.0
    %2865 = vmatpush1.msra.mxu0 0.0
    %2866 = vmatprep.subr.mxu0 0.0
    %2867 = vmatpush1.msra.mxu0 0.0
    %2868 = vmatprep.subr.mxu0 0.0
    %2869 = vmatpush1.msra.mxu0 0.0
    %2870 = vmatprep.subr.mxu0 0.0
    %2871 = vmatpush1.msra.mxu0 0.0
    %2872 = vmatprep.subr.mxu0 0.0
    %2873 = vmatpush1.msra.mxu0 0.0
    %2874 = vmatprep.subr.mxu0 0.0
    %2875 = vmatpush1.msra.mxu0 0.0
    %2876 = vmatprep.subr.mxu0 0.0
    %2877 = vmatpush1.msra.mxu0 0.0
    %2878 = vmatprep.subr.mxu0 0.0
    %2879 = vmatpush1.msra.mxu0 0.0
    %2880 = vmatprep.subr.mxu0 0.0
    %2881 = vmatpush1.msra.mxu0 0.0
    %2882 = vmatprep.subr.mxu0 0.0
    %2883 = vmatpush1.msra.mxu0 0.0
    %2884 = vmatprep.subr.mxu0 0.0
    %2885 = vmatpush1.msra.mxu0 0.0
    %2886 = vmatprep.subr.mxu0 0.0
    %2887 = vmatpush1.msra.mxu0 0.0
    %2888 = vmatprep.subr.mxu0 0.0
    %2889 = vmatpush1.msra.mxu0 0.0
    %2890 = vmatprep.subr.mxu0 0.0
    %2891 = vmatpush1.msra.mxu0 0.0
    %2892 = vmatprep.subr.mxu0 0.0
    %2893 = vmatpush1.msra.mxu0 0.0
    %2894 = vmatprep.subr.mxu0 0.0
    %2895 = vmatpush1.msra.mxu0 0.0
    %2896 = vmatprep.subr.mxu0 0.0
    %2897 = vmatpush1.msra.mxu0 0.0
    %2898 = vmatprep.subr.mxu0 0.0
    %2899 = vmatpush1.msra.mxu0 0.0
    %2900 = vmatprep.subr.mxu0 0.0
    %2901 = vmatpush1.msra.mxu0 0.0
    %2902 = vmatprep.subr.mxu0 0.0
    %2903 = vmatpush1.msra.mxu0 0.0
    %2904 = vmatprep.subr.mxu0 0.0
    %2905 = vmatpush1.msra.mxu0 0.0
    %2906 = vmatprep.subr.mxu0 0.0
    %2907 = vmatpush1.msra.mxu0 0.0
    %2908 = vmatprep.subr.mxu0 0.0
    %2909 = vmatpush1.msra.mxu0 0.0
    %2910 = vmatprep.subr.mxu0 0.0
    %2911 = vmatpush1.msra.mxu0 0.0
    %2912 = vmatprep.subr.mxu0 0.0
    %2913 = vmatpush1.msra.mxu0 0.0
    %2914 = vmatprep.subr.mxu0 0.0
    %2915 = vmatpush1.msra.mxu0 0.0
    %2916 = vmatprep.subr.mxu0 0.0
    %2917 = vmatpush1.msra.mxu0 0.0
    %2918 = vmatprep.mubr.f32.mxu0 0.0
    %2919 = vmatmul.mubr.f32.gmra.mrb[0].mxu0 %v2852
    %v2920 = vpop.f32.mrb[0].mxu0
    %v2921 = vadd.f32 0.0, %v2920
    %v2922 = vpop.f32.mrb[0].mxu0
    %2923 = vdwg.mxu0
    %v2924 = vld [vmem:[#allocation2 + $0xc0] sm:$0xff]
    %v2925 = vld [vmem:[#allocation2 + $0xc8] sm:$0xff]
    %v2926 = vld [vmem:[#allocation2 + $0xd0] sm:$0xff]
    %v2927 = vld [vmem:[#allocation2 + $0xd8] sm:$0xff]
    %v2928 = vld [vmem:[#allocation2 + $0xe0] sm:$0xff]
    %v2929 = vld [vmem:[#allocation2 + $0xe8] sm:$0xff]
    %v2930 = vld [vmem:[#allocation2 + $0xf0] sm:$0xff]
    %v2931 = vld [vmem:[#allocation2 + $0xf8] sm:$0xff]
    %v2933 = vsel %vm2310, %v2921, 0
    %2935 = vmatprep.subr.mxu0 0.0
    %2936 = vmatpush1.msra.mxu0 %v2924
    %2937 = vmatprep.subr.mxu0 0.0
    %2938 = vmatpush1.msra.mxu0 %v2925
    %2939 = vmatprep.subr.mxu0 0.0
    %2940 = vmatpush1.msra.mxu0 %v2926
    %2941 = vmatprep.subr.mxu0 0.0
    %2942 = vmatpush1.msra.mxu0 %v2927
    %2943 = vmatprep.subr.mxu0 0.0
    %2944 = vmatpush1.msra.mxu0 %v2928
    %2945 = vmatprep.subr.mxu0 0.0
    %2946 = vmatpush1.msra.mxu0 %v2929
    %2947 = vmatprep.subr.mxu0 0.0
    %2948 = vmatpush1.msra.mxu0 %v2930
    %2949 = vmatprep.subr.mxu0 0.0
    %2950 = vmatpush1.msra.mxu0 %v2931
    %2951 = vmatprep.subr.mxu0 0.0
    %2952 = vmatpush1.msra.mxu0 0.0
    %2953 = vmatprep.subr.mxu0 0.0
    %2954 = vmatpush1.msra.mxu0 0.0
    %2955 = vmatprep.subr.mxu0 0.0
    %2956 = vmatpush1.msra.mxu0 0.0
    %2957 = vmatprep.subr.mxu0 0.0
    %2958 = vmatpush1.msra.mxu0 0.0
    %2959 = vmatprep.subr.mxu0 0.0
    %2960 = vmatpush1.msra.mxu0 0.0
    %2961 = vmatprep.subr.mxu0 0.0
    %2962 = vmatpush1.msra.mxu0 0.0
    %2963 = vmatprep.subr.mxu0 0.0
    %2964 = vmatpush1.msra.mxu0 0.0
    %2965 = vmatprep.subr.mxu0 0.0
    %2966 = vmatpush1.msra.mxu0 0.0
    %2967 = vmatprep.subr.mxu0 0.0
    %2968 = vmatpush1.msra.mxu0 0.0
    %2969 = vmatprep.subr.mxu0 0.0
    %2970 = vmatpush1.msra.mxu0 0.0
    %2971 = vmatprep.subr.mxu0 0.0
    %2972 = vmatpush1.msra.mxu0 0.0
    %2973 = vmatprep.subr.mxu0 0.0
    %2974 = vmatpush1.msra.mxu0 0.0
    %2975 = vmatprep.subr.mxu0 0.0
    %2976 = vmatpush1.msra.mxu0 0.0
    %2977 = vmatprep.subr.mxu0 0.0
    %2978 = vmatpush1.msra.mxu0 0.0
    %2979 = vmatprep.subr.mxu0 0.0
    %2980 = vmatpush1.msra.mxu0 0.0
    %2981 = vmatprep.subr.mxu0 0.0
    %2982 = vmatpush1.msra.mxu0 0.0
    %2983 = vmatprep.subr.mxu0 0.0
    %2984 = vmatpush1.msra.mxu0 0.0
    %2985 = vmatprep.subr.mxu0 0.0
    %2986 = vmatpush1.msra.mxu0 0.0
    %2987 = vmatprep.subr.mxu0 0.0
    %2988 = vmatpush1.msra.mxu0 0.0
    %2989 = vmatprep.subr.mxu0 0.0
    %2990 = vmatpush1.msra.mxu0 0.0
    %2991 = vmatprep.subr.mxu0 0.0
    %2992 = vmatpush1.msra.mxu0 0.0
    %2993 = vmatprep.subr.mxu0 0.0
    %2994 = vmatpush1.msra.mxu0 0.0
    %2995 = vmatprep.subr.mxu0 0.0
    %2996 = vmatpush1.msra.mxu0 0.0
    %2997 = vmatprep.subr.mxu0 0.0
    %2998 = vmatpush1.msra.mxu0 0.0
    %2999 = vmatprep.mubr.f32.mxu0 0.0
    %3000 = vmatmul.mubr.f32.gmra.mrb[0].mxu0 %v2933
    %v3001 = vpop.f32.mrb[0].mxu0
    %v3002 = vadd.f32 0.0, %v3001
    %v3003 = vpop.f32.mrb[0].mxu0
    %3004 = vdwg.mxu0
    %v3005 = vadd.f32 %v2848, %v3002
    %s3006 = scalar_lea.vmem [#allocation13], 32
    %v3007 = vld [vmem:[%s3006] sm:$0xff]
    %v3009 = vsel %vm373, %v3007, 0
    %3011 = vmatprep.subr.mxu0 0.0
    %3012 = vmatpush1.msra.mxu0 %v2377
    %3013 = vmatprep.subr.mxu0 0.0
    %3014 = vmatpush1.msra.mxu0 %v2378
    %3015 = vmatprep.subr.mxu0 0.0
    %3016 = vmatpush1.msra.mxu0 %v2379
    %3017 = vmatprep.subr.mxu0 0.0
    %3018 = vmatpush1.msra.mxu0 %v2380
    %3019 = vmatprep.subr.mxu0 0.0
    %3020 = vmatpush1.msra.mxu0 0.0
    %3021 = vmatprep.subr.mxu0 0.0
    %3022 = vmatpush1.msra.mxu0 0.0
    %3023 = vmatprep.subr.mxu0 0.0
    %3024 = vmatpush1.msra.mxu0 0.0
    %3025 = vmatprep.subr.mxu0 0.0
    %3026 = vmatpush1.msra.mxu0 0.0
    %3027 = vmatprep.subr.mxu0 0.0
    %3028 = vmatpush1.msra.mxu0 0.0
    %3029 = vmatprep.subr.mxu0 0.0
    %3030 = vmatpush1.msra.mxu0 0.0
    %3031 = vmatprep.subr.mxu0 0.0
    %3032 = vmatpush1.msra.mxu0 0.0
    %3033 = vmatprep.subr.mxu0 0.0
    %3034 = vmatpush1.msra.mxu0 0.0
    %3035 = vmatprep.subr.mxu0 0.0
    %3036 = vmatpush1.msra.mxu0 0.0
    %3037 = vmatprep.subr.mxu0 0.0
    %3038 = vmatpush1.msra.mxu0 0.0
    %3039 = vmatprep.subr.mxu0 0.0
    %3040 = vmatpush1.msra.mxu0 0.0
    %3041 = vmatprep.subr.mxu0 0.0
    %3042 = vmatpush1.msra.mxu0 0.0
    %3043 = vmatprep.subr.mxu0 0.0
    %3044 = vmatpush1.msra.mxu0 0.0
    %3045 = vmatprep.subr.mxu0 0.0
    %3046 = vmatpush1.msra.mxu0 0.0
    %3047 = vmatprep.subr.mxu0 0.0
    %3048 = vmatpush1.msra.mxu0 0.0
    %3049 = vmatprep.subr.mxu0 0.0
    %3050 = vmatpush1.msra.mxu0 0.0
    %3051 = vmatprep.subr.mxu0 0.0
    %3052 = vmatpush1.msra.mxu0 0.0
    %3053 = vmatprep.subr.mxu0 0.0
    %3054 = vmatpush1.msra.mxu0 0.0
    %3055 = vmatprep.subr.mxu0 0.0
    %3056 = vmatpush1.msra.mxu0 0.0
    %3057 = vmatprep.subr.mxu0 0.0
    %3058 = vmatpush1.msra.mxu0 0.0
    %3059 = vmatprep.subr.mxu0 0.0
    %3060 = vmatpush1.msra.mxu0 0.0
    %3061 = vmatprep.subr.mxu0 0.0
    %3062 = vmatpush1.msra.mxu0 0.0
    %3063 = vmatprep.subr.mxu0 0.0
    %3064 = vmatpush1.msra.mxu0 0.0
    %3065 = vmatprep.subr.mxu0 0.0
    %3066 = vmatpush1.msra.mxu0 0.0
    %3067 = vmatprep.subr.mxu0 0.0
    %3068 = vmatpush1.msra.mxu0 0.0
    %3069 = vmatprep.subr.mxu0 0.0
    %3070 = vmatpush1.msra.mxu0 0.0
    %3071 = vmatprep.subr.mxu0 0.0
    %3072 = vmatpush1.msra.mxu0 0.0
    %3073 = vmatprep.subr.mxu0 0.0
    %3074 = vmatpush1.msra.mxu0 0.0
    %3075 = vmatprep.mubr.f32.mxu0 0.0
    %3076 = vmatmul.mubr.f32.gmra.mrb[0].mxu0 %v3009
    %v3077 = vpop.f32.mrb[0].mxu0
    %v3078 = vadd.f32 0.0, %v3077
    %v3079 = vpop.f32.mrb[0].mxu0
    %3080 = vdwg.mxu0
    %v3081 = vld [vmem:[#allocation2 + $0x100] sm:$0xff]
    %v3082 = vld [vmem:[#allocation2 + $0x108] sm:$0xff]
    %v3083 = vld [vmem:[#allocation2 + $0x110] sm:$0xff]
    %v3084 = vld [vmem:[#allocation2 + $0x118] sm:$0xff]
    %v3085 = vld [vmem:[#allocation2 + $0x120] sm:$0xff]
    %v3086 = vld [vmem:[#allocation2 + $0x128] sm:$0xff]
    %v3087 = vld [vmem:[#allocation2 + $0x130] sm:$0xff]
    %v3088 = vld [vmem:[#allocation2 + $0x138] sm:$0xff]
    %v3090 = vsel %vm2310, %v3078, 0
    %3092 = vmatprep.subr.mxu0 0.0
    %3093 = vmatpush1.msra.mxu0 %v3081
    %3094 = vmatprep.subr.mxu0 0.0
    %3095 = vmatpush1.msra.mxu0 %v3082
    %3096 = vmatprep.subr.mxu0 0.0
    %3097 = vmatpush1.msra.mxu0 %v3083
    %3098 = vmatprep.subr.mxu0 0.0
    %3099 = vmatpush1.msra.mxu0 %v3084
    %3100 = vmatprep.subr.mxu0 0.0
    %3101 = vmatpush1.msra.mxu0 %v3085
    %3102 = vmatprep.subr.mxu0 0.0
    %3103 = vmatpush1.msra.mxu0 %v3086
    %3104 = vmatprep.subr.mxu0 0.0
    %3105 = vmatpush1.msra.mxu0 %v3087
    %3106 = vmatprep.subr.mxu0 0.0
    %3107 = vmatpush1.msra.mxu0 %v3088
    %3108 = vmatprep.subr.mxu0 0.0
    %3109 = vmatpush1.msra.mxu0 0.0
    %3110 = vmatprep.subr.mxu0 0.0
    %3111 = vmatpush1.msra.mxu0 0.0
    %3112 = vmatprep.subr.mxu0 0.0
    %3113 = vmatpush1.msra.mxu0 0.0
    %3114 = vmatprep.subr.mxu0 0.0
    %3115 = vmatpush1.msra.mxu0 0.0
    %3116 = vmatprep.subr.mxu0 0.0
    %3117 = vmatpush1.msra.mxu0 0.0
    %3118 = vmatprep.subr.mxu0 0.0
    %3119 = vmatpush1.msra.mxu0 0.0
    %3120 = vmatprep.subr.mxu0 0.0
    %3121 = vmatpush1.msra.mxu0 0.0
    %3122 = vmatprep.subr.mxu0 0.0
    %3123 = vmatpush1.msra.mxu0 0.0
    %3124 = vmatprep.subr.mxu0 0.0
    %3125 = vmatpush1.msra.mxu0 0.0
    %3126 = vmatprep.subr.mxu0 0.0
    %3127 = vmatpush1.msra.mxu0 0.0
    %3128 = vmatprep.subr.mxu0 0.0
    %3129 = vmatpush1.msra.mxu0 0.0
    %3130 = vmatprep.subr.mxu0 0.0
    %3131 = vmatpush1.msra.mxu0 0.0
    %3132 = vmatprep.subr.mxu0 0.0
    %3133 = vmatpush1.msra.mxu0 0.0
    %3134 = vmatprep.subr.mxu0 0.0
    %3135 = vmatpush1.msra.mxu0 0.0
    %3136 = vmatprep.subr.mxu0 0.0
    %3137 = vmatpush1.msra.mxu0 0.0
    %3138 = vmatprep.subr.mxu0 0.0
    %3139 = vmatpush1.msra.mxu0 0.0
    %3140 = vmatprep.subr.mxu0 0.0
    %3141 = vmatpush1.msra.mxu0 0.0
    %3142 = vmatprep.subr.mxu0 0.0
    %3143 = vmatpush1.msra.mxu0 0.0
    %3144 = vmatprep.subr.mxu0 0.0
    %3145 = vmatpush1.msra.mxu0 0.0
    %3146 = vmatprep.subr.mxu0 0.0
    %3147 = vmatpush1.msra.mxu0 0.0
    %3148 = vmatprep.subr.mxu0 0.0
    %3149 = vmatpush1.msra.mxu0 0.0
    %3150 = vmatprep.subr.mxu0 0.0
    %3151 = vmatpush1.msra.mxu0 0.0
    %3152 = vmatprep.subr.mxu0 0.0
    %3153 = vmatpush1.msra.mxu0 0.0
    %3154 = vmatprep.subr.mxu0 0.0
    %3155 = vmatpush1.msra.mxu0 0.0
    %3156 = vmatprep.mubr.f32.mxu0 0.0
    %3157 = vmatmul.mubr.f32.gmra.mrb[0].mxu0 %v3090
    %v3158 = vpop.f32.mrb[0].mxu0
    %v3159 = vadd.f32 0.0, %v3158
    %v3160 = vpop.f32.mrb[0].mxu0
    %3161 = vdwg.mxu0
    %v3162 = vadd.f32 %v3005, %v3159
    %s3163 = scalar_lea.vmem [#allocation13], 40
    %v3164 = vld [vmem:[%s3163] sm:$0xff]
    %v3166 = vsel %vm373, %v3164, 0
    %3168 = vmatprep.subr.mxu0 0.0
    %3169 = vmatpush1.msra.mxu0 %v2377
    %3170 = vmatprep.subr.mxu0 0.0
    %3171 = vmatpush1.msra.mxu0 %v2378
    %3172 = vmatprep.subr.mxu0 0.0
    %3173 = vmatpush1.msra.mxu0 %v2379
    %3174 = vmatprep.subr.mxu0 0.0
    %3175 = vmatpush1.msra.mxu0 %v2380
    %3176 = vmatprep.subr.mxu0 0.0
    %3177 = vmatpush1.msra.mxu0 0.0
    %3178 = vmatprep.subr.mxu0 0.0
    %3179 = vmatpush1.msra.mxu0 0.0
    %3180 = vmatprep.subr.mxu0 0.0
    %3181 = vmatpush1.msra.mxu0 0.0
    %3182 = vmatprep.subr.mxu0 0.0
    %3183 = vmatpush1.msra.mxu0 0.0
    %3184 = vmatprep.subr.mxu0 0.0
    %3185 = vmatpush1.msra.mxu0 0.0
    %3186 = vmatprep.subr.mxu0 0.0
    %3187 = vmatpush1.msra.mxu0 0.0
    %3188 = vmatprep.subr.mxu0 0.0
    %3189 = vmatpush1.msra.mxu0 0.0
    %3190 = vmatprep.subr.mxu0 0.0
    %3191 = vmatpush1.msra.mxu0 0.0
    %3192 = vmatprep.subr.mxu0 0.0
    %3193 = vmatpush1.msra.mxu0 0.0
    %3194 = vmatprep.subr.mxu0 0.0
    %3195 = vmatpush1.msra.mxu0 0.0
    %3196 = vmatprep.subr.mxu0 0.0
    %3197 = vmatpush1.msra.mxu0 0.0
    %3198 = vmatprep.subr.mxu0 0.0
    %3199 = vmatpush1.msra.mxu0 0.0
    %3200 = vmatprep.subr.mxu0 0.0
    %3201 = vmatpush1.msra.mxu0 0.0
    %3202 = vmatprep.subr.mxu0 0.0
    %3203 = vmatpush1.msra.mxu0 0.0
    %3204 = vmatprep.subr.mxu0 0.0
    %3205 = vmatpush1.msra.mxu0 0.0
    %3206 = vmatprep.subr.mxu0 0.0
    %3207 = vmatpush1.msra.mxu0 0.0
    %3208 = vmatprep.subr.mxu0 0.0
    %3209 = vmatpush1.msra.mxu0 0.0
    %3210 = vmatprep.subr.mxu0 0.0
    %3211 = vmatpush1.msra.mxu0 0.0
    %3212 = vmatprep.subr.mxu0 0.0
    %3213 = vmatpush1.msra.mxu0 0.0
    %3214 = vmatprep.subr.mxu0 0.0
    %3215 = vmatpush1.msra.mxu0 0.0
    %3216 = vmatprep.subr.mxu0 0.0
    %3217 = vmatpush1.msra.mxu0 0.0
    %3218 = vmatprep.subr.mxu0 0.0
    %3219 = vmatpush1.msra.mxu0 0.0
    %3220 = vmatprep.subr.mxu0 0.0
    %3221 = vmatpush1.msra.mxu0 0.0
    %3222 = vmatprep.subr.mxu0 0.0
    %3223 = vmatpush1.msra.mxu0 0.0
    %3224 = vmatprep.subr.mxu0 0.0
    %3225 = vmatpush1.msra.mxu0 0.0
    %3226 = vmatprep.subr.mxu0 0.0
    %3227 = vmatpush1.msra.mxu0 0.0
    %3228 = vmatprep.subr.mxu0 0.0
    %3229 = vmatpush1.msra.mxu0 0.0
    %3230 = vmatprep.subr.mxu0 0.0
    %3231 = vmatpush1.msra.mxu0 0.0
    %3232 = vmatprep.mubr.f32.mxu0 0.0
    %3233 = vmatmul.mubr.f32.gmra.mrb[0].mxu0 %v3166
    %v3234 = vpop.f32.mrb[0].mxu0
    %v3235 = vadd.f32 0.0, %v3234
    %v3236 = vpop.f32.mrb[0].mxu0
    %3237 = vdwg.mxu0
    %v3238 = vld [vmem:[#allocation2 + $0x140] sm:$0xff]
    %v3239 = vld [vmem:[#allocation2 + $0x148] sm:$0xff]
    %v3240 = vld [vmem:[#allocation2 + $0x150] sm:$0xff]
    %v3241 = vld [vmem:[#allocation2 + $0x158] sm:$0xff]
    %v3242 = vld [vmem:[#allocation2 + $0x160] sm:$0xff]
    %v3243 = vld [vmem:[#allocation2 + $0x168] sm:$0xff]
    %v3244 = vld [vmem:[#allocation2 + $0x170] sm:$0xff]
    %v3245 = vld [vmem:[#allocation2 + $0x178] sm:$0xff]
    %v3247 = vsel %vm2310, %v3235, 0
    %3249 = vmatprep.subr.mxu0 0.0
    %3250 = vmatpush1.msra.mxu0 %v3238
    %3251 = vmatprep.subr.mxu0 0.0
    %3252 = vmatpush1.msra.mxu0 %v3239
    %3253 = vmatprep.subr.mxu0 0.0
    %3254 = vmatpush1.msra.mxu0 %v3240
    %3255 = vmatprep.subr.mxu0 0.0
    %3256 = vmatpush1.msra.mxu0 %v3241
    %3257 = vmatprep.subr.mxu0 0.0
    %3258 = vmatpush1.msra.mxu0 %v3242
    %3259 = vmatprep.subr.mxu0 0.0
    %3260 = vmatpush1.msra.mxu0 %v3243
    %3261 = vmatprep.subr.mxu0 0.0
    %3262 = vmatpush1.msra.mxu0 %v3244
    %3263 = vmatprep.subr.mxu0 0.0
    %3264 = vmatpush1.msra.mxu0 %v3245
    %3265 = vmatprep.subr.mxu0 0.0
    %3266 = vmatpush1.msra.mxu0 0.0
    %3267 = vmatprep.subr.mxu0 0.0
    %3268 = vmatpush1.msra.mxu0 0.0
    %3269 = vmatprep.subr.mxu0 0.0
    %3270 = vmatpush1.msra.mxu0 0.0
    %3271 = vmatprep.subr.mxu0 0.0
    %3272 = vmatpush1.msra.mxu0 0.0
    %3273 = vmatprep.subr.mxu0 0.0
    %3274 = vmatpush1.msra.mxu0 0.0
    %3275 = vmatprep.subr.mxu0 0.0
    %3276 = vmatpush1.msra.mxu0 0.0
    %3277 = vmatprep.subr.mxu0 0.0
    %3278 = vmatpush1.msra.mxu0 0.0
    %3279 = vmatprep.subr.mxu0 0.0
    %3280 = vmatpush1.msra.mxu0 0.0
    %3281 = vmatprep.subr.mxu0 0.0
    %3282 = vmatpush1.msra.mxu0 0.0
    %3283 = vmatprep.subr.mxu0 0.0
    %3284 = vmatpush1.msra.mxu0 0.0
    %3285 = vmatprep.subr.mxu0 0.0
    %3286 = vmatpush1.msra.mxu0 0.0
    %3287 = vmatprep.subr.mxu0 0.0
    %3288 = vmatpush1.msra.mxu0 0.0
    %3289 = vmatprep.subr.mxu0 0.0
    %3290 = vmatpush1.msra.mxu0 0.0
    %3291 = vmatprep.subr.mxu0 0.0
    %3292 = vmatpush1.msra.mxu0 0.0
    %3293 = vmatprep.subr.mxu0 0.0
    %3294 = vmatpush1.msra.mxu0 0.0
    %3295 = vmatprep.subr.mxu0 0.0
    %3296 = vmatpush1.msra.mxu0 0.0
    %3297 = vmatprep.subr.mxu0 0.0
    %3298 = vmatpush1.msra.mxu0 0.0
    %3299 = vmatprep.subr.mxu0 0.0
    %3300 = vmatpush1.msra.mxu0 0.0
    %3301 = vmatprep.subr.mxu0 0.0
    %3302 = vmatpush1.msra.mxu0 0.0
    %3303 = vmatprep.subr.mxu0 0.0
    %3304 = vmatpush1.msra.mxu0 0.0
    %3305 = vmatprep.subr.mxu0 0.0
    %3306 = vmatpush1.msra.mxu0 0.0
    %3307 = vmatprep.subr.mxu0 0.0
    %3308 = vmatpush1.msra.mxu0 0.0
    %3309 = vmatprep.subr.mxu0 0.0
    %3310 = vmatpush1.msra.mxu0 0.0
    %3311 = vmatprep.subr.mxu0 0.0
    %3312 = vmatpush1.msra.mxu0 0.0
    %3313 = vmatprep.mubr.f32.mxu0 0.0
    %3314 = vmatmul.mubr.f32.gmra.mrb[0].mxu0 %v3247
    %v3315 = vpop.f32.mrb[0].mxu0
    %v3316 = vadd.f32 0.0, %v3315
    %v3317 = vpop.f32.mrb[0].mxu0
    %3318 = vdwg.mxu0
    %v3319 = vadd.f32 %v3162, %v3316
    %s3320 = scalar_lea.vmem [#allocation13], 48
    %v3321 = vld [vmem:[%s3320] sm:$0xff]
    %v3323 = vsel %vm373, %v3321, 0
    %3325 = vmatprep.subr.mxu0 0.0
    %3326 = vmatpush1.msra.mxu0 %v2377
    %3327 = vmatprep.subr.mxu0 0.0
    %3328 = vmatpush1.msra.mxu0 %v2378
    %3329 = vmatprep.subr.mxu0 0.0
    %3330 = vmatpush1.msra.mxu0 %v2379
    %3331 = vmatprep.subr.mxu0 0.0
    %3332 = vmatpush1.msra.mxu0 %v2380
    %3333 = vmatprep.subr.mxu0 0.0
    %3334 = vmatpush1.msra.mxu0 0.0
    %3335 = vmatprep.subr.mxu0 0.0
    %3336 = vmatpush1.msra.mxu0 0.0
    %3337 = vmatprep.subr.mxu0 0.0
    %3338 = vmatpush1.msra.mxu0 0.0
    %3339 = vmatprep.subr.mxu0 0.0
    %3340 = vmatpush1.msra.mxu0 0.0
    %3341 = vmatprep.subr.mxu0 0.0
    %3342 = vmatpush1.msra.mxu0 0.0
    %3343 = vmatprep.subr.mxu0 0.0
    %3344 = vmatpush1.msra.mxu0 0.0
    %3345 = vmatprep.subr.mxu0 0.0
    %3346 = vmatpush1.msra.mxu0 0.0
    %3347 = vmatprep.subr.mxu0 0.0
    %3348 = vmatpush1.msra.mxu0 0.0
    %3349 = vmatprep.subr.mxu0 0.0
    %3350 = vmatpush1.msra.mxu0 0.0
    %3351 = vmatprep.subr.mxu0 0.0
    %3352 = vmatpush1.msra.mxu0 0.0
    %3353 = vmatprep.subr.mxu0 0.0
    %3354 = vmatpush1.msra.mxu0 0.0
    %3355 = vmatprep.subr.mxu0 0.0
    %3356 = vmatpush1.msra.mxu0 0.0
    %3357 = vmatprep.subr.mxu0 0.0
    %3358 = vmatpush1.msra.mxu0 0.0
    %3359 = vmatprep.subr.mxu0 0.0
    %3360 = vmatpush1.msra.mxu0 0.0
    %3361 = vmatprep.subr.mxu0 0.0
    %3362 = vmatpush1.msra.mxu0 0.0
    %3363 = vmatprep.subr.mxu0 0.0
    %3364 = vmatpush1.msra.mxu0 0.0
    %3365 = vmatprep.subr.mxu0 0.0
    %3366 = vmatpush1.msra.mxu0 0.0
    %3367 = vmatprep.subr.mxu0 0.0
    %3368 = vmatpush1.msra.mxu0 0.0
    %3369 = vmatprep.subr.mxu0 0.0
    %3370 = vmatpush1.msra.mxu0 0.0
    %3371 = vmatprep.subr.mxu0 0.0
    %3372 = vmatpush1.msra.mxu0 0.0
    %3373 = vmatprep.subr.mxu0 0.0
    %3374 = vmatpush1.msra.mxu0 0.0
    %3375 = vmatprep.subr.mxu0 0.0
    %3376 = vmatpush1.msra.mxu0 0.0
    %3377 = vmatprep.subr.mxu0 0.0
    %3378 = vmatpush1.msra.mxu0 0.0
    %3379 = vmatprep.subr.mxu0 0.0
    %3380 = vmatpush1.msra.mxu0 0.0
    %3381 = vmatprep.subr.mxu0 0.0
    %3382 = vmatpush1.msra.mxu0 0.0
    %3383 = vmatprep.subr.mxu0 0.0
    %3384 = vmatpush1.msra.mxu0 0.0
    %3385 = vmatprep.subr.mxu0 0.0
    %3386 = vmatpush1.msra.mxu0 0.0
    %3387 = vmatprep.subr.mxu0 0.0
    %3388 = vmatpush1.msra.mxu0 0.0
    %3389 = vmatprep.mubr.f32.mxu0 0.0
    %3390 = vmatmul.mubr.f32.gmra.mrb[0].mxu0 %v3323
    %v3391 = vpop.f32.mrb[0].mxu0
    %v3392 = vadd.f32 0.0, %v3391
    %v3393 = vpop.f32.mrb[0].mxu0
    %3394 = vdwg.mxu0
    %v3395 = vld [vmem:[#allocation2 + $0x180] sm:$0xff]
    %v3396 = vld [vmem:[#allocation2 + $0x188] sm:$0xff]
    %v3397 = vld [vmem:[#allocation2 + $0x190] sm:$0xff]
    %v3398 = vld [vmem:[#allocation2 + $0x198] sm:$0xff]
    %v3399 = vld [vmem:[#allocation2 + $0x1a0] sm:$0xff]
    %v3400 = vld [vmem:[#allocation2 + $0x1a8] sm:$0xff]
    %v3401 = vld [vmem:[#allocation2 + $0x1b0] sm:$0xff]
    %v3402 = vld [vmem:[#allocation2 + $0x1b8] sm:$0xff]
    %v3404 = vsel %vm2310, %v3392, 0
    %3406 = vmatprep.subr.mxu0 0.0
    %3407 = vmatpush1.msra.mxu0 %v3395
    %3408 = vmatprep.subr.mxu0 0.0
    %3409 = vmatpush1.msra.mxu0 %v3396
    %3410 = vmatprep.subr.mxu0 0.0
    %3411 = vmatpush1.msra.mxu0 %v3397
    %3412 = vmatprep.subr.mxu0 0.0
    %3413 = vmatpush1.msra.mxu0 %v3398
    %3414 = vmatprep.subr.mxu0 0.0
    %3415 = vmatpush1.msra.mxu0 %v3399
    %3416 = vmatprep.subr.mxu0 0.0
    %3417 = vmatpush1.msra.mxu0 %v3400
    %3418 = vmatprep.subr.mxu0 0.0
    %3419 = vmatpush1.msra.mxu0 %v3401
    %3420 = vmatprep.subr.mxu0 0.0
    %3421 = vmatpush1.msra.mxu0 %v3402
    %3422 = vmatprep.subr.mxu0 0.0
    %3423 = vmatpush1.msra.mxu0 0.0
    %3424 = vmatprep.subr.mxu0 0.0
    %3425 = vmatpush1.msra.mxu0 0.0
    %3426 = vmatprep.subr.mxu0 0.0
    %3427 = vmatpush1.msra.mxu0 0.0
    %3428 = vmatprep.subr.mxu0 0.0
    %3429 = vmatpush1.msra.mxu0 0.0
    %3430 = vmatprep.subr.mxu0 0.0
    %3431 = vmatpush1.msra.mxu0 0.0
    %3432 = vmatprep.subr.mxu0 0.0
    %3433 = vmatpush1.msra.mxu0 0.0
    %3434 = vmatprep.subr.mxu0 0.0
    %3435 = vmatpush1.msra.mxu0 0.0
    %3436 = vmatprep.subr.mxu0 0.0
    %3437 = vmatpush1.msra.mxu0 0.0
    %3438 = vmatprep.subr.mxu0 0.0
    %3439 = vmatpush1.msra.mxu0 0.0
    %3440 = vmatprep.subr.mxu0 0.0
    %3441 = vmatpush1.msra.mxu0 0.0
    %3442 = vmatprep.subr.mxu0 0.0
    %3443 = vmatpush1.msra.mxu0 0.0
    %3444 = vmatprep.subr.mxu0 0.0
    %3445 = vmatpush1.msra.mxu0 0.0
    %3446 = vmatprep.subr.mxu0 0.0
    %3447 = vmatpush1.msra.mxu0 0.0
    %3448 = vmatprep.subr.mxu0 0.0
    %3449 = vmatpush1.msra.mxu0 0.0
    %3450 = vmatprep.subr.mxu0 0.0
    %3451 = vmatpush1.msra.mxu0 0.0
    %3452 = vmatprep.subr.mxu0 0.0
    %3453 = vmatpush1.msra.mxu0 0.0
    %3454 = vmatprep.subr.mxu0 0.0
    %3455 = vmatpush1.msra.mxu0 0.0
    %3456 = vmatprep.subr.mxu0 0.0
    %3457 = vmatpush1.msra.mxu0 0.0
    %3458 = vmatprep.subr.mxu0 0.0
    %3459 = vmatpush1.msra.mxu0 0.0
    %3460 = vmatprep.subr.mxu0 0.0
    %3461 = vmatpush1.msra.mxu0 0.0
    %3462 = vmatprep.subr.mxu0 0.0
    %3463 = vmatpush1.msra.mxu0 0.0
    %3464 = vmatprep.subr.mxu0 0.0
    %3465 = vmatpush1.msra.mxu0 0.0
    %3466 = vmatprep.subr.mxu0 0.0
    %3467 = vmatpush1.msra.mxu0 0.0
    %3468 = vmatprep.subr.mxu0 0.0
    %3469 = vmatpush1.msra.mxu0 0.0
    %3470 = vmatprep.mubr.f32.mxu0 0.0
    %3471 = vmatmul.mubr.f32.gmra.mrb[0].mxu0 %v3404
    %v3472 = vpop.f32.mrb[0].mxu0
    %v3473 = vadd.f32 0.0, %v3472
    %v3474 = vpop.f32.mrb[0].mxu0
    %3475 = vdwg.mxu0
    %v3476 = vadd.f32 %v3319, %v3473
    %s3477 = scalar_lea.vmem [#allocation13], 56
    %v3478 = vld [vmem:[%s3477] sm:$0xff]
    %v3480 = vsel %vm373, %v3478, 0
    %3482 = vmatprep.subr.mxu0 0.0
    %3483 = vmatpush1.msra.mxu0 %v2377
    %3484 = vmatprep.subr.mxu0 0.0
    %3485 = vmatpush1.msra.mxu0 %v2378
    %3486 = vmatprep.subr.mxu0 0.0
    %3487 = vmatpush1.msra.mxu0 %v2379
    %3488 = vmatprep.subr.mxu0 0.0
    %3489 = vmatpush1.msra.mxu0 %v2380
    %3490 = vmatprep.subr.mxu0 0.0
    %3491 = vmatpush1.msra.mxu0 0.0
    %3492 = vmatprep.subr.mxu0 0.0
    %3493 = vmatpush1.msra.mxu0 0.0
    %3494 = vmatprep.subr.mxu0 0.0
    %3495 = vmatpush1.msra.mxu0 0.0
    %3496 = vmatprep.subr.mxu0 0.0
    %3497 = vmatpush1.msra.mxu0 0.0
    %3498 = vmatprep.subr.mxu0 0.0
    %3499 = vmatpush1.msra.mxu0 0.0
    %3500 = vmatprep.subr.mxu0 0.0
    %3501 = vmatpush1.msra.mxu0 0.0
    %3502 = vmatprep.subr.mxu0 0.0
    %3503 = vmatpush1.msra.mxu0 0.0
    %3504 = vmatprep.subr.mxu0 0.0
    %3505 = vmatpush1.msra.mxu0 0.0
    %3506 = vmatprep.subr.mxu0 0.0
    %3507 = vmatpush1.msra.mxu0 0.0
    %3508 = vmatprep.subr.mxu0 0.0
    %3509 = vmatpush1.msra.mxu0 0.0
    %3510 = vmatprep.subr.mxu0 0.0
    %3511 = vmatpush1.msra.mxu0 0.0
    %3512 = vmatprep.subr.mxu0 0.0
    %3513 = vmatpush1.msra.mxu0 0.0
    %3514 = vmatprep.subr.mxu0 0.0
    %3515 = vmatpush1.msra.mxu0 0.0
    %3516 = vmatprep.subr.mxu0 0.0
    %3517 = vmatpush1.msra.mxu0 0.0
    %3518 = vmatprep.subr.mxu0 0.0
    %3519 = vmatpush1.msra.mxu0 0.0
    %3520 = vmatprep.subr.mxu0 0.0
    %3521 = vmatpush1.msra.mxu0 0.0
    %3522 = vmatprep.subr.mxu0 0.0
    %3523 = vmatpush1.msra.mxu0 0.0
    %3524 = vmatprep.subr.mxu0 0.0
    %3525 = vmatpush1.msra.mxu0 0.0
    %3526 = vmatprep.subr.mxu0 0.0
    %3527 = vmatpush1.msra.mxu0 0.0
    %3528 = vmatprep.subr.mxu0 0.0
    %3529 = vmatpush1.msra.mxu0 0.0
    %3530 = vmatprep.subr.mxu0 0.0
    %3531 = vmatpush1.msra.mxu0 0.0
    %3532 = vmatprep.subr.mxu0 0.0
    %3533 = vmatpush1.msra.mxu0 0.0
    %3534 = vmatprep.subr.mxu0 0.0
    %3535 = vmatpush1.msra.mxu0 0.0
    %3536 = vmatprep.subr.mxu0 0.0
    %3537 = vmatpush1.msra.mxu0 0.0
    %3538 = vmatprep.subr.mxu0 0.0
    %3539 = vmatpush1.msra.mxu0 0.0
    %3540 = vmatprep.subr.mxu0 0.0
    %3541 = vmatpush1.msra.mxu0 0.0
    %3542 = vmatprep.subr.mxu0 0.0
    %3543 = vmatpush1.msra.mxu0 0.0
    %3544 = vmatprep.subr.mxu0 0.0
    %3545 = vmatpush1.msra.mxu0 0.0
    %3546 = vmatprep.mubr.f32.mxu0 0.0
    %3547 = vmatmul.mubr.f32.gmra.mrb[0].mxu0 %v3480
    %v3548 = vpop.f32.mrb[0].mxu0
    %v3549 = vadd.f32 0.0, %v3548
    %v3550 = vpop.f32.mrb[0].mxu0
    %3551 = vdwg.mxu0
    %v3552 = vld [vmem:[#allocation2 + $0x1c0] sm:$0xff]
    %v3553 = vld [vmem:[#allocation2 + $0x1c8] sm:$0xff]
    %v3554 = vld [vmem:[#allocation2 + $0x1d0] sm:$0xff]
    %v3555 = vld [vmem:[#allocation2 + $0x1d8] sm:$0xff]
    %v3556 = vld [vmem:[#allocation2 + $0x1e0] sm:$0xff]
    %v3557 = vld [vmem:[#allocation2 + $0x1e8] sm:$0xff]
    %v3558 = vld [vmem:[#allocation2 + $0x1f0] sm:$0xff]
    %v3559 = vld [vmem:[#allocation2 + $0x1f8] sm:$0xff]
    %v3561 = vsel %vm2310, %v3549, 0
    %3563 = vmatprep.subr.mxu0 0.0
    %3564 = vmatpush1.msra.mxu0 %v3552
    %3565 = vmatprep.subr.mxu0 0.0
    %3566 = vmatpush1.msra.mxu0 %v3553
    %3567 = vmatprep.subr.mxu0 0.0
    %3568 = vmatpush1.msra.mxu0 %v3554
    %3569 = vmatprep.subr.mxu0 0.0
    %3570 = vmatpush1.msra.mxu0 %v3555
    %3571 = vmatprep.subr.mxu0 0.0
    %3572 = vmatpush1.msra.mxu0 %v3556
    %3573 = vmatprep.subr.mxu0 0.0
    %3574 = vmatpush1.msra.mxu0 %v3557
    %3575 = vmatprep.subr.mxu0 0.0
    %3576 = vmatpush1.msra.mxu0 %v3558
    %3577 = vmatprep.subr.mxu0 0.0
    %3578 = vmatpush1.msra.mxu0 %v3559
    %3579 = vmatprep.subr.mxu0 0.0
    %3580 = vmatpush1.msra.mxu0 0.0
    %3581 = vmatprep.subr.mxu0 0.0
    %3582 = vmatpush1.msra.mxu0 0.0
    %3583 = vmatprep.subr.mxu0 0.0
    %3584 = vmatpush1.msra.mxu0 0.0
    %3585 = vmatprep.subr.mxu0 0.0
    %3586 = vmatpush1.msra.mxu0 0.0
    %3587 = vmatprep.subr.mxu0 0.0
    %3588 = vmatpush1.msra.mxu0 0.0
    %3589 = vmatprep.subr.mxu0 0.0
    %3590 = vmatpush1.msra.mxu0 0.0
    %3591 = vmatprep.subr.mxu0 0.0
    %3592 = vmatpush1.msra.mxu0 0.0
    %3593 = vmatprep.subr.mxu0 0.0
    %3594 = vmatpush1.msra.mxu0 0.0
    %3595 = vmatprep.subr.mxu0 0.0
    %3596 = vmatpush1.msra.mxu0 0.0
    %3597 = vmatprep.subr.mxu0 0.0
    %3598 = vmatpush1.msra.mxu0 0.0
    %3599 = vmatprep.subr.mxu0 0.0
    %3600 = vmatpush1.msra.mxu0 0.0
    %3601 = vmatprep.subr.mxu0 0.0
    %3602 = vmatpush1.msra.mxu0 0.0
    %3603 = vmatprep.subr.mxu0 0.0
    %3604 = vmatpush1.msra.mxu0 0.0
    %3605 = vmatprep.subr.mxu0 0.0
    %3606 = vmatpush1.msra.mxu0 0.0
    %3607 = vmatprep.subr.mxu0 0.0
    %3608 = vmatpush1.msra.mxu0 0.0
    %3609 = vmatprep.subr.mxu0 0.0
    %3610 = vmatpush1.msra.mxu0 0.0
    %3611 = vmatprep.subr.mxu0 0.0
    %3612 = vmatpush1.msra.mxu0 0.0
    %3613 = vmatprep.subr.mxu0 0.0
    %3614 = vmatpush1.msra.mxu0 0.0
    %3615 = vmatprep.subr.mxu0 0.0
    %3616 = vmatpush1.msra.mxu0 0.0
    %3617 = vmatprep.subr.mxu0 0.0
    %3618 = vmatpush1.msra.mxu0 0.0
    %3619 = vmatprep.subr.mxu0 0.0
    %3620 = vmatpush1.msra.mxu0 0.0
    %3621 = vmatprep.subr.mxu0 0.0
    %3622 = vmatpush1.msra.mxu0 0.0
    %3623 = vmatprep.subr.mxu0 0.0
    %3624 = vmatpush1.msra.mxu0 0.0
    %3625 = vmatprep.subr.mxu0 0.0
    %3626 = vmatpush1.msra.mxu0 0.0
    %3627 = vmatprep.mubr.f32.mxu0 0.0
    %3628 = vmatmul.mubr.f32.gmra.mrb[0].mxu0 %v3561
    %v3629 = vpop.f32.mrb[0].mxu0
    %v3630 = vadd.f32 0.0, %v3629
    %v3631 = vpop.f32.mrb[0].mxu0
    %3632 = vdwg.mxu0
    %v3633 = vadd.f32 %v3476, %v3630
    %s3634 = scalar_lea.vmem [#allocation13], 64
    %v3635 = vld [vmem:[%s3634] sm:$0xff]
    %v3637 = vsel %vm373, %v3635, 0
    %3639 = vmatprep.subr.mxu0 0.0
    %3640 = vmatpush1.msra.mxu0 %v2377
    %3641 = vmatprep.subr.mxu0 0.0
    %3642 = vmatpush1.msra.mxu0 %v2378
    %3643 = vmatprep.subr.mxu0 0.0
    %3644 = vmatpush1.msra.mxu0 %v2379
    %3645 = vmatprep.subr.mxu0 0.0
    %3646 = vmatpush1.msra.mxu0 %v2380
    %3647 = vmatprep.subr.mxu0 0.0
    %3648 = vmatpush1.msra.mxu0 0.0
    %3649 = vmatprep.subr.mxu0 0.0
    %3650 = vmatpush1.msra.mxu0 0.0
    %3651 = vmatprep.subr.mxu0 0.0
    %3652 = vmatpush1.msra.mxu0 0.0
    %3653 = vmatprep.subr.mxu0 0.0
    %3654 = vmatpush1.msra.mxu0 0.0
    %3655 = vmatprep.subr.mxu0 0.0
    %3656 = vmatpush1.msra.mxu0 0.0
    %3657 = vmatprep.subr.mxu0 0.0
    %3658 = vmatpush1.msra.mxu0 0.0
    %3659 = vmatprep.subr.mxu0 0.0
    %3660 = vmatpush1.msra.mxu0 0.0
    %3661 = vmatprep.subr.mxu0 0.0
    %3662 = vmatpush1.msra.mxu0 0.0
    %3663 = vmatprep.subr.mxu0 0.0
    %3664 = vmatpush1.msra.mxu0 0.0
    %3665 = vmatprep.subr.mxu0 0.0
    %3666 = vmatpush1.msra.mxu0 0.0
    %3667 = vmatprep.subr.mxu0 0.0
    %3668 = vmatpush1.msra.mxu0 0.0
    %3669 = vmatprep.subr.mxu0 0.0
    %3670 = vmatpush1.msra.mxu0 0.0
    %3671 = vmatprep.subr.mxu0 0.0
    %3672 = vmatpush1.msra.mxu0 0.0
    %3673 = vmatprep.subr.mxu0 0.0
    %3674 = vmatpush1.msra.mxu0 0.0
    %3675 = vmatprep.subr.mxu0 0.0
    %3676 = vmatpush1.msra.mxu0 0.0
    %3677 = vmatprep.subr.mxu0 0.0
    %3678 = vmatpush1.msra.mxu0 0.0
    %3679 = vmatprep.subr.mxu0 0.0
    %3680 = vmatpush1.msra.mxu0 0.0
    %3681 = vmatprep.subr.mxu0 0.0
    %3682 = vmatpush1.msra.mxu0 0.0
    %3683 = vmatprep.subr.mxu0 0.0
    %3684 = vmatpush1.msra.mxu0 0.0
    %3685 = vmatprep.subr.mxu0 0.0
    %3686 = vmatpush1.msra.mxu0 0.0
    %3687 = vmatprep.subr.mxu0 0.0
    %3688 = vmatpush1.msra.mxu0 0.0
    %3689 = vmatprep.subr.mxu0 0.0
    %3690 = vmatpush1.msra.mxu0 0.0
    %3691 = vmatprep.subr.mxu0 0.0
    %3692 = vmatpush1.msra.mxu0 0.0
    %3693 = vmatprep.subr.mxu0 0.0
    %3694 = vmatpush1.msra.mxu0 0.0
    %3695 = vmatprep.subr.mxu0 0.0
    %3696 = vmatpush1.msra.mxu0 0.0
    %3697 = vmatprep.subr.mxu0 0.0
    %3698 = vmatpush1.msra.mxu0 0.0
    %3699 = vmatprep.subr.mxu0 0.0
    %3700 = vmatpush1.msra.mxu0 0.0
    %3701 = vmatprep.subr.mxu0 0.0
    %3702 = vmatpush1.msra.mxu0 0.0
    %3703 = vmatprep.mubr.f32.mxu0 0.0
    %3704 = vmatmul.mubr.f32.gmra.mrb[0].mxu0 %v3637
    %v3705 = vpop.f32.mrb[0].mxu0
    %v3706 = vadd.f32 0.0, %v3705
    %v3707 = vpop.f32.mrb[0].mxu0
    %3708 = vdwg.mxu0
    %v3709 = vld [vmem:[#allocation2 + $0x200] sm:$0xff]
    %v3710 = vld [vmem:[#allocation2 + $0x208] sm:$0xff]
    %v3711 = vld [vmem:[#allocation2 + $0x210] sm:$0xff]
    %v3712 = vld [vmem:[#allocation2 + $0x218] sm:$0xff]
    %v3713 = vld [vmem:[#allocation2 + $0x220] sm:$0xff]
    %v3714 = vld [vmem:[#allocation2 + $0x228] sm:$0xff]
    %v3715 = vld [vmem:[#allocation2 + $0x230] sm:$0xff]
    %v3716 = vld [vmem:[#allocation2 + $0x238] sm:$0xff]
    %v3718 = vsel %vm2310, %v3706, 0
    %3720 = vmatprep.subr.mxu0 0.0
    %3721 = vmatpush1.msra.mxu0 %v3709
    %3722 = vmatprep.subr.mxu0 0.0
    %3723 = vmatpush1.msra.mxu0 %v3710
    %3724 = vmatprep.subr.mxu0 0.0
    %3725 = vmatpush1.msra.mxu0 %v3711
    %3726 = vmatprep.subr.mxu0 0.0
    %3727 = vmatpush1.msra.mxu0 %v3712
    %3728 = vmatprep.subr.mxu0 0.0
    %3729 = vmatpush1.msra.mxu0 %v3713
    %3730 = vmatprep.subr.mxu0 0.0
    %3731 = vmatpush1.msra.mxu0 %v3714
    %3732 = vmatprep.subr.mxu0 0.0
    %3733 = vmatpush1.msra.mxu0 %v3715
    %3734 = vmatprep.subr.mxu0 0.0
    %3735 = vmatpush1.msra.mxu0 %v3716
    %3736 = vmatprep.subr.mxu0 0.0
    %3737 = vmatpush1.msra.mxu0 0.0
    %3738 = vmatprep.subr.mxu0 0.0
    %3739 = vmatpush1.msra.mxu0 0.0
    %3740 = vmatprep.subr.mxu0 0.0
    %3741 = vmatpush1.msra.mxu0 0.0
    %3742 = vmatprep.subr.mxu0 0.0
    %3743 = vmatpush1.msra.mxu0 0.0
    %3744 = vmatprep.subr.mxu0 0.0
    %3745 = vmatpush1.msra.mxu0 0.0
    %3746 = vmatprep.subr.mxu0 0.0
    %3747 = vmatpush1.msra.mxu0 0.0
    %3748 = vmatprep.subr.mxu0 0.0
    %3749 = vmatpush1.msra.mxu0 0.0
    %3750 = vmatprep.subr.mxu0 0.0
    %3751 = vmatpush1.msra.mxu0 0.0
    %3752 = vmatprep.subr.mxu0 0.0
    %3753 = vmatpush1.msra.mxu0 0.0
    %3754 = vmatprep.subr.mxu0 0.0
    %3755 = vmatpush1.msra.mxu0 0.0
    %3756 = vmatprep.subr.mxu0 0.0
    %3757 = vmatpush1.msra.mxu0 0.0
    %3758 = vmatprep.subr.mxu0 0.0
    %3759 = vmatpush1.msra.mxu0 0.0
    %3760 = vmatprep.subr.mxu0 0.0
    %3761 = vmatpush1.msra.mxu0 0.0
    %3762 = vmatprep.subr.mxu0 0.0
    %3763 = vmatpush1.msra.mxu0 0.0
    %3764 = vmatprep.subr.mxu0 0.0
    %3765 = vmatpush1.msra.mxu0 0.0
    %3766 = vmatprep.subr.mxu0 0.0
    %3767 = vmatpush1.msra.mxu0 0.0
    %3768 = vmatprep.subr.mxu0 0.0
    %3769 = vmatpush1.msra.mxu0 0.0
    %3770 = vmatprep.subr.mxu0 0.0
    %3771 = vmatpush1.msra.mxu0 0.0
    %3772 = vmatprep.subr.mxu0 0.0
    %3773 = vmatpush1.msra.mxu0 0.0
    %3774 = vmatprep.subr.mxu0 0.0
    %3775 = vmatpush1.msra.mxu0 0.0
    %3776 = vmatprep.subr.mxu0 0.0
    %3777 = vmatpush1.msra.mxu0 0.0
    %3778 = vmatprep.subr.mxu0 0.0
    %3779 = vmatpush1.msra.mxu0 0.0
    %3780 = vmatprep.subr.mxu0 0.0
    %3781 = vmatpush1.msra.mxu0 0.0
    %3782 = vmatprep.subr.mxu0 0.0
    %3783 = vmatpush1.msra.mxu0 0.0
    %3784 = vmatprep.mubr.f32.mxu0 0.0
    %3785 = vmatmul.mubr.f32.gmra.mrb[0].mxu0 %v3718
    %v3786 = vpop.f32.mrb[0].mxu0
    %v3787 = vadd.f32 0.0, %v3786
    %v3788 = vpop.f32.mrb[0].mxu0
    %3789 = vdwg.mxu0
    %v3790 = vadd.f32 %v3633, %v3787
    %v3791 = vrot.slane %v3790, 4
    %v3792 = vadd.f32 %v3790, %v3791
    %v3793 = vrot.slane %v3792, 2
    %v3794 = vadd.f32 %v3792, %v3793
    %v3795 = vrot.slane %v3794, 1
    %v3796 = vadd.f32 %v3794, %v3795
    %v3797 = vmul.f32 %v3796, 0.125
    %v3798 = vmul.f32 %v3790, %v3790
    %v3799 = vrot.slane %v3798, 4
    %v3800 = vadd.f32 %v3798, %v3799
    %v3801 = vrot.slane %v3800, 2
    %v3802 = vadd.f32 %v3800, %v3801
    %v3803 = vrot.slane %v3802, 1
    %v3804 = vadd.f32 %v3802, %v3803
    %v3805 = vmul.f32 %v3804, 0.125
    %v3806 = vmul.f32 %v3797, %v3797
    %v3807 = vsub.f32 %v3805, %v3806
    %v3808 = vmax.f32 %v3807, 0.0
    %v3809 = vld [vmem:[#allocation9] sm:$0x1]
    %v3810 = vadd.f32 %v3808, 1e-05
    %v3811 = vrsqrt.pop %v3810
    %v3812 = vmul.f32 %v3809, %v3811
    %v3813 = vld [vmem:[#allocation9 + $0x1] sm:$0x1]
    %v3814 = vmul.f32 %v3797, %v3812
    %v3815 = vsub.f32 %v3813, %v3814
    %v3816 = vlaneseq
    %v3817 = vshrl.u32 %v3816, 7
    %v3818 = vsub.s32 0, %v3817
    %v3819 = vrot.slane %v3812, %v3818
    %v3820 = vmul.f32 %v3790, %v3819
    %v3821 = vlaneseq
    %v3822 = vshrl.u32 %v3821, 7
    %v3823 = vsub.s32 0, %v3822
    %v3824 = vrot.slane %v3815, %v3823
    %v3825 = vadd.f32 %v3820, %v3824
    %vm3826 = vcmp.ge.f32.partialorder %v3825, 0.0
    %v3827 = vmul.f32 %v3825, 0.01
    %v3828 = vsel %vm3826, %v3825, %v3827
    %v3829 = vld [vmem:[%s13] sm:$0xff]
    %vm3830 = vcmask 64512
    %v3832 = vsel %vm3830, %v3829, 0
    %3834 = vmatprep.subr.mxu0 0.0
    %3835 = vmatpush1.msra.mxu0 %v3828
    %3836 = vmatprep.subr.mxu0 0.0
    %3837 = vmatpush1.msra.mxu0 0.0
    %3838 = vmatprep.subr.mxu0 0.0
    %3839 = vmatpush1.msra.mxu0 0.0
    %3840 = vmatprep.subr.mxu0 0.0
    %3841 = vmatpush1.msra.mxu0 0.0
    %3842 = vmatprep.subr.mxu0 0.0
    %3843 = vmatpush1.msra.mxu0 0.0
    %3844 = vmatprep.subr.mxu0 0.0
    %3845 = vmatpush1.msra.mxu0 0.0
    %3846 = vmatprep.subr.mxu0 0.0
    %3847 = vmatpush1.msra.mxu0 0.0
    %3848 = vmatprep.subr.mxu0 0.0
    %3849 = vmatpush1.msra.mxu0 0.0
    %3850 = vmatprep.subr.mxu0 0.0
    %3851 = vmatpush1.msra.mxu0 0.0
    %3852 = vmatprep.subr.mxu0 0.0
    %3853 = vmatpush1.msra.mxu0 0.0
    %3854 = vmatprep.subr.mxu0 0.0
    %3855 = vmatpush1.msra.mxu0 0.0
    %3856 = vmatprep.subr.mxu0 0.0
    %3857 = vmatpush1.msra.mxu0 0.0
    %3858 = vmatprep.subr.mxu0 0.0
    %3859 = vmatpush1.msra.mxu0 0.0
    %3860 = vmatprep.subr.mxu0 0.0
    %3861 = vmatpush1.msra.mxu0 0.0
    %3862 = vmatprep.subr.mxu0 0.0
    %3863 = vmatpush1.msra.mxu0 0.0
    %3864 = vmatprep.subr.mxu0 0.0
    %3865 = vmatpush1.msra.mxu0 0.0
    %3866 = vmatprep.subr.mxu0 0.0
    %3867 = vmatpush1.msra.mxu0 0.0
    %3868 = vmatprep.subr.mxu0 0.0
    %3869 = vmatpush1.msra.mxu0 0.0
    %3870 = vmatprep.subr.mxu0 0.0
    %3871 = vmatpush1.msra.mxu0 0.0
    %3872 = vmatprep.subr.mxu0 0.0
    %3873 = vmatpush1.msra.mxu0 0.0
    %3874 = vmatprep.subr.mxu0 0.0
    %3875 = vmatpush1.msra.mxu0 0.0
    %3876 = vmatprep.subr.mxu0 0.0
    %3877 = vmatpush1.msra.mxu0 0.0
    %3878 = vmatprep.subr.mxu0 0.0
    %3879 = vmatpush1.msra.mxu0 0.0
    %3880 = vmatprep.subr.mxu0 0.0
    %3881 = vmatpush1.msra.mxu0 0.0
    %3882 = vmatprep.subr.mxu0 0.0
    %3883 = vmatpush1.msra.mxu0 0.0
    %3884 = vmatprep.subr.mxu0 0.0
    %3885 = vmatpush1.msra.mxu0 0.0
    %3886 = vmatprep.subr.mxu0 0.0
    %3887 = vmatpush1.msra.mxu0 0.0
    %3888 = vmatprep.subr.mxu0 0.0
    %3889 = vmatpush1.msra.mxu0 0.0
    %3890 = vmatprep.subr.mxu0 0.0
    %3891 = vmatpush1.msra.mxu0 0.0
    %3892 = vmatprep.subr.mxu0 0.0
    %3893 = vmatpush1.msra.mxu0 0.0
    %3894 = vmatprep.subr.mxu0 0.0
    %3895 = vmatpush1.msra.mxu0 0.0
    %3896 = vmatprep.subr.mxu0 0.0
    %3897 = vmatpush1.msra.mxu0 0.0
    %3898 = vmatprep.mubr.f32.mxu0 0.0
    %3899 = vmatmul.mubr.f32.gmra.mrb[0].mxu0 %v3832
    %v3900 = vpop.f32.mrb[0].mxu0
    %v3901 = vadd.f32 0.0, %v3900
    %v3902 = vpop.f32.mrb[0].mxu0
    %3903 = vdwg.mxu0
    %v3904 = vld [vmem:[#allocation4] sm:$0xff]
    %v3905 = vld [vmem:[#allocation4 + $0x8] sm:$0xff]
    %v3906 = vld [vmem:[#allocation4 + $0x10] sm:$0xff]
    %v3907 = vld [vmem:[#allocation4 + $0x18] sm:$0xff]
    %v3908 = vld [vmem:[#allocation4 + $0x20] sm:$0xff]
    %v3909 = vld [vmem:[#allocation4 + $0x28] sm:$0xff]
    %v3910 = vld [vmem:[#allocation4 + $0x30] sm:$0xff]
    %v3911 = vld [vmem:[#allocation4 + $0x38] sm:$0xff]
    %v3912 = vld [vmem:[#allocation4 + $0x40] sm:$0xff]
    %v3913 = vld [vmem:[#allocation4 + $0x48] sm:$0xff]
    %v3914 = vld [vmem:[#allocation4 + $0x50] sm:$0xff]
    %v3915 = vld [vmem:[#allocation4 + $0x58] sm:$0xff]
    %v3916 = vld [vmem:[#allocation4 + $0x60] sm:$0xff]
    %v3917 = vld [vmem:[#allocation4 + $0x68] sm:$0xff]
    %v3918 = vld [vmem:[#allocation4 + $0x70] sm:$0xff]
    %v3919 = vld [vmem:[#allocation4 + $0x78] sm:$0xff]
    %v3920 = vld [vmem:[#allocation4 + $0x80] sm:$0xff]
    %v3921 = vld [vmem:[#allocation4 + $0x88] sm:$0xff]
    %v3922 = vld [vmem:[#allocation4 + $0x90] sm:$0xff]
    %v3923 = vld [vmem:[#allocation4 + $0x98] sm:$0xff]
    %v3924 = vld [vmem:[#allocation4 + $0xa0] sm:$0xff]
    %v3925 = vld [vmem:[#allocation4 + $0xa8] sm:$0xff]
    %v3926 = vld [vmem:[#allocation4 + $0xb0] sm:$0xff]
    %v3927 = vld [vmem:[#allocation4 + $0xb8] sm:$0xff]
    %v3928 = vld [vmem:[#allocation4 + $0xc0] sm:$0xff]
    %v3929 = vld [vmem:[#allocation4 + $0xc8] sm:$0xff]
    %v3930 = vld [vmem:[#allocation4 + $0xd0] sm:$0xff]
    %v3931 = vld [vmem:[#allocation4 + $0xd8] sm:$0xff]
    %v3932 = vld [vmem:[#allocation4 + $0xe0] sm:$0xff]
    %v3933 = vld [vmem:[#allocation4 + $0xe8] sm:$0xff]
    %v3934 = vld [vmem:[#allocation4 + $0xf0] sm:$0xff]
    %v3935 = vld [vmem:[#allocation4 + $0xf8] sm:$0xff]
    %s3936 = scalar_lea.vmem %s13, 8
    %v3937 = vld [vmem:[%s3936] sm:$0xff]
    %v3939 = vsel %vm3830, %v3937, 0
    %3941 = vmatprep.subr.mxu0 0.0
    %3942 = vmatpush1.msra.mxu0 %v3828
    %3943 = vmatprep.subr.mxu0 0.0
    %3944 = vmatpush1.msra.mxu0 0.0
    %3945 = vmatprep.subr.mxu0 0.0
    %3946 = vmatpush1.msra.mxu0 0.0
    %3947 = vmatprep.subr.mxu0 0.0
    %3948 = vmatpush1.msra.mxu0 0.0
    %3949 = vmatprep.subr.mxu0 0.0
    %3950 = vmatpush1.msra.mxu0 0.0
    %3951 = vmatprep.subr.mxu0 0.0
    %3952 = vmatpush1.msra.mxu0 0.0
    %3953 = vmatprep.subr.mxu0 0.0
    %3954 = vmatpush1.msra.mxu0 0.0
    %3955 = vmatprep.subr.mxu0 0.0
    %3956 = vmatpush1.msra.mxu0 0.0
    %3957 = vmatprep.subr.mxu0 0.0
    %3958 = vmatpush1.msra.mxu0 0.0
    %3959 = vmatprep.subr.mxu0 0.0
    %3960 = vmatpush1.msra.mxu0 0.0
    %3961 = vmatprep.subr.mxu0 0.0
    %3962 = vmatpush1.msra.mxu0 0.0
    %3963 = vmatprep.subr.mxu0 0.0
    %3964 = vmatpush1.msra.mxu0 0.0
    %3965 = vmatprep.subr.mxu0 0.0
    %3966 = vmatpush1.msra.mxu0 0.0
    %3967 = vmatprep.subr.mxu0 0.0
    %3968 = vmatpush1.msra.mxu0 0.0
    %3969 = vmatprep.subr.mxu0 0.0
    %3970 = vmatpush1.msra.mxu0 0.0
    %3971 = vmatprep.subr.mxu0 0.0
    %3972 = vmatpush1.msra.mxu0 0.0
    %3973 = vmatprep.subr.mxu0 0.0
    %3974 = vmatpush1.msra.mxu0 0.0
    %3975 = vmatprep.subr.mxu0 0.0
    %3976 = vmatpush1.msra.mxu0 0.0
    %3977 = vmatprep.subr.mxu0 0.0
    %3978 = vmatpush1.msra.mxu0 0.0
    %3979 = vmatprep.subr.mxu0 0.0
    %3980 = vmatpush1.msra.mxu0 0.0
    %3981 = vmatprep.subr.mxu0 0.0
    %3982 = vmatpush1.msra.mxu0 0.0
    %3983 = vmatprep.subr.mxu0 0.0
    %3984 = vmatpush1.msra.mxu0 0.0
    %3985 = vmatprep.subr.mxu0 0.0
    %3986 = vmatpush1.msra.mxu0 0.0
    %3987 = vmatprep.subr.mxu0 0.0
    %3988 = vmatpush1.msra.mxu0 0.0
    %3989 = vmatprep.subr.mxu0 0.0
    %3990 = vmatpush1.msra.mxu0 0.0
    %3991 = vmatprep.subr.mxu0 0.0
    %3992 = vmatpush1.msra.mxu0 0.0
    %3993 = vmatprep.subr.mxu0 0.0
    %3994 = vmatpush1.msra.mxu0 0.0
    %3995 = vmatprep.subr.mxu0 0.0
    %3996 = vmatpush1.msra.mxu0 0.0
    %3997 = vmatprep.subr.mxu0 0.0
    %3998 = vmatpush1.msra.mxu0 0.0
    %3999 = vmatprep.subr.mxu0 0.0
    %4000 = vmatpush1.msra.mxu0 0.0
    %4001 = vmatprep.subr.mxu0 0.0
    %4002 = vmatpush1.msra.mxu0 0.0
    %4003 = vmatprep.subr.mxu0 0.0
    %4004 = vmatpush1.msra.mxu0 0.0
    %4005 = vmatprep.mubr.f32.mxu0 0.0
    %4006 = vmatmul.mubr.f32.gmra.mrb[0].mxu0 %v3939
    %v4007 = vpop.f32.mrb[0].mxu0
    %v4008 = vadd.f32 0.0, %v4007
    %v4009 = vpop.f32.mrb[0].mxu0
    %4010 = vdwg.mxu0
    %v4011 = vld [vmem:[#allocation4 + $0x100] sm:$0xff]
    %v4012 = vld [vmem:[#allocation4 + $0x108] sm:$0xff]
    %v4013 = vld [vmem:[#allocation4 + $0x110] sm:$0xff]
    %v4014 = vld [vmem:[#allocation4 + $0x118] sm:$0xff]
    %v4015 = vld [vmem:[#allocation4 + $0x120] sm:$0xff]
    %v4016 = vld [vmem:[#allocation4 + $0x128] sm:$0xff]
    %v4017 = vld [vmem:[#allocation4 + $0x130] sm:$0xff]
    %v4018 = vld [vmem:[#allocation4 + $0x138] sm:$0xff]
    %v4019 = vld [vmem:[#allocation4 + $0x140] sm:$0xff]
    %v4020 = vld [vmem:[#allocation4 + $0x148] sm:$0xff]
    %v4021 = vld [vmem:[#allocation4 + $0x150] sm:$0xff]
    %v4022 = vld [vmem:[#allocation4 + $0x158] sm:$0xff]
    %v4023 = vld [vmem:[#allocation4 + $0x160] sm:$0xff]
    %v4024 = vld [vmem:[#allocation4 + $0x168] sm:$0xff]
    %v4025 = vld [vmem:[#allocation4 + $0x170] sm:$0xff]
    %v4026 = vld [vmem:[#allocation4 + $0x178] sm:$0xff]
    %v4027 = vld [vmem:[#allocation4 + $0x180] sm:$0xff]
    %v4028 = vld [vmem:[#allocation4 + $0x188] sm:$0xff]
    %v4029 = vld [vmem:[#allocation4 + $0x190] sm:$0xff]
    %v4030 = vld [vmem:[#allocation4 + $0x198] sm:$0xff]
    %v4031 = vld [vmem:[#allocation4 + $0x1a0] sm:$0xff]
    %v4032 = vld [vmem:[#allocation4 + $0x1a8] sm:$0xff]
    %v4033 = vld [vmem:[#allocation4 + $0x1b0] sm:$0xff]
    %v4034 = vld [vmem:[#allocation4 + $0x1b8] sm:$0xff]
    %v4035 = vld [vmem:[#allocation4 + $0x1c0] sm:$0xff]
    %v4036 = vld [vmem:[#allocation4 + $0x1c8] sm:$0xff]
    %v4037 = vld [vmem:[#allocation4 + $0x1d0] sm:$0xff]
    %v4038 = vld [vmem:[#allocation4 + $0x1d8] sm:$0xff]
    %v4039 = vld [vmem:[#allocation4 + $0x1e0] sm:$0xff]
    %v4040 = vld [vmem:[#allocation4 + $0x1e8] sm:$0xff]
    %v4041 = vld [vmem:[#allocation4 + $0x1f0] sm:$0xff]
    %v4042 = vld [vmem:[#allocation4 + $0x1f8] sm:$0xff]
    %4043 = vmatprep.subr.mxu0 %v4012
    %4044 = vmatpush1.msra.mxu0 %v4011
    %4045 = vmatprep.subr.mxu0 %v4014
    %4046 = vmatpush1.msra.mxu0 %v4013
    %4047 = vmatprep.subr.mxu0 %v4016
    %4048 = vmatpush1.msra.mxu0 %v4015
    %4049 = vmatprep.subr.mxu0 %v4018
    %4050 = vmatpush1.msra.mxu0 %v4017
    %4051 = vmatprep.subr.mxu0 %v4020
    %4052 = vmatpush1.msra.mxu0 %v4019
    %4053 = vmatprep.subr.mxu0 %v4022
    %4054 = vmatpush1.msra.mxu0 %v4021
    %4055 = vmatprep.subr.mxu0 %v4024
    %4056 = vmatpush1.msra.mxu0 %v4023
    %4057 = vmatprep.subr.mxu0 %v4026
    %4058 = vmatpush1.msra.mxu0 %v4025
    %4059 = vmatprep.subr.mxu0 %v4028
    %4060 = vmatpush1.msra.mxu0 %v4027
    %4061 = vmatprep.subr.mxu0 %v4030
    %4062 = vmatpush1.msra.mxu0 %v4029
    %4063 = vmatprep.subr.mxu0 %v4032
    %4064 = vmatpush1.msra.mxu0 %v4031
    %4065 = vmatprep.subr.mxu0 %v4034
    %4066 = vmatpush1.msra.mxu0 %v4033
    %4067 = vmatprep.subr.mxu0 %v4036
    %4068 = vmatpush1.msra.mxu0 %v4035
    %4069 = vmatprep.subr.mxu0 %v4038
    %4070 = vmatpush1.msra.mxu0 %v4037
    %4071 = vmatprep.subr.mxu0 %v4040
    %4072 = vmatpush1.msra.mxu0 %v4039
    %4073 = vmatprep.subr.mxu0 %v4042
    %4074 = vmatpush1.msra.mxu0 %v4041
    %4075 = vmatprep.subr.mxu0 0.0
    %4076 = vmatpush1.msra.mxu0 0.0
    %4077 = vmatprep.subr.mxu0 0.0
    %4078 = vmatpush1.msra.mxu0 0.0
    %4079 = vmatprep.subr.mxu0 0.0
    %4080 = vmatpush1.msra.mxu0 0.0
    %4081 = vmatprep.subr.mxu0 0.0
    %4082 = vmatpush1.msra.mxu0 0.0
    %4083 = vmatprep.subr.mxu0 0.0
    %4084 = vmatpush1.msra.mxu0 0.0
    %4085 = vmatprep.subr.mxu0 0.0
    %4086 = vmatpush1.msra.mxu0 0.0
    %4087 = vmatprep.subr.mxu0 0.0
    %4088 = vmatpush1.msra.mxu0 0.0
    %4089 = vmatprep.subr.mxu0 0.0
    %4090 = vmatpush1.msra.mxu0 0.0
    %4091 = vmatprep.subr.mxu0 0.0
    %4092 = vmatpush1.msra.mxu0 0.0
    %4093 = vmatprep.subr.mxu0 0.0
    %4094 = vmatpush1.msra.mxu0 0.0
    %4095 = vmatprep.subr.mxu0 0.0
    %4096 = vmatpush1.msra.mxu0 0.0
    %4097 = vmatprep.subr.mxu0 0.0
    %4098 = vmatpush1.msra.mxu0 0.0
    %4099 = vmatprep.subr.mxu0 0.0
    %4100 = vmatpush1.msra.mxu0 0.0
    %4101 = vmatprep.subr.mxu0 0.0
    %4102 = vmatpush1.msra.mxu0 0.0
    %4103 = vmatprep.subr.mxu0 0.0
    %4104 = vmatpush1.msra.mxu0 0.0
    %4105 = vmatprep.subr.mxu0 0.0
    %4106 = vmatpush1.msra.mxu0 0.0
    %4107 = vmatprep.mubr.f32.mxu0 0.0
    %4108 = vmatmul.mubr.f32.gmra.mrb[0].mxu0 %v4008
    %v4109 = vpop.f32.mrb[0].mxu0
    %v4110 = vadd.f32 0.0, %v4109
    %v4111 = vpop.f32.mrb[0].mxu0
    %v4112 = vadd.f32 0.0, %v4111
    %4113 = vdwg.mxu0
    %4114 = vmatprep.subr.mxu0 %v3905
    %4115 = vmatpush1.msra.mxu0 %v3904
    %4116 = vmatprep.subr.mxu0 %v3907
    %4117 = vmatpush1.msra.mxu0 %v3906
    %4118 = vmatprep.subr.mxu0 %v3909
    %4119 = vmatpush1.msra.mxu0 %v3908
    %4120 = vmatprep.subr.mxu0 %v3911
    %4121 = vmatpush1.msra.mxu0 %v3910
    %4122 = vmatprep.subr.mxu0 %v3913
    %4123 = vmatpush1.msra.mxu0 %v3912
    %4124 = vmatprep.subr.mxu0 %v3915
    %4125 = vmatpush1.msra.mxu0 %v3914
    %4126 = vmatprep.subr.mxu0 %v3917
    %4127 = vmatpush1.msra.mxu0 %v3916
    %4128 = vmatprep.subr.mxu0 %v3919
    %4129 = vmatpush1.msra.mxu0 %v3918
    %4130 = vmatprep.subr.mxu0 %v3921
    %4131 = vmatpush1.msra.mxu0 %v3920
    %4132 = vmatprep.subr.mxu0 %v3923
    %4133 = vmatpush1.msra.mxu0 %v3922
    %4134 = vmatprep.subr.mxu0 %v3925
    %4135 = vmatpush1.msra.mxu0 %v3924
    %4136 = vmatprep.subr.mxu0 %v3927
    %4137 = vmatpush1.msra.mxu0 %v3926
    %4138 = vmatprep.subr.mxu0 %v3929
    %4139 = vmatpush1.msra.mxu0 %v3928
    %4140 = vmatprep.subr.mxu0 %v3931
    %4141 = vmatpush1.msra.mxu0 %v3930
    %4142 = vmatprep.subr.mxu0 %v3933
    %4143 = vmatpush1.msra.mxu0 %v3932
    %4144 = vmatprep.subr.mxu0 %v3935
    %4145 = vmatpush1.msra.mxu0 %v3934
    %4146 = vmatprep.subr.mxu0 0.0
    %4147 = vmatpush1.msra.mxu0 0.0
    %4148 = vmatprep.subr.mxu0 0.0
    %4149 = vmatpush1.msra.mxu0 0.0
    %4150 = vmatprep.subr.mxu0 0.0
    %4151 = vmatpush1.msra.mxu0 0.0
    %4152 = vmatprep.subr.mxu0 0.0
    %4153 = vmatpush1.msra.mxu0 0.0
    %4154 = vmatprep.subr.mxu0 0.0
    %4155 = vmatpush1.msra.mxu0 0.0
    %4156 = vmatprep.subr.mxu0 0.0
    %4157 = vmatpush1.msra.mxu0 0.0
    %4158 = vmatprep.subr.mxu0 0.0
    %4159 = vmatpush1.msra.mxu0 0.0
    %4160 = vmatprep.subr.mxu0 0.0
    %4161 = vmatpush1.msra.mxu0 0.0
    %4162 = vmatprep.subr.mxu0 0.0
    %4163 = vmatpush1.msra.mxu0 0.0
    %4164 = vmatprep.subr.mxu0 0.0
    %4165 = vmatpush1.msra.mxu0 0.0
    %4166 = vmatprep.subr.mxu0 0.0
    %4167 = vmatpush1.msra.mxu0 0.0
    %4168 = vmatprep.subr.mxu0 0.0
    %4169 = vmatpush1.msra.mxu0 0.0
    %4170 = vmatprep.subr.mxu0 0.0
    %4171 = vmatpush1.msra.mxu0 0.0
    %4172 = vmatprep.subr.mxu0 0.0
    %4173 = vmatpush1.msra.mxu0 0.0
    %4174 = vmatprep.subr.mxu0 0.0
    %4175 = vmatpush1.msra.mxu0 0.0
    %4176 = vmatprep.subr.mxu0 0.0
    %4177 = vmatpush1.msra.mxu0 0.0
    %4178 = vmatprep.mubr.f32.mxu0 0.0
    %4179 = vmatmul.mubr.f32.gmra.mrb[0].mxu0 %v3901
    %v4180 = vpop.f32.mrb[0].mxu0
    %v4181 = vadd.f32 %v4110, %v4180
    %v4182 = vpop.f32.mrb[0].mxu0
    %v4183 = vadd.f32 %v4112, %v4182
    %4184 = vdwg.mxu0
    %s4185 = scalar_lea.vmem %s13, 16
    %v4186 = vld [vmem:[%s4185] sm:$0xff]
    %v4188 = vsel %vm3830, %v4186, 0
    %4190 = vmatprep.subr.mxu0 0.0
    %4191 = vmatpush1.msra.mxu0 %v3828
    %4192 = vmatprep.subr.mxu0 0.0
    %4193 = vmatpush1.msra.mxu0 0.0
    %4194 = vmatprep.subr.mxu0 0.0
    %4195 = vmatpush1.msra.mxu0 0.0
    %4196 = vmatprep.subr.mxu0 0.0
    %4197 = vmatpush1.msra.mxu0 0.0
    %4198 = vmatprep.subr.mxu0 0.0
    %4199 = vmatpush1.msra.mxu0 0.0
    %4200 = vmatprep.subr.mxu0 0.0
    %4201 = vmatpush1.msra.mxu0 0.0
    %4202 = vmatprep.subr.mxu0 0.0
    %4203 = vmatpush1.msra.mxu0 0.0
    %4204 = vmatprep.subr.mxu0 0.0
    %4205 = vmatpush1.msra.mxu0 0.0
    %4206 = vmatprep.subr.mxu0 0.0
    %4207 = vmatpush1.msra.mxu0 0.0
    %4208 = vmatprep.subr.mxu0 0.0
    %4209 = vmatpush1.msra.mxu0 0.0
    %4210 = vmatprep.subr.mxu0 0.0
    %4211 = vmatpush1.msra.mxu0 0.0
    %4212 = vmatprep.subr.mxu0 0.0
    %4213 = vmatpush1.msra.mxu0 0.0
    %4214 = vmatprep.subr.mxu0 0.0
    %4215 = vmatpush1.msra.mxu0 0.0
    %4216 = vmatprep.subr.mxu0 0.0
    %4217 = vmatpush1.msra.mxu0 0.0
    %4218 = vmatprep.subr.mxu0 0.0
    %4219 = vmatpush1.msra.mxu0 0.0
    %4220 = vmatprep.subr.mxu0 0.0
    %4221 = vmatpush1.msra.mxu0 0.0
    %4222 = vmatprep.subr.mxu0 0.0
    %4223 = vmatpush1.msra.mxu0 0.0
    %4224 = vmatprep.subr.mxu0 0.0
    %4225 = vmatpush1.msra.mxu0 0.0
    %4226 = vmatprep.subr.mxu0 0.0
    %4227 = vmatpush1.msra.mxu0 0.0
    %4228 = vmatprep.subr.mxu0 0.0
    %4229 = vmatpush1.msra.mxu0 0.0
    %4230 = vmatprep.subr.mxu0 0.0
    %4231 = vmatpush1.msra.mxu0 0.0
    %4232 = vmatprep.subr.mxu0 0.0
    %4233 = vmatpush1.msra.mxu0 0.0
    %4234 = vmatprep.subr.mxu0 0.0
    %4235 = vmatpush1.msra.mxu0 0.0
    %4236 = vmatprep.subr.mxu0 0.0
    %4237 = vmatpush1.msra.mxu0 0.0
    %4238 = vmatprep.subr.mxu0 0.0
    %4239 = vmatpush1.msra.mxu0 0.0
    %4240 = vmatprep.subr.mxu0 0.0
    %4241 = vmatpush1.msra.mxu0 0.0
    %4242 = vmatprep.subr.mxu0 0.0
    %4243 = vmatpush1.msra.mxu0 0.0
    %4244 = vmatprep.subr.mxu0 0.0
    %4245 = vmatpush1.msra.mxu0 0.0
    %4246 = vmatprep.subr.mxu0 0.0
    %4247 = vmatpush1.msra.mxu0 0.0
    %4248 = vmatprep.subr.mxu0 0.0
    %4249 = vmatpush1.msra.mxu0 0.0
    %4250 = vmatprep.subr.mxu0 0.0
    %4251 = vmatpush1.msra.mxu0 0.0
    %4252 = vmatprep.subr.mxu0 0.0
    %4253 = vmatpush1.msra.mxu0 0.0
    %4254 = vmatprep.mubr.f32.mxu0 0.0
    %4255 = vmatmul.mubr.f32.gmra.mrb[0].mxu0 %v4188
    %v4256 = vpop.f32.mrb[0].mxu0
    %v4257 = vadd.f32 0.0, %v4256
    %v4258 = vpop.f32.mrb[0].mxu0
    %4259 = vdwg.mxu0
    %v4260 = vld [vmem:[#allocation4 + $0x200] sm:$0xff]
    %v4261 = vld [vmem:[#allocation4 + $0x208] sm:$0xff]
    %v4262 = vld [vmem:[#allocation4 + $0x210] sm:$0xff]
    %v4263 = vld [vmem:[#allocation4 + $0x218] sm:$0xff]
    %v4264 = vld [vmem:[#allocation4 + $0x220] sm:$0xff]
    %v4265 = vld [vmem:[#allocation4 + $0x228] sm:$0xff]
    %v4266 = vld [vmem:[#allocation4 + $0x230] sm:$0xff]
    %v4267 = vld [vmem:[#allocation4 + $0x238] sm:$0xff]
    %v4268 = vld [vmem:[#allocation4 + $0x240] sm:$0xff]
    %v4269 = vld [vmem:[#allocation4 + $0x248] sm:$0xff]
    %v4270 = vld [vmem:[#allocation4 + $0x250] sm:$0xff]
    %v4271 = vld [vmem:[#allocation4 + $0x258] sm:$0xff]
    %v4272 = vld [vmem:[#allocation4 + $0x260] sm:$0xff]
    %v4273 = vld [vmem:[#allocation4 + $0x268] sm:$0xff]
    %v4274 = vld [vmem:[#allocation4 + $0x270] sm:$0xff]
    %v4275 = vld [vmem:[#allocation4 + $0x278] sm:$0xff]
    %v4276 = vld [vmem:[#allocation4 + $0x280] sm:$0xff]
    %v4277 = vld [vmem:[#allocation4 + $0x288] sm:$0xff]
    %v4278 = vld [vmem:[#allocation4 + $0x290] sm:$0xff]
    %v4279 = vld [vmem:[#allocation4 + $0x298] sm:$0xff]
    %v4280 = vld [vmem:[#allocation4 + $0x2a0] sm:$0xff]
    %v4281 = vld [vmem:[#allocation4 + $0x2a8] sm:$0xff]
    %v4282 = vld [vmem:[#allocation4 + $0x2b0] sm:$0xff]
    %v4283 = vld [vmem:[#allocation4 + $0x2b8] sm:$0xff]
    %v4284 = vld [vmem:[#allocation4 + $0x2c0] sm:$0xff]
    %v4285 = vld [vmem:[#allocation4 + $0x2c8] sm:$0xff]
    %v4286 = vld [vmem:[#allocation4 + $0x2d0] sm:$0xff]
    %v4287 = vld [vmem:[#allocation4 + $0x2d8] sm:$0xff]
    %v4288 = vld [vmem:[#allocation4 + $0x2e0] sm:$0xff]
    %v4289 = vld [vmem:[#allocation4 + $0x2e8] sm:$0xff]
    %v4290 = vld [vmem:[#allocation4 + $0x2f0] sm:$0xff]
    %v4291 = vld [vmem:[#allocation4 + $0x2f8] sm:$0xff]
    %4292 = vmatprep.subr.mxu0 %v4261
    %4293 = vmatpush1.msra.mxu0 %v4260
    %4294 = vmatprep.subr.mxu0 %v4263
    %4295 = vmatpush1.msra.mxu0 %v4262
    %4296 = vmatprep.subr.mxu0 %v4265
    %4297 = vmatpush1.msra.mxu0 %v4264
    %4298 = vmatprep.subr.mxu0 %v4267
    %4299 = vmatpush1.msra.mxu0 %v4266
    %4300 = vmatprep.subr.mxu0 %v4269
    %4301 = vmatpush1.msra.mxu0 %v4268
    %4302 = vmatprep.subr.mxu0 %v4271
    %4303 = vmatpush1.msra.mxu0 %v4270
    %4304 = vmatprep.subr.mxu0 %v4273
    %4305 = vmatpush1.msra.mxu0 %v4272
    %4306 = vmatprep.subr.mxu0 %v4275
    %4307 = vmatpush1.msra.mxu0 %v4274
    %4308 = vmatprep.subr.mxu0 %v4277
    %4309 = vmatpush1.msra.mxu0 %v4276
    %4310 = vmatprep.subr.mxu0 %v4279
    %4311 = vmatpush1.msra.mxu0 %v4278
    %4312 = vmatprep.subr.mxu0 %v4281
    %4313 = vmatpush1.msra.mxu0 %v4280
    %4314 = vmatprep.subr.mxu0 %v4283
    %4315 = vmatpush1.msra.mxu0 %v4282
    %4316 = vmatprep.subr.mxu0 %v4285
    %4317 = vmatpush1.msra.mxu0 %v4284
    %4318 = vmatprep.subr.mxu0 %v4287
    %4319 = vmatpush1.msra.mxu0 %v4286
    %4320 = vmatprep.subr.mxu0 %v4289
    %4321 = vmatpush1.msra.mxu0 %v4288
    %4322 = vmatprep.subr.mxu0 %v4291
    %4323 = vmatpush1.msra.mxu0 %v4290
    %4324 = vmatprep.subr.mxu0 0.0
    %4325 = vmatpush1.msra.mxu0 0.0
    %4326 = vmatprep.subr.mxu0 0.0
    %4327 = vmatpush1.msra.mxu0 0.0
    %4328 = vmatprep.subr.mxu0 0.0
    %4329 = vmatpush1.msra.mxu0 0.0
    %4330 = vmatprep.subr.mxu0 0.0
    %4331 = vmatpush1.msra.mxu0 0.0
    %4332 = vmatprep.subr.mxu0 0.0
    %4333 = vmatpush1.msra.mxu0 0.0
    %4334 = vmatprep.subr.mxu0 0.0
    %4335 = vmatpush1.msra.mxu0 0.0
    %4336 = vmatprep.subr.mxu0 0.0
    %4337 = vmatpush1.msra.mxu0 0.0
    %4338 = vmatprep.subr.mxu0 0.0
    %4339 = vmatpush1.msra.mxu0 0.0
    %4340 = vmatprep.subr.mxu0 0.0
    %4341 = vmatpush1.msra.mxu0 0.0
    %4342 = vmatprep.subr.mxu0 0.0
    %4343 = vmatpush1.msra.mxu0 0.0
    %4344 = vmatprep.subr.mxu0 0.0
    %4345 = vmatpush1.msra.mxu0 0.0
    %4346 = vmatprep.subr.mxu0 0.0
    %4347 = vmatpush1.msra.mxu0 0.0
    %4348 = vmatprep.subr.mxu0 0.0
    %4349 = vmatpush1.msra.mxu0 0.0
    %4350 = vmatprep.subr.mxu0 0.0
    %4351 = vmatpush1.msra.mxu0 0.0
    %4352 = vmatprep.subr.mxu0 0.0
    %4353 = vmatpush1.msra.mxu0 0.0
    %4354 = vmatprep.subr.mxu0 0.0
    %4355 = vmatpush1.msra.mxu0 0.0
    %4356 = vmatprep.mubr.f32.mxu0 0.0
    %4357 = vmatmul.mubr.f32.gmra.mrb[0].mxu0 %v4257
    %v4358 = vpop.f32.mrb[0].mxu0
    %v4359 = vadd.f32 0.0, %v4358
    %v4360 = vpop.f32.mrb[0].mxu0
    %v4361 = vadd.f32 0.0, %v4360
    %4362 = vdwg.mxu0
    %v4363 = vadd.f32 %v4181, %v4359
    %v4364 = vadd.f32 %v4183, %v4361
    %s4365 = scalar_lea.vmem %s13, 24
    %v4366 = vld [vmem:[%s4365] sm:$0xff]
    %v4368 = vsel %vm3830, %v4366, 0
    %4370 = vmatprep.subr.mxu0 0.0
    %4371 = vmatpush1.msra.mxu0 %v3828
    %4372 = vmatprep.subr.mxu0 0.0
    %4373 = vmatpush1.msra.mxu0 0.0
    %4374 = vmatprep.subr.mxu0 0.0
    %4375 = vmatpush1.msra.mxu0 0.0
    %4376 = vmatprep.subr.mxu0 0.0
    %4377 = vmatpush1.msra.mxu0 0.0
    %4378 = vmatprep.subr.mxu0 0.0
    %4379 = vmatpush1.msra.mxu0 0.0
    %4380 = vmatprep.subr.mxu0 0.0
    %4381 = vmatpush1.msra.mxu0 0.0
    %4382 = vmatprep.subr.mxu0 0.0
    %4383 = vmatpush1.msra.mxu0 0.0
    %4384 = vmatprep.subr.mxu0 0.0
    %4385 = vmatpush1.msra.mxu0 0.0
    %4386 = vmatprep.subr.mxu0 0.0
    %4387 = vmatpush1.msra.mxu0 0.0
    %4388 = vmatprep.subr.mxu0 0.0
    %4389 = vmatpush1.msra.mxu0 0.0
    %4390 = vmatprep.subr.mxu0 0.0
    %4391 = vmatpush1.msra.mxu0 0.0
    %4392 = vmatprep.subr.mxu0 0.0
    %4393 = vmatpush1.msra.mxu0 0.0
    %4394 = vmatprep.subr.mxu0 0.0
    %4395 = vmatpush1.msra.mxu0 0.0
    %4396 = vmatprep.subr.mxu0 0.0
    %4397 = vmatpush1.msra.mxu0 0.0
    %4398 = vmatprep.subr.mxu0 0.0
    %4399 = vmatpush1.msra.mxu0 0.0
    %4400 = vmatprep.subr.mxu0 0.0
    %4401 = vmatpush1.msra.mxu0 0.0
    %4402 = vmatprep.subr.mxu0 0.0
    %4403 = vmatpush1.msra.mxu0 0.0
    %4404 = vmatprep.subr.mxu0 0.0
    %4405 = vmatpush1.msra.mxu0 0.0
    %4406 = vmatprep.subr.mxu0 0.0
    %4407 = vmatpush1.msra.mxu0 0.0
    %4408 = vmatprep.subr.mxu0 0.0
    %4409 = vmatpush1.msra.mxu0 0.0
    %4410 = vmatprep.subr.mxu0 0.0
    %4411 = vmatpush1.msra.mxu0 0.0
    %4412 = vmatprep.subr.mxu0 0.0
    %4413 = vmatpush1.msra.mxu0 0.0
    %4414 = vmatprep.subr.mxu0 0.0
    %4415 = vmatpush1.msra.mxu0 0.0
    %4416 = vmatprep.subr.mxu0 0.0
    %4417 = vmatpush1.msra.mxu0 0.0
    %4418 = vmatprep.subr.mxu0 0.0
    %4419 = vmatpush1.msra.mxu0 0.0
    %4420 = vmatprep.subr.mxu0 0.0
    %4421 = vmatpush1.msra.mxu0 0.0
    %4422 = vmatprep.subr.mxu0 0.0
    %4423 = vmatpush1.msra.mxu0 0.0
    %4424 = vmatprep.subr.mxu0 0.0
    %4425 = vmatpush1.msra.mxu0 0.0
    %4426 = vmatprep.subr.mxu0 0.0
    %4427 = vmatpush1.msra.mxu0 0.0
    %4428 = vmatprep.subr.mxu0 0.0
    %4429 = vmatpush1.msra.mxu0 0.0
    %4430 = vmatprep.subr.mxu0 0.0
    %4431 = vmatpush1.msra.mxu0 0.0
    %4432 = vmatprep.subr.mxu0 0.0
    %4433 = vmatpush1.msra.mxu0 0.0
    %4434 = vmatprep.mubr.f32.mxu0 0.0
    %4435 = vmatmul.mubr.f32.gmra.mrb[0].mxu0 %v4368
    %v4436 = vpop.f32.mrb[0].mxu0
    %v4437 = vadd.f32 0.0, %v4436
    %v4438 = vpop.f32.mrb[0].mxu0
    %4439 = vdwg.mxu0
    %v4440 = vld [vmem:[#allocation4 + $0x300] sm:$0xff]
    %v4441 = vld [vmem:[#allocation4 + $0x308] sm:$0xff]
    %v4442 = vld [vmem:[#allocation4 + $0x310] sm:$0xff]
    %v4443 = vld [vmem:[#allocation4 + $0x318] sm:$0xff]
    %v4444 = vld [vmem:[#allocation4 + $0x320] sm:$0xff]
    %v4445 = vld [vmem:[#allocation4 + $0x328] sm:$0xff]
    %v4446 = vld [vmem:[#allocation4 + $0x330] sm:$0xff]
    %v4447 = vld [vmem:[#allocation4 + $0x338] sm:$0xff]
    %v4448 = vld [vmem:[#allocation4 + $0x340] sm:$0xff]
    %v4449 = vld [vmem:[#allocation4 + $0x348] sm:$0xff]
    %v4450 = vld [vmem:[#allocation4 + $0x350] sm:$0xff]
    %v4451 = vld [vmem:[#allocation4 + $0x358] sm:$0xff]
    %v4452 = vld [vmem:[#allocation4 + $0x360] sm:$0xff]
    %v4453 = vld [vmem:[#allocation4 + $0x368] sm:$0xff]
    %v4454 = vld [vmem:[#allocation4 + $0x370] sm:$0xff]
    %v4455 = vld [vmem:[#allocation4 + $0x378] sm:$0xff]
    %v4456 = vld [vmem:[#allocation4 + $0x380] sm:$0xff]
    %v4457 = vld [vmem:[#allocation4 + $0x388] sm:$0xff]
    %v4458 = vld [vmem:[#allocation4 + $0x390] sm:$0xff]
    %v4459 = vld [vmem:[#allocation4 + $0x398] sm:$0xff]
    %v4460 = vld [vmem:[#allocation4 + $0x3a0] sm:$0xff]
    %v4461 = vld [vmem:[#allocation4 + $0x3a8] sm:$0xff]
    %v4462 = vld [vmem:[#allocation4 + $0x3b0] sm:$0xff]
    %v4463 = vld [vmem:[#allocation4 + $0x3b8] sm:$0xff]
    %v4464 = vld [vmem:[#allocation4 + $0x3c0] sm:$0xff]
    %v4465 = vld [vmem:[#allocation4 + $0x3c8] sm:$0xff]
    %v4466 = vld [vmem:[#allocation4 + $0x3d0] sm:$0xff]
    %v4467 = vld [vmem:[#allocation4 + $0x3d8] sm:$0xff]
    %v4468 = vld [vmem:[#allocation4 + $0x3e0] sm:$0xff]
    %v4469 = vld [vmem:[#allocation4 + $0x3e8] sm:$0xff]
    %v4470 = vld [vmem:[#allocation4 + $0x3f0] sm:$0xff]
    %v4471 = vld [vmem:[#allocation4 + $0x3f8] sm:$0xff]
    %4472 = vmatprep.subr.mxu0 %v4441
    %4473 = vmatpush1.msra.mxu0 %v4440
    %4474 = vmatprep.subr.mxu0 %v4443
    %4475 = vmatpush1.msra.mxu0 %v4442
    %4476 = vmatprep.subr.mxu0 %v4445
    %4477 = vmatpush1.msra.mxu0 %v4444
    %4478 = vmatprep.subr.mxu0 %v4447
    %4479 = vmatpush1.msra.mxu0 %v4446
    %4480 = vmatprep.subr.mxu0 %v4449
    %4481 = vmatpush1.msra.mxu0 %v4448
    %4482 = vmatprep.subr.mxu0 %v4451
    %4483 = vmatpush1.msra.mxu0 %v4450
    %4484 = vmatprep.subr.mxu0 %v4453
    %4485 = vmatpush1.msra.mxu0 %v4452
    %4486 = vmatprep.subr.mxu0 %v4455
    %4487 = vmatpush1.msra.mxu0 %v4454
    %4488 = vmatprep.subr.mxu0 %v4457
    %4489 = vmatpush1.msra.mxu0 %v4456
    %4490 = vmatprep.subr.mxu0 %v4459
    %4491 = vmatpush1.msra.mxu0 %v4458
    %4492 = vmatprep.subr.mxu0 %v4461
    %4493 = vmatpush1.msra.mxu0 %v4460
    %4494 = vmatprep.subr.mxu0 %v4463
    %4495 = vmatpush1.msra.mxu0 %v4462
    %4496 = vmatprep.subr.mxu0 %v4465
    %4497 = vmatpush1.msra.mxu0 %v4464
    %4498 = vmatprep.subr.mxu0 %v4467
    %4499 = vmatpush1.msra.mxu0 %v4466
    %4500 = vmatprep.subr.mxu0 %v4469
    %4501 = vmatpush1.msra.mxu0 %v4468
    %4502 = vmatprep.subr.mxu0 %v4471
    %4503 = vmatpush1.msra.mxu0 %v4470
    %4504 = vmatprep.subr.mxu0 0.0
    %4505 = vmatpush1.msra.mxu0 0.0
    %4506 = vmatprep.subr.mxu0 0.0
    %4507 = vmatpush1.msra.mxu0 0.0
    %4508 = vmatprep.subr.mxu0 0.0
    %4509 = vmatpush1.msra.mxu0 0.0
    %4510 = vmatprep.subr.mxu0 0.0
    %4511 = vmatpush1.msra.mxu0 0.0
    %4512 = vmatprep.subr.mxu0 0.0
    %4513 = vmatpush1.msra.mxu0 0.0
    %4514 = vmatprep.subr.mxu0 0.0
    %4515 = vmatpush1.msra.mxu0 0.0
    %4516 = vmatprep.subr.mxu0 0.0
    %4517 = vmatpush1.msra.mxu0 0.0
    %4518 = vmatprep.subr.mxu0 0.0
    %4519 = vmatpush1.msra.mxu0 0.0
    %4520 = vmatprep.subr.mxu0 0.0
    %4521 = vmatpush1.msra.mxu0 0.0
    %4522 = vmatprep.subr.mxu0 0.0
    %4523 = vmatpush1.msra.mxu0 0.0
    %4524 = vmatprep.subr.mxu0 0.0
    %4525 = vmatpush1.msra.mxu0 0.0
    %4526 = vmatprep.subr.mxu0 0.0
    %4527 = vmatpush1.msra.mxu0 0.0
    %4528 = vmatprep.subr.mxu0 0.0
    %4529 = vmatpush1.msra.mxu0 0.0
    %4530 = vmatprep.subr.mxu0 0.0
    %4531 = vmatpush1.msra.mxu0 0.0
    %4532 = vmatprep.subr.mxu0 0.0
    %4533 = vmatpush1.msra.mxu0 0.0
    %4534 = vmatprep.subr.mxu0 0.0
    %4535 = vmatpush1.msra.mxu0 0.0
    %4536 = vmatprep.mubr.f32.mxu0 0.0
    %4537 = vmatmul.mubr.f32.gmra.mrb[0].mxu0 %v4437
    %v4538 = vpop.f32.mrb[0].mxu0
    %v4539 = vadd.f32 0.0, %v4538
    %v4540 = vpop.f32.mrb[0].mxu0
    %v4541 = vadd.f32 0.0, %v4540
    %4542 = vdwg.mxu0
    %v4543 = vadd.f32 %v4363, %v4539
    %v4544 = vadd.f32 %v4364, %v4541
    %s4545 = scalar_lea.vmem %s13, 32
    %v4546 = vld [vmem:[%s4545] sm:$0xff]
    %v4548 = vsel %vm3830, %v4546, 0
    %4550 = vmatprep.subr.mxu0 0.0
    %4551 = vmatpush1.msra.mxu0 %v3828
    %4552 = vmatprep.subr.mxu0 0.0
    %4553 = vmatpush1.msra.mxu0 0.0
    %4554 = vmatprep.subr.mxu0 0.0
    %4555 = vmatpush1.msra.mxu0 0.0
    %4556 = vmatprep.subr.mxu0 0.0
    %4557 = vmatpush1.msra.mxu0 0.0
    %4558 = vmatprep.subr.mxu0 0.0
    %4559 = vmatpush1.msra.mxu0 0.0
    %4560 = vmatprep.subr.mxu0 0.0
    %4561 = vmatpush1.msra.mxu0 0.0
    %4562 = vmatprep.subr.mxu0 0.0
    %4563 = vmatpush1.msra.mxu0 0.0
    %4564 = vmatprep.subr.mxu0 0.0
    %4565 = vmatpush1.msra.mxu0 0.0
    %4566 = vmatprep.subr.mxu0 0.0
    %4567 = vmatpush1.msra.mxu0 0.0
    %4568 = vmatprep.subr.mxu0 0.0
    %4569 = vmatpush1.msra.mxu0 0.0
    %4570 = vmatprep.subr.mxu0 0.0
    %4571 = vmatpush1.msra.mxu0 0.0
    %4572 = vmatprep.subr.mxu0 0.0
    %4573 = vmatpush1.msra.mxu0 0.0
    %4574 = vmatprep.subr.mxu0 0.0
    %4575 = vmatpush1.msra.mxu0 0.0
    %4576 = vmatprep.subr.mxu0 0.0
    %4577 = vmatpush1.msra.mxu0 0.0
    %4578 = vmatprep.subr.mxu0 0.0
    %4579 = vmatpush1.msra.mxu0 0.0
    %4580 = vmatprep.subr.mxu0 0.0
    %4581 = vmatpush1.msra.mxu0 0.0
    %4582 = vmatprep.subr.mxu0 0.0
    %4583 = vmatpush1.msra.mxu0 0.0
    %4584 = vmatprep.subr.mxu0 0.0
    %4585 = vmatpush1.msra.mxu0 0.0
    %4586 = vmatprep.subr.mxu0 0.0
    %4587 = vmatpush1.msra.mxu0 0.0
    %4588 = vmatprep.subr.mxu0 0.0
    %4589 = vmatpush1.msra.mxu0 0.0
    %4590 = vmatprep.subr.mxu0 0.0
    %4591 = vmatpush1.msra.mxu0 0.0
    %4592 = vmatprep.subr.mxu0 0.0
    %4593 = vmatpush1.msra.mxu0 0.0
    %4594 = vmatprep.subr.mxu0 0.0
    %4595 = vmatpush1.msra.mxu0 0.0
    %4596 = vmatprep.subr.mxu0 0.0
    %4597 = vmatpush1.msra.mxu0 0.0
    %4598 = vmatprep.subr.mxu0 0.0
    %4599 = vmatpush1.msra.mxu0 0.0
    %4600 = vmatprep.subr.mxu0 0.0
    %4601 = vmatpush1.msra.mxu0 0.0
    %4602 = vmatprep.subr.mxu0 0.0
    %4603 = vmatpush1.msra.mxu0 0.0
    %4604 = vmatprep.subr.mxu0 0.0
    %4605 = vmatpush1.msra.mxu0 0.0
    %4606 = vmatprep.subr.mxu0 0.0
    %4607 = vmatpush1.msra.mxu0 0.0
    %4608 = vmatprep.subr.mxu0 0.0
    %4609 = vmatpush1.msra.mxu0 0.0
    %4610 = vmatprep.subr.mxu0 0.0
    %4611 = vmatpush1.msra.mxu0 0.0
    %4612 = vmatprep.subr.mxu0 0.0
    %4613 = vmatpush1.msra.mxu0 0.0
    %4614 = vmatprep.mubr.f32.mxu0 0.0
    %4615 = vmatmul.mubr.f32.gmra.mrb[0].mxu0 %v4548
    %v4616 = vpop.f32.mrb[0].mxu0
    %v4617 = vadd.f32 0.0, %v4616
    %v4618 = vpop.f32.mrb[0].mxu0
    %4619 = vdwg.mxu0
    %v4620 = vld [vmem:[#allocation4 + $0x400] sm:$0xff]
    %v4621 = vld [vmem:[#allocation4 + $0x408] sm:$0xff]
    %v4622 = vld [vmem:[#allocation4 + $0x410] sm:$0xff]
    %v4623 = vld [vmem:[#allocation4 + $0x418] sm:$0xff]
    %v4624 = vld [vmem:[#allocation4 + $0x420] sm:$0xff]
    %v4625 = vld [vmem:[#allocation4 + $0x428] sm:$0xff]
    %v4626 = vld [vmem:[#allocation4 + $0x430] sm:$0xff]
    %v4627 = vld [vmem:[#allocation4 + $0x438] sm:$0xff]
    %v4628 = vld [vmem:[#allocation4 + $0x440] sm:$0xff]
    %v4629 = vld [vmem:[#allocation4 + $0x448] sm:$0xff]
    %v4630 = vld [vmem:[#allocation4 + $0x450] sm:$0xff]
    %v4631 = vld [vmem:[#allocation4 + $0x458] sm:$0xff]
    %v4632 = vld [vmem:[#allocation4 + $0x460] sm:$0xff]
    %v4633 = vld [vmem:[#allocation4 + $0x468] sm:$0xff]
    %v4634 = vld [vmem:[#allocation4 + $0x470] sm:$0xff]
    %v4635 = vld [vmem:[#allocation4 + $0x478] sm:$0xff]
    %v4636 = vld [vmem:[#allocation4 + $0x480] sm:$0xff]
    %v4637 = vld [vmem:[#allocation4 + $0x488] sm:$0xff]
    %v4638 = vld [vmem:[#allocation4 + $0x490] sm:$0xff]
    %v4639 = vld [vmem:[#allocation4 + $0x498] sm:$0xff]
    %v4640 = vld [vmem:[#allocation4 + $0x4a0] sm:$0xff]
    %v4641 = vld [vmem:[#allocation4 + $0x4a8] sm:$0xff]
    %v4642 = vld [vmem:[#allocation4 + $0x4b0] sm:$0xff]
    %v4643 = vld [vmem:[#allocation4 + $0x4b8] sm:$0xff]
    %v4644 = vld [vmem:[#allocation4 + $0x4c0] sm:$0xff]
    %v4645 = vld [vmem:[#allocation4 + $0x4c8] sm:$0xff]
    %v4646 = vld [vmem:[#allocation4 + $0x4d0] sm:$0xff]
    %v4647 = vld [vmem:[#allocation4 + $0x4d8] sm:$0xff]
    %v4648 = vld [vmem:[#allocation4 + $0x4e0] sm:$0xff]
    %v4649 = vld [vmem:[#allocation4 + $0x4e8] sm:$0xff]
    %v4650 = vld [vmem:[#allocation4 + $0x4f0] sm:$0xff]
    %v4651 = vld [vmem:[#allocation4 + $0x4f8] sm:$0xff]
    %4652 = vmatprep.subr.mxu0 %v4621
    %4653 = vmatpush1.msra.mxu0 %v4620
    %4654 = vmatprep.subr.mxu0 %v4623
    %4655 = vmatpush1.msra.mxu0 %v4622
    %4656 = vmatprep.subr.mxu0 %v4625
    %4657 = vmatpush1.msra.mxu0 %v4624
    %4658 = vmatprep.subr.mxu0 %v4627
    %4659 = vmatpush1.msra.mxu0 %v4626
    %4660 = vmatprep.subr.mxu0 %v4629
    %4661 = vmatpush1.msra.mxu0 %v4628
    %4662 = vmatprep.subr.mxu0 %v4631
    %4663 = vmatpush1.msra.mxu0 %v4630
    %4664 = vmatprep.subr.mxu0 %v4633
    %4665 = vmatpush1.msra.mxu0 %v4632
    %4666 = vmatprep.subr.mxu0 %v4635
    %4667 = vmatpush1.msra.mxu0 %v4634
    %4668 = vmatprep.subr.mxu0 %v4637
    %4669 = vmatpush1.msra.mxu0 %v4636
    %4670 = vmatprep.subr.mxu0 %v4639
    %4671 = vmatpush1.msra.mxu0 %v4638
    %4672 = vmatprep.subr.mxu0 %v4641
    %4673 = vmatpush1.msra.mxu0 %v4640
    %4674 = vmatprep.subr.mxu0 %v4643
    %4675 = vmatpush1.msra.mxu0 %v4642
    %4676 = vmatprep.subr.mxu0 %v4645
    %4677 = vmatpush1.msra.mxu0 %v4644
    %4678 = vmatprep.subr.mxu0 %v4647
    %4679 = vmatpush1.msra.mxu0 %v4646
    %4680 = vmatprep.subr.mxu0 %v4649
    %4681 = vmatpush1.msra.mxu0 %v4648
    %4682 = vmatprep.subr.mxu0 %v4651
    %4683 = vmatpush1.msra.mxu0 %v4650
    %4684 = vmatprep.subr.mxu0 0.0
    %4685 = vmatpush1.msra.mxu0 0.0
    %4686 = vmatprep.subr.mxu0 0.0
    %4687 = vmatpush1.msra.mxu0 0.0
    %4688 = vmatprep.subr.mxu0 0.0
    %4689 = vmatpush1.msra.mxu0 0.0
    %4690 = vmatprep.subr.mxu0 0.0
    %4691 = vmatpush1.msra.mxu0 0.0
    %4692 = vmatprep.subr.mxu0 0.0
    %4693 = vmatpush1.msra.mxu0 0.0
    %4694 = vmatprep.subr.mxu0 0.0
    %4695 = vmatpush1.msra.mxu0 0.0
    %4696 = vmatprep.subr.mxu0 0.0
    %4697 = vmatpush1.msra.mxu0 0.0
    %4698 = vmatprep.subr.mxu0 0.0
    %4699 = vmatpush1.msra.mxu0 0.0
    %4700 = vmatprep.subr.mxu0 0.0
    %4701 = vmatpush1.msra.mxu0 0.0
    %4702 = vmatprep.subr.mxu0 0.0
    %4703 = vmatpush1.msra.mxu0 0.0
    %4704 = vmatprep.subr.mxu0 0.0
    %4705 = vmatpush1.msra.mxu0 0.0
    %4706 = vmatprep.subr.mxu0 0.0
    %4707 = vmatpush1.msra.mxu0 0.0
    %4708 = vmatprep.subr.mxu0 0.0
    %4709 = vmatpush1.msra.mxu0 0.0
    %4710 = vmatprep.subr.mxu0 0.0
    %4711 = vmatpush1.msra.mxu0 0.0
    %4712 = vmatprep.subr.mxu0 0.0
    %4713 = vmatpush1.msra.mxu0 0.0
    %4714 = vmatprep.subr.mxu0 0.0
    %4715 = vmatpush1.msra.mxu0 0.0
    %4716 = vmatprep.mubr.f32.mxu0 0.0
    %4717 = vmatmul.mubr.f32.gmra.mrb[0].mxu0 %v4617
    %v4718 = vpop.f32.mrb[0].mxu0
    %v4719 = vadd.f32 0.0, %v4718
    %v4720 = vpop.f32.mrb[0].mxu0
    %v4721 = vadd.f32 0.0, %v4720
    %4722 = vdwg.mxu0
    %v4723 = vadd.f32 %v4543, %v4719
    %v4724 = vadd.f32 %v4544, %v4721
    %s4725 = scalar_lea.vmem %s13, 40
    %v4726 = vld [vmem:[%s4725] sm:$0xff]
    %v4728 = vsel %vm3830, %v4726, 0
    %4730 = vmatprep.subr.mxu0 0.0
    %4731 = vmatpush1.msra.mxu0 %v3828
    %4732 = vmatprep.subr.mxu0 0.0
    %4733 = vmatpush1.msra.mxu0 0.0
    %4734 = vmatprep.subr.mxu0 0.0
    %4735 = vmatpush1.msra.mxu0 0.0
    %4736 = vmatprep.subr.mxu0 0.0
    %4737 = vmatpush1.msra.mxu0 0.0
    %4738 = vmatprep.subr.mxu0 0.0
    %4739 = vmatpush1.msra.mxu0 0.0
    %4740 = vmatprep.subr.mxu0 0.0
    %4741 = vmatpush1.msra.mxu0 0.0
    %4742 = vmatprep.subr.mxu0 0.0
    %4743 = vmatpush1.msra.mxu0 0.0
    %4744 = vmatprep.subr.mxu0 0.0
    %4745 = vmatpush1.msra.mxu0 0.0
    %4746 = vmatprep.subr.mxu0 0.0
    %4747 = vmatpush1.msra.mxu0 0.0
    %4748 = vmatprep.subr.mxu0 0.0
    %4749 = vmatpush1.msra.mxu0 0.0
    %4750 = vmatprep.subr.mxu0 0.0
    %4751 = vmatpush1.msra.mxu0 0.0
    %4752 = vmatprep.subr.mxu0 0.0
    %4753 = vmatpush1.msra.mxu0 0.0
    %4754 = vmatprep.subr.mxu0 0.0
    %4755 = vmatpush1.msra.mxu0 0.0
    %4756 = vmatprep.subr.mxu0 0.0
    %4757 = vmatpush1.msra.mxu0 0.0
    %4758 = vmatprep.subr.mxu0 0.0
    %4759 = vmatpush1.msra.mxu0 0.0
    %4760 = vmatprep.subr.mxu0 0.0
    %4761 = vmatpush1.msra.mxu0 0.0
    %4762 = vmatprep.subr.mxu0 0.0
    %4763 = vmatpush1.msra.mxu0 0.0
    %4764 = vmatprep.subr.mxu0 0.0
    %4765 = vmatpush1.msra.mxu0 0.0
    %4766 = vmatprep.subr.mxu0 0.0
    %4767 = vmatpush1.msra.mxu0 0.0
    %4768 = vmatprep.subr.mxu0 0.0
    %4769 = vmatpush1.msra.mxu0 0.0
    %4770 = vmatprep.subr.mxu0 0.0
    %4771 = vmatpush1.msra.mxu0 0.0
    %4772 = vmatprep.subr.mxu0 0.0
    %4773 = vmatpush1.msra.mxu0 0.0
    %4774 = vmatprep.subr.mxu0 0.0
    %4775 = vmatpush1.msra.mxu0 0.0
    %4776 = vmatprep.subr.mxu0 0.0
    %4777 = vmatpush1.msra.mxu0 0.0
    %4778 = vmatprep.subr.mxu0 0.0
    %4779 = vmatpush1.msra.mxu0 0.0
    %4780 = vmatprep.subr.mxu0 0.0
    %4781 = vmatpush1.msra.mxu0 0.0
    %4782 = vmatprep.subr.mxu0 0.0
    %4783 = vmatpush1.msra.mxu0 0.0
    %4784 = vmatprep.subr.mxu0 0.0
    %4785 = vmatpush1.msra.mxu0 0.0
    %4786 = vmatprep.subr.mxu0 0.0
    %4787 = vmatpush1.msra.mxu0 0.0
    %4788 = vmatprep.subr.mxu0 0.0
    %4789 = vmatpush1.msra.mxu0 0.0
    %4790 = vmatprep.subr.mxu0 0.0
    %4791 = vmatpush1.msra.mxu0 0.0
    %4792 = vmatprep.subr.mxu0 0.0
    %4793 = vmatpush1.msra.mxu0 0.0
    %4794 = vmatprep.mubr.f32.mxu0 0.0
    %4795 = vmatmul.mubr.f32.gmra.mrb[0].mxu0 %v4728
    %v4796 = vpop.f32.mrb[0].mxu0
    %v4797 = vadd.f32 0.0, %v4796
    %v4798 = vpop.f32.mrb[0].mxu0
    %4799 = vdwg.mxu0
    %v4800 = vld [vmem:[#allocation4 + $0x500] sm:$0xff]
    %v4801 = vld [vmem:[#allocation4 + $0x508] sm:$0xff]
    %v4802 = vld [vmem:[#allocation4 + $0x510] sm:$0xff]
    %v4803 = vld [vmem:[#allocation4 + $0x518] sm:$0xff]
    %v4804 = vld [vmem:[#allocation4 + $0x520] sm:$0xff]
    %v4805 = vld [vmem:[#allocation4 + $0x528] sm:$0xff]
    %v4806 = vld [vmem:[#allocation4 + $0x530] sm:$0xff]
    %v4807 = vld [vmem:[#allocation4 + $0x538] sm:$0xff]
    %v4808 = vld [vmem:[#allocation4 + $0x540] sm:$0xff]
    %v4809 = vld [vmem:[#allocation4 + $0x548] sm:$0xff]
    %v4810 = vld [vmem:[#allocation4 + $0x550] sm:$0xff]
    %v4811 = vld [vmem:[#allocation4 + $0x558] sm:$0xff]
    %v4812 = vld [vmem:[#allocation4 + $0x560] sm:$0xff]
    %v4813 = vld [vmem:[#allocation4 + $0x568] sm:$0xff]
    %v4814 = vld [vmem:[#allocation4 + $0x570] sm:$0xff]
    %v4815 = vld [vmem:[#allocation4 + $0x578] sm:$0xff]
    %v4816 = vld [vmem:[#allocation4 + $0x580] sm:$0xff]
    %v4817 = vld [vmem:[#allocation4 + $0x588] sm:$0xff]
    %v4818 = vld [vmem:[#allocation4 + $0x590] sm:$0xff]
    %v4819 = vld [vmem:[#allocation4 + $0x598] sm:$0xff]
    %v4820 = vld [vmem:[#allocation4 + $0x5a0] sm:$0xff]
    %v4821 = vld [vmem:[#allocation4 + $0x5a8] sm:$0xff]
    %v4822 = vld [vmem:[#allocation4 + $0x5b0] sm:$0xff]
    %v4823 = vld [vmem:[#allocation4 + $0x5b8] sm:$0xff]
    %v4824 = vld [vmem:[#allocation4 + $0x5c0] sm:$0xff]
    %v4825 = vld [vmem:[#allocation4 + $0x5c8] sm:$0xff]
    %v4826 = vld [vmem:[#allocation4 + $0x5d0] sm:$0xff]
    %v4827 = vld [vmem:[#allocation4 + $0x5d8] sm:$0xff]
    %v4828 = vld [vmem:[#allocation4 + $0x5e0] sm:$0xff]
    %v4829 = vld [vmem:[#allocation4 + $0x5e8] sm:$0xff]
    %v4830 = vld [vmem:[#allocation4 + $0x5f0] sm:$0xff]
    %v4831 = vld [vmem:[#allocation4 + $0x5f8] sm:$0xff]
    %4832 = vmatprep.subr.mxu0 %v4801
    %4833 = vmatpush1.msra.mxu0 %v4800
    %4834 = vmatprep.subr.mxu0 %v4803
    %4835 = vmatpush1.msra.mxu0 %v4802
    %4836 = vmatprep.subr.mxu0 %v4805
    %4837 = vmatpush1.msra.mxu0 %v4804
    %4838 = vmatprep.subr.mxu0 %v4807
    %4839 = vmatpush1.msra.mxu0 %v4806
    %4840 = vmatprep.subr.mxu0 %v4809
    %4841 = vmatpush1.msra.mxu0 %v4808
    %4842 = vmatprep.subr.mxu0 %v4811
    %4843 = vmatpush1.msra.mxu0 %v4810
    %4844 = vmatprep.subr.mxu0 %v4813
    %4845 = vmatpush1.msra.mxu0 %v4812
    %4846 = vmatprep.subr.mxu0 %v4815
    %4847 = vmatpush1.msra.mxu0 %v4814
    %4848 = vmatprep.subr.mxu0 %v4817
    %4849 = vmatpush1.msra.mxu0 %v4816
    %4850 = vmatprep.subr.mxu0 %v4819
    %4851 = vmatpush1.msra.mxu0 %v4818
    %4852 = vmatprep.subr.mxu0 %v4821
    %4853 = vmatpush1.msra.mxu0 %v4820
    %4854 = vmatprep.subr.mxu0 %v4823
    %4855 = vmatpush1.msra.mxu0 %v4822
    %4856 = vmatprep.subr.mxu0 %v4825
    %4857 = vmatpush1.msra.mxu0 %v4824
    %4858 = vmatprep.subr.mxu0 %v4827
    %4859 = vmatpush1.msra.mxu0 %v4826
    %4860 = vmatprep.subr.mxu0 %v4829
    %4861 = vmatpush1.msra.mxu0 %v4828
    %4862 = vmatprep.subr.mxu0 %v4831
    %4863 = vmatpush1.msra.mxu0 %v4830
    %4864 = vmatprep.subr.mxu0 0.0
    %4865 = vmatpush1.msra.mxu0 0.0
    %4866 = vmatprep.subr.mxu0 0.0
    %4867 = vmatpush1.msra.mxu0 0.0
    %4868 = vmatprep.subr.mxu0 0.0
    %4869 = vmatpush1.msra.mxu0 0.0
    %4870 = vmatprep.subr.mxu0 0.0
    %4871 = vmatpush1.msra.mxu0 0.0
    %4872 = vmatprep.subr.mxu0 0.0
    %4873 = vmatpush1.msra.mxu0 0.0
    %4874 = vmatprep.subr.mxu0 0.0
    %4875 = vmatpush1.msra.mxu0 0.0
    %4876 = vmatprep.subr.mxu0 0.0
    %4877 = vmatpush1.msra.mxu0 0.0
    %4878 = vmatprep.subr.mxu0 0.0
    %4879 = vmatpush1.msra.mxu0 0.0
    %4880 = vmatprep.subr.mxu0 0.0
    %4881 = vmatpush1.msra.mxu0 0.0
    %4882 = vmatprep.subr.mxu0 0.0
    %4883 = vmatpush1.msra.mxu0 0.0
    %4884 = vmatprep.subr.mxu0 0.0
    %4885 = vmatpush1.msra.mxu0 0.0
    %4886 = vmatprep.subr.mxu0 0.0
    %4887 = vmatpush1.msra.mxu0 0.0
    %4888 = vmatprep.subr.mxu0 0.0
    %4889 = vmatpush1.msra.mxu0 0.0
    %4890 = vmatprep.subr.mxu0 0.0
    %4891 = vmatpush1.msra.mxu0 0.0
    %4892 = vmatprep.subr.mxu0 0.0
    %4893 = vmatpush1.msra.mxu0 0.0
    %4894 = vmatprep.subr.mxu0 0.0
    %4895 = vmatpush1.msra.mxu0 0.0
    %4896 = vmatprep.mubr.f32.mxu0 0.0
    %4897 = vmatmul.mubr.f32.gmra.mrb[0].mxu0 %v4797
    %v4898 = vpop.f32.mrb[0].mxu0
    %v4899 = vadd.f32 0.0, %v4898
    %v4900 = vpop.f32.mrb[0].mxu0
    %v4901 = vadd.f32 0.0, %v4900
    %4902 = vdwg.mxu0
    %v4903 = vadd.f32 %v4723, %v4899
    %v4904 = vadd.f32 %v4724, %v4901
    %s4905 = scalar_lea.vmem %s13, 48
    %v4906 = vld [vmem:[%s4905] sm:$0xff]
    %v4908 = vsel %vm3830, %v4906, 0
    %4910 = vmatprep.subr.mxu0 0.0
    %4911 = vmatpush1.msra.mxu0 %v3828
    %4912 = vmatprep.subr.mxu0 0.0
    %4913 = vmatpush1.msra.mxu0 0.0
    %4914 = vmatprep.subr.mxu0 0.0
    %4915 = vmatpush1.msra.mxu0 0.0
    %4916 = vmatprep.subr.mxu0 0.0
    %4917 = vmatpush1.msra.mxu0 0.0
    %4918 = vmatprep.subr.mxu0 0.0
    %4919 = vmatpush1.msra.mxu0 0.0
    %4920 = vmatprep.subr.mxu0 0.0
    %4921 = vmatpush1.msra.mxu0 0.0
    %4922 = vmatprep.subr.mxu0 0.0
    %4923 = vmatpush1.msra.mxu0 0.0
    %4924 = vmatprep.subr.mxu0 0.0
    %4925 = vmatpush1.msra.mxu0 0.0
    %4926 = vmatprep.subr.mxu0 0.0
    %4927 = vmatpush1.msra.mxu0 0.0
    %4928 = vmatprep.subr.mxu0 0.0
    %4929 = vmatpush1.msra.mxu0 0.0
    %4930 = vmatprep.subr.mxu0 0.0
    %4931 = vmatpush1.msra.mxu0 0.0
    %4932 = vmatprep.subr.mxu0 0.0
    %4933 = vmatpush1.msra.mxu0 0.0
    %4934 = vmatprep.subr.mxu0 0.0
    %4935 = vmatpush1.msra.mxu0 0.0
    %4936 = vmatprep.subr.mxu0 0.0
    %4937 = vmatpush1.msra.mxu0 0.0
    %4938 = vmatprep.subr.mxu0 0.0
    %4939 = vmatpush1.msra.mxu0 0.0
    %4940 = vmatprep.subr.mxu0 0.0
    %4941 = vmatpush1.msra.mxu0 0.0
    %4942 = vmatprep.subr.mxu0 0.0
    %4943 = vmatpush1.msra.mxu0 0.0
    %4944 = vmatprep.subr.mxu0 0.0
    %4945 = vmatpush1.msra.mxu0 0.0
    %4946 = vmatprep.subr.mxu0 0.0
    %4947 = vmatpush1.msra.mxu0 0.0
    %4948 = vmatprep.subr.mxu0 0.0
    %4949 = vmatpush1.msra.mxu0 0.0
    %4950 = vmatprep.subr.mxu0 0.0
    %4951 = vmatpush1.msra.mxu0 0.0
    %4952 = vmatprep.subr.mxu0 0.0
    %4953 = vmatpush1.msra.mxu0 0.0
    %4954 = vmatprep.subr.mxu0 0.0
    %4955 = vmatpush1.msra.mxu0 0.0
    %4956 = vmatprep.subr.mxu0 0.0
    %4957 = vmatpush1.msra.mxu0 0.0
    %4958 = vmatprep.subr.mxu0 0.0
    %4959 = vmatpush1.msra.mxu0 0.0
    %4960 = vmatprep.subr.mxu0 0.0
    %4961 = vmatpush1.msra.mxu0 0.0
    %4962 = vmatprep.subr.mxu0 0.0
    %4963 = vmatpush1.msra.mxu0 0.0
    %4964 = vmatprep.subr.mxu0 0.0
    %4965 = vmatpush1.msra.mxu0 0.0
    %4966 = vmatprep.subr.mxu0 0.0
    %4967 = vmatpush1.msra.mxu0 0.0
    %4968 = vmatprep.subr.mxu0 0.0
    %4969 = vmatpush1.msra.mxu0 0.0
    %4970 = vmatprep.subr.mxu0 0.0
    %4971 = vmatpush1.msra.mxu0 0.0
    %4972 = vmatprep.subr.mxu0 0.0
    %4973 = vmatpush1.msra.mxu0 0.0
    %4974 = vmatprep.mubr.f32.mxu0 0.0
    %4975 = vmatmul.mubr.f32.gmra.mrb[0].mxu0 %v4908
    %v4976 = vpop.f32.mrb[0].mxu0
    %v4977 = vadd.f32 0.0, %v4976
    %v4978 = vpop.f32.mrb[0].mxu0
    %4979 = vdwg.mxu0
    %v4980 = vld [vmem:[#allocation4 + $0x600] sm:$0xff]
    %v4981 = vld [vmem:[#allocation4 + $0x608] sm:$0xff]
    %v4982 = vld [vmem:[#allocation4 + $0x610] sm:$0xff]
    %v4983 = vld [vmem:[#allocation4 + $0x618] sm:$0xff]
    %v4984 = vld [vmem:[#allocation4 + $0x620] sm:$0xff]
    %v4985 = vld [vmem:[#allocation4 + $0x628] sm:$0xff]
    %v4986 = vld [vmem:[#allocation4 + $0x630] sm:$0xff]
    %v4987 = vld [vmem:[#allocation4 + $0x638] sm:$0xff]
    %v4988 = vld [vmem:[#allocation4 + $0x640] sm:$0xff]
    %v4989 = vld [vmem:[#allocation4 + $0x648] sm:$0xff]
    %v4990 = vld [vmem:[#allocation4 + $0x650] sm:$0xff]
    %v4991 = vld [vmem:[#allocation4 + $0x658] sm:$0xff]
    %v4992 = vld [vmem:[#allocation4 + $0x660] sm:$0xff]
    %v4993 = vld [vmem:[#allocation4 + $0x668] sm:$0xff]
    %v4994 = vld [vmem:[#allocation4 + $0x670] sm:$0xff]
    %v4995 = vld [vmem:[#allocation4 + $0x678] sm:$0xff]
    %v4996 = vld [vmem:[#allocation4 + $0x680] sm:$0xff]
    %v4997 = vld [vmem:[#allocation4 + $0x688] sm:$0xff]
    %v4998 = vld [vmem:[#allocation4 + $0x690] sm:$0xff]
    %v4999 = vld [vmem:[#allocation4 + $0x698] sm:$0xff]
    %v5000 = vld [vmem:[#allocation4 + $0x6a0] sm:$0xff]
    %v5001 = vld [vmem:[#allocation4 + $0x6a8] sm:$0xff]
    %v5002 = vld [vmem:[#allocation4 + $0x6b0] sm:$0xff]
    %v5003 = vld [vmem:[#allocation4 + $0x6b8] sm:$0xff]
    %v5004 = vld [vmem:[#allocation4 + $0x6c0] sm:$0xff]
    %v5005 = vld [vmem:[#allocation4 + $0x6c8] sm:$0xff]
    %v5006 = vld [vmem:[#allocation4 + $0x6d0] sm:$0xff]
    %v5007 = vld [vmem:[#allocation4 + $0x6d8] sm:$0xff]
    %v5008 = vld [vmem:[#allocation4 + $0x6e0] sm:$0xff]
    %v5009 = vld [vmem:[#allocation4 + $0x6e8] sm:$0xff]
    %v5010 = vld [vmem:[#allocation4 + $0x6f0] sm:$0xff]
    %v5011 = vld [vmem:[#allocation4 + $0x6f8] sm:$0xff]
    %5012 = vmatprep.subr.mxu0 %v4981
    %5013 = vmatpush1.msra.mxu0 %v4980
    %5014 = vmatprep.subr.mxu0 %v4983
    %5015 = vmatpush1.msra.mxu0 %v4982
    %5016 = vmatprep.subr.mxu0 %v4985
    %5017 = vmatpush1.msra.mxu0 %v4984
    %5018 = vmatprep.subr.mxu0 %v4987
    %5019 = vmatpush1.msra.mxu0 %v4986
    %5020 = vmatprep.subr.mxu0 %v4989
    %5021 = vmatpush1.msra.mxu0 %v4988
    %5022 = vmatprep.subr.mxu0 %v4991
    %5023 = vmatpush1.msra.mxu0 %v4990
    %5024 = vmatprep.subr.mxu0 %v4993
    %5025 = vmatpush1.msra.mxu0 %v4992
    %5026 = vmatprep.subr.mxu0 %v4995
    %5027 = vmatpush1.msra.mxu0 %v4994
    %5028 = vmatprep.subr.mxu0 %v4997
    %5029 = vmatpush1.msra.mxu0 %v4996
    %5030 = vmatprep.subr.mxu0 %v4999
    %5031 = vmatpush1.msra.mxu0 %v4998
    %5032 = vmatprep.subr.mxu0 %v5001
    %5033 = vmatpush1.msra.mxu0 %v5000
    %5034 = vmatprep.subr.mxu0 %v5003
    %5035 = vmatpush1.msra.mxu0 %v5002
    %5036 = vmatprep.subr.mxu0 %v5005
    %5037 = vmatpush1.msra.mxu0 %v5004
    %5038 = vmatprep.subr.mxu0 %v5007
    %5039 = vmatpush1.msra.mxu0 %v5006
    %5040 = vmatprep.subr.mxu0 %v5009
    %5041 = vmatpush1.msra.mxu0 %v5008
    %5042 = vmatprep.subr.mxu0 %v5011
    %5043 = vmatpush1.msra.mxu0 %v5010
    %5044 = vmatprep.subr.mxu0 0.0
    %5045 = vmatpush1.msra.mxu0 0.0
    %5046 = vmatprep.subr.mxu0 0.0
    %5047 = vmatpush1.msra.mxu0 0.0
    %5048 = vmatprep.subr.mxu0 0.0
    %5049 = vmatpush1.msra.mxu0 0.0
    %5050 = vmatprep.subr.mxu0 0.0
    %5051 = vmatpush1.msra.mxu0 0.0
    %5052 = vmatprep.subr.mxu0 0.0
    %5053 = vmatpush1.msra.mxu0 0.0
    %5054 = vmatprep.subr.mxu0 0.0
    %5055 = vmatpush1.msra.mxu0 0.0
    %5056 = vmatprep.subr.mxu0 0.0
    %5057 = vmatpush1.msra.mxu0 0.0
    %5058 = vmatprep.subr.mxu0 0.0
    %5059 = vmatpush1.msra.mxu0 0.0
    %5060 = vmatprep.subr.mxu0 0.0
    %5061 = vmatpush1.msra.mxu0 0.0
    %5062 = vmatprep.subr.mxu0 0.0
    %5063 = vmatpush1.msra.mxu0 0.0
    %5064 = vmatprep.subr.mxu0 0.0
    %5065 = vmatpush1.msra.mxu0 0.0
    %5066 = vmatprep.subr.mxu0 0.0
    %5067 = vmatpush1.msra.mxu0 0.0
    %5068 = vmatprep.subr.mxu0 0.0
    %5069 = vmatpush1.msra.mxu0 0.0
    %5070 = vmatprep.subr.mxu0 0.0
    %5071 = vmatpush1.msra.mxu0 0.0
    %5072 = vmatprep.subr.mxu0 0.0
    %5073 = vmatpush1.msra.mxu0 0.0
    %5074 = vmatprep.subr.mxu0 0.0
    %5075 = vmatpush1.msra.mxu0 0.0
    %5076 = vmatprep.mubr.f32.mxu0 0.0
    %5077 = vmatmul.mubr.f32.gmra.mrb[0].mxu0 %v4977
    %v5078 = vpop.f32.mrb[0].mxu0
    %v5079 = vadd.f32 0.0, %v5078
    %v5080 = vpop.f32.mrb[0].mxu0
    %v5081 = vadd.f32 0.0, %v5080
    %5082 = vdwg.mxu0
    %v5083 = vadd.f32 %v4903, %v5079
    %v5084 = vadd.f32 %v4904, %v5081
    %s5085 = scalar_lea.vmem %s13, 56
    %v5086 = vld [vmem:[%s5085] sm:$0xff]
    %v5088 = vsel %vm3830, %v5086, 0
    %5090 = vmatprep.subr.mxu0 0.0
    %5091 = vmatpush1.msra.mxu0 %v3828
    %5092 = vmatprep.subr.mxu0 0.0
    %5093 = vmatpush1.msra.mxu0 0.0
    %5094 = vmatprep.subr.mxu0 0.0
    %5095 = vmatpush1.msra.mxu0 0.0
    %5096 = vmatprep.subr.mxu0 0.0
    %5097 = vmatpush1.msra.mxu0 0.0
    %5098 = vmatprep.subr.mxu0 0.0
    %5099 = vmatpush1.msra.mxu0 0.0
    %5100 = vmatprep.subr.mxu0 0.0
    %5101 = vmatpush1.msra.mxu0 0.0
    %5102 = vmatprep.subr.mxu0 0.0
    %5103 = vmatpush1.msra.mxu0 0.0
    %5104 = vmatprep.subr.mxu0 0.0
    %5105 = vmatpush1.msra.mxu0 0.0
    %5106 = vmatprep.subr.mxu0 0.0
    %5107 = vmatpush1.msra.mxu0 0.0
    %5108 = vmatprep.subr.mxu0 0.0
    %5109 = vmatpush1.msra.mxu0 0.0
    %5110 = vmatprep.subr.mxu0 0.0
    %5111 = vmatpush1.msra.mxu0 0.0
    %5112 = vmatprep.subr.mxu0 0.0
    %5113 = vmatpush1.msra.mxu0 0.0
    %5114 = vmatprep.subr.mxu0 0.0
    %5115 = vmatpush1.msra.mxu0 0.0
    %5116 = vmatprep.subr.mxu0 0.0
    %5117 = vmatpush1.msra.mxu0 0.0
    %5118 = vmatprep.subr.mxu0 0.0
    %5119 = vmatpush1.msra.mxu0 0.0
    %5120 = vmatprep.subr.mxu0 0.0
    %5121 = vmatpush1.msra.mxu0 0.0
    %5122 = vmatprep.subr.mxu0 0.0
    %5123 = vmatpush1.msra.mxu0 0.0
    %5124 = vmatprep.subr.mxu0 0.0
    %5125 = vmatpush1.msra.mxu0 0.0
    %5126 = vmatprep.subr.mxu0 0.0
    %5127 = vmatpush1.msra.mxu0 0.0
    %5128 = vmatprep.subr.mxu0 0.0
    %5129 = vmatpush1.msra.mxu0 0.0
    %5130 = vmatprep.subr.mxu0 0.0
    %5131 = vmatpush1.msra.mxu0 0.0
    %5132 = vmatprep.subr.mxu0 0.0
    %5133 = vmatpush1.msra.mxu0 0.0
    %5134 = vmatprep.subr.mxu0 0.0
    %5135 = vmatpush1.msra.mxu0 0.0
    %5136 = vmatprep.subr.mxu0 0.0
    %5137 = vmatpush1.msra.mxu0 0.0
    %5138 = vmatprep.subr.mxu0 0.0
    %5139 = vmatpush1.msra.mxu0 0.0
    %5140 = vmatprep.subr.mxu0 0.0
    %5141 = vmatpush1.msra.mxu0 0.0
    %5142 = vmatprep.subr.mxu0 0.0
    %5143 = vmatpush1.msra.mxu0 0.0
    %5144 = vmatprep.subr.mxu0 0.0
    %5145 = vmatpush1.msra.mxu0 0.0
    %5146 = vmatprep.subr.mxu0 0.0
    %5147 = vmatpush1.msra.mxu0 0.0
    %5148 = vmatprep.subr.mxu0 0.0
    %5149 = vmatpush1.msra.mxu0 0.0
    %5150 = vmatprep.subr.mxu0 0.0
    %5151 = vmatpush1.msra.mxu0 0.0
    %5152 = vmatprep.subr.mxu0 0.0
    %5153 = vmatpush1.msra.mxu0 0.0
    %5154 = vmatprep.mubr.f32.mxu0 0.0
    %5155 = vmatmul.mubr.f32.gmra.mrb[0].mxu0 %v5088
    %v5156 = vpop.f32.mrb[0].mxu0
    %v5157 = vadd.f32 0.0, %v5156
    %v5158 = vpop.f32.mrb[0].mxu0
    %5159 = vdwg.mxu0
    %v5160 = vld [vmem:[#allocation4 + $0x700] sm:$0xff]
    %v5161 = vld [vmem:[#allocation4 + $0x708] sm:$0xff]
    %v5162 = vld [vmem:[#allocation4 + $0x710] sm:$0xff]
    %v5163 = vld [vmem:[#allocation4 + $0x718] sm:$0xff]
    %v5164 = vld [vmem:[#allocation4 + $0x720] sm:$0xff]
    %v5165 = vld [vmem:[#allocation4 + $0x728] sm:$0xff]
    %v5166 = vld [vmem:[#allocation4 + $0x730] sm:$0xff]
    %v5167 = vld [vmem:[#allocation4 + $0x738] sm:$0xff]
    %v5168 = vld [vmem:[#allocation4 + $0x740] sm:$0xff]
    %v5169 = vld [vmem:[#allocation4 + $0x748] sm:$0xff]
    %v5170 = vld [vmem:[#allocation4 + $0x750] sm:$0xff]
    %v5171 = vld [vmem:[#allocation4 + $0x758] sm:$0xff]
    %v5172 = vld [vmem:[#allocation4 + $0x760] sm:$0xff]
    %v5173 = vld [vmem:[#allocation4 + $0x768] sm:$0xff]
    %v5174 = vld [vmem:[#allocation4 + $0x770] sm:$0xff]
    %v5175 = vld [vmem:[#allocation4 + $0x778] sm:$0xff]
    %v5176 = vld [vmem:[#allocation4 + $0x780] sm:$0xff]
    %v5177 = vld [vmem:[#allocation4 + $0x788] sm:$0xff]
    %v5178 = vld [vmem:[#allocation4 + $0x790] sm:$0xff]
    %v5179 = vld [vmem:[#allocation4 + $0x798] sm:$0xff]
    %v5180 = vld [vmem:[#allocation4 + $0x7a0] sm:$0xff]
    %v5181 = vld [vmem:[#allocation4 + $0x7a8] sm:$0xff]
    %v5182 = vld [vmem:[#allocation4 + $0x7b0] sm:$0xff]
    %v5183 = vld [vmem:[#allocation4 + $0x7b8] sm:$0xff]
    %v5184 = vld [vmem:[#allocation4 + $0x7c0] sm:$0xff]
    %v5185 = vld [vmem:[#allocation4 + $0x7c8] sm:$0xff]
    %v5186 = vld [vmem:[#allocation4 + $0x7d0] sm:$0xff]
    %v5187 = vld [vmem:[#allocation4 + $0x7d8] sm:$0xff]
    %v5188 = vld [vmem:[#allocation4 + $0x7e0] sm:$0xff]
    %v5189 = vld [vmem:[#allocation4 + $0x7e8] sm:$0xff]
    %v5190 = vld [vmem:[#allocation4 + $0x7f0] sm:$0xff]
    %v5191 = vld [vmem:[#allocation4 + $0x7f8] sm:$0xff]
    %5192 = vmatprep.subr.mxu0 %v5161
    %5193 = vmatpush1.msra.mxu0 %v5160
    %5194 = vmatprep.subr.mxu0 %v5163
    %5195 = vmatpush1.msra.mxu0 %v5162
    %5196 = vmatprep.subr.mxu0 %v5165
    %5197 = vmatpush1.msra.mxu0 %v5164
    %5198 = vmatprep.subr.mxu0 %v5167
    %5199 = vmatpush1.msra.mxu0 %v5166
    %5200 = vmatprep.subr.mxu0 %v5169
    %5201 = vmatpush1.msra.mxu0 %v5168
    %5202 = vmatprep.subr.mxu0 %v5171
    %5203 = vmatpush1.msra.mxu0 %v5170
    %5204 = vmatprep.subr.mxu0 %v5173
    %5205 = vmatpush1.msra.mxu0 %v5172
    %5206 = vmatprep.subr.mxu0 %v5175
    %5207 = vmatpush1.msra.mxu0 %v5174
    %5208 = vmatprep.subr.mxu0 %v5177
    %5209 = vmatpush1.msra.mxu0 %v5176
    %5210 = vmatprep.subr.mxu0 %v5179
    %5211 = vmatpush1.msra.mxu0 %v5178
    %5212 = vmatprep.subr.mxu0 %v5181
    %5213 = vmatpush1.msra.mxu0 %v5180
    %5214 = vmatprep.subr.mxu0 %v5183
    %5215 = vmatpush1.msra.mxu0 %v5182
    %5216 = vmatprep.subr.mxu0 %v5185
    %5217 = vmatpush1.msra.mxu0 %v5184
    %5218 = vmatprep.subr.mxu0 %v5187
    %5219 = vmatpush1.msra.mxu0 %v5186
    %5220 = vmatprep.subr.mxu0 %v5189
    %5221 = vmatpush1.msra.mxu0 %v5188
    %5222 = vmatprep.subr.mxu0 %v5191
    %5223 = vmatpush1.msra.mxu0 %v5190
    %5224 = vmatprep.subr.mxu0 0.0
    %5225 = vmatpush1.msra.mxu0 0.0
    %5226 = vmatprep.subr.mxu0 0.0
    %5227 = vmatpush1.msra.mxu0 0.0
    %5228 = vmatprep.subr.mxu0 0.0
    %5229 = vmatpush1.msra.mxu0 0.0
    %5230 = vmatprep.subr.mxu0 0.0
    %5231 = vmatpush1.msra.mxu0 0.0
    %5232 = vmatprep.subr.mxu0 0.0
    %5233 = vmatpush1.msra.mxu0 0.0
    %5234 = vmatprep.subr.mxu0 0.0
    %5235 = vmatpush1.msra.mxu0 0.0
    %5236 = vmatprep.subr.mxu0 0.0
    %5237 = vmatpush1.msra.mxu0 0.0
    %5238 = vmatprep.subr.mxu0 0.0
    %5239 = vmatpush1.msra.mxu0 0.0
    %5240 = vmatprep.subr.mxu0 0.0
    %5241 = vmatpush1.msra.mxu0 0.0
    %5242 = vmatprep.subr.mxu0 0.0
    %5243 = vmatpush1.msra.mxu0 0.0
    %5244 = vmatprep.subr.mxu0 0.0
    %5245 = vmatpush1.msra.mxu0 0.0
    %5246 = vmatprep.subr.mxu0 0.0
    %5247 = vmatpush1.msra.mxu0 0.0
    %5248 = vmatprep.subr.mxu0 0.0
    %5249 = vmatpush1.msra.mxu0 0.0
    %5250 = vmatprep.subr.mxu0 0.0
    %5251 = vmatpush1.msra.mxu0 0.0
    %5252 = vmatprep.subr.mxu0 0.0
    %5253 = vmatpush1.msra.mxu0 0.0
    %5254 = vmatprep.subr.mxu0 0.0
    %5255 = vmatpush1.msra.mxu0 0.0
    %5256 = vmatprep.mubr.f32.mxu0 0.0
    %5257 = vmatmul.mubr.f32.gmra.mrb[0].mxu0 %v5157
    %v5258 = vpop.f32.mrb[0].mxu0
    %v5259 = vadd.f32 0.0, %v5258
    %v5260 = vpop.f32.mrb[0].mxu0
    %v5261 = vadd.f32 0.0, %v5260
    %5262 = vdwg.mxu0
    %v5263 = vadd.f32 %v5083, %v5259
    %v5264 = vadd.f32 %v5084, %v5261
    %s5265 = scalar_lea.vmem %s13, 64
    %v5266 = vld [vmem:[%s5265] sm:$0xff]
    %v5268 = vsel %vm3830, %v5266, 0
    %5270 = vmatprep.subr.mxu0 0.0
    %5271 = vmatpush1.msra.mxu0 %v3828
    %5272 = vmatprep.subr.mxu0 0.0
    %5273 = vmatpush1.msra.mxu0 0.0
    %5274 = vmatprep.subr.mxu0 0.0
    %5275 = vmatpush1.msra.mxu0 0.0
    %5276 = vmatprep.subr.mxu0 0.0
    %5277 = vmatpush1.msra.mxu0 0.0
    %5278 = vmatprep.subr.mxu0 0.0
    %5279 = vmatpush1.msra.mxu0 0.0
    %5280 = vmatprep.subr.mxu0 0.0
    %5281 = vmatpush1.msra.mxu0 0.0
    %5282 = vmatprep.subr.mxu0 0.0
    %5283 = vmatpush1.msra.mxu0 0.0
    %5284 = vmatprep.subr.mxu0 0.0
    %5285 = vmatpush1.msra.mxu0 0.0
    %5286 = vmatprep.subr.mxu0 0.0
    %5287 = vmatpush1.msra.mxu0 0.0
    %5288 = vmatprep.subr.mxu0 0.0
    %5289 = vmatpush1.msra.mxu0 0.0
    %5290 = vmatprep.subr.mxu0 0.0
    %5291 = vmatpush1.msra.mxu0 0.0
    %5292 = vmatprep.subr.mxu0 0.0
    %5293 = vmatpush1.msra.mxu0 0.0
    %5294 = vmatprep.subr.mxu0 0.0
    %5295 = vmatpush1.msra.mxu0 0.0
    %5296 = vmatprep.subr.mxu0 0.0
    %5297 = vmatpush1.msra.mxu0 0.0
    %5298 = vmatprep.subr.mxu0 0.0
    %5299 = vmatpush1.msra.mxu0 0.0
    %5300 = vmatprep.subr.mxu0 0.0
    %5301 = vmatpush1.msra.mxu0 0.0
    %5302 = vmatprep.subr.mxu0 0.0
    %5303 = vmatpush1.msra.mxu0 0.0
    %5304 = vmatprep.subr.mxu0 0.0
    %5305 = vmatpush1.msra.mxu0 0.0
    %5306 = vmatprep.subr.mxu0 0.0
    %5307 = vmatpush1.msra.mxu0 0.0
    %5308 = vmatprep.subr.mxu0 0.0
    %5309 = vmatpush1.msra.mxu0 0.0
    %5310 = vmatprep.subr.mxu0 0.0
    %5311 = vmatpush1.msra.mxu0 0.0
    %5312 = vmatprep.subr.mxu0 0.0
    %5313 = vmatpush1.msra.mxu0 0.0
    %5314 = vmatprep.subr.mxu0 0.0
    %5315 = vmatpush1.msra.mxu0 0.0
    %5316 = vmatprep.subr.mxu0 0.0
    %5317 = vmatpush1.msra.mxu0 0.0
    %5318 = vmatprep.subr.mxu0 0.0
    %5319 = vmatpush1.msra.mxu0 0.0
    %5320 = vmatprep.subr.mxu0 0.0
    %5321 = vmatpush1.msra.mxu0 0.0
    %5322 = vmatprep.subr.mxu0 0.0
    %5323 = vmatpush1.msra.mxu0 0.0
    %5324 = vmatprep.subr.mxu0 0.0
    %5325 = vmatpush1.msra.mxu0 0.0
    %5326 = vmatprep.subr.mxu0 0.0
    %5327 = vmatpush1.msra.mxu0 0.0
    %5328 = vmatprep.subr.mxu0 0.0
    %5329 = vmatpush1.msra.mxu0 0.0
    %5330 = vmatprep.subr.mxu0 0.0
    %5331 = vmatpush1.msra.mxu0 0.0
    %5332 = vmatprep.subr.mxu0 0.0
    %5333 = vmatpush1.msra.mxu0 0.0
    %5334 = vmatprep.mubr.f32.mxu0 0.0
    %5335 = vmatmul.mubr.f32.gmra.mrb[0].mxu0 %v5268
    %v5336 = vpop.f32.mrb[0].mxu0
    %v5337 = vadd.f32 0.0, %v5336
    %v5338 = vpop.f32.mrb[0].mxu0
    %5339 = vdwg.mxu0
    %v5340 = vld [vmem:[#allocation4 + $0x800] sm:$0xff]
    %v5341 = vld [vmem:[#allocation4 + $0x808] sm:$0xff]
    %v5342 = vld [vmem:[#allocation4 + $0x810] sm:$0xff]
    %v5343 = vld [vmem:[#allocation4 + $0x818] sm:$0xff]
    %v5344 = vld [vmem:[#allocation4 + $0x820] sm:$0xff]
    %v5345 = vld [vmem:[#allocation4 + $0x828] sm:$0xff]
    %v5346 = vld [vmem:[#allocation4 + $0x830] sm:$0xff]
    %v5347 = vld [vmem:[#allocation4 + $0x838] sm:$0xff]
    %v5348 = vld [vmem:[#allocation4 + $0x840] sm:$0xff]
    %v5349 = vld [vmem:[#allocation4 + $0x848] sm:$0xff]
    %v5350 = vld [vmem:[#allocation4 + $0x850] sm:$0xff]
    %v5351 = vld [vmem:[#allocation4 + $0x858] sm:$0xff]
    %v5352 = vld [vmem:[#allocation4 + $0x860] sm:$0xff]
    %v5353 = vld [vmem:[#allocation4 + $0x868] sm:$0xff]
    %v5354 = vld [vmem:[#allocation4 + $0x870] sm:$0xff]
    %v5355 = vld [vmem:[#allocation4 + $0x878] sm:$0xff]
    %v5356 = vld [vmem:[#allocation4 + $0x880] sm:$0xff]
    %v5357 = vld [vmem:[#allocation4 + $0x888] sm:$0xff]
    %v5358 = vld [vmem:[#allocation4 + $0x890] sm:$0xff]
    %v5359 = vld [vmem:[#allocation4 + $0x898] sm:$0xff]
    %v5360 = vld [vmem:[#allocation4 + $0x8a0] sm:$0xff]
    %v5361 = vld [vmem:[#allocation4 + $0x8a8] sm:$0xff]
    %v5362 = vld [vmem:[#allocation4 + $0x8b0] sm:$0xff]
    %v5363 = vld [vmem:[#allocation4 + $0x8b8] sm:$0xff]
    %v5364 = vld [vmem:[#allocation4 + $0x8c0] sm:$0xff]
    %v5365 = vld [vmem:[#allocation4 + $0x8c8] sm:$0xff]
    %v5366 = vld [vmem:[#allocation4 + $0x8d0] sm:$0xff]
    %v5367 = vld [vmem:[#allocation4 + $0x8d8] sm:$0xff]
    %v5368 = vld [vmem:[#allocation4 + $0x8e0] sm:$0xff]
    %v5369 = vld [vmem:[#allocation4 + $0x8e8] sm:$0xff]
    %v5370 = vld [vmem:[#allocation4 + $0x8f0] sm:$0xff]
    %v5371 = vld [vmem:[#allocation4 + $0x8f8] sm:$0xff]
    %5372 = vmatprep.subr.mxu0 %v5341
    %5373 = vmatpush1.msra.mxu0 %v5340
    %5374 = vmatprep.subr.mxu0 %v5343
    %5375 = vmatpush1.msra.mxu0 %v5342
    %5376 = vmatprep.subr.mxu0 %v5345
    %5377 = vmatpush1.msra.mxu0 %v5344
    %5378 = vmatprep.subr.mxu0 %v5347
    %5379 = vmatpush1.msra.mxu0 %v5346
    %5380 = vmatprep.subr.mxu0 %v5349
    %5381 = vmatpush1.msra.mxu0 %v5348
    %5382 = vmatprep.subr.mxu0 %v5351
    %5383 = vmatpush1.msra.mxu0 %v5350
    %5384 = vmatprep.subr.mxu0 %v5353
    %5385 = vmatpush1.msra.mxu0 %v5352
    %5386 = vmatprep.subr.mxu0 %v5355
    %5387 = vmatpush1.msra.mxu0 %v5354
    %5388 = vmatprep.subr.mxu0 %v5357
    %5389 = vmatpush1.msra.mxu0 %v5356
    %5390 = vmatprep.subr.mxu0 %v5359
    %5391 = vmatpush1.msra.mxu0 %v5358
    %5392 = vmatprep.subr.mxu0 %v5361
    %5393 = vmatpush1.msra.mxu0 %v5360
    %5394 = vmatprep.subr.mxu0 %v5363
    %5395 = vmatpush1.msra.mxu0 %v5362
    %5396 = vmatprep.subr.mxu0 %v5365
    %5397 = vmatpush1.msra.mxu0 %v5364
    %5398 = vmatprep.subr.mxu0 %v5367
    %5399 = vmatpush1.msra.mxu0 %v5366
    %5400 = vmatprep.subr.mxu0 %v5369
    %5401 = vmatpush1.msra.mxu0 %v5368
    %5402 = vmatprep.subr.mxu0 %v5371
    %5403 = vmatpush1.msra.mxu0 %v5370
    %5404 = vmatprep.subr.mxu0 0.0
    %5405 = vmatpush1.msra.mxu0 0.0
    %5406 = vmatprep.subr.mxu0 0.0
    %5407 = vmatpush1.msra.mxu0 0.0
    %5408 = vmatprep.subr.mxu0 0.0
    %5409 = vmatpush1.msra.mxu0 0.0
    %5410 = vmatprep.subr.mxu0 0.0
    %5411 = vmatpush1.msra.mxu0 0.0
    %5412 = vmatprep.subr.mxu0 0.0
    %5413 = vmatpush1.msra.mxu0 0.0
    %5414 = vmatprep.subr.mxu0 0.0
    %5415 = vmatpush1.msra.mxu0 0.0
    %5416 = vmatprep.subr.mxu0 0.0
    %5417 = vmatpush1.msra.mxu0 0.0
    %5418 = vmatprep.subr.mxu0 0.0
    %5419 = vmatpush1.msra.mxu0 0.0
    %5420 = vmatprep.subr.mxu0 0.0
    %5421 = vmatpush1.msra.mxu0 0.0
    %5422 = vmatprep.subr.mxu0 0.0
    %5423 = vmatpush1.msra.mxu0 0.0
    %5424 = vmatprep.subr.mxu0 0.0
    %5425 = vmatpush1.msra.mxu0 0.0
    %5426 = vmatprep.subr.mxu0 0.0
    %5427 = vmatpush1.msra.mxu0 0.0
    %5428 = vmatprep.subr.mxu0 0.0
    %5429 = vmatpush1.msra.mxu0 0.0
    %5430 = vmatprep.subr.mxu0 0.0
    %5431 = vmatpush1.msra.mxu0 0.0
    %5432 = vmatprep.subr.mxu0 0.0
    %5433 = vmatpush1.msra.mxu0 0.0
    %5434 = vmatprep.subr.mxu0 0.0
    %5435 = vmatpush1.msra.mxu0 0.0
    %5436 = vmatprep.mubr.f32.mxu0 0.0
    %5437 = vmatmul.mubr.f32.gmra.mrb[0].mxu0 %v5337
    %v5438 = vpop.f32.mrb[0].mxu0
    %v5439 = vadd.f32 0.0, %v5438
    %v5440 = vpop.f32.mrb[0].mxu0
    %v5441 = vadd.f32 0.0, %v5440
    %5442 = vdwg.mxu0
    %v5443 = vadd.f32 %v5263, %v5439
    %v5444 = vadd.f32 %v5264, %v5441
    %v5445 = vrot.slane %v5443, 4
    %v5446 = vadd.f32 %v5443, %v5445
    %v5447 = vrot.slane %v5446, 2
    %v5448 = vadd.f32 %v5446, %v5447
    %v5449 = vrot.slane %v5448, 1
    %v5450 = vadd.f32 %v5448, %v5449
    %v5451 = vrot.slane %v5444, 4
    %v5452 = vadd.f32 %v5444, %v5451
    %v5453 = vrot.slane %v5452, 2
    %v5454 = vadd.f32 %v5452, %v5453
    %v5455 = vrot.slane %v5454, 1
    %v5456 = vadd.f32 %v5454, %v5455
    %v5457 = vmul.f32 %v5450, 0.125
    %v5458 = vmul.f32 %v5456, 0.125
    %v5459 = vmul.f32 %v5443, %v5443
    %v5460 = vmul.f32 %v5444, %v5444
    %v5461 = vrot.slane %v5459, 4
    %v5462 = vadd.f32 %v5459, %v5461
    %v5463 = vrot.slane %v5462, 2
    %v5464 = vadd.f32 %v5462, %v5463
    %v5465 = vrot.slane %v5464, 1
    %v5466 = vadd.f32 %v5464, %v5465
    %v5467 = vrot.slane %v5460, 4
    %v5468 = vadd.f32 %v5460, %v5467
    %v5469 = vrot.slane %v5468, 2
    %v5470 = vadd.f32 %v5468, %v5469
    %v5471 = vrot.slane %v5470, 1
    %v5472 = vadd.f32 %v5470, %v5471
    %v5473 = vmul.f32 %v5466, 0.125
    %v5474 = vmul.f32 %v5472, 0.125
    %v5475 = vmul.f32 %v5457, %v5457
    %v5476 = vmul.f32 %v5458, %v5458
    %v5477 = vsub.f32 %v5473, %v5475
    %v5478 = vsub.f32 %v5474, %v5476
    %v5479 = vmax.f32 %v5477, 0.0
    %v5480 = vmax.f32 %v5478, 0.0
    %v5481 = vld [vmem:[#allocation10] ss:$2 sm:$0x3]
    %v5482 = vadd.f32 %v5479, 1e-05
    %v5483 = vadd.f32 %v5480, 1e-05
    %v5484 = vrsqrt.pop %v5482
    %v5485 = vrsqrt.pop %v5483
    %v5488 = vcombine.low %v5484, %v5485
    %v5490 = vunpack.c.l.s4 1966171168
    %v5491 = vunpack.c.0.s8 %v5490
    %v5492 = vlaneseq
    %v5493 = vshrl.u32 %v5492, 7
    %v5494 = vsub.s32 %v5491, %v5493
    %v5495 = vrot.slane %v5488, %v5494
    %v5497 = vunpack.c.l.s4 1966171168
    %v5498 = vunpack.c.0.s8 %v5497
    %v5499 = vlaneseq
    %v5500 = vshrl.u32 %v5499, 7
    %v5501 = vsub.s32 %v5498, %v5500
    %v5502 = vrot.slane %v5495, %v5501
    %v5504 = vmul.f32 %v5481, %v5502
    %s5505 = scalar_lea.vmem [#allocation10], 1
    %v5506 = vld [vmem:[%s5505] ss:$2 sm:$0x3]
    %v5508 = vlaneseq
    %v5509 = vshrl.u32 %v5508, 7
    %v5510 = vsub.s32 0, %v5509
    %v5511 = vrot.slane %v5504, %v5510
    %v5512 = vlaneseq
    %v5513 = vshrl.u32 %v5512, 7
    %v5514 = vsub.s32 1, %v5513
    %v5515 = vrot.slane %v5504, %v5514
    %v5518 = vmul.f32 %v5457, %v5511
    %v5519 = vmul.f32 %v5458, %v5515
    %v5522 = vcombine.low %v5518, %v5519
    %v5524 = vunpack.c.l.s4 1966171168
    %v5525 = vunpack.c.0.s8 %v5524
    %v5526 = vlaneseq
    %v5527 = vshrl.u32 %v5526, 7
    %v5528 = vsub.s32 %v5525, %v5527
    %v5529 = vrot.slane %v5522, %v5528
    %v5531 = vunpack.c.l.s4 1966171168
    %v5532 = vunpack.c.0.s8 %v5531
    %v5533 = vlaneseq
    %v5534 = vshrl.u32 %v5533, 7
    %v5535 = vsub.s32 %v5532, %v5534
    %v5536 = vrot.slane %v5529, %v5535
    %v5538 = vsub.f32 %v5506, %v5536
    %v5539 = vmul.f32 %v5443, %v5511
    %v5540 = vmul.f32 %v5444, %v5515
    %v5542 = vlaneseq
    %v5543 = vshrl.u32 %v5542, 7
    %v5544 = vsub.s32 0, %v5543
    %v5545 = vrot.slane %v5538, %v5544
    %v5546 = vlaneseq
    %v5547 = vshrl.u32 %v5546, 7
    %v5548 = vsub.s32 1, %v5547
    %v5549 = vrot.slane %v5538, %v5548
    %v5552 = vadd.f32 %v5539, %v5545
    %v5553 = vadd.f32 %v5540, %v5549
    %vm5554 = vcmp.ge.f32.partialorder %v5552, 0.0
    %vm5555 = vcmp.ge.f32.partialorder %v5553, 0.0
    %v5556 = vmul.f32 %v5552, 0.01
    %v5557 = vmul.f32 %v5553, 0.01
    %v5558 = vsel %vm5554, %v5552, %v5556
    %v5559 = vsel %vm5555, %v5553, %v5557
    %v5560 = vld [vmem:[%s5] sm:$0xff]
    %v5561 = vld [vmem:[%s5 + $0x8] sm:$0xff]
    %v5562 = vld [vmem:[%s5 + $0x10] sm:$0xff]
    %v5563 = vld [vmem:[%s5 + $0x18] sm:$0xff]
    %v5564 = vld [vmem:[%s5 + $0x20] sm:$0xff]
    %v5565 = vld [vmem:[%s5 + $0x28] sm:$0xff]
    %v5566 = vld [vmem:[%s5 + $0x30] sm:$0xff]
    %v5567 = vld [vmem:[%s5 + $0x38] sm:$0xff]
    %v5568 = vld [vmem:[%s5 + $0x40] sm:$0xff]
    %v5569 = vld [vmem:[%s5 + $0x48] sm:$0xff]
    %v5570 = vld [vmem:[%s5 + $0x50] sm:$0xff]
    %v5571 = vld [vmem:[%s5 + $0x58] sm:$0xff]
    %v5572 = vld [vmem:[%s5 + $0x60] sm:$0xff]
    %v5573 = vld [vmem:[%s5 + $0x68] sm:$0xff]
    %v5574 = vld [vmem:[%s5 + $0x70] sm:$0xff]
    %v5575 = vld [vmem:[%s5 + $0x78] sm:$0xff]
    %v5576 = vld [vmem:[%s5 + $0x80] sm:$0xff]
    %v5577 = vld [vmem:[%s5 + $0x88] sm:$0xff]
    %v5578 = vld [vmem:[%s5 + $0x90] sm:$0xff]
    %v5579 = vld [vmem:[%s5 + $0x98] sm:$0xff]
    %v5580 = vld [vmem:[%s5 + $0xa0] sm:$0xff]
    %v5581 = vld [vmem:[%s5 + $0xa8] sm:$0xff]
    %v5582 = vld [vmem:[%s5 + $0xb0] sm:$0xff]
    %v5583 = vld [vmem:[%s5 + $0xb8] sm:$0xff]
    %v5584 = vld [vmem:[%s5 + $0xc0] sm:$0xff]
    %v5585 = vld [vmem:[%s5 + $0xc8] sm:$0xff]
    %v5586 = vld [vmem:[%s5 + $0xd0] sm:$0xff]
    %v5587 = vld [vmem:[%s5 + $0xd8] sm:$0xff]
    %v5588 = vld [vmem:[%s5 + $0xe0] sm:$0xff]
    %v5589 = vld [vmem:[%s5 + $0xe8] sm:$0xff]
    %v5590 = vld [vmem:[%s5 + $0xf0] sm:$0xff]
    %v5591 = vld [vmem:[%s5 + $0xf8] sm:$0xff]
    %5592 = vmatprep.subr.mxu0 0.0
    %5593 = vmatpush1.msra.mxu0 %v5560
    %5594 = vmatprep.subr.mxu0 0.0
    %5595 = vmatpush1.msra.mxu0 %v5561
    %5596 = vmatprep.subr.mxu0 0.0
    %5597 = vmatpush1.msra.mxu0 %v5562
    %5598 = vmatprep.subr.mxu0 0.0
    %5599 = vmatpush1.msra.mxu0 %v5563
    %5600 = vmatprep.subr.mxu0 0.0
    %5601 = vmatpush1.msra.mxu0 %v5564
    %5602 = vmatprep.subr.mxu0 0.0
    %5603 = vmatpush1.msra.mxu0 %v5565
    %5604 = vmatprep.subr.mxu0 0.0
    %5605 = vmatpush1.msra.mxu0 %v5566
    %5606 = vmatprep.subr.mxu0 0.0
    %5607 = vmatpush1.msra.mxu0 %v5567
    %5608 = vmatprep.subr.mxu0 0.0
    %5609 = vmatpush1.msra.mxu0 %v5568
    %5610 = vmatprep.subr.mxu0 0.0
    %5611 = vmatpush1.msra.mxu0 %v5569
    %5612 = vmatprep.subr.mxu0 0.0
    %5613 = vmatpush1.msra.mxu0 %v5570
    %5614 = vmatprep.subr.mxu0 0.0
    %5615 = vmatpush1.msra.mxu0 %v5571
    %5616 = vmatprep.subr.mxu0 0.0
    %5617 = vmatpush1.msra.mxu0 %v5572
    %5618 = vmatprep.subr.mxu0 0.0
    %5619 = vmatpush1.msra.mxu0 %v5573
    %5620 = vmatprep.subr.mxu0 0.0
    %5621 = vmatpush1.msra.mxu0 %v5574
    %5622 = vmatprep.subr.mxu0 0.0
    %5623 = vmatpush1.msra.mxu0 %v5575
    %5624 = vmatprep.subr.mxu0 0.0
    %5625 = vmatpush1.msra.mxu0 %v5576
    %5626 = vmatprep.subr.mxu0 0.0
    %5627 = vmatpush1.msra.mxu0 %v5577
    %5628 = vmatprep.subr.mxu0 0.0
    %5629 = vmatpush1.msra.mxu0 %v5578
    %5630 = vmatprep.subr.mxu0 0.0
    %5631 = vmatpush1.msra.mxu0 %v5579
    %5632 = vmatprep.subr.mxu0 0.0
    %5633 = vmatpush1.msra.mxu0 %v5580
    %5634 = vmatprep.subr.mxu0 0.0
    %5635 = vmatpush1.msra.mxu0 %v5581
    %5636 = vmatprep.subr.mxu0 0.0
    %5637 = vmatpush1.msra.mxu0 %v5582
    %5638 = vmatprep.subr.mxu0 0.0
    %5639 = vmatpush1.msra.mxu0 %v5583
    %5640 = vmatprep.subr.mxu0 0.0
    %5641 = vmatpush1.msra.mxu0 %v5584
    %5642 = vmatprep.subr.mxu0 0.0
    %5643 = vmatpush1.msra.mxu0 %v5585
    %5644 = vmatprep.subr.mxu0 0.0
    %5645 = vmatpush1.msra.mxu0 %v5586
    %5646 = vmatprep.subr.mxu0 0.0
    %5647 = vmatpush1.msra.mxu0 %v5587
    %5648 = vmatprep.subr.mxu0 0.0
    %5649 = vmatpush1.msra.mxu0 %v5588
    %5650 = vmatprep.subr.mxu0 0.0
    %5651 = vmatpush1.msra.mxu0 %v5589
    %5652 = vmatprep.subr.mxu0 0.0
    %5653 = vmatpush1.msra.mxu0 %v5590
    %5654 = vmatprep.subr.mxu0 0.0
    %5655 = vmatpush1.msra.mxu0 %v5591
    %5656 = vmatprep.mubr.f32.mxu0 %v5559
    %5657 = vmatmul.mubr.f32.gmra.mrb[0].mxu0 %v5558
    %v5658 = vpop.f32.mrb[0].mxu0
    %v5659 = vadd.f32 0.0, %v5658
    %v5660 = vpop.f32.mrb[0].mxu0
    %5661 = vdwg.mxu0
    %vm5662 = vcmask 7168
    %v5663 = vsel %vm5662, %v5659, 0.0
    %v5664 = vrot.slane %v5663, 4
    %v5665 = vadd.f32 %v5663, %v5664
    %v5666 = vrot.slane %v5665, 2
    %v5667 = vadd.f32 %v5665, %v5666
    %v5668 = vrot.slane %v5667, 1
    %v5669 = vadd.f32 %v5667, %v5668
    %v5670 = vmul.f32 %v5669, 0.125
    %v5671 = vmul.f32 %v5659, %v5659
    %v5672 = vsel %vm5662, %v5671, 0.0
    %v5673 = vrot.slane %v5672, 4
    %v5674 = vadd.f32 %v5672, %v5673
    %v5675 = vrot.slane %v5674, 2
    %v5676 = vadd.f32 %v5674, %v5675
    %v5677 = vrot.slane %v5676, 1
    %v5678 = vadd.f32 %v5676, %v5677
    %v5679 = vmul.f32 %v5678, 0.125
    %v5680 = vmul.f32 %v5670, %v5670
    %v5681 = vsub.f32 %v5679, %v5680
    %v5682 = vmax.f32 %v5681, 0.0
    %v5683 = vld [vmem:[%s10] sm:$0x1]
    %v5684 = vadd.f32 %v5682, 1e-05
    %v5685 = vrsqrt.pop %v5684
    %v5686 = vmul.f32 %v5683, %v5685
    %v5687 = vld [vmem:[%s10 + $0x1] sm:$0x1]
    %v5688 = vmul.f32 %v5670, %v5686
    %v5689 = vsub.f32 %v5687, %v5688
    %v5690 = vlaneseq
    %v5691 = vshrl.u32 %v5690, 7
    %v5692 = vsub.s32 0, %v5691
    %v5693 = vrot.slane %v5686, %v5692
    %v5694 = vmul.f32 %v5659, %v5693
    %v5695 = vlaneseq
    %v5696 = vshrl.u32 %v5695, 7
    %v5697 = vsub.s32 0, %v5696
    %v5698 = vrot.slane %v5689, %v5697
    %v5699 = vadd.f32 %v5694, %v5698
    %v5700 = vxor.u32 %v5699, 2147483648
    %v5701 = vmul.f32 %v5700, 1.442695
    %v5702 = vpow.pop %v5701
    %v5703 = vadd.f32 %v5702, 1.0
    %v5704 = vrcp.pop %v5703
    %v5705 = vmul.f32 1.0, %v5704
    %5706 = vst.msk [vmem:[%s14] sm:$0xff] %vm5662, %v5705
    // Predicated region
    $region90: #{tpu_custom_call.1} parent=1 // pred_check
      _
    $region91: #{tpu_custom_call.1} parent=1 // pred_check_branch
      %5708 = sbr.rel (0) target = $region93
    $region92: #{tpu_custom_call.1} parent=1 // pred_region
      _
    $region93: #{tpu_custom_call.1} parent=1 // pred_fallthru
      _
    // Predicated region
    $region94: #{tpu_custom_call.1} parent=1 // pred_check
      _
    $region95: #{tpu_custom_call.1} parent=1 // pred_check_branch
      %5710 = sbr.rel (0) target = $region97
    $region96: #{tpu_custom_call.1} parent=1 // pred_region
      _
    $region97: #{tpu_custom_call.1} parent=1 // pred_fallthru
      _
    %5711 = vsyncpa [#allocation3], 1
    %5712 = vsyncpa [#allocation5], 1
    %5713 = vsyncpa [#allocation8], 1
    %5714 = vsyncpa [#allocation11], 1
    %5715 = vsyncpa [#allocation14], 1

</llo_original>
